<compile_context>
chip_gen: v6e
topology: v6e:2x2x1
jax: 0.10.0
libtpu: 0.0.40
codegen_flags: <defaults>
</compile_context>

<pallas_src>
import math

import numpy as np

import jax
import jax.numpy as jnp
from jax.experimental import pallas as pl
from jax.experimental.pallas import tpu as pltpu


ACT_DTYPE = jnp.bfloat16   # HBM dtype of activations / MXU-input weights.

# Tap offsets (dy, dx), matching the weight reshape (3, 3, Cin, Cout) -> (9, Cin, Cout).
_TAPS = tuple((ky - 1, kx - 1) for ky in range(3) for kx in range(3))


# ------------------------- fused conv3x3 + BN + ReLU (+ pool / head) -------------------------

def _make_conv_kernel(Hp, Wp, Cin, Cout, pool, head):
    """Conv3x3(stride=1, pad=1, no bias) + eval-BN + ReLU, with optional fused
    MaxPool2d(2,2) and/or the pad(7->8)+AvgPool(2,2)+AvgPool(4,4) head.

    Activations are in padded-flat layout: rows = zero-padded spatial positions
    flattened row-major; valid pixels are the interior.
    """
    HWp = Hp * Wp
    margin = Wp + 1                 # largest |tap shift|
    M0 = HWp - 2 * margin           # "core" rows: every interior position lives here
    H, W = Hp - 2, Wp - 2
    Ho, Wo = (H // 2, W // 2) if pool else (H, W)
    Hpo, Wpo = Ho + 2, Wo + 2       # padded spatial dims of the (non-head) output

    def kernel(x_ref, w_ref, scale_ref, shift_ref, mask_ref, o_ref, *scratch):
        idx = 0
        xs = scratch[idx]; idx += 1             # (HWp, Cin)  f32 copy of the input block
        if pool:
            ys = scratch[idx]; idx += 1         # (M0, Cout)  f32 conv result (for pooling)
        if not head:
            os_ = scratch[idx]; idx += 1        # (Hpo*Wpo, Cout) f32 output staging

        # One aligned full-block bf16 load, upcast once; all shifted/unaligned
        # accesses below touch only 32-bit VMEM scratch.
        xs[...] = x_ref[0].astype(jnp.float32)

        # conv: 9 shifted contiguous views of the single padded block, MXU-accumulated
        acc = None
        for t, (dy, dx) in enumerate(_TAPS):
            off = margin + dy * Wp + dx                       # static, >= 0
            tap = xs[pl.ds(off, M0), :].astype(ACT_DTYPE)     # (M0, Cin)
            p = jnp.dot(tap, w_ref[t], preferred_element_type=jnp.float32)
            acc = p if acc is None else acc + p

        # folded eval-mode BatchNorm + ReLU; zero every non-interior row
        y = jnp.maximum(acc * scale_ref[...] + shift_ref[...], 0.0) * mask_ref[...]

        if not pool:
            if head:
                # pad(7->8) + AvgPool(2,2) + AvgPool(4,4)  ==  sum over 7x7 / 64
                s = jnp.sum(y, axis=0, keepdims=True) * (1.0 / 64.0)
                o_ref[0] = s.astype(o_ref.dtype)
            else:
                # emit the next layer's padded-flat input (zero border)
                z = jnp.zeros((margin, Cout), jnp.float32)
                os_[pl.ds(0, margin), :] = z
                os_[pl.ds(HWp - margin, margin), :] = z
                os_[pl.ds(margin, M0), :] = y
                o_ref[0] = os_[...].astype(o_ref.dtype)
            return

        # ---- fused MaxPool2d(2, 2): stride-2 re-reads of the conv result ----
        ys[...] = y
        if head:
            hsum = None
        else:
            os_[...] = jnp.zeros((Hpo * Wpo, Cout), jnp.float32)
        for hh in range(Ho):
            # valid pixel (i, j) (1-based padded coords) sits at ys row (i-1)*Wp + (j-1)
            r0 = (2 * hh) * Wp
            r1 = (2 * hh + 1) * Wp
            tl = ys[pl.ds(r0, Wo, 2), :]
            tr = ys[pl.ds(r0 + 1, Wo, 2), :]
            bl = ys[pl.ds(r1, Wo, 2), :]
            br = ys[pl.ds(r1 + 1, Wo, 2), :]
            prow = jnp.maximum(jnp.maximum(tl, tr), jnp.maximum(bl, br))   # (Wo, Cout)
            if head:
                ps = jnp.sum(prow, axis=0, keepdims=True)
                hsum = ps if hsum is None else hsum + ps
            else:
                os_[pl.ds((hh + 1) * Wpo + 1, Wo), :] = prow
        if head:
            o_ref[0] = (hsum * (1.0 / 64.0)).astype(o_ref.dtype)
        else:
            o_ref[0] = os_[...].astype(o_ref.dtype)

    return kernel


def _interior_mask(Hp, Wp):
    """(M0, 1) f32 mask: 1.0 on interior (valid) positions of the core rows."""
    margin = Wp + 1
    M0 = Hp * Wp - 2 * margin
    p = np.arange(M0) + margin
    i, j = p // Wp, p % Wp
    m = ((i >= 1) & (i <= Hp - 2) & (j >= 1) & (j <= Wp - 2)).astype(np.float32)
    return jnp.asarray(m[:, None])


def conv_layer(x_flat, w9, scale, shift, mask, *, Hp, Wp, pool, head):
    """x_flat: (N, Hp*Wp, Cin) padded-flat activations (zero border)."""
    N, HWp, Cin = x_flat.shape
    assert HWp == Hp * Wp
    Cout = w9.shape[-1]
    margin = Wp + 1
    M0 = HWp - 2 * margin
    H, W = Hp - 2, Wp - 2
    Ho, Wo = (H // 2, W // 2) if pool else (H, W)
    Hpo, Wpo = Ho + 2, Wo + 2

    kernel = _make_conv_kernel(Hp, Wp, Cin, Cout, pool, head)

    if head:
        out_shape = jax.ShapeDtypeStruct((N, 1, Cout), ACT_DTYPE)
        out_spec = pl.BlockSpec((1, 1, Cout), lambda n: (n, 0, 0))
    else:
        out_shape = jax.ShapeDtypeStruct((N, Hpo * Wpo, Cout), ACT_DTYPE)
        out_spec = pl.BlockSpec((1, Hpo * Wpo, Cout), lambda n: (n, 0, 0))

    scratch = [pltpu.VMEM((HWp, Cin), jnp.float32)]
    if pool:
        scratch.append(pltpu.VMEM((M0, Cout), jnp.float32))
    if not head:
        scratch.append(pltpu.VMEM((Hpo * Wpo, Cout), jnp.float32))

    return pl.pallas_call(
        kernel,
        out_shape=out_shape,
        grid_spec=pltpu.PrefetchScalarGridSpec(
            num_scalar_prefetch=0,
            grid=(N,),
            in_specs=[
                pl.BlockSpec((1, HWp, Cin), lambda n: (n, 0, 0)),
                pl.BlockSpec((9, Cin, Cout), lambda n: (0, 0, 0)),
                pl.BlockSpec((1, Cout), lambda n: (0, 0)),
                pl.BlockSpec((1, Cout), lambda n: (0, 0)),
                pl.BlockSpec((M0, 1), lambda n: (0, 0)),
            ],
            out_specs=out_spec,
            scratch_shapes=scratch,
        ),
        compiler_params=pltpu.CompilerParams(
            dimension_semantics=("parallel",)),
    )(x_flat, w9, scale, shift, mask)


# -------------------------------- fused classifier MLP --------------------------------

def _mlp_kernel(x_ref, w1_ref, b1_ref, w2_ref, b2_ref, w3_ref, b3_ref, o_ref):
    # Dropout == identity in eval mode.
    h = jnp.dot(x_ref[...], w1_ref[...], preferred_element_type=jnp.float32) + b1_ref[...]
    h = jnp.maximum(h, 0.0).astype(ACT_DTYPE)
    h = jnp.dot(h, w2_ref[...], preferred_element_type=jnp.float32) + b2_ref[...]
    h = jnp.maximum(h, 0.0).astype(ACT_DTYPE)
    y = jnp.dot(h, w3_ref[...], preferred_element_type=jnp.float32) + b3_ref[...]
    o_ref[...] = y.astype(o_ref.dtype)


def classifier(x, fc1, fc2, fc3):
    w1, b1 = fc1
    w2, b2 = fc2
    w3, b3 = fc3
    N = x.shape[0]
    num_classes = w3.shape[1]
    return pl.pallas_call(
        _mlp_kernel,
        out_shape=jax.ShapeDtypeStruct((N, num_classes), jnp.float32),
    )(x, w1, b1, w2, b2, w3, b3)


# ------------------------------------- vgg forward -------------------------------------

def init_params(key, cfg, num_classes):
    params = {"convs": []}
    in_c = 3
    bn_scale_val = 0.5 / math.sqrt(1.0 + 1e-5)   # gamma / sqrt(running_var + eps)
    for v in cfg:
        if v == "M":
            continue
        key, kw = jax.random.split(key)
        std = math.sqrt(2.0 / (9 * v))           # kaiming-style init from the module
        w = std * jax.random.normal(kw, (3, 3, in_c, v), jnp.float32)
        w9 = w.reshape(9, in_c, v).astype(ACT_DTYPE)
        scale = jnp.full((1, v), bn_scale_val, jnp.float32)
        shift = jnp.zeros((1, v), jnp.float32)
        params["convs"].append((w9, scale, shift))
        in_c = v
    for name, (din, dout) in (("fc1", (512, 512)),
                              ("fc2", (512, 512)),
                              ("fc3", (512, num_classes))):
        key, kw = jax.random.split(key)
        w = (0.01 * jax.random.normal(kw, (din, dout), jnp.float32)).astype(ACT_DTYPE)
        b = jnp.zeros((1, dout), jnp.float32)
        params[name] = (w, b)
    return params


def _parse_cfg(cfg):
    """cfg -> [(out_channels, followed_by_maxpool), ...]"""
    layers = []
    i = 0
    while i < len(cfg):
        v = cfg[i]
        assert v != "M", "cfg must not start with / repeat 'M'"
        pool = (i + 1 < len(cfg)) and cfg[i + 1] == "M"
        layers.append((v, pool))
        i += 2 if pool else 1
    return layers


def vgg_forward(params, x_nchw, cfg):
    layers = _parse_cfg(cfg)
    N, C, H, W = x_nchw.shape

    # boundary glue: NCHW -> padded-flat NHWC, done once
    x = jnp.transpose(x_nchw, (0, 2, 3, 1))
    x = jnp.pad(x, ((0, 0), (1, 1), (1, 1), (0, 0)))
    x = x.reshape(N, (H + 2) * (W + 2), C).astype(ACT_DTYPE)

    h, w = H, W
    for li, ((cout, pool), (w9, scale, shift)) in enumerate(zip(layers, params["convs"])):
        head = (li == len(layers) - 1)
        Hp, Wp = h + 2, w + 2
        if head:
            ho = h // 2 if pool else h
            wo = w // 2 if pool else w
            assert ho == 7 and wo == 7, "forward() requires 7x7 feature maps before padding"
        mask = _interior_mask(Hp, Wp)
        x = conv_layer(x, w9, scale, shift, mask, Hp=Hp, Wp=Wp, pool=pool, head=head)
        if pool:
            h, w = h // 2, w // 2

    feats = x.reshape(N, -1)                     # (N, 512)
    logits = classifier(feats, params["fc1"], params["fc2"], params["fc3"])
    return logits


if __name__ == "__main__":
    key = jax.random.PRNGKey(0)
    # Small VGG-style cfg (same structure as defaultcfg; the depth-16 cfg needs
    # 224x224 inputs). Last conv is 512 channels to feed the Linear(512, 512)
    # classifier, matching the module; forward() requires 7x7 before padding.
    cfg = [16, "M", 32, "M", 512]
    num_classes = 10
    n_pools = sum(1 for v in cfg if v == "M")
    spatial = 7 * (2 ** n_pools)                 # 28

    kp, kx = jax.random.split(key)
    params = init_params(kp, cfg, num_classes)
    x = jax.random.normal(kx, (2, 3, spatial, spatial), jnp.float32)  # NCHW, like PyTorch

    out = vgg_forward(params, x, cfg)
    out = jax.block_until_ready(out)
    assert out.shape == (2, num_classes)
    assert bool(jnp.all(jnp.isfinite(out)))
    print("KERNEL_OK")
</pallas_src>

<mosaic_0001>
module attributes {stable_mosaic.version = 11 : i64} {
  func.func @kernel(%arg0: i32, %arg1: memref<1x900x3xbf16, #tpu.memory_space<vmem>>, %arg2: memref<9x3x16xbf16, #tpu.memory_space<vmem>>, %arg3: memref<1x16xf32, #tpu.memory_space<vmem>>, %arg4: memref<1x16xf32, #tpu.memory_space<vmem>>, %arg5: memref<838x1xf32, #tpu.memory_space<vmem>>, %arg6: memref<1x256x16xbf16, #tpu.memory_space<vmem>>, %arg7: memref<900x3xf32, #tpu.memory_space<vmem>>, %arg8: memref<838x16xf32, #tpu.memory_space<vmem>>, %arg9: memref<256x16xf32, #tpu.memory_space<vmem>>) attributes {dimension_semantics = [#tpu.dimension_semantics<parallel>], iteration_bounds = array<i64: 2>, scalar_prefetch = 0 : i64, scratch_operands = 3 : i64, tpu.core_type = #tpu.core_type<tc>, window_params = [{transform_indices = @transform_0, window_bounds = array<i64: 1, 900, 3>}, {pipeline_mode = #tpu.pipeline_mode<synchronous>, transform_indices = @transform_1, window_bounds = array<i64: 9, 3, 16>}, {pipeline_mode = #tpu.pipeline_mode<synchronous>, transform_indices = @transform_2, window_bounds = array<i64: 1, 16>}, {pipeline_mode = #tpu.pipeline_mode<synchronous>, transform_indices = @transform_3, window_bounds = array<i64: 1, 16>}, {pipeline_mode = #tpu.pipeline_mode<synchronous>, transform_indices = @transform_4, window_bounds = array<i64: 838, 1>}, {transform_indices = @transform_5, window_bounds = array<i64: 1, 256, 16>}]} {
    %c0 = arith.constant 0 : index
    %c0_0 = arith.constant 0 : index
    %c0_1 = arith.constant 0 : index
    %0 = vector.load %arg1[%c0, %c0_0, %c0_1] : memref<1x900x3xbf16, #tpu.memory_space<vmem>>, vector<1x900x3xbf16>
    %1 = vector.shape_cast %0 : vector<1x900x3xbf16> to vector<900x3xbf16>
    %2 = arith.extf %1 : vector<900x3xbf16> to vector<900x3xf32>
    %c0_2 = arith.constant 0 : index
    %c0_3 = arith.constant 0 : index
    %3 = vector.load %arg7[%c0_2, %c0_3] : memref<900x3xf32, #tpu.memory_space<vmem>>, vector<900x3xf32>
    tpu.vector_store %arg7[%c0_2, %c0_3], %2 {strides = array<i32>} : memref<900x3xf32, #tpu.memory_space<vmem>>, vector<900x3xf32>,
    %c0_4 = arith.constant 0 : index
    %c0_5 = arith.constant 0 : index
    %4 = vector.load %arg7[%c0_4, %c0_5] : memref<900x3xf32, #tpu.memory_space<vmem>>, vector<838x3xf32>
    %5 = arith.truncf %4 : vector<838x3xf32> to vector<838x3xbf16>
    %c0_6 = arith.constant 0 : index
    %c0_7 = arith.constant 0 : index
    %c0_8 = arith.constant 0 : index
    %6 = vector.load %arg2[%c0_6, %c0_7, %c0_8] : memref<9x3x16xbf16, #tpu.memory_space<vmem>>, vector<1x3x16xbf16>
    %7 = vector.shape_cast %6 : vector<1x3x16xbf16> to vector<3x16xbf16>
    %cst = arith.constant dense<0.000000e+00> : vector<838x16xf32>
    %8 = tpu.matmul %5, %7, %cst {dimension_numbers = #tpu.dot_dimension_numbers<[1], [0], [0], [1], [0, 0, 1, 1], [], []>} : vector<838x3xbf16>, vector<3x16xbf16>, vector<838x16xf32> -> vector<838x16xf32>
    %c1 = arith.constant 1 : index
    %c0_9 = arith.constant 0 : index
    %9 = vector.load %arg7[%c1, %c0_9] : memref<900x3xf32, #tpu.memory_space<vmem>>, vector<838x3xf32>
    %10 = arith.truncf %9 : vector<838x3xf32> to vector<838x3xbf16>
    %c1_10 = arith.constant 1 : index
    %c0_11 = arith.constant 0 : index
    %c0_12 = arith.constant 0 : index
    %11 = vector.load %arg2[%c1_10, %c0_11, %c0_12] : memref<9x3x16xbf16, #tpu.memory_space<vmem>>, vector<1x3x16xbf16>
    %12 = vector.shape_cast %11 : vector<1x3x16xbf16> to vector<3x16xbf16>
    %cst_13 = arith.constant dense<0.000000e+00> : vector<838x16xf32>
    %13 = tpu.matmul %10, %12, %cst_13 {dimension_numbers = #tpu.dot_dimension_numbers<[1], [0], [0], [1], [0, 0, 1, 1], [], []>} : vector<838x3xbf16>, vector<3x16xbf16>, vector<838x16xf32> -> vector<838x16xf32>
    %14 = arith.addf %8, %13 : vector<838x16xf32>
    %c2 = arith.constant 2 : index
    %c0_14 = arith.constant 0 : index
    %15 = vector.load %arg7[%c2, %c0_14] : memref<900x3xf32, #tpu.memory_space<vmem>>, vector<838x3xf32>
    %16 = arith.truncf %15 : vector<838x3xf32> to vector<838x3xbf16>
    %c2_15 = arith.constant 2 : index
    %c0_16 = arith.constant 0 : index
    %c0_17 = arith.constant 0 : index
    %17 = vector.load %arg2[%c2_15, %c0_16, %c0_17] : memref<9x3x16xbf16, #tpu.memory_space<vmem>>, vector<1x3x16xbf16>
    %18 = vector.shape_cast %17 : vector<1x3x16xbf16> to vector<3x16xbf16>
    %cst_18 = arith.constant dense<0.000000e+00> : vector<838x16xf32>
    %19 = tpu.matmul %16, %18, %cst_18 {dimension_numbers = #tpu.dot_dimension_numbers<[1], [0], [0], [1], [0, 0, 1, 1], [], []>} : vector<838x3xbf16>, vector<3x16xbf16>, vector<838x16xf32> -> vector<838x16xf32>
    %20 = arith.addf %14, %19 : vector<838x16xf32>
    %c30 = arith.constant 30 : index
    %c0_19 = arith.constant 0 : index
    %21 = vector.load %arg7[%c30, %c0_19] : memref<900x3xf32, #tpu.memory_space<vmem>>, vector<838x3xf32>
    %22 = arith.truncf %21 : vector<838x3xf32> to vector<838x3xbf16>
    %c3 = arith.constant 3 : index
    %c0_20 = arith.constant 0 : index
    %c0_21 = arith.constant 0 : index
    %23 = vector.load %arg2[%c3, %c0_20, %c0_21] : memref<9x3x16xbf16, #tpu.memory_space<vmem>>, vector<1x3x16xbf16>
    %24 = vector.shape_cast %23 : vector<1x3x16xbf16> to vector<3x16xbf16>
    %cst_22 = arith.constant dense<0.000000e+00> : vector<838x16xf32>
    %25 = tpu.matmul %22, %24, %cst_22 {dimension_numbers = #tpu.dot_dimension_numbers<[1], [0], [0], [1], [0, 0, 1, 1], [], []>} : vector<838x3xbf16>, vector<3x16xbf16>, vector<838x16xf32> -> vector<838x16xf32>
    %26 = arith.addf %20, %25 : vector<838x16xf32>
    %c31 = arith.constant 31 : index
    %c0_23 = arith.constant 0 : index
    %27 = vector.load %arg7[%c31, %c0_23] : memref<900x3xf32, #tpu.memory_space<vmem>>, vector<838x3xf32>
    %28 = arith.truncf %27 : vector<838x3xf32> to vector<838x3xbf16>
    %c4 = arith.constant 4 : index
    %c0_24 = arith.constant 0 : index
    %c0_25 = arith.constant 0 : index
    %29 = vector.load %arg2[%c4, %c0_24, %c0_25] : memref<9x3x16xbf16, #tpu.memory_space<vmem>>, vector<1x3x16xbf16>
    %30 = vector.shape_cast %29 : vector<1x3x16xbf16> to vector<3x16xbf16>
    %cst_26 = arith.constant dense<0.000000e+00> : vector<838x16xf32>
    %31 = tpu.matmul %28, %30, %cst_26 {dimension_numbers = #tpu.dot_dimension_numbers<[1], [0], [0], [1], [0, 0, 1, 1], [], []>} : vector<838x3xbf16>, vector<3x16xbf16>, vector<838x16xf32> -> vector<838x16xf32>
    %32 = arith.addf %26, %31 : vector<838x16xf32>
    %c32 = arith.constant 32 : index
    %c0_27 = arith.constant 0 : index
    %33 = vector.load %arg7[%c32, %c0_27] : memref<900x3xf32, #tpu.memory_space<vmem>>, vector<838x3xf32>
    %34 = arith.truncf %33 : vector<838x3xf32> to vector<838x3xbf16>
    %c5 = arith.constant 5 : index
    %c0_28 = arith.constant 0 : index
    %c0_29 = arith.constant 0 : index
    %35 = vector.load %arg2[%c5, %c0_28, %c0_29] : memref<9x3x16xbf16, #tpu.memory_space<vmem>>, vector<1x3x16xbf16>
    %36 = vector.shape_cast %35 : vector<1x3x16xbf16> to vector<3x16xbf16>
    %cst_30 = arith.constant dense<0.000000e+00> : vector<838x16xf32>
    %37 = tpu.matmul %34, %36, %cst_30 {dimension_numbers = #tpu.dot_dimension_numbers<[1], [0], [0], [1], [0, 0, 1, 1], [], []>} : vector<838x3xbf16>, vector<3x16xbf16>, vector<838x16xf32> -> vector<838x16xf32>
    %38 = arith.addf %32, %37 : vector<838x16xf32>
    %c60 = arith.constant 60 : index
    %c0_31 = arith.constant 0 : index
    %39 = vector.load %arg7[%c60, %c0_31] : memref<900x3xf32, #tpu.memory_space<vmem>>, vector<838x3xf32>
    %40 = arith.truncf %39 : vector<838x3xf32> to vector<838x3xbf16>
    %c6 = arith.constant 6 : index
    %c0_32 = arith.constant 0 : index
    %c0_33 = arith.constant 0 : index
    %41 = vector.load %arg2[%c6, %c0_32, %c0_33] : memref<9x3x16xbf16, #tpu.memory_space<vmem>>, vector<1x3x16xbf16>
    %42 = vector.shape_cast %41 : vector<1x3x16xbf16> to vector<3x16xbf16>
    %cst_34 = arith.constant dense<0.000000e+00> : vector<838x16xf32>
    %43 = tpu.matmul %40, %42, %cst_34 {dimension_numbers = #tpu.dot_dimension_numbers<[1], [0], [0], [1], [0, 0, 1, 1], [], []>} : vector<838x3xbf16>, vector<3x16xbf16>, vector<838x16xf32> -> vector<838x16xf32>
    %44 = arith.addf %38, %43 : vector<838x16xf32>
    %c61 = arith.constant 61 : index
    %c0_35 = arith.constant 0 : index
    %45 = vector.load %arg7[%c61, %c0_35] : memref<900x3xf32, #tpu.memory_space<vmem>>, vector<838x3xf32>
    %46 = arith.truncf %45 : vector<838x3xf32> to vector<838x3xbf16>
    %c7 = arith.constant 7 : index
    %c0_36 = arith.constant 0 : index
    %c0_37 = arith.constant 0 : index
    %47 = vector.load %arg2[%c7, %c0_36, %c0_37] : memref<9x3x16xbf16, #tpu.memory_space<vmem>>, vector<1x3x16xbf16>
    %48 = vector.shape_cast %47 : vector<1x3x16xbf16> to vector<3x16xbf16>
    %cst_38 = arith.constant dense<0.000000e+00> : vector<838x16xf32>
    %49 = tpu.matmul %46, %48, %cst_38 {dimension_numbers = #tpu.dot_dimension_numbers<[1], [0], [0], [1], [0, 0, 1, 1], [], []>} : vector<838x3xbf16>, vector<3x16xbf16>, vector<838x16xf32> -> vector<838x16xf32>
    %50 = arith.addf %44, %49 : vector<838x16xf32>
    %c62 = arith.constant 62 : index
    %c0_39 = arith.constant 0 : index
    %51 = vector.load %arg7[%c62, %c0_39] : memref<900x3xf32, #tpu.memory_space<vmem>>, vector<838x3xf32>
    %52 = arith.truncf %51 : vector<838x3xf32> to vector<838x3xbf16>
    %c8 = arith.constant 8 : index
    %c0_40 = arith.constant 0 : index
    %c0_41 = arith.constant 0 : index
    %53 = vector.load %arg2[%c8, %c0_40, %c0_41] : memref<9x3x16xbf16, #tpu.memory_space<vmem>>, vector<1x3x16xbf16>
    %54 = vector.shape_cast %53 : vector<1x3x16xbf16> to vector<3x16xbf16>
    %cst_42 = arith.constant dense<0.000000e+00> : vector<838x16xf32>
    %55 = tpu.matmul %52, %54, %cst_42 {dimension_numbers = #tpu.dot_dimension_numbers<[1], [0], [0], [1], [0, 0, 1, 1], [], []>} : vector<838x3xbf16>, vector<3x16xbf16>, vector<838x16xf32> -> vector<838x16xf32>
    %56 = arith.addf %50, %55 : vector<838x16xf32>
    %c0_43 = arith.constant 0 : index
    %c0_44 = arith.constant 0 : index
    %57 = vector.load %arg3[%c0_43, %c0_44] : memref<1x16xf32, #tpu.memory_space<vmem>>, vector<1x16xf32>
    %58 = vector.broadcast %57 : vector<1x16xf32> to vector<838x16xf32>
    %59 = arith.mulf %56, %58 : vector<838x16xf32>
    %c0_45 = arith.constant 0 : index
    %c0_46 = arith.constant 0 : index
    %60 = vector.load %arg4[%c0_45, %c0_46] : memref<1x16xf32, #tpu.memory_space<vmem>>, vector<1x16xf32>
    %61 = vector.broadcast %60 : vector<1x16xf32> to vector<838x16xf32>
    %62 = arith.addf %59, %61 : vector<838x16xf32>
    %cst_47 = arith.constant 0.000000e+00 : f32
    %63 = vector.broadcast %cst_47 : f32 to vector<838x16xf32>
    %64 = arith.maximumf %62, %63 : vector<838x16xf32>
    %c0_48 = arith.constant 0 : index
    %c0_49 = arith.constant 0 : index
    %65 = vector.load %arg5[%c0_48, %c0_49] : memref<838x1xf32, #tpu.memory_space<vmem>>, vector<838x1xf32>
    %66 = vector.broadcast %65 : vector<838x1xf32> to vector<838x16xf32>
    %67 = arith.mulf %64, %66 : vector<838x16xf32>
    %c0_50 = arith.constant 0 : index
    %c0_51 = arith.constant 0 : index
    %68 = vector.load %arg8[%c0_50, %c0_51] : memref<838x16xf32, #tpu.memory_space<vmem>>, vector<838x16xf32>
    tpu.vector_store %arg8[%c0_50, %c0_51], %67 {strides = array<i32>} : memref<838x16xf32, #tpu.memory_space<vmem>>, vector<838x16xf32>,
    %cst_52 = arith.constant 0.000000e+00 : f32
    %69 = vector.broadcast %cst_52 : f32 to vector<256x16xf32>
    %c0_53 = arith.constant 0 : index
    %c0_54 = arith.constant 0 : index
    %70 = vector.load %arg9[%c0_53, %c0_54] : memref<256x16xf32, #tpu.memory_space<vmem>>, vector<256x16xf32>
    tpu.vector_store %arg9[%c0_53, %c0_54], %69 {strides = array<i32>} : memref<256x16xf32, #tpu.memory_space<vmem>>, vector<256x16xf32>,
    %c0_55 = arith.constant 0 : index
    %c0_56 = arith.constant 0 : index
    %71 = tpu.strided_load %arg8[%c0_55, %c0_56] {strides = array<i32: 2, 1>} : memref<838x16xf32, #tpu.memory_space<vmem>>, vector<14x16xf32>
    %c1_57 = arith.constant 1 : index
    %c0_58 = arith.constant 0 : index
    %72 = tpu.strided_load %arg8[%c1_57, %c0_58] {strides = array<i32: 2, 1>} : memref<838x16xf32, #tpu.memory_space<vmem>>, vector<14x16xf32>
    %c30_59 = arith.constant 30 : index
    %c0_60 = arith.constant 0 : index
    %73 = tpu.strided_load %arg8[%c30_59, %c0_60] {strides = array<i32: 2, 1>} : memref<838x16xf32, #tpu.memory_space<vmem>>, vector<14x16xf32>
    %c31_61 = arith.constant 31 : index
    %c0_62 = arith.constant 0 : index
    %74 = tpu.strided_load %arg8[%c31_61, %c0_62] {strides = array<i32: 2, 1>} : memref<838x16xf32, #tpu.memory_space<vmem>>, vector<14x16xf32>
    %75 = arith.maximumf %71, %72 : vector<14x16xf32>
    %76 = arith.maximumf %73, %74 : vector<14x16xf32>
    %77 = arith.maximumf %75, %76 : vector<14x16xf32>
    %c17 = arith.constant 17 : index
    %c0_63 = arith.constant 0 : index
    %78 = vector.load %arg9[%c17, %c0_63] : memref<256x16xf32, #tpu.memory_space<vmem>>, vector<14x16xf32>
    tpu.vector_store %arg9[%c17, %c0_63], %77 {strides = array<i32>} : memref<256x16xf32, #tpu.memory_space<vmem>>, vector<14x16xf32>,
    %c60_64 = arith.constant 60 : index
    %c0_65 = arith.constant 0 : index
    %79 = tpu.strided_load %arg8[%c60_64, %c0_65] {strides = array<i32: 2, 1>} : memref<838x16xf32, #tpu.memory_space<vmem>>, vector<14x16xf32>
    %c61_66 = arith.constant 61 : index
    %c0_67 = arith.constant 0 : index
    %80 = tpu.strided_load %arg8[%c61_66, %c0_67] {strides = array<i32: 2, 1>} : memref<838x16xf32, #tpu.memory_space<vmem>>, vector<14x16xf32>
    %c90 = arith.constant 90 : index
    %c0_68 = arith.constant 0 : index
    %81 = tpu.strided_load %arg8[%c90, %c0_68] {strides = array<i32: 2, 1>} : memref<838x16xf32, #tpu.memory_space<vmem>>, vector<14x16xf32>
    %c91 = arith.constant 91 : index
    %c0_69 = arith.constant 0 : index
    %82 = tpu.strided_load %arg8[%c91, %c0_69] {strides = array<i32: 2, 1>} : memref<838x16xf32, #tpu.memory_space<vmem>>, vector<14x16xf32>
    %83 = arith.maximumf %79, %80 : vector<14x16xf32>
    %84 = arith.maximumf %81, %82 : vector<14x16xf32>
    %85 = arith.maximumf %83, %84 : vector<14x16xf32>
    %c33 = arith.constant 33 : index
    %c0_70 = arith.constant 0 : index
    %86 = vector.load %arg9[%c33, %c0_70] : memref<256x16xf32, #tpu.memory_space<vmem>>, vector<14x16xf32>
    tpu.vector_store %arg9[%c33, %c0_70], %85 {strides = array<i32>} : memref<256x16xf32, #tpu.memory_space<vmem>>, vector<14x16xf32>,
    %c120 = arith.constant 120 : index
    %c0_71 = arith.constant 0 : index
    %87 = tpu.strided_load %arg8[%c120, %c0_71] {strides = array<i32: 2, 1>} : memref<838x16xf32, #tpu.memory_space<vmem>>, vector<14x16xf32>
    %c121 = arith.constant 121 : index
    %c0_72 = arith.constant 0 : index
    %88 = tpu.strided_load %arg8[%c121, %c0_72] {strides = array<i32: 2, 1>} : memref<838x16xf32, #tpu.memory_space<vmem>>, vector<14x16xf32>
    %c150 = arith.constant 150 : index
    %c0_73 = arith.constant 0 : index
    %89 = tpu.strided_load %arg8[%c150, %c0_73] {strides = array<i32: 2, 1>} : memref<838x16xf32, #tpu.memory_space<vmem>>, vector<14x16xf32>
    %c151 = arith.constant 151 : index
    %c0_74 = arith.constant 0 : index
    %90 = tpu.strided_load %arg8[%c151, %c0_74] {strides = array<i32: 2, 1>} : memref<838x16xf32, #tpu.memory_space<vmem>>, vector<14x16xf32>
    %91 = arith.maximumf %87, %88 : vector<14x16xf32>
    %92 = arith.maximumf %89, %90 : vector<14x16xf32>
    %93 = arith.maximumf %91, %92 : vector<14x16xf32>
    %c49 = arith.constant 49 : index
    %c0_75 = arith.constant 0 : index
    %94 = vector.load %arg9[%c49, %c0_75] : memref<256x16xf32, #tpu.memory_space<vmem>>, vector<14x16xf32>
    tpu.vector_store %arg9[%c49, %c0_75], %93 {strides = array<i32>} : memref<256x16xf32, #tpu.memory_space<vmem>>, vector<14x16xf32>,
    %c180 = arith.constant 180 : index
    %c0_76 = arith.constant 0 : index
    %95 = tpu.strided_load %arg8[%c180, %c0_76] {strides = array<i32: 2, 1>} : memref<838x16xf32, #tpu.memory_space<vmem>>, vector<14x16xf32>
    %c181 = arith.constant 181 : index
    %c0_77 = arith.constant 0 : index
    %96 = tpu.strided_load %arg8[%c181, %c0_77] {strides = array<i32: 2, 1>} : memref<838x16xf32, #tpu.memory_space<vmem>>, vector<14x16xf32>
    %c210 = arith.constant 210 : index
    %c0_78 = arith.constant 0 : index
    %97 = tpu.strided_load %arg8[%c210, %c0_78] {strides = array<i32: 2, 1>} : memref<838x16xf32, #tpu.memory_space<vmem>>, vector<14x16xf32>
    %c211 = arith.constant 211 : index
    %c0_79 = arith.constant 0 : index
    %98 = tpu.strided_load %arg8[%c211, %c0_79] {strides = array<i32: 2, 1>} : memref<838x16xf32, #tpu.memory_space<vmem>>, vector<14x16xf32>
    %99 = arith.maximumf %95, %96 : vector<14x16xf32>
    %100 = arith.maximumf %97, %98 : vector<14x16xf32>
    %101 = arith.maximumf %99, %100 : vector<14x16xf32>
    %c65 = arith.constant 65 : index
    %c0_80 = arith.constant 0 : index
    %102 = vector.load %arg9[%c65, %c0_80] : memref<256x16xf32, #tpu.memory_space<vmem>>, vector<14x16xf32>
    tpu.vector_store %arg9[%c65, %c0_80], %101 {strides = array<i32>} : memref<256x16xf32, #tpu.memory_space<vmem>>, vector<14x16xf32>,
    %c240 = arith.constant 240 : index
    %c0_81 = arith.constant 0 : index
    %103 = tpu.strided_load %arg8[%c240, %c0_81] {strides = array<i32: 2, 1>} : memref<838x16xf32, #tpu.memory_space<vmem>>, vector<14x16xf32>
    %c241 = arith.constant 241 : index
    %c0_82 = arith.constant 0 : index
    %104 = tpu.strided_load %arg8[%c241, %c0_82] {strides = array<i32: 2, 1>} : memref<838x16xf32, #tpu.memory_space<vmem>>, vector<14x16xf32>
    %c270 = arith.constant 270 : index
    %c0_83 = arith.constant 0 : index
    %105 = tpu.strided_load %arg8[%c270, %c0_83] {strides = array<i32: 2, 1>} : memref<838x16xf32, #tpu.memory_space<vmem>>, vector<14x16xf32>
    %c271 = arith.constant 271 : index
    %c0_84 = arith.constant 0 : index
    %106 = tpu.strided_load %arg8[%c271, %c0_84] {strides = array<i32: 2, 1>} : memref<838x16xf32, #tpu.memory_space<vmem>>, vector<14x16xf32>
    %107 = arith.maximumf %103, %104 : vector<14x16xf32>
    %108 = arith.maximumf %105, %106 : vector<14x16xf32>
    %109 = arith.maximumf %107, %108 : vector<14x16xf32>
    %c81 = arith.constant 81 : index
    %c0_85 = arith.constant 0 : index
    %110 = vector.load %arg9[%c81, %c0_85] : memref<256x16xf32, #tpu.memory_space<vmem>>, vector<14x16xf32>
    tpu.vector_store %arg9[%c81, %c0_85], %109 {strides = array<i32>} : memref<256x16xf32, #tpu.memory_space<vmem>>, vector<14x16xf32>,
    %c300 = arith.constant 300 : index
    %c0_86 = arith.constant 0 : index
    %111 = tpu.strided_load %arg8[%c300, %c0_86] {strides = array<i32: 2, 1>} : memref<838x16xf32, #tpu.memory_space<vmem>>, vector<14x16xf32>
    %c301 = arith.constant 301 : index
    %c0_87 = arith.constant 0 : index
    %112 = tpu.strided_load %arg8[%c301, %c0_87] {strides = array<i32: 2, 1>} : memref<838x16xf32, #tpu.memory_space<vmem>>, vector<14x16xf32>
    %c330 = arith.constant 330 : index
    %c0_88 = arith.constant 0 : index
    %113 = tpu.strided_load %arg8[%c330, %c0_88] {strides = array<i32: 2, 1>} : memref<838x16xf32, #tpu.memory_space<vmem>>, vector<14x16xf32>
    %c331 = arith.constant 331 : index
    %c0_89 = arith.constant 0 : index
    %114 = tpu.strided_load %arg8[%c331, %c0_89] {strides = array<i32: 2, 1>} : memref<838x16xf32, #tpu.memory_space<vmem>>, vector<14x16xf32>
    %115 = arith.maximumf %111, %112 : vector<14x16xf32>
    %116 = arith.maximumf %113, %114 : vector<14x16xf32>
    %117 = arith.maximumf %115, %116 : vector<14x16xf32>
    %c97 = arith.constant 97 : index
    %c0_90 = arith.constant 0 : index
    %118 = vector.load %arg9[%c97, %c0_90] : memref<256x16xf32, #tpu.memory_space<vmem>>, vector<14x16xf32>
    tpu.vector_store %arg9[%c97, %c0_90], %117 {strides = array<i32>} : memref<256x16xf32, #tpu.memory_space<vmem>>, vector<14x16xf32>,
    %c360 = arith.constant 360 : index
    %c0_91 = arith.constant 0 : index
    %119 = tpu.strided_load %arg8[%c360, %c0_91] {strides = array<i32: 2, 1>} : memref<838x16xf32, #tpu.memory_space<vmem>>, vector<14x16xf32>
    %c361 = arith.constant 361 : index
    %c0_92 = arith.constant 0 : index
    %120 = tpu.strided_load %arg8[%c361, %c0_92] {strides = array<i32: 2, 1>} : memref<838x16xf32, #tpu.memory_space<vmem>>, vector<14x16xf32>
    %c390 = arith.constant 390 : index
    %c0_93 = arith.constant 0 : index
    %121 = tpu.strided_load %arg8[%c390, %c0_93] {strides = array<i32: 2, 1>} : memref<838x16xf32, #tpu.memory_space<vmem>>, vector<14x16xf32>
    %c391 = arith.constant 391 : index
    %c0_94 = arith.constant 0 : index
    %122 = tpu.strided_load %arg8[%c391, %c0_94] {strides = array<i32: 2, 1>} : memref<838x16xf32, #tpu.memory_space<vmem>>, vector<14x16xf32>
    %123 = arith.maximumf %119, %120 : vector<14x16xf32>
    %124 = arith.maximumf %121, %122 : vector<14x16xf32>
    %125 = arith.maximumf %123, %124 : vector<14x16xf32>
    %c113 = arith.constant 113 : index
    %c0_95 = arith.constant 0 : index
    %126 = vector.load %arg9[%c113, %c0_95] : memref<256x16xf32, #tpu.memory_space<vmem>>, vector<14x16xf32>
    tpu.vector_store %arg9[%c113, %c0_95], %125 {strides = array<i32>} : memref<256x16xf32, #tpu.memory_space<vmem>>, vector<14x16xf32>,
    %c420 = arith.constant 420 : index
    %c0_96 = arith.constant 0 : index
    %127 = tpu.strided_load %arg8[%c420, %c0_96] {strides = array<i32: 2, 1>} : memref<838x16xf32, #tpu.memory_space<vmem>>, vector<14x16xf32>
    %c421 = arith.constant 421 : index
    %c0_97 = arith.constant 0 : index
    %128 = tpu.strided_load %arg8[%c421, %c0_97] {strides = array<i32: 2, 1>} : memref<838x16xf32, #tpu.memory_space<vmem>>, vector<14x16xf32>
    %c450 = arith.constant 450 : index
    %c0_98 = arith.constant 0 : index
    %129 = tpu.strided_load %arg8[%c450, %c0_98] {strides = array<i32: 2, 1>} : memref<838x16xf32, #tpu.memory_space<vmem>>, vector<14x16xf32>
    %c451 = arith.constant 451 : index
    %c0_99 = arith.constant 0 : index
    %130 = tpu.strided_load %arg8[%c451, %c0_99] {strides = array<i32: 2, 1>} : memref<838x16xf32, #tpu.memory_space<vmem>>, vector<14x16xf32>
    %131 = arith.maximumf %127, %128 : vector<14x16xf32>
    %132 = arith.maximumf %129, %130 : vector<14x16xf32>
    %133 = arith.maximumf %131, %132 : vector<14x16xf32>
    %c129 = arith.constant 129 : index
    %c0_100 = arith.constant 0 : index
    %134 = vector.load %arg9[%c129, %c0_100] : memref<256x16xf32, #tpu.memory_space<vmem>>, vector<14x16xf32>
    tpu.vector_store %arg9[%c129, %c0_100], %133 {strides = array<i32>} : memref<256x16xf32, #tpu.memory_space<vmem>>, vector<14x16xf32>,
    %c480 = arith.constant 480 : index
    %c0_101 = arith.constant 0 : index
    %135 = tpu.strided_load %arg8[%c480, %c0_101] {strides = array<i32: 2, 1>} : memref<838x16xf32, #tpu.memory_space<vmem>>, vector<14x16xf32>
    %c481 = arith.constant 481 : index
    %c0_102 = arith.constant 0 : index
    %136 = tpu.strided_load %arg8[%c481, %c0_102] {strides = array<i32: 2, 1>} : memref<838x16xf32, #tpu.memory_space<vmem>>, vector<14x16xf32>
    %c510 = arith.constant 510 : index
    %c0_103 = arith.constant 0 : index
    %137 = tpu.strided_load %arg8[%c510, %c0_103] {strides = array<i32: 2, 1>} : memref<838x16xf32, #tpu.memory_space<vmem>>, vector<14x16xf32>
    %c511 = arith.constant 511 : index
    %c0_104 = arith.constant 0 : index
    %138 = tpu.strided_load %arg8[%c511, %c0_104] {strides = array<i32: 2, 1>} : memref<838x16xf32, #tpu.memory_space<vmem>>, vector<14x16xf32>
    %139 = arith.maximumf %135, %136 : vector<14x16xf32>
    %140 = arith.maximumf %137, %138 : vector<14x16xf32>
    %141 = arith.maximumf %139, %140 : vector<14x16xf32>
    %c145 = arith.constant 145 : index
    %c0_105 = arith.constant 0 : index
    %142 = vector.load %arg9[%c145, %c0_105] : memref<256x16xf32, #tpu.memory_space<vmem>>, vector<14x16xf32>
    tpu.vector_store %arg9[%c145, %c0_105], %141 {strides = array<i32>} : memref<256x16xf32, #tpu.memory_space<vmem>>, vector<14x16xf32>,
    %c540 = arith.constant 540 : index
    %c0_106 = arith.constant 0 : index
    %143 = tpu.strided_load %arg8[%c540, %c0_106] {strides = array<i32: 2, 1>} : memref<838x16xf32, #tpu.memory_space<vmem>>, vector<14x16xf32>
    %c541 = arith.constant 541 : index
    %c0_107 = arith.constant 0 : index
    %144 = tpu.strided_load %arg8[%c541, %c0_107] {strides = array<i32: 2, 1>} : memref<838x16xf32, #tpu.memory_space<vmem>>, vector<14x16xf32>
    %c570 = arith.constant 570 : index
    %c0_108 = arith.constant 0 : index
    %145 = tpu.strided_load %arg8[%c570, %c0_108] {strides = array<i32: 2, 1>} : memref<838x16xf32, #tpu.memory_space<vmem>>, vector<14x16xf32>
    %c571 = arith.constant 571 : index
    %c0_109 = arith.constant 0 : index
    %146 = tpu.strided_load %arg8[%c571, %c0_109] {strides = array<i32: 2, 1>} : memref<838x16xf32, #tpu.memory_space<vmem>>, vector<14x16xf32>
    %147 = arith.maximumf %143, %144 : vector<14x16xf32>
    %148 = arith.maximumf %145, %146 : vector<14x16xf32>
    %149 = arith.maximumf %147, %148 : vector<14x16xf32>
    %c161 = arith.constant 161 : index
    %c0_110 = arith.constant 0 : index
    %150 = vector.load %arg9[%c161, %c0_110] : memref<256x16xf32, #tpu.memory_space<vmem>>, vector<14x16xf32>
    tpu.vector_store %arg9[%c161, %c0_110], %149 {strides = array<i32>} : memref<256x16xf32, #tpu.memory_space<vmem>>, vector<14x16xf32>,
    %c600 = arith.constant 600 : index
    %c0_111 = arith.constant 0 : index
    %151 = tpu.strided_load %arg8[%c600, %c0_111] {strides = array<i32: 2, 1>} : memref<838x16xf32, #tpu.memory_space<vmem>>, vector<14x16xf32>
    %c601 = arith.constant 601 : index
    %c0_112 = arith.constant 0 : index
    %152 = tpu.strided_load %arg8[%c601, %c0_112] {strides = array<i32: 2, 1>} : memref<838x16xf32, #tpu.memory_space<vmem>>, vector<14x16xf32>
    %c630 = arith.constant 630 : index
    %c0_113 = arith.constant 0 : index
    %153 = tpu.strided_load %arg8[%c630, %c0_113] {strides = array<i32: 2, 1>} : memref<838x16xf32, #tpu.memory_space<vmem>>, vector<14x16xf32>
    %c631 = arith.constant 631 : index
    %c0_114 = arith.constant 0 : index
    %154 = tpu.strided_load %arg8[%c631, %c0_114] {strides = array<i32: 2, 1>} : memref<838x16xf32, #tpu.memory_space<vmem>>, vector<14x16xf32>
    %155 = arith.maximumf %151, %152 : vector<14x16xf32>
    %156 = arith.maximumf %153, %154 : vector<14x16xf32>
    %157 = arith.maximumf %155, %156 : vector<14x16xf32>
    %c177 = arith.constant 177 : index
    %c0_115 = arith.constant 0 : index
    %158 = vector.load %arg9[%c177, %c0_115] : memref<256x16xf32, #tpu.memory_space<vmem>>, vector<14x16xf32>
    tpu.vector_store %arg9[%c177, %c0_115], %157 {strides = array<i32>} : memref<256x16xf32, #tpu.memory_space<vmem>>, vector<14x16xf32>,
    %c660 = arith.constant 660 : index
    %c0_116 = arith.constant 0 : index
    %159 = tpu.strided_load %arg8[%c660, %c0_116] {strides = array<i32: 2, 1>} : memref<838x16xf32, #tpu.memory_space<vmem>>, vector<14x16xf32>
    %c661 = arith.constant 661 : index
    %c0_117 = arith.constant 0 : index
    %160 = tpu.strided_load %arg8[%c661, %c0_117] {strides = array<i32: 2, 1>} : memref<838x16xf32, #tpu.memory_space<vmem>>, vector<14x16xf32>
    %c690 = arith.constant 690 : index
    %c0_118 = arith.constant 0 : index
    %161 = tpu.strided_load %arg8[%c690, %c0_118] {strides = array<i32: 2, 1>} : memref<838x16xf32, #tpu.memory_space<vmem>>, vector<14x16xf32>
    %c691 = arith.constant 691 : index
    %c0_119 = arith.constant 0 : index
    %162 = tpu.strided_load %arg8[%c691, %c0_119] {strides = array<i32: 2, 1>} : memref<838x16xf32, #tpu.memory_space<vmem>>, vector<14x16xf32>
    %163 = arith.maximumf %159, %160 : vector<14x16xf32>
    %164 = arith.maximumf %161, %162 : vector<14x16xf32>
    %165 = arith.maximumf %163, %164 : vector<14x16xf32>
    %c193 = arith.constant 193 : index
    %c0_120 = arith.constant 0 : index
    %166 = vector.load %arg9[%c193, %c0_120] : memref<256x16xf32, #tpu.memory_space<vmem>>, vector<14x16xf32>
    tpu.vector_store %arg9[%c193, %c0_120], %165 {strides = array<i32>} : memref<256x16xf32, #tpu.memory_space<vmem>>, vector<14x16xf32>,
    %c720 = arith.constant 720 : index
    %c0_121 = arith.constant 0 : index
    %167 = tpu.strided_load %arg8[%c720, %c0_121] {strides = array<i32: 2, 1>} : memref<838x16xf32, #tpu.memory_space<vmem>>, vector<14x16xf32>
    %c721 = arith.constant 721 : index
    %c0_122 = arith.constant 0 : index
    %168 = tpu.strided_load %arg8[%c721, %c0_122] {strides = array<i32: 2, 1>} : memref<838x16xf32, #tpu.memory_space<vmem>>, vector<14x16xf32>
    %c750 = arith.constant 750 : index
    %c0_123 = arith.constant 0 : index
    %169 = tpu.strided_load %arg8[%c750, %c0_123] {strides = array<i32: 2, 1>} : memref<838x16xf32, #tpu.memory_space<vmem>>, vector<14x16xf32>
    %c751 = arith.constant 751 : index
    %c0_124 = arith.constant 0 : index
    %170 = tpu.strided_load %arg8[%c751, %c0_124] {strides = array<i32: 2, 1>} : memref<838x16xf32, #tpu.memory_space<vmem>>, vector<14x16xf32>
    %171 = arith.maximumf %167, %168 : vector<14x16xf32>
    %172 = arith.maximumf %169, %170 : vector<14x16xf32>
    %173 = arith.maximumf %171, %172 : vector<14x16xf32>
    %c209 = arith.constant 209 : index
    %c0_125 = arith.constant 0 : index
    %174 = vector.load %arg9[%c209, %c0_125] : memref<256x16xf32, #tpu.memory_space<vmem>>, vector<14x16xf32>
    tpu.vector_store %arg9[%c209, %c0_125], %173 {strides = array<i32>} : memref<256x16xf32, #tpu.memory_space<vmem>>, vector<14x16xf32>,
    %c780 = arith.constant 780 : index
    %c0_126 = arith.constant 0 : index
    %175 = tpu.strided_load %arg8[%c780, %c0_126] {strides = array<i32: 2, 1>} : memref<838x16xf32, #tpu.memory_space<vmem>>, vector<14x16xf32>
    %c781 = arith.constant 781 : index
    %c0_127 = arith.constant 0 : index
    %176 = tpu.strided_load %arg8[%c781, %c0_127] {strides = array<i32: 2, 1>} : memref<838x16xf32, #tpu.memory_space<vmem>>, vector<14x16xf32>
    %c810 = arith.constant 810 : index
    %c0_128 = arith.constant 0 : index
    %177 = tpu.strided_load %arg8[%c810, %c0_128] {strides = array<i32: 2, 1>} : memref<838x16xf32, #tpu.memory_space<vmem>>, vector<14x16xf32>
    %c811 = arith.constant 811 : index
    %c0_129 = arith.constant 0 : index
    %178 = tpu.strided_load %arg8[%c811, %c0_129] {strides = array<i32: 2, 1>} : memref<838x16xf32, #tpu.memory_space<vmem>>, vector<14x16xf32>
    %179 = arith.maximumf %175, %176 : vector<14x16xf32>
    %180 = arith.maximumf %177, %178 : vector<14x16xf32>
    %181 = arith.maximumf %179, %180 : vector<14x16xf32>
    %c225 = arith.constant 225 : index
    %c0_130 = arith.constant 0 : index
    %182 = vector.load %arg9[%c225, %c0_130] : memref<256x16xf32, #tpu.memory_space<vmem>>, vector<14x16xf32>
    tpu.vector_store %arg9[%c225, %c0_130], %181 {strides = array<i32>} : memref<256x16xf32, #tpu.memory_space<vmem>>, vector<14x16xf32>,
    %c0_131 = arith.constant 0 : index
    %c0_132 = arith.constant 0 : index
    %183 = vector.load %arg9[%c0_131, %c0_132] : memref<256x16xf32, #tpu.memory_space<vmem>>, vector<256x16xf32>
    %184 = arith.truncf %183 : vector<256x16xf32> to vector<256x16xbf16>
    %c0_133 = arith.constant 0 : index
    %c0_134 = arith.constant 0 : index
    %c0_135 = arith.constant 0 : index
    %185 = vector.load %arg6[%c0_133, %c0_134, %c0_135] : memref<1x256x16xbf16, #tpu.memory_space<vmem>>, vector<1x256x16xbf16>
    %186 = vector.shape_cast %185 : vector<1x256x16xbf16> to vector<256x16xbf16>
    %187 = vector.shape_cast %184 : vector<256x16xbf16> to vector<1x256x16xbf16>
    tpu.vector_store %arg6[%c0_133, %c0_134, %c0_135], %187 {strides = array<i32>} : memref<1x256x16xbf16, #tpu.memory_space<vmem>>, vector<1x256x16xbf16>,
    return
  }
  func.func @transform_0(%arg0: i32) -> (i32, i32, i32) {
    %c0_i32 = arith.constant 0 : i32
    %c0_i32_0 = arith.constant 0 : i32
    %c0_i32_1 = arith.constant 0 : i32
    return %arg0, %c0_i32, %c0_i32_0 : i32, i32, i32
  }
  func.func @transform_1(%arg0: i32) -> (i32, i32, i32) {
    %c0_i32 = arith.constant 0 : i32
    %c0_i32_0 = arith.constant 0 : i32
    %c0_i32_1 = arith.constant 0 : i32
    %c0_i32_2 = arith.constant 0 : i32
    return %c0_i32, %c0_i32_0, %c0_i32_1 : i32, i32, i32
  }
  func.func @transform_2(%arg0: i32) -> (i32, i32) {
    %c0_i32 = arith.constant 0 : i32
    %c0_i32_0 = arith.constant 0 : i32
    %c0_i32_1 = arith.constant 0 : i32
    return %c0_i32, %c0_i32_0 : i32, i32
  }
  func.func @transform_3(%arg0: i32) -> (i32, i32) {
    %c0_i32 = arith.constant 0 : i32
    %c0_i32_0 = arith.constant 0 : i32
    %c0_i32_1 = arith.constant 0 : i32
    return %c0_i32, %c0_i32_0 : i32, i32
  }
  func.func @transform_4(%arg0: i32) -> (i32, i32) {
    %c0_i32 = arith.constant 0 : i32
    %c0_i32_0 = arith.constant 0 : i32
    %c0_i32_1 = arith.constant 0 : i32
    return %c0_i32, %c0_i32_0 : i32, i32
  }
  func.func @transform_5(%arg0: i32) -> (i32, i32, i32) {
    %c0_i32 = arith.constant 0 : i32
    %c0_i32_0 = arith.constant 0 : i32
    %c0_i32_1 = arith.constant 0 : i32
    return %arg0, %c0_i32, %c0_i32_0 : i32, i32, i32
  }
}

</mosaic_0001>

<llo_original>
// kernel: tpu_custom_call.1
$region0: #{tpu_custom_call.1}
  #allocation0 [shape = 'u32[]', space=smem, size = 0x4, offset = 0x4, fixed_abs, tag = 'smem constant byte address 0x4 - core index']
  #allocation1 [shape = 'u32[144,128]{1,0:T(1,128)}', space=vmem, size = 0x12000, scoped, tag = 'internal scratch']
  #allocation2 [shape = 'f32[900,3]{1,0:T(8,128)}', space=vmem, size = 0x71000, scoped, tag = 'scratch operand']
  #allocation3 [shape = 'f32[838,16]{1,0:T(8,128)}', space=vmem, size = 0x69000, scoped, tag = 'scratch operand']
  #allocation4 [shape = 'f32[256,16]{1,0:T(8,128)}', space=vmem, size = 0x20000, scoped, tag = 'scratch operand']
  %s0 = inlined_call_operand.vmem [shape: bf16[2,900,3], index: 0, kind: input, shape index: {}]
  %s1 = inlined_call_operand.vmem [shape: bf16[9,3,16], index: 1, kind: input, shape index: {}]
  %s2 = inlined_call_operand.vmem [shape: f32[1,16], index: 2, kind: input, shape index: {}]
  %s3 = inlined_call_operand.vmem [shape: f32[1,16], index: 3, kind: input, shape index: {}]
  %s4 = inlined_call_operand.vmem [shape: f32[838,1], index: 4, kind: input, shape index: {}]
  %s5 = inlined_call_operand.vmem [shape: bf16[2,256,16], index: 5, kind: output, shape index: {}]
  %s6 = sld [smem:[#allocation0]]
  $region53: #{tpu_custom_call.1} parent=0
    _
  %s8 = ssub.s32 1, %s6
  %s9 = scalar_select 0, %s8, %s6
  loop: start=0, step=1, limit=4
  $region2: #{tpu_custom_call.1} parent=0 // loop_pre_header
    _
  $region3: #{tpu_custom_call.1} parent=0 // loop_header
    %s11 = sphi 0, %s15
    %p12 = scmp.ge.s32.totalorder %s11, 4
    %s21 = sphi 0, %s23
    %s24 = sphi 0, %s21
    %s25 = sphi 0, %s24
    %s41 = sphi 0, %s25
    %s45 = sphi 0, %s45
    %s47 = sphi 0, %s45
    %s48 = sphi 0, %s47
    %s62 = sphi 0, %s48
    %s66 = sphi 0, %s66
    %s68 = sphi 0, %s66
    %s69 = sphi 0, %s68
    %s83 = sphi 0, %s69
    %s87 = sphi 0, %s87
    %s89 = sphi 0, %s87
    %s90 = sphi 0, %s89
    %s104 = sphi 0, %s90
    %s108 = sphi 0, %s108
    %s110 = sphi 0, %s108
    %s111 = sphi 0, %s110
    %s125 = sphi 0, %s111
    %s131 = sphi 0, %s133
    %s134 = sphi 0, %s131
    %s135 = sphi 0, %s134
    %s151 = sphi 0, %s135
  $region4: #{tpu_custom_call.1} parent=0 // loop_header_branch
    %14 = sbr.rel (%p12) target = $region8
  $region5: #{tpu_custom_call.1} parent=0 // loop_body
    %s16 = ssub.s32 %s11, 1
    %s17 = ssub.s32 %s11, 2
    %s18 = sadd.s32 %s11, 1
    %s19 = ssub.s32 %s11, %s18
    %p20 = scmp.eq.s32.totalorder %s19, 0
    %s22 = sadd.s32 %s21, 1
    %s23 = scalar_select %p20, %s21, %s22
    %p26 = pneg %p20
    %p27 = scmp.eq.s32.totalorder %s11, 1
    %p28 = por %p26, %p27
    %p29 = scmp.ne.s32.totalorder %s21, %s24
    %p30 = scmp.eq.s32.totalorder %s11, 0
    %p31 = por %p29, %p30
    %p32 = scmp.ne.s32.totalorder %s21, %s24
    %p33 = scmp.eq.s32.totalorder %s16, 1
    %p34 = por %p32, %p33
    %p35 = scmp.ne.s32.totalorder %s24, %s25
    %p36 = scmp.eq.s32.totalorder %s16, 0
    %p37 = por %p35, %p36
    %p38 = scmp.ne.s32.totalorder %s24, %s25
    %p39 = scmp.eq.s32.totalorder %s17, 1
    %p40 = por %p38, %p39
    %p42 = scmp.ne.s32.totalorder %s25, %s41
    %p43 = scmp.eq.s32.totalorder %s17, 0
    %p44 = por %p42, %p43
    %s46 = sadd.s32 %s45, 1
    %p49 = scmp.eq.s32.totalorder %s11, 1
    %p50 = scmp.ne.s32.totalorder %s45, %s47
    %p51 = scmp.eq.s32.totalorder %s11, 0
    %p52 = por %p50, %p51
    %p53 = scmp.ne.s32.totalorder %s45, %s47
    %p54 = scmp.eq.s32.totalorder %s16, 1
    %p55 = por %p53, %p54
    %p56 = scmp.ne.s32.totalorder %s47, %s48
    %p57 = scmp.eq.s32.totalorder %s16, 0
    %p58 = por %p56, %p57
    %p59 = scmp.ne.s32.totalorder %s47, %s48
    %p60 = scmp.eq.s32.totalorder %s17, 1
    %p61 = por %p59, %p60
    %p63 = scmp.ne.s32.totalorder %s48, %s62
    %p64 = scmp.eq.s32.totalorder %s17, 0
    %p65 = por %p63, %p64
    %s67 = sadd.s32 %s66, 1
    %p70 = scmp.eq.s32.totalorder %s11, 1
    %p71 = scmp.ne.s32.totalorder %s66, %s68
    %p72 = scmp.eq.s32.totalorder %s11, 0
    %p73 = por %p71, %p72
    %p74 = scmp.ne.s32.totalorder %s66, %s68
    %p75 = scmp.eq.s32.totalorder %s16, 1
    %p76 = por %p74, %p75
    %p77 = scmp.ne.s32.totalorder %s68, %s69
    %p78 = scmp.eq.s32.totalorder %s16, 0
    %p79 = por %p77, %p78
    %p80 = scmp.ne.s32.totalorder %s68, %s69
    %p81 = scmp.eq.s32.totalorder %s17, 1
    %p82 = por %p80, %p81
    %p84 = scmp.ne.s32.totalorder %s69, %s83
    %p85 = scmp.eq.s32.totalorder %s17, 0
    %p86 = por %p84, %p85
    %s88 = sadd.s32 %s87, 1
    %p91 = scmp.eq.s32.totalorder %s11, 1
    %p92 = scmp.ne.s32.totalorder %s87, %s89
    %p93 = scmp.eq.s32.totalorder %s11, 0
    %p94 = por %p92, %p93
    %p95 = scmp.ne.s32.totalorder %s87, %s89
    %p96 = scmp.eq.s32.totalorder %s16, 1
    %p97 = por %p95, %p96
    %p98 = scmp.ne.s32.totalorder %s89, %s90
    %p99 = scmp.eq.s32.totalorder %s16, 0
    %p100 = por %p98, %p99
    %p101 = scmp.ne.s32.totalorder %s89, %s90
    %p102 = scmp.eq.s32.totalorder %s17, 1
    %p103 = por %p101, %p102
    %p105 = scmp.ne.s32.totalorder %s90, %s104
    %p106 = scmp.eq.s32.totalorder %s17, 0
    %p107 = por %p105, %p106
    %s109 = sadd.s32 %s108, 1
    %p112 = scmp.eq.s32.totalorder %s11, 1
    %p113 = scmp.ne.s32.totalorder %s108, %s110
    %p114 = scmp.eq.s32.totalorder %s11, 0
    %p115 = por %p113, %p114
    %p116 = scmp.ne.s32.totalorder %s108, %s110
    %p117 = scmp.eq.s32.totalorder %s16, 1
    %p118 = por %p116, %p117
    %p119 = scmp.ne.s32.totalorder %s110, %s111
    %p120 = scmp.eq.s32.totalorder %s16, 0
    %p121 = por %p119, %p120
    %p122 = scmp.ne.s32.totalorder %s110, %s111
    %p123 = scmp.eq.s32.totalorder %s17, 1
    %p124 = por %p122, %p123
    %p126 = scmp.ne.s32.totalorder %s111, %s125
    %p127 = scmp.eq.s32.totalorder %s17, 0
    %p128 = por %p126, %p127
    %s129 = ssub.s32 %s11, %s18
    %p130 = scmp.eq.s32.totalorder %s129, 0
    %s132 = sadd.s32 %s131, 1
    %s133 = scalar_select %p130, %s131, %s132
    %p136 = pneg %p130
    %p137 = scmp.eq.s32.totalorder %s11, 1
    %p138 = por %p136, %p137
    %p139 = scmp.ne.s32.totalorder %s131, %s134
    %p140 = scmp.eq.s32.totalorder %s11, 0
    %p141 = por %p139, %p140
    %p142 = scmp.ne.s32.totalorder %s131, %s134
    %p143 = scmp.eq.s32.totalorder %s16, 1
    %p144 = por %p142, %p143
    %p145 = scmp.ne.s32.totalorder %s134, %s135
    %p146 = scmp.eq.s32.totalorder %s16, 0
    %p147 = por %p145, %p146
    %p148 = scmp.ne.s32.totalorder %s134, %s135
    %p149 = scmp.eq.s32.totalorder %s17, 1
    %p150 = por %p148, %p149
    %p152 = scmp.ne.s32.totalorder %s135, %s151
    %p153 = scmp.eq.s32.totalorder %s17, 0
    %p154 = por %p152, %p153
    %p155 = scmp.le.s32.totalorder 1, %s11
    %p156 = scmp.lt.s32.totalorder %s11, 3
    %p157 = pnand %p155, %p156
    %p158 = pneg %p157
    // Predicated region
    $region9: #{tpu_custom_call.1} parent=5 // pred_check
      _
    $region10: #{tpu_custom_call.1} parent=5 // pred_check_branch
      %160 = sbr.rel (%p157) target = $region12
    $region11: #{tpu_custom_call.1} parent=5 // pred_region
      %s161 = ssub.s32 %s11, 1
      // Predicated region
      $region13: #{tpu_custom_call.1} parent=11 // pred_check
        %p162 = pneg %p58
      $region14: #{tpu_custom_call.1} parent=11 // pred_check_branch
        %164 = sbr.rel (%p162) target = $region16
      $region15: #{tpu_custom_call.1} parent=11 // pred_region
        _
      $region16: #{tpu_custom_call.1} parent=11 // pred_fallthru
        _
      // Predicated region
      $region17: #{tpu_custom_call.1} parent=11 // pred_check
        %p165 = pneg %p79
      $region18: #{tpu_custom_call.1} parent=11 // pred_check_branch
        %167 = sbr.rel (%p165) target = $region20
      $region19: #{tpu_custom_call.1} parent=11 // pred_region
        _
      $region20: #{tpu_custom_call.1} parent=11 // pred_fallthru
        _
      // Predicated region
      $region21: #{tpu_custom_call.1} parent=11 // pred_check
        %p168 = pneg %p100
      $region22: #{tpu_custom_call.1} parent=11 // pred_check_branch
        %170 = sbr.rel (%p168) target = $region24
      $region23: #{tpu_custom_call.1} parent=11 // pred_region
        _
      $region24: #{tpu_custom_call.1} parent=11 // pred_fallthru
        _
      // Predicated region
      $region25: #{tpu_custom_call.1} parent=11 // pred_check
        %p171 = pneg %p121
      $region26: #{tpu_custom_call.1} parent=11 // pred_check_branch
        %173 = sbr.rel (%p171) target = $region28
      $region27: #{tpu_custom_call.1} parent=11 // pred_region
        _
      $region28: #{tpu_custom_call.1} parent=11 // pred_fallthru
        _
    $region12: #{tpu_custom_call.1} parent=5 // pred_fallthru
      _
    %p174 = scmp.lt.s32.totalorder %s11, 2
    // Predicated region
    $region29: #{tpu_custom_call.1} parent=5 // pred_check
      %p175 = pneg %p174
    $region30: #{tpu_custom_call.1} parent=5 // pred_check_branch
      %177 = sbr.rel (%p175) target = $region32
    $region31: #{tpu_custom_call.1} parent=5 // pred_region
      // Predicated region
      $region33: #{tpu_custom_call.1} parent=31 // pred_check
        %p178 = pneg %p31
      $region34: #{tpu_custom_call.1} parent=31 // pred_check_branch
        %180 = sbr.rel (%p178) target = $region36
      $region35: #{tpu_custom_call.1} parent=31 // pred_region
        %p181 = scmp.lt.s32.totalorder %s11, 1
        %s182 = scalar_select %p181, %s11, 1
        %s183 = smul.addr %s182, 113
        %s184 = smul.addr %s183, 4
        %s185 = scalar_lea.vmem %s0, %s184
      $region36: #{tpu_custom_call.1} parent=31 // pred_fallthru
        _
    $region32: #{tpu_custom_call.1} parent=5 // pred_fallthru
      _
    %p186 = scmp.le.s32.totalorder 1, %s11
    %p187 = scmp.lt.s32.totalorder %s11, 3
    %p188 = pnand %p186, %p187
    %p189 = pneg %p188
    // Predicated region
    $region37: #{tpu_custom_call.1} parent=5 // pred_check
      _
    $region38: #{tpu_custom_call.1} parent=5 // pred_check_branch
      %191 = sbr.rel (%p188) target = $region40
    $region39: #{tpu_custom_call.1} parent=5 // pred_region
      %s192 = ssub.s32 %s11, 1
      %p193 = scmp.lt.s32.totalorder %s16, 1
      %s194 = scalar_select %p193, %s16, 1
      %s195 = smul.addr %s194, 113
      %s196 = smul.addr %s195, 4
      %s197 = scalar_lea.vmem %s0, %s196
      %p198 = pneg %p37
      %p199 = pneg %p34
      %p200 = pneg %p58
      %p201 = pneg %p55
      %p202 = pneg %p79
      %p203 = pneg %p76
      %p204 = pneg %p100
      %p205 = pneg %p97
      %p206 = pneg %p121
      %p207 = pneg %p118
      %p208 = pneg %p147
      %p209 = pneg %p144
      %p210 = scmp.lt.s32.totalorder %s16, 1
      %s211 = scalar_select %p210, %s16, 1
      %s212 = smul.addr %s211, 32
      %s213 = smul.addr %s212, 4
      %s214 = scalar_lea.vmem %s5, %s213
      %p215 = scmp.lt.s32.totalorder %s16, 1
      %s216 = scalar_select %p215, %s16, 1
      %s217 = smul.addr %s216, 113
      %s218 = smul.addr %s217, 4
      %s219 = scalar_lea.vmem %s0, %s218
      %p220 = scmp.lt.s32.totalorder %s16, 1
      %s221 = scalar_select %p220, %s16, 1
      %s222 = smul.addr %s221, 32
      %s223 = smul.addr %s222, 4
      %s224 = scalar_lea.vmem %s5, %s223
      %v226 = vld [vmem:[%s219] sm:$0xf]
      %v227 = vld [vmem:[%s219 + $0x4] sm:$0xf]
      %v228 = vld [vmem:[%s219 + $0x8] sm:$0xf]
      %v229 = vld [vmem:[%s219 + $0xc] sm:$0xf]
      %v230 = vld [vmem:[%s219 + $0x10] sm:$0xf]
      %v231 = vld [vmem:[%s219 + $0x14] sm:$0xf]
      %v232 = vld [vmem:[%s219 + $0x18] sm:$0xf]
      %v233 = vld [vmem:[%s219 + $0x1c] sm:$0xf]
      %v234 = vld [vmem:[%s219 + $0x20] sm:$0xf]
      %v235 = vld [vmem:[%s219 + $0x24] sm:$0xf]
      %v236 = vld [vmem:[%s219 + $0x28] sm:$0xf]
      %v237 = vld [vmem:[%s219 + $0x2c] sm:$0xf]
      %v238 = vld [vmem:[%s219 + $0x30] sm:$0xf]
      %v239 = vld [vmem:[%s219 + $0x34] sm:$0xf]
      %v240 = vld [vmem:[%s219 + $0x38] sm:$0xf]
      %v241 = vld [vmem:[%s219 + $0x3c] sm:$0xf]
      %v242 = vld [vmem:[%s219 + $0x40] sm:$0xf]
      %v243 = vld [vmem:[%s219 + $0x44] sm:$0xf]
      %v244 = vld [vmem:[%s219 + $0x48] sm:$0xf]
      %v245 = vld [vmem:[%s219 + $0x4c] sm:$0xf]
      %v246 = vld [vmem:[%s219 + $0x50] sm:$0xf]
      %v247 = vld [vmem:[%s219 + $0x54] sm:$0xf]
      %v248 = vld [vmem:[%s219 + $0x58] sm:$0xf]
      %v249 = vld [vmem:[%s219 + $0x5c] sm:$0xf]
      %v250 = vld [vmem:[%s219 + $0x60] sm:$0xf]
      %v251 = vld [vmem:[%s219 + $0x64] sm:$0xf]
      %v252 = vld [vmem:[%s219 + $0x68] sm:$0xf]
      %v253 = vld [vmem:[%s219 + $0x6c] sm:$0xf]
      %v254 = vld [vmem:[%s219 + $0x70] sm:$0xf]
      %v255 = vld [vmem:[%s219 + $0x74] sm:$0xf]
      %v256 = vld [vmem:[%s219 + $0x78] sm:$0xf]
      %v257 = vld [vmem:[%s219 + $0x7c] sm:$0xf]
      %v258 = vld [vmem:[%s219 + $0x80] sm:$0xf]
      %v259 = vld [vmem:[%s219 + $0x84] sm:$0xf]
      %v260 = vld [vmem:[%s219 + $0x88] sm:$0xf]
      %v261 = vld [vmem:[%s219 + $0x8c] sm:$0xf]
      %v262 = vld [vmem:[%s219 + $0x90] sm:$0xf]
      %v263 = vld [vmem:[%s219 + $0x94] sm:$0xf]
      %v264 = vld [vmem:[%s219 + $0x98] sm:$0xf]
      %v265 = vld [vmem:[%s219 + $0x9c] sm:$0xf]
      %v266 = vld [vmem:[%s219 + $0xa0] sm:$0xf]
      %v267 = vld [vmem:[%s219 + $0xa4] sm:$0xf]
      %v268 = vld [vmem:[%s219 + $0xa8] sm:$0xf]
      %v269 = vld [vmem:[%s219 + $0xac] sm:$0xf]
      %v270 = vld [vmem:[%s219 + $0xb0] sm:$0xf]
      %v271 = vld [vmem:[%s219 + $0xb4] sm:$0xf]
      %v272 = vld [vmem:[%s219 + $0xb8] sm:$0xf]
      %v273 = vld [vmem:[%s219 + $0xbc] sm:$0xf]
      %v274 = vld [vmem:[%s219 + $0xc0] sm:$0xf]
      %v275 = vld [vmem:[%s219 + $0xc4] sm:$0xf]
      %v276 = vld [vmem:[%s219 + $0xc8] sm:$0xf]
      %v277 = vld [vmem:[%s219 + $0xcc] sm:$0xf]
      %v278 = vld [vmem:[%s219 + $0xd0] sm:$0xf]
      %v279 = vld [vmem:[%s219 + $0xd4] sm:$0xf]
      %v280 = vld [vmem:[%s219 + $0xd8] sm:$0xf]
      %v281 = vld [vmem:[%s219 + $0xdc] sm:$0xf]
      %v282 = vld [vmem:[%s219 + $0xe0] sm:$0xf]
      %v283 = vld [vmem:[%s219 + $0xe4] sm:$0xf]
      %v284 = vld [vmem:[%s219 + $0xe8] sm:$0xf]
      %v285 = vld [vmem:[%s219 + $0xec] sm:$0xf]
      %v286 = vld [vmem:[%s219 + $0xf0] sm:$0xf]
      %v287 = vld [vmem:[%s219 + $0xf4] sm:$0xf]
      %v288 = vld [vmem:[%s219 + $0xf8] sm:$0xf]
      %v289 = vld [vmem:[%s219 + $0xfc] sm:$0xf]
      %v290 = vld [vmem:[%s219 + $0x100] sm:$0xf]
      %v291 = vld [vmem:[%s219 + $0x104] sm:$0xf]
      %v292 = vld [vmem:[%s219 + $0x108] sm:$0xf]
      %v293 = vld [vmem:[%s219 + $0x10c] sm:$0xf]
      %v294 = vld [vmem:[%s219 + $0x110] sm:$0xf]
      %v295 = vld [vmem:[%s219 + $0x114] sm:$0xf]
      %v296 = vld [vmem:[%s219 + $0x118] sm:$0xf]
      %v297 = vld [vmem:[%s219 + $0x11c] sm:$0xf]
      %v298 = vld [vmem:[%s219 + $0x120] sm:$0xf]
      %v299 = vld [vmem:[%s219 + $0x124] sm:$0xf]
      %v300 = vld [vmem:[%s219 + $0x128] sm:$0xf]
      %v301 = vld [vmem:[%s219 + $0x12c] sm:$0xf]
      %v302 = vld [vmem:[%s219 + $0x130] sm:$0xf]
      %v303 = vld [vmem:[%s219 + $0x134] sm:$0xf]
      %v304 = vld [vmem:[%s219 + $0x138] sm:$0xf]
      %v305 = vld [vmem:[%s219 + $0x13c] sm:$0xf]
      %v306 = vld [vmem:[%s219 + $0x140] sm:$0xf]
      %v307 = vld [vmem:[%s219 + $0x144] sm:$0xf]
      %v308 = vld [vmem:[%s219 + $0x148] sm:$0xf]
      %v309 = vld [vmem:[%s219 + $0x14c] sm:$0xf]
      %v310 = vld [vmem:[%s219 + $0x150] sm:$0xf]
      %v311 = vld [vmem:[%s219 + $0x154] sm:$0xf]
      %v312 = vld [vmem:[%s219 + $0x158] sm:$0xf]
      %v313 = vld [vmem:[%s219 + $0x15c] sm:$0xf]
      %v314 = vld [vmem:[%s219 + $0x160] sm:$0xf]
      %v315 = vld [vmem:[%s219 + $0x164] sm:$0xf]
      %v316 = vld [vmem:[%s219 + $0x168] sm:$0xf]
      %v317 = vld [vmem:[%s219 + $0x16c] sm:$0xf]
      %v318 = vld [vmem:[%s219 + $0x170] sm:$0xf]
      %v319 = vld [vmem:[%s219 + $0x174] sm:$0xf]
      %v320 = vld [vmem:[%s219 + $0x178] sm:$0xf]
      %v321 = vld [vmem:[%s219 + $0x17c] sm:$0xf]
      %v322 = vld [vmem:[%s219 + $0x180] sm:$0xf]
      %v323 = vld [vmem:[%s219 + $0x184] sm:$0xf]
      %v324 = vld [vmem:[%s219 + $0x188] sm:$0xf]
      %v325 = vld [vmem:[%s219 + $0x18c] sm:$0xf]
      %v326 = vld [vmem:[%s219 + $0x190] sm:$0xf]
      %v327 = vld [vmem:[%s219 + $0x194] sm:$0xf]
      %v328 = vld [vmem:[%s219 + $0x198] sm:$0xf]
      %v329 = vld [vmem:[%s219 + $0x19c] sm:$0xf]
      %v330 = vld [vmem:[%s219 + $0x1a0] sm:$0xf]
      %v331 = vld [vmem:[%s219 + $0x1a4] sm:$0xf]
      %v332 = vld [vmem:[%s219 + $0x1a8] sm:$0xf]
      %v333 = vld [vmem:[%s219 + $0x1ac] sm:$0xf]
      %v334 = vld [vmem:[%s219 + $0x1b0] sm:$0xf]
      %v335 = vld [vmem:[%s219 + $0x1b4] sm:$0xf]
      %v336 = vld [vmem:[%s219 + $0x1b8] sm:$0xf]
      %v337 = vld [vmem:[%s219 + $0x1bc] sm:$0xf]
      %v338 = vld [vmem:[%s219 + $0x1c0] sm:$0x3]
      %v339 = vunpack.c.l.bf16 %v226
      %v340 = vunpack.c.l.bf16 %v227
      %v341 = vunpack.c.l.bf16 %v228
      %v342 = vunpack.c.l.bf16 %v229
      %v343 = vunpack.c.l.bf16 %v230
      %v344 = vunpack.c.l.bf16 %v231
      %v345 = vunpack.c.l.bf16 %v232
      %v346 = vunpack.c.l.bf16 %v233
      %v347 = vunpack.c.l.bf16 %v234
      %v348 = vunpack.c.l.bf16 %v235
      %v349 = vunpack.c.l.bf16 %v236
      %v350 = vunpack.c.l.bf16 %v237
      %v351 = vunpack.c.l.bf16 %v238
      %v352 = vunpack.c.l.bf16 %v239
      %v353 = vunpack.c.l.bf16 %v240
      %v354 = vunpack.c.l.bf16 %v241
      %v355 = vunpack.c.l.bf16 %v242
      %v356 = vunpack.c.l.bf16 %v243
      %v357 = vunpack.c.l.bf16 %v244
      %v358 = vunpack.c.l.bf16 %v245
      %v359 = vunpack.c.l.bf16 %v246
      %v360 = vunpack.c.l.bf16 %v247
      %v361 = vunpack.c.l.bf16 %v248
      %v362 = vunpack.c.l.bf16 %v249
      %v363 = vunpack.c.l.bf16 %v250
      %v364 = vunpack.c.l.bf16 %v251
      %v365 = vunpack.c.l.bf16 %v252
      %v366 = vunpack.c.l.bf16 %v253
      %v367 = vunpack.c.l.bf16 %v254
      %v368 = vunpack.c.l.bf16 %v255
      %v369 = vunpack.c.l.bf16 %v256
      %v370 = vunpack.c.l.bf16 %v257
      %v371 = vunpack.c.l.bf16 %v258
      %v372 = vunpack.c.l.bf16 %v259
      %v373 = vunpack.c.l.bf16 %v260
      %v374 = vunpack.c.l.bf16 %v261
      %v375 = vunpack.c.l.bf16 %v262
      %v376 = vunpack.c.l.bf16 %v263
      %v377 = vunpack.c.l.bf16 %v264
      %v378 = vunpack.c.l.bf16 %v265
      %v379 = vunpack.c.l.bf16 %v266
      %v380 = vunpack.c.l.bf16 %v267
      %v381 = vunpack.c.l.bf16 %v268
      %v382 = vunpack.c.l.bf16 %v269
      %v383 = vunpack.c.l.bf16 %v270
      %v384 = vunpack.c.l.bf16 %v271
      %v385 = vunpack.c.l.bf16 %v272
      %v386 = vunpack.c.l.bf16 %v273
      %v387 = vunpack.c.l.bf16 %v274
      %v388 = vunpack.c.l.bf16 %v275
      %v389 = vunpack.c.l.bf16 %v276
      %v390 = vunpack.c.l.bf16 %v277
      %v391 = vunpack.c.l.bf16 %v278
      %v392 = vunpack.c.l.bf16 %v279
      %v393 = vunpack.c.l.bf16 %v280
      %v394 = vunpack.c.l.bf16 %v281
      %v395 = vunpack.c.l.bf16 %v282
      %v396 = vunpack.c.l.bf16 %v283
      %v397 = vunpack.c.l.bf16 %v284
      %v398 = vunpack.c.l.bf16 %v285
      %v399 = vunpack.c.l.bf16 %v286
      %v400 = vunpack.c.l.bf16 %v287
      %v401 = vunpack.c.l.bf16 %v288
      %v402 = vunpack.c.l.bf16 %v289
      %v403 = vunpack.c.l.bf16 %v290
      %v404 = vunpack.c.l.bf16 %v291
      %v405 = vunpack.c.l.bf16 %v292
      %v406 = vunpack.c.l.bf16 %v293
      %v407 = vunpack.c.l.bf16 %v294
      %v408 = vunpack.c.l.bf16 %v295
      %v409 = vunpack.c.l.bf16 %v296
      %v410 = vunpack.c.l.bf16 %v297
      %v411 = vunpack.c.l.bf16 %v298
      %v412 = vunpack.c.l.bf16 %v299
      %v413 = vunpack.c.l.bf16 %v300
      %v414 = vunpack.c.l.bf16 %v301
      %v415 = vunpack.c.l.bf16 %v302
      %v416 = vunpack.c.l.bf16 %v303
      %v417 = vunpack.c.l.bf16 %v304
      %v418 = vunpack.c.l.bf16 %v305
      %v419 = vunpack.c.l.bf16 %v306
      %v420 = vunpack.c.l.bf16 %v307
      %v421 = vunpack.c.l.bf16 %v308
      %v422 = vunpack.c.l.bf16 %v309
      %v423 = vunpack.c.l.bf16 %v310
      %v424 = vunpack.c.l.bf16 %v311
      %v425 = vunpack.c.l.bf16 %v312
      %v426 = vunpack.c.l.bf16 %v313
      %v427 = vunpack.c.l.bf16 %v314
      %v428 = vunpack.c.l.bf16 %v315
      %v429 = vunpack.c.l.bf16 %v316
      %v430 = vunpack.c.l.bf16 %v317
      %v431 = vunpack.c.l.bf16 %v318
      %v432 = vunpack.c.l.bf16 %v319
      %v433 = vunpack.c.l.bf16 %v320
      %v434 = vunpack.c.l.bf16 %v321
      %v435 = vunpack.c.l.bf16 %v322
      %v436 = vunpack.c.l.bf16 %v323
      %v437 = vunpack.c.l.bf16 %v324
      %v438 = vunpack.c.l.bf16 %v325
      %v439 = vunpack.c.l.bf16 %v326
      %v440 = vunpack.c.l.bf16 %v327
      %v441 = vunpack.c.l.bf16 %v328
      %v442 = vunpack.c.l.bf16 %v329
      %v443 = vunpack.c.l.bf16 %v330
      %v444 = vunpack.c.l.bf16 %v331
      %v445 = vunpack.c.l.bf16 %v332
      %v446 = vunpack.c.l.bf16 %v333
      %v447 = vunpack.c.l.bf16 %v334
      %v448 = vunpack.c.l.bf16 %v335
      %v449 = vunpack.c.l.bf16 %v336
      %v450 = vunpack.c.l.bf16 %v337
      %v451 = vunpack.c.l.bf16 %v338
      %vm452 = vcmask 23552
      %453 = vst.msk [vmem:[#allocation2] sm:$0xff] %vm452, %v339
      %454 = vst.msk [vmem:[#allocation2 + $0x8] sm:$0xff] %vm452, %v340
      %455 = vst.msk [vmem:[#allocation2 + $0x10] sm:$0xff] %vm452, %v341
      %456 = vst.msk [vmem:[#allocation2 + $0x18] sm:$0xff] %vm452, %v342
      %457 = vst.msk [vmem:[#allocation2 + $0x20] sm:$0xff] %vm452, %v343
      %458 = vst.msk [vmem:[#allocation2 + $0x28] sm:$0xff] %vm452, %v344
      %459 = vst.msk [vmem:[#allocation2 + $0x30] sm:$0xff] %vm452, %v345
      %460 = vst.msk [vmem:[#allocation2 + $0x38] sm:$0xff] %vm452, %v346
      %461 = vst.msk [vmem:[#allocation2 + $0x40] sm:$0xff] %vm452, %v347
      %462 = vst.msk [vmem:[#allocation2 + $0x48] sm:$0xff] %vm452, %v348
      %463 = vst.msk [vmem:[#allocation2 + $0x50] sm:$0xff] %vm452, %v349
      %464 = vst.msk [vmem:[#allocation2 + $0x58] sm:$0xff] %vm452, %v350
      %465 = vst.msk [vmem:[#allocation2 + $0x60] sm:$0xff] %vm452, %v351
      %466 = vst.msk [vmem:[#allocation2 + $0x68] sm:$0xff] %vm452, %v352
      %467 = vst.msk [vmem:[#allocation2 + $0x70] sm:$0xff] %vm452, %v353
      %468 = vst.msk [vmem:[#allocation2 + $0x78] sm:$0xff] %vm452, %v354
      %469 = vst.msk [vmem:[#allocation2 + $0x80] sm:$0xff] %vm452, %v355
      %470 = vst.msk [vmem:[#allocation2 + $0x88] sm:$0xff] %vm452, %v356
      %471 = vst.msk [vmem:[#allocation2 + $0x90] sm:$0xff] %vm452, %v357
      %472 = vst.msk [vmem:[#allocation2 + $0x98] sm:$0xff] %vm452, %v358
      %473 = vst.msk [vmem:[#allocation2 + $0xa0] sm:$0xff] %vm452, %v359
      %474 = vst.msk [vmem:[#allocation2 + $0xa8] sm:$0xff] %vm452, %v360
      %475 = vst.msk [vmem:[#allocation2 + $0xb0] sm:$0xff] %vm452, %v361
      %476 = vst.msk [vmem:[#allocation2 + $0xb8] sm:$0xff] %vm452, %v362
      %477 = vst.msk [vmem:[#allocation2 + $0xc0] sm:$0xff] %vm452, %v363
      %478 = vst.msk [vmem:[#allocation2 + $0xc8] sm:$0xff] %vm452, %v364
      %479 = vst.msk [vmem:[#allocation2 + $0xd0] sm:$0xff] %vm452, %v365
      %480 = vst.msk [vmem:[#allocation2 + $0xd8] sm:$0xff] %vm452, %v366
      %481 = vst.msk [vmem:[#allocation2 + $0xe0] sm:$0xff] %vm452, %v367
      %482 = vst.msk [vmem:[#allocation2 + $0xe8] sm:$0xff] %vm452, %v368
      %483 = vst.msk [vmem:[#allocation2 + $0xf0] sm:$0xff] %vm452, %v369
      %484 = vst.msk [vmem:[#allocation2 + $0xf8] sm:$0xff] %vm452, %v370
      %485 = vst.msk [vmem:[#allocation2 + $0x100] sm:$0xff] %vm452, %v371
      %486 = vst.msk [vmem:[#allocation2 + $0x108] sm:$0xff] %vm452, %v372
      %487 = vst.msk [vmem:[#allocation2 + $0x110] sm:$0xff] %vm452, %v373
      %488 = vst.msk [vmem:[#allocation2 + $0x118] sm:$0xff] %vm452, %v374
      %489 = vst.msk [vmem:[#allocation2 + $0x120] sm:$0xff] %vm452, %v375
      %490 = vst.msk [vmem:[#allocation2 + $0x128] sm:$0xff] %vm452, %v376
      %491 = vst.msk [vmem:[#allocation2 + $0x130] sm:$0xff] %vm452, %v377
      %492 = vst.msk [vmem:[#allocation2 + $0x138] sm:$0xff] %vm452, %v378
      %493 = vst.msk [vmem:[#allocation2 + $0x140] sm:$0xff] %vm452, %v379
      %494 = vst.msk [vmem:[#allocation2 + $0x148] sm:$0xff] %vm452, %v380
      %495 = vst.msk [vmem:[#allocation2 + $0x150] sm:$0xff] %vm452, %v381
      %496 = vst.msk [vmem:[#allocation2 + $0x158] sm:$0xff] %vm452, %v382
      %497 = vst.msk [vmem:[#allocation2 + $0x160] sm:$0xff] %vm452, %v383
      %498 = vst.msk [vmem:[#allocation2 + $0x168] sm:$0xff] %vm452, %v384
      %499 = vst.msk [vmem:[#allocation2 + $0x170] sm:$0xff] %vm452, %v385
      %500 = vst.msk [vmem:[#allocation2 + $0x178] sm:$0xff] %vm452, %v386
      %501 = vst.msk [vmem:[#allocation2 + $0x180] sm:$0xff] %vm452, %v387
      %502 = vst.msk [vmem:[#allocation2 + $0x188] sm:$0xff] %vm452, %v388
      %503 = vst.msk [vmem:[#allocation2 + $0x190] sm:$0xff] %vm452, %v389
      %504 = vst.msk [vmem:[#allocation2 + $0x198] sm:$0xff] %vm452, %v390
      %505 = vst.msk [vmem:[#allocation2 + $0x1a0] sm:$0xff] %vm452, %v391
      %506 = vst.msk [vmem:[#allocation2 + $0x1a8] sm:$0xff] %vm452, %v392
      %507 = vst.msk [vmem:[#allocation2 + $0x1b0] sm:$0xff] %vm452, %v393
      %508 = vst.msk [vmem:[#allocation2 + $0x1b8] sm:$0xff] %vm452, %v394
      %509 = vst.msk [vmem:[#allocation2 + $0x1c0] sm:$0xff] %vm452, %v395
      %510 = vst.msk [vmem:[#allocation2 + $0x1c8] sm:$0xff] %vm452, %v396
      %511 = vst.msk [vmem:[#allocation2 + $0x1d0] sm:$0xff] %vm452, %v397
      %512 = vst.msk [vmem:[#allocation2 + $0x1d8] sm:$0xff] %vm452, %v398
      %513 = vst.msk [vmem:[#allocation2 + $0x1e0] sm:$0xff] %vm452, %v399
      %514 = vst.msk [vmem:[#allocation2 + $0x1e8] sm:$0xff] %vm452, %v400
      %515 = vst.msk [vmem:[#allocation2 + $0x1f0] sm:$0xff] %vm452, %v401
      %516 = vst.msk [vmem:[#allocation2 + $0x1f8] sm:$0xff] %vm452, %v402
      %517 = vst.msk [vmem:[#allocation2 + $0x200] sm:$0xff] %vm452, %v403
      %518 = vst.msk [vmem:[#allocation2 + $0x208] sm:$0xff] %vm452, %v404
      %519 = vst.msk [vmem:[#allocation2 + $0x210] sm:$0xff] %vm452, %v405
      %520 = vst.msk [vmem:[#allocation2 + $0x218] sm:$0xff] %vm452, %v406
      %521 = vst.msk [vmem:[#allocation2 + $0x220] sm:$0xff] %vm452, %v407
      %522 = vst.msk [vmem:[#allocation2 + $0x228] sm:$0xff] %vm452, %v408
      %523 = vst.msk [vmem:[#allocation2 + $0x230] sm:$0xff] %vm452, %v409
      %524 = vst.msk [vmem:[#allocation2 + $0x238] sm:$0xff] %vm452, %v410
      %525 = vst.msk [vmem:[#allocation2 + $0x240] sm:$0xff] %vm452, %v411
      %526 = vst.msk [vmem:[#allocation2 + $0x248] sm:$0xff] %vm452, %v412
      %527 = vst.msk [vmem:[#allocation2 + $0x250] sm:$0xff] %vm452, %v413
      %528 = vst.msk [vmem:[#allocation2 + $0x258] sm:$0xff] %vm452, %v414
      %529 = vst.msk [vmem:[#allocation2 + $0x260] sm:$0xff] %vm452, %v415
      %530 = vst.msk [vmem:[#allocation2 + $0x268] sm:$0xff] %vm452, %v416
      %531 = vst.msk [vmem:[#allocation2 + $0x270] sm:$0xff] %vm452, %v417
      %532 = vst.msk [vmem:[#allocation2 + $0x278] sm:$0xff] %vm452, %v418
      %533 = vst.msk [vmem:[#allocation2 + $0x280] sm:$0xff] %vm452, %v419
      %534 = vst.msk [vmem:[#allocation2 + $0x288] sm:$0xff] %vm452, %v420
      %535 = vst.msk [vmem:[#allocation2 + $0x290] sm:$0xff] %vm452, %v421
      %536 = vst.msk [vmem:[#allocation2 + $0x298] sm:$0xff] %vm452, %v422
      %537 = vst.msk [vmem:[#allocation2 + $0x2a0] sm:$0xff] %vm452, %v423
      %538 = vst.msk [vmem:[#allocation2 + $0x2a8] sm:$0xff] %vm452, %v424
      %539 = vst.msk [vmem:[#allocation2 + $0x2b0] sm:$0xff] %vm452, %v425
      %540 = vst.msk [vmem:[#allocation2 + $0x2b8] sm:$0xff] %vm452, %v426
      %541 = vst.msk [vmem:[#allocation2 + $0x2c0] sm:$0xff] %vm452, %v427
      %542 = vst.msk [vmem:[#allocation2 + $0x2c8] sm:$0xff] %vm452, %v428
      %543 = vst.msk [vmem:[#allocation2 + $0x2d0] sm:$0xff] %vm452, %v429
      %544 = vst.msk [vmem:[#allocation2 + $0x2d8] sm:$0xff] %vm452, %v430
      %545 = vst.msk [vmem:[#allocation2 + $0x2e0] sm:$0xff] %vm452, %v431
      %546 = vst.msk [vmem:[#allocation2 + $0x2e8] sm:$0xff] %vm452, %v432
      %547 = vst.msk [vmem:[#allocation2 + $0x2f0] sm:$0xff] %vm452, %v433
      %548 = vst.msk [vmem:[#allocation2 + $0x2f8] sm:$0xff] %vm452, %v434
      %549 = vst.msk [vmem:[#allocation2 + $0x300] sm:$0xff] %vm452, %v435
      %550 = vst.msk [vmem:[#allocation2 + $0x308] sm:$0xff] %vm452, %v436
      %551 = vst.msk [vmem:[#allocation2 + $0x310] sm:$0xff] %vm452, %v437
      %552 = vst.msk [vmem:[#allocation2 + $0x318] sm:$0xff] %vm452, %v438
      %553 = vst.msk [vmem:[#allocation2 + $0x320] sm:$0xff] %vm452, %v439
      %554 = vst.msk [vmem:[#allocation2 + $0x328] sm:$0xff] %vm452, %v440
      %555 = vst.msk [vmem:[#allocation2 + $0x330] sm:$0xff] %vm452, %v441
      %556 = vst.msk [vmem:[#allocation2 + $0x338] sm:$0xff] %vm452, %v442
      %557 = vst.msk [vmem:[#allocation2 + $0x340] sm:$0xff] %vm452, %v443
      %558 = vst.msk [vmem:[#allocation2 + $0x348] sm:$0xff] %vm452, %v444
      %559 = vst.msk [vmem:[#allocation2 + $0x350] sm:$0xff] %vm452, %v445
      %560 = vst.msk [vmem:[#allocation2 + $0x358] sm:$0xff] %vm452, %v446
      %561 = vst.msk [vmem:[#allocation2 + $0x360] sm:$0xff] %vm452, %v447
      %562 = vst.msk [vmem:[#allocation2 + $0x368] sm:$0xff] %vm452, %v448
      %563 = vst.msk [vmem:[#allocation2 + $0x370] sm:$0xff] %vm452, %v449
      %564 = vst.msk [vmem:[#allocation2 + $0x378] sm:$0xff] %vm452, %v450
      %vm565 = vcmask 19456
      %566 = vst.msk [vmem:[#allocation2 + $0x380] sm:$0xf] %vm565, %v451
      %v567 = vld [vmem:[#allocation2] sm:$0xff]
      %v568 = vld [vmem:[#allocation2 + $0x8] sm:$0xff]
      %v569 = vld [vmem:[#allocation2 + $0x10] sm:$0xff]
      %v570 = vld [vmem:[#allocation2 + $0x18] sm:$0xff]
      %v571 = vld [vmem:[#allocation2 + $0x20] sm:$0xff]
      %v572 = vld [vmem:[#allocation2 + $0x28] sm:$0xff]
      %v573 = vld [vmem:[#allocation2 + $0x30] sm:$0xff]
      %v574 = vld [vmem:[#allocation2 + $0x38] sm:$0xff]
      %v575 = vld [vmem:[#allocation2 + $0x40] sm:$0xff]
      %v576 = vld [vmem:[#allocation2 + $0x48] sm:$0xff]
      %v577 = vld [vmem:[#allocation2 + $0x50] sm:$0xff]
      %v578 = vld [vmem:[#allocation2 + $0x58] sm:$0xff]
      %v579 = vld [vmem:[#allocation2 + $0x60] sm:$0xff]
      %v580 = vld [vmem:[#allocation2 + $0x68] sm:$0xff]
      %v581 = vld [vmem:[#allocation2 + $0x70] sm:$0xff]
      %v582 = vld [vmem:[#allocation2 + $0x78] sm:$0xff]
      %v583 = vld [vmem:[#allocation2 + $0x80] sm:$0xff]
      %v584 = vld [vmem:[#allocation2 + $0x88] sm:$0xff]
      %v585 = vld [vmem:[#allocation2 + $0x90] sm:$0xff]
      %v586 = vld [vmem:[#allocation2 + $0x98] sm:$0xff]
      %v587 = vld [vmem:[#allocation2 + $0xa0] sm:$0xff]
      %v588 = vld [vmem:[#allocation2 + $0xa8] sm:$0xff]
      %v589 = vld [vmem:[#allocation2 + $0xb0] sm:$0xff]
      %v590 = vld [vmem:[#allocation2 + $0xb8] sm:$0xff]
      %v591 = vld [vmem:[#allocation2 + $0xc0] sm:$0xff]
      %v592 = vld [vmem:[#allocation2 + $0xc8] sm:$0xff]
      %v593 = vld [vmem:[#allocation2 + $0xd0] sm:$0xff]
      %v594 = vld [vmem:[#allocation2 + $0xd8] sm:$0xff]
      %v595 = vld [vmem:[#allocation2 + $0xe0] sm:$0xff]
      %v596 = vld [vmem:[#allocation2 + $0xe8] sm:$0xff]
      %v597 = vld [vmem:[#allocation2 + $0xf0] sm:$0xff]
      %v598 = vld [vmem:[#allocation2 + $0xf8] sm:$0xff]
      %v599 = vld [vmem:[#allocation2 + $0x100] sm:$0xff]
      %v600 = vld [vmem:[#allocation2 + $0x108] sm:$0xff]
      %v601 = vld [vmem:[#allocation2 + $0x110] sm:$0xff]
      %v602 = vld [vmem:[#allocation2 + $0x118] sm:$0xff]
      %v603 = vld [vmem:[#allocation2 + $0x120] sm:$0xff]
      %v604 = vld [vmem:[#allocation2 + $0x128] sm:$0xff]
      %v605 = vld [vmem:[#allocation2 + $0x130] sm:$0xff]
      %v606 = vld [vmem:[#allocation2 + $0x138] sm:$0xff]
      %v607 = vld [vmem:[#allocation2 + $0x140] sm:$0xff]
      %v608 = vld [vmem:[#allocation2 + $0x148] sm:$0xff]
      %v609 = vld [vmem:[#allocation2 + $0x150] sm:$0xff]
      %v610 = vld [vmem:[#allocation2 + $0x158] sm:$0xff]
      %v611 = vld [vmem:[#allocation2 + $0x160] sm:$0xff]
      %v612 = vld [vmem:[#allocation2 + $0x168] sm:$0xff]
      %v613 = vld [vmem:[#allocation2 + $0x170] sm:$0xff]
      %v614 = vld [vmem:[#allocation2 + $0x178] sm:$0xff]
      %v615 = vld [vmem:[#allocation2 + $0x180] sm:$0xff]
      %v616 = vld [vmem:[#allocation2 + $0x188] sm:$0xff]
      %v617 = vld [vmem:[#allocation2 + $0x190] sm:$0xff]
      %v618 = vld [vmem:[#allocation2 + $0x198] sm:$0xff]
      %v619 = vld [vmem:[#allocation2 + $0x1a0] sm:$0xff]
      %v620 = vld [vmem:[#allocation2 + $0x1a8] sm:$0xff]
      %v621 = vld [vmem:[#allocation2 + $0x1b0] sm:$0xff]
      %v622 = vld [vmem:[#allocation2 + $0x1b8] sm:$0xff]
      %v623 = vld [vmem:[#allocation2 + $0x1c0] sm:$0xff]
      %v624 = vld [vmem:[#allocation2 + $0x1c8] sm:$0xff]
      %v625 = vld [vmem:[#allocation2 + $0x1d0] sm:$0xff]
      %v626 = vld [vmem:[#allocation2 + $0x1d8] sm:$0xff]
      %v627 = vld [vmem:[#allocation2 + $0x1e0] sm:$0xff]
      %v628 = vld [vmem:[#allocation2 + $0x1e8] sm:$0xff]
      %v629 = vld [vmem:[#allocation2 + $0x1f0] sm:$0xff]
      %v630 = vld [vmem:[#allocation2 + $0x1f8] sm:$0xff]
      %v631 = vld [vmem:[#allocation2 + $0x200] sm:$0xff]
      %v632 = vld [vmem:[#allocation2 + $0x208] sm:$0xff]
      %v633 = vld [vmem:[#allocation2 + $0x210] sm:$0xff]
      %v634 = vld [vmem:[#allocation2 + $0x218] sm:$0xff]
      %v635 = vld [vmem:[#allocation2 + $0x220] sm:$0xff]
      %v636 = vld [vmem:[#allocation2 + $0x228] sm:$0xff]
      %v637 = vld [vmem:[#allocation2 + $0x230] sm:$0xff]
      %v638 = vld [vmem:[#allocation2 + $0x238] sm:$0xff]
      %v639 = vld [vmem:[#allocation2 + $0x240] sm:$0xff]
      %v640 = vld [vmem:[#allocation2 + $0x248] sm:$0xff]
      %v641 = vld [vmem:[#allocation2 + $0x250] sm:$0xff]
      %v642 = vld [vmem:[#allocation2 + $0x258] sm:$0xff]
      %v643 = vld [vmem:[#allocation2 + $0x260] sm:$0xff]
      %v644 = vld [vmem:[#allocation2 + $0x268] sm:$0xff]
      %v645 = vld [vmem:[#allocation2 + $0x270] sm:$0xff]
      %v646 = vld [vmem:[#allocation2 + $0x278] sm:$0xff]
      %v647 = vld [vmem:[#allocation2 + $0x280] sm:$0xff]
      %v648 = vld [vmem:[#allocation2 + $0x288] sm:$0xff]
      %v649 = vld [vmem:[#allocation2 + $0x290] sm:$0xff]
      %v650 = vld [vmem:[#allocation2 + $0x298] sm:$0xff]
      %v651 = vld [vmem:[#allocation2 + $0x2a0] sm:$0xff]
      %v652 = vld [vmem:[#allocation2 + $0x2a8] sm:$0xff]
      %v653 = vld [vmem:[#allocation2 + $0x2b0] sm:$0xff]
      %v654 = vld [vmem:[#allocation2 + $0x2b8] sm:$0xff]
      %v655 = vld [vmem:[#allocation2 + $0x2c0] sm:$0xff]
      %v656 = vld [vmem:[#allocation2 + $0x2c8] sm:$0xff]
      %v657 = vld [vmem:[#allocation2 + $0x2d0] sm:$0xff]
      %v658 = vld [vmem:[#allocation2 + $0x2d8] sm:$0xff]
      %v659 = vld [vmem:[#allocation2 + $0x2e0] sm:$0xff]
      %v660 = vld [vmem:[#allocation2 + $0x2e8] sm:$0xff]
      %v661 = vld [vmem:[#allocation2 + $0x2f0] sm:$0xff]
      %v662 = vld [vmem:[#allocation2 + $0x2f8] sm:$0xff]
      %v663 = vld [vmem:[#allocation2 + $0x300] sm:$0xff]
      %v664 = vld [vmem:[#allocation2 + $0x308] sm:$0xff]
      %v665 = vld [vmem:[#allocation2 + $0x310] sm:$0xff]
      %v666 = vld [vmem:[#allocation2 + $0x318] sm:$0xff]
      %v667 = vld [vmem:[#allocation2 + $0x320] sm:$0xff]
      %v668 = vld [vmem:[#allocation2 + $0x328] sm:$0xff]
      %v669 = vld [vmem:[#allocation2 + $0x330] sm:$0xff]
      %v670 = vld [vmem:[#allocation2 + $0x338] sm:$0xff]
      %v671 = vld [vmem:[#allocation2 + $0x340] sm:$0x3f]
      %v672 = vpack.c.bf16 %v568, %v567
      %v673 = vpack.c.bf16 %v570, %v569
      %v674 = vpack.c.bf16 %v572, %v571
      %v675 = vpack.c.bf16 %v574, %v573
      %v676 = vpack.c.bf16 %v576, %v575
      %v677 = vpack.c.bf16 %v578, %v577
      %v678 = vpack.c.bf16 %v580, %v579
      %v679 = vpack.c.bf16 %v582, %v581
      %v680 = vpack.c.bf16 %v584, %v583
      %v681 = vpack.c.bf16 %v586, %v585
      %v682 = vpack.c.bf16 %v588, %v587
      %v683 = vpack.c.bf16 %v590, %v589
      %v684 = vpack.c.bf16 %v592, %v591
      %v685 = vpack.c.bf16 %v594, %v593
      %v686 = vpack.c.bf16 %v596, %v595
      %v687 = vpack.c.bf16 %v598, %v597
      %v688 = vpack.c.bf16 %v600, %v599
      %v689 = vpack.c.bf16 %v602, %v601
      %v690 = vpack.c.bf16 %v604, %v603
      %v691 = vpack.c.bf16 %v606, %v605
      %v692 = vpack.c.bf16 %v608, %v607
      %v693 = vpack.c.bf16 %v610, %v609
      %v694 = vpack.c.bf16 %v612, %v611
      %v695 = vpack.c.bf16 %v614, %v613
      %v696 = vpack.c.bf16 %v616, %v615
      %v697 = vpack.c.bf16 %v618, %v617
      %v698 = vpack.c.bf16 %v620, %v619
      %v699 = vpack.c.bf16 %v622, %v621
      %v700 = vpack.c.bf16 %v624, %v623
      %v701 = vpack.c.bf16 %v626, %v625
      %v702 = vpack.c.bf16 %v628, %v627
      %v703 = vpack.c.bf16 %v630, %v629
      %v704 = vpack.c.bf16 %v632, %v631
      %v705 = vpack.c.bf16 %v634, %v633
      %v706 = vpack.c.bf16 %v636, %v635
      %v707 = vpack.c.bf16 %v638, %v637
      %v708 = vpack.c.bf16 %v640, %v639
      %v709 = vpack.c.bf16 %v642, %v641
      %v710 = vpack.c.bf16 %v644, %v643
      %v711 = vpack.c.bf16 %v646, %v645
      %v712 = vpack.c.bf16 %v648, %v647
      %v713 = vpack.c.bf16 %v650, %v649
      %v714 = vpack.c.bf16 %v652, %v651
      %v715 = vpack.c.bf16 %v654, %v653
      %v716 = vpack.c.bf16 %v656, %v655
      %v717 = vpack.c.bf16 %v658, %v657
      %v718 = vpack.c.bf16 %v660, %v659
      %v719 = vpack.c.bf16 %v662, %v661
      %v720 = vpack.c.bf16 %v664, %v663
      %v721 = vpack.c.bf16 %v666, %v665
      %v722 = vpack.c.bf16 %v668, %v667
      %v723 = vpack.c.bf16 %v670, %v669
      %v724 = vpack.c.bf16 %v671, %v671
      %v725 = vld [vmem:[%s1] sm:$0x3]
      %v726 = vld [vmem:[#allocation2 + $0x1] sm:$0xff]
      %v727 = vld [vmem:[#allocation2 + $0x9] sm:$0xff]
      %v728 = vld [vmem:[#allocation2 + $0x11] sm:$0xff]
      %v729 = vld [vmem:[#allocation2 + $0x19] sm:$0xff]
      %v730 = vld [vmem:[#allocation2 + $0x21] sm:$0xff]
      %v731 = vld [vmem:[#allocation2 + $0x29] sm:$0xff]
      %v732 = vld [vmem:[#allocation2 + $0x31] sm:$0xff]
      %v733 = vld [vmem:[#allocation2 + $0x39] sm:$0xff]
      %v734 = vld [vmem:[#allocation2 + $0x41] sm:$0xff]
      %v735 = vld [vmem:[#allocation2 + $0x49] sm:$0xff]
      %v736 = vld [vmem:[#allocation2 + $0x51] sm:$0xff]
      %v737 = vld [vmem:[#allocation2 + $0x59] sm:$0xff]
      %v738 = vld [vmem:[#allocation2 + $0x61] sm:$0xff]
      %v739 = vld [vmem:[#allocation2 + $0x69] sm:$0xff]
      %v740 = vld [vmem:[#allocation2 + $0x71] sm:$0xff]
      %v741 = vld [vmem:[#allocation2 + $0x79] sm:$0xff]
      %v742 = vld [vmem:[#allocation2 + $0x81] sm:$0xff]
      %v743 = vld [vmem:[#allocation2 + $0x89] sm:$0xff]
      %v744 = vld [vmem:[#allocation2 + $0x91] sm:$0xff]
      %v745 = vld [vmem:[#allocation2 + $0x99] sm:$0xff]
      %v746 = vld [vmem:[#allocation2 + $0xa1] sm:$0xff]
      %v747 = vld [vmem:[#allocation2 + $0xa9] sm:$0xff]
      %v748 = vld [vmem:[#allocation2 + $0xb1] sm:$0xff]
      %v749 = vld [vmem:[#allocation2 + $0xb9] sm:$0xff]
      %v750 = vld [vmem:[#allocation2 + $0xc1] sm:$0xff]
      %v751 = vld [vmem:[#allocation2 + $0xc9] sm:$0xff]
      %v752 = vld [vmem:[#allocation2 + $0xd1] sm:$0xff]
      %v753 = vld [vmem:[#allocation2 + $0xd9] sm:$0xff]
      %v754 = vld [vmem:[#allocation2 + $0xe1] sm:$0xff]
      %v755 = vld [vmem:[#allocation2 + $0xe9] sm:$0xff]
      %v756 = vld [vmem:[#allocation2 + $0xf1] sm:$0xff]
      %v757 = vld [vmem:[#allocation2 + $0xf9] sm:$0xff]
      %v758 = vld [vmem:[#allocation2 + $0x101] sm:$0xff]
      %v759 = vld [vmem:[#allocation2 + $0x109] sm:$0xff]
      %v760 = vld [vmem:[#allocation2 + $0x111] sm:$0xff]
      %v761 = vld [vmem:[#allocation2 + $0x119] sm:$0xff]
      %v762 = vld [vmem:[#allocation2 + $0x121] sm:$0xff]
      %v763 = vld [vmem:[#allocation2 + $0x129] sm:$0xff]
      %v764 = vld [vmem:[#allocation2 + $0x131] sm:$0xff]
      %v765 = vld [vmem:[#allocation2 + $0x139] sm:$0xff]
      %v766 = vld [vmem:[#allocation2 + $0x141] sm:$0xff]
      %v767 = vld [vmem:[#allocation2 + $0x149] sm:$0xff]
      %v768 = vld [vmem:[#allocation2 + $0x151] sm:$0xff]
      %v769 = vld [vmem:[#allocation2 + $0x159] sm:$0xff]
      %v770 = vld [vmem:[#allocation2 + $0x161] sm:$0xff]
      %v771 = vld [vmem:[#allocation2 + $0x169] sm:$0xff]
      %v772 = vld [vmem:[#allocation2 + $0x171] sm:$0xff]
      %v773 = vld [vmem:[#allocation2 + $0x179] sm:$0xff]
      %v774 = vld [vmem:[#allocation2 + $0x181] sm:$0xff]
      %v775 = vld [vmem:[#allocation2 + $0x189] sm:$0xff]
      %v776 = vld [vmem:[#allocation2 + $0x191] sm:$0xff]
      %v777 = vld [vmem:[#allocation2 + $0x199] sm:$0xff]
      %v778 = vld [vmem:[#allocation2 + $0x1a1] sm:$0xff]
      %v779 = vld [vmem:[#allocation2 + $0x1a9] sm:$0xff]
      %v780 = vld [vmem:[#allocation2 + $0x1b1] sm:$0xff]
      %v781 = vld [vmem:[#allocation2 + $0x1b9] sm:$0xff]
      %v782 = vld [vmem:[#allocation2 + $0x1c1] sm:$0xff]
      %v783 = vld [vmem:[#allocation2 + $0x1c9] sm:$0xff]
      %v784 = vld [vmem:[#allocation2 + $0x1d1] sm:$0xff]
      %v785 = vld [vmem:[#allocation2 + $0x1d9] sm:$0xff]
      %v786 = vld [vmem:[#allocation2 + $0x1e1] sm:$0xff]
      %v787 = vld [vmem:[#allocation2 + $0x1e9] sm:$0xff]
      %v788 = vld [vmem:[#allocation2 + $0x1f1] sm:$0xff]
      %v789 = vld [vmem:[#allocation2 + $0x1f9] sm:$0xff]
      %v790 = vld [vmem:[#allocation2 + $0x201] sm:$0xff]
      %v791 = vld [vmem:[#allocation2 + $0x209] sm:$0xff]
      %v792 = vld [vmem:[#allocation2 + $0x211] sm:$0xff]
      %v793 = vld [vmem:[#allocation2 + $0x219] sm:$0xff]
      %v794 = vld [vmem:[#allocation2 + $0x221] sm:$0xff]
      %v795 = vld [vmem:[#allocation2 + $0x229] sm:$0xff]
      %v796 = vld [vmem:[#allocation2 + $0x231] sm:$0xff]
      %v797 = vld [vmem:[#allocation2 + $0x239] sm:$0xff]
      %v798 = vld [vmem:[#allocation2 + $0x241] sm:$0xff]
      %v799 = vld [vmem:[#allocation2 + $0x249] sm:$0xff]
      %v800 = vld [vmem:[#allocation2 + $0x251] sm:$0xff]
      %v801 = vld [vmem:[#allocation2 + $0x259] sm:$0xff]
      %v802 = vld [vmem:[#allocation2 + $0x261] sm:$0xff]
      %v803 = vld [vmem:[#allocation2 + $0x269] sm:$0xff]
      %v804 = vld [vmem:[#allocation2 + $0x271] sm:$0xff]
      %v805 = vld [vmem:[#allocation2 + $0x279] sm:$0xff]
      %v806 = vld [vmem:[#allocation2 + $0x281] sm:$0xff]
      %v807 = vld [vmem:[#allocation2 + $0x289] sm:$0xff]
      %v808 = vld [vmem:[#allocation2 + $0x291] sm:$0xff]
      %v809 = vld [vmem:[#allocation2 + $0x299] sm:$0xff]
      %v810 = vld [vmem:[#allocation2 + $0x2a1] sm:$0xff]
      %v811 = vld [vmem:[#allocation2 + $0x2a9] sm:$0xff]
      %v812 = vld [vmem:[#allocation2 + $0x2b1] sm:$0xff]
      %v813 = vld [vmem:[#allocation2 + $0x2b9] sm:$0xff]
      %v814 = vld [vmem:[#allocation2 + $0x2c1] sm:$0xff]
      %v815 = vld [vmem:[#allocation2 + $0x2c9] sm:$0xff]
      %v816 = vld [vmem:[#allocation2 + $0x2d1] sm:$0xff]
      %v817 = vld [vmem:[#allocation2 + $0x2d9] sm:$0xff]
      %v818 = vld [vmem:[#allocation2 + $0x2e1] sm:$0xff]
      %v819 = vld [vmem:[#allocation2 + $0x2e9] sm:$0xff]
      %v820 = vld [vmem:[#allocation2 + $0x2f1] sm:$0xff]
      %v821 = vld [vmem:[#allocation2 + $0x2f9] sm:$0xff]
      %v822 = vld [vmem:[#allocation2 + $0x301] sm:$0xff]
      %v823 = vld [vmem:[#allocation2 + $0x309] sm:$0xff]
      %v824 = vld [vmem:[#allocation2 + $0x311] sm:$0xff]
      %v825 = vld [vmem:[#allocation2 + $0x319] sm:$0xff]
      %v826 = vld [vmem:[#allocation2 + $0x321] sm:$0xff]
      %v827 = vld [vmem:[#allocation2 + $0x329] sm:$0xff]
      %v828 = vld [vmem:[#allocation2 + $0x331] sm:$0xff]
      %v829 = vld [vmem:[#allocation2 + $0x339] sm:$0xff]
      %v830 = vld [vmem:[#allocation2 + $0x341] sm:$0x3f]
      %v831 = vpack.c.bf16 %v727, %v726
      %v832 = vpack.c.bf16 %v729, %v728
      %v833 = vpack.c.bf16 %v731, %v730
      %v834 = vpack.c.bf16 %v733, %v732
      %v835 = vpack.c.bf16 %v735, %v734
      %v836 = vpack.c.bf16 %v737, %v736
      %v837 = vpack.c.bf16 %v739, %v738
      %v838 = vpack.c.bf16 %v741, %v740
      %v839 = vpack.c.bf16 %v743, %v742
      %v840 = vpack.c.bf16 %v745, %v744
      %v841 = vpack.c.bf16 %v747, %v746
      %v842 = vpack.c.bf16 %v749, %v748
      %v843 = vpack.c.bf16 %v751, %v750
      %v844 = vpack.c.bf16 %v753, %v752
      %v845 = vpack.c.bf16 %v755, %v754
      %v846 = vpack.c.bf16 %v757, %v756
      %v847 = vpack.c.bf16 %v759, %v758
      %v848 = vpack.c.bf16 %v761, %v760
      %v849 = vpack.c.bf16 %v763, %v762
      %v850 = vpack.c.bf16 %v765, %v764
      %v851 = vpack.c.bf16 %v767, %v766
      %v852 = vpack.c.bf16 %v769, %v768
      %v853 = vpack.c.bf16 %v771, %v770
      %v854 = vpack.c.bf16 %v773, %v772
      %v855 = vpack.c.bf16 %v775, %v774
      %v856 = vpack.c.bf16 %v777, %v776
      %v857 = vpack.c.bf16 %v779, %v778
      %v858 = vpack.c.bf16 %v781, %v780
      %v859 = vpack.c.bf16 %v783, %v782
      %v860 = vpack.c.bf16 %v785, %v784
      %v861 = vpack.c.bf16 %v787, %v786
      %v862 = vpack.c.bf16 %v789, %v788
      %v863 = vpack.c.bf16 %v791, %v790
      %v864 = vpack.c.bf16 %v793, %v792
      %v865 = vpack.c.bf16 %v795, %v794
      %v866 = vpack.c.bf16 %v797, %v796
      %v867 = vpack.c.bf16 %v799, %v798
      %v868 = vpack.c.bf16 %v801, %v800
      %v869 = vpack.c.bf16 %v803, %v802
      %v870 = vpack.c.bf16 %v805, %v804
      %v871 = vpack.c.bf16 %v807, %v806
      %v872 = vpack.c.bf16 %v809, %v808
      %v873 = vpack.c.bf16 %v811, %v810
      %v874 = vpack.c.bf16 %v813, %v812
      %v875 = vpack.c.bf16 %v815, %v814
      %v876 = vpack.c.bf16 %v817, %v816
      %v877 = vpack.c.bf16 %v819, %v818
      %v878 = vpack.c.bf16 %v821, %v820
      %v879 = vpack.c.bf16 %v823, %v822
      %v880 = vpack.c.bf16 %v825, %v824
      %v881 = vpack.c.bf16 %v827, %v826
      %v882 = vpack.c.bf16 %v829, %v828
      %v883 = vpack.c.bf16 %v830, %v830
      %s884 = scalar_lea.vmem %s1, 2
      %v885 = vld [vmem:[%s884] sm:$0x3]
      %v887 = vsel %vm452, %v831, 0
      %v890 = vsel %vm452, %v832, 0
      %v893 = vsel %vm452, %v833, 0
      %v896 = vsel %vm452, %v834, 0
      %v899 = vsel %vm452, %v835, 0
      %v902 = vsel %vm452, %v836, 0
      %v905 = vsel %vm452, %v837, 0
      %v908 = vsel %vm452, %v838, 0
      %v911 = vsel %vm452, %v839, 0
      %v914 = vsel %vm452, %v840, 0
      %v917 = vsel %vm452, %v841, 0
      %v920 = vsel %vm452, %v842, 0
      %v923 = vsel %vm452, %v843, 0
      %v926 = vsel %vm452, %v844, 0
      %v929 = vsel %vm452, %v845, 0
      %v932 = vsel %vm452, %v846, 0
      %v935 = vsel %vm452, %v847, 0
      %v938 = vsel %vm452, %v848, 0
      %v941 = vsel %vm452, %v849, 0
      %v944 = vsel %vm452, %v850, 0
      %v947 = vsel %vm452, %v851, 0
      %v950 = vsel %vm452, %v852, 0
      %v953 = vsel %vm452, %v853, 0
      %v956 = vsel %vm452, %v854, 0
      %v959 = vsel %vm452, %v855, 0
      %v962 = vsel %vm452, %v856, 0
      %v965 = vsel %vm452, %v857, 0
      %v968 = vsel %vm452, %v858, 0
      %v971 = vsel %vm452, %v859, 0
      %v974 = vsel %vm452, %v860, 0
      %v977 = vsel %vm452, %v861, 0
      %v980 = vsel %vm452, %v862, 0
      %v983 = vsel %vm452, %v863, 0
      %v986 = vsel %vm452, %v864, 0
      %v989 = vsel %vm452, %v865, 0
      %v992 = vsel %vm452, %v866, 0
      %v995 = vsel %vm452, %v867, 0
      %v998 = vsel %vm452, %v868, 0
      %v1001 = vsel %vm452, %v869, 0
      %v1004 = vsel %vm452, %v870, 0
      %v1007 = vsel %vm452, %v871, 0
      %v1010 = vsel %vm452, %v872, 0
      %v1013 = vsel %vm452, %v873, 0
      %v1016 = vsel %vm452, %v874, 0
      %v1019 = vsel %vm452, %v875, 0
      %v1022 = vsel %vm452, %v876, 0
      %v1025 = vsel %vm452, %v877, 0
      %v1028 = vsel %vm452, %v878, 0
      %v1031 = vsel %vm452, %v879, 0
      %v1034 = vsel %vm452, %v880, 0
      %v1037 = vsel %vm452, %v881, 0
      %v1040 = vsel %vm452, %v882, 0
      %v1043 = vsel %vm452, %v883, 0
      %vm1045 = vcmask 1040384
      %vm1046 = vcmask 1041408
      %v1047 = vsel %vm1045, 4294967295, 65535
      %v1048 = vsel %vm1046, %v1047, 0
      %v1050 = vand.u32 %v885, %v1048
      %1052 = vmatprep.subr.bf16.mxu0 0
      %1053 = vmatpush1.bf16.msra.mxu0 0
      %1054 = vmatprep.subr.bf16.mxu0 0
      %1055 = vmatpush1.bf16.msra.mxu0 0
      %1056 = vmatprep.subr.bf16.mxu0 0
      %1057 = vmatpush1.bf16.msra.mxu0 0
      %1058 = vmatprep.subr.bf16.mxu0 0
      %1059 = vmatpush1.bf16.msra.mxu0 0
      %1060 = vmatprep.subr.bf16.mxu0 0
      %1061 = vmatpush1.bf16.msra.mxu0 0
      %1062 = vmatprep.subr.bf16.mxu0 0
      %1063 = vmatpush1.bf16.msra.mxu0 0
      %1064 = vmatprep.subr.bf16.mxu0 0
      %1065 = vmatpush1.bf16.msra.mxu0 0
      %1066 = vmatprep.subr.bf16.mxu0 0
      %1067 = vmatpush1.bf16.msra.mxu0 %v1050
      %1068 = vmatprep.subr.bf16.mxu0 0
      %1069 = vmatpush2.bf16.msra.mxu0 0
      %1070 = vmatprep.subr.bf16.mxu0 0
      %1071 = vmatpush2.bf16.msra.mxu0 0
      %1072 = vmatprep.subr.bf16.mxu0 0
      %1073 = vmatpush2.bf16.msra.mxu0 0
      %1074 = vmatprep.subr.bf16.mxu0 0
      %1075 = vmatpush2.bf16.msra.mxu0 0
      %1076 = vmatprep.subr.bf16.mxu0 0
      %1077 = vmatpush2.bf16.msra.mxu0 0
      %1078 = vmatprep.subr.bf16.mxu0 0
      %1079 = vmatpush2.bf16.msra.mxu0 0
      %1080 = vmatprep.subr.bf16.mxu0 0
      %1081 = vmatpush2.bf16.msra.mxu0 0
      %1082 = vmatprep.subr.bf16.mxu0 0
      %1083 = vmatpush2.bf16.msra.mxu0 0
      %1084 = vmatprep.mubr.bf16.mxu0 0
      %1085 = vmatmul.mubr.bf16.gmra.mxu0 %v887
      %v1086 = vpop.f32.mrf.mxu0
      %v1087 = vadd.f32 0.0, %v1086
      %v1088 = vpop.f32.mrf.mxu0
      %v1089 = vpop.f32.mrf.mxu0
      %v1090 = vadd.f32 0.0, %v1089
      %v1091 = vpop.f32.mrf.mxu0
      %1092 = vmatprep.mubr.bf16.mxu0 0
      %1093 = vmatmul.mubr.bf16.gmra.mxu0 %v890
      %v1094 = vpop.f32.mrf.mxu0
      %v1095 = vadd.f32 0.0, %v1094
      %v1096 = vpop.f32.mrf.mxu0
      %v1097 = vpop.f32.mrf.mxu0
      %v1098 = vadd.f32 0.0, %v1097
      %v1099 = vpop.f32.mrf.mxu0
      %1100 = vmatprep.mubr.bf16.mxu0 0
      %1101 = vmatmul.mubr.bf16.gmra.mxu0 %v893
      %v1102 = vpop.f32.mrf.mxu0
      %v1103 = vadd.f32 0.0, %v1102
      %v1104 = vpop.f32.mrf.mxu0
      %v1105 = vpop.f32.mrf.mxu0
      %v1106 = vadd.f32 0.0, %v1105
      %v1107 = vpop.f32.mrf.mxu0
      %1108 = vmatprep.mubr.bf16.mxu0 0
      %1109 = vmatmul.mubr.bf16.gmra.mxu0 %v896
      %v1110 = vpop.f32.mrf.mxu0
      %v1111 = vadd.f32 0.0, %v1110
      %v1112 = vpop.f32.mrf.mxu0
      %v1113 = vpop.f32.mrf.mxu0
      %v1114 = vadd.f32 0.0, %v1113
      %v1115 = vpop.f32.mrf.mxu0
      %1116 = vmatprep.mubr.bf16.mxu0 0
      %1117 = vmatmul.mubr.bf16.gmra.mxu0 %v899
      %v1118 = vpop.f32.mrf.mxu0
      %v1119 = vadd.f32 0.0, %v1118
      %v1120 = vpop.f32.mrf.mxu0
      %v1121 = vpop.f32.mrf.mxu0
      %v1122 = vadd.f32 0.0, %v1121
      %v1123 = vpop.f32.mrf.mxu0
      %1124 = vmatprep.mubr.bf16.mxu0 0
      %1125 = vmatmul.mubr.bf16.gmra.mxu0 %v902
      %v1126 = vpop.f32.mrf.mxu0
      %v1127 = vadd.f32 0.0, %v1126
      %v1128 = vpop.f32.mrf.mxu0
      %v1129 = vpop.f32.mrf.mxu0
      %v1130 = vadd.f32 0.0, %v1129
      %v1131 = vpop.f32.mrf.mxu0
      %1132 = vmatprep.mubr.bf16.mxu0 0
      %1133 = vmatmul.mubr.bf16.gmra.mxu0 %v905
      %v1134 = vpop.f32.mrf.mxu0
      %v1135 = vadd.f32 0.0, %v1134
      %v1136 = vpop.f32.mrf.mxu0
      %v1137 = vpop.f32.mrf.mxu0
      %v1138 = vadd.f32 0.0, %v1137
      %v1139 = vpop.f32.mrf.mxu0
      %1140 = vmatprep.mubr.bf16.mxu0 0
      %1141 = vmatmul.mubr.bf16.gmra.mxu0 %v908
      %v1142 = vpop.f32.mrf.mxu0
      %v1143 = vadd.f32 0.0, %v1142
      %v1144 = vpop.f32.mrf.mxu0
      %v1145 = vpop.f32.mrf.mxu0
      %v1146 = vadd.f32 0.0, %v1145
      %v1147 = vpop.f32.mrf.mxu0
      %1148 = vmatprep.mubr.bf16.mxu0 0
      %1149 = vmatmul.mubr.bf16.gmra.mxu0 %v911
      %v1150 = vpop.f32.mrf.mxu0
      %v1151 = vadd.f32 0.0, %v1150
      %v1152 = vpop.f32.mrf.mxu0
      %v1153 = vpop.f32.mrf.mxu0
      %v1154 = vadd.f32 0.0, %v1153
      %v1155 = vpop.f32.mrf.mxu0
      %1156 = vmatprep.mubr.bf16.mxu0 0
      %1157 = vmatmul.mubr.bf16.gmra.mxu0 %v914
      %v1158 = vpop.f32.mrf.mxu0
      %v1159 = vadd.f32 0.0, %v1158
      %v1160 = vpop.f32.mrf.mxu0
      %v1161 = vpop.f32.mrf.mxu0
      %v1162 = vadd.f32 0.0, %v1161
      %v1163 = vpop.f32.mrf.mxu0
      %1164 = vmatprep.mubr.bf16.mxu0 0
      %1165 = vmatmul.mubr.bf16.gmra.mxu0 %v917
      %v1166 = vpop.f32.mrf.mxu0
      %v1167 = vadd.f32 0.0, %v1166
      %v1168 = vpop.f32.mrf.mxu0
      %v1169 = vpop.f32.mrf.mxu0
      %v1170 = vadd.f32 0.0, %v1169
      %v1171 = vpop.f32.mrf.mxu0
      %1172 = vmatprep.mubr.bf16.mxu0 0
      %1173 = vmatmul.mubr.bf16.gmra.mxu0 %v920
      %v1174 = vpop.f32.mrf.mxu0
      %v1175 = vadd.f32 0.0, %v1174
      %v1176 = vpop.f32.mrf.mxu0
      %v1177 = vpop.f32.mrf.mxu0
      %v1178 = vadd.f32 0.0, %v1177
      %v1179 = vpop.f32.mrf.mxu0
      %1180 = vmatprep.mubr.bf16.mxu0 0
      %1181 = vmatmul.mubr.bf16.gmra.mxu0 %v923
      %v1182 = vpop.f32.mrf.mxu0
      %v1183 = vadd.f32 0.0, %v1182
      %v1184 = vpop.f32.mrf.mxu0
      %v1185 = vpop.f32.mrf.mxu0
      %v1186 = vadd.f32 0.0, %v1185
      %v1187 = vpop.f32.mrf.mxu0
      %1188 = vmatprep.mubr.bf16.mxu0 0
      %1189 = vmatmul.mubr.bf16.gmra.mxu0 %v926
      %v1190 = vpop.f32.mrf.mxu0
      %v1191 = vadd.f32 0.0, %v1190
      %v1192 = vpop.f32.mrf.mxu0
      %v1193 = vpop.f32.mrf.mxu0
      %v1194 = vadd.f32 0.0, %v1193
      %v1195 = vpop.f32.mrf.mxu0
      %1196 = vmatprep.mubr.bf16.mxu0 0
      %1197 = vmatmul.mubr.bf16.gmra.mxu0 %v929
      %v1198 = vpop.f32.mrf.mxu0
      %v1199 = vadd.f32 0.0, %v1198
      %v1200 = vpop.f32.mrf.mxu0
      %v1201 = vpop.f32.mrf.mxu0
      %v1202 = vadd.f32 0.0, %v1201
      %v1203 = vpop.f32.mrf.mxu0
      %1204 = vmatprep.mubr.bf16.mxu0 0
      %1205 = vmatmul.mubr.bf16.gmra.mxu0 %v932
      %v1206 = vpop.f32.mrf.mxu0
      %v1207 = vadd.f32 0.0, %v1206
      %v1208 = vpop.f32.mrf.mxu0
      %v1209 = vpop.f32.mrf.mxu0
      %v1210 = vadd.f32 0.0, %v1209
      %v1211 = vpop.f32.mrf.mxu0
      %1212 = vmatprep.mubr.bf16.mxu0 0
      %1213 = vmatmul.mubr.bf16.gmra.mxu0 %v935
      %v1214 = vpop.f32.mrf.mxu0
      %v1215 = vadd.f32 0.0, %v1214
      %v1216 = vpop.f32.mrf.mxu0
      %v1217 = vpop.f32.mrf.mxu0
      %v1218 = vadd.f32 0.0, %v1217
      %v1219 = vpop.f32.mrf.mxu0
      %1220 = vmatprep.mubr.bf16.mxu0 0
      %1221 = vmatmul.mubr.bf16.gmra.mxu0 %v938
      %v1222 = vpop.f32.mrf.mxu0
      %v1223 = vadd.f32 0.0, %v1222
      %v1224 = vpop.f32.mrf.mxu0
      %v1225 = vpop.f32.mrf.mxu0
      %v1226 = vadd.f32 0.0, %v1225
      %v1227 = vpop.f32.mrf.mxu0
      %1228 = vmatprep.mubr.bf16.mxu0 0
      %1229 = vmatmul.mubr.bf16.gmra.mxu0 %v941
      %v1230 = vpop.f32.mrf.mxu0
      %v1231 = vadd.f32 0.0, %v1230
      %v1232 = vpop.f32.mrf.mxu0
      %v1233 = vpop.f32.mrf.mxu0
      %v1234 = vadd.f32 0.0, %v1233
      %v1235 = vpop.f32.mrf.mxu0
      %1236 = vmatprep.mubr.bf16.mxu0 0
      %1237 = vmatmul.mubr.bf16.gmra.mxu0 %v944
      %v1238 = vpop.f32.mrf.mxu0
      %v1239 = vadd.f32 0.0, %v1238
      %v1240 = vpop.f32.mrf.mxu0
      %v1241 = vpop.f32.mrf.mxu0
      %v1242 = vadd.f32 0.0, %v1241
      %v1243 = vpop.f32.mrf.mxu0
      %1244 = vmatprep.mubr.bf16.mxu0 0
      %1245 = vmatmul.mubr.bf16.gmra.mxu0 %v947
      %v1246 = vpop.f32.mrf.mxu0
      %v1247 = vadd.f32 0.0, %v1246
      %v1248 = vpop.f32.mrf.mxu0
      %v1249 = vpop.f32.mrf.mxu0
      %v1250 = vadd.f32 0.0, %v1249
      %v1251 = vpop.f32.mrf.mxu0
      %1252 = vmatprep.mubr.bf16.mxu0 0
      %1253 = vmatmul.mubr.bf16.gmra.mxu0 %v950
      %v1254 = vpop.f32.mrf.mxu0
      %v1255 = vadd.f32 0.0, %v1254
      %v1256 = vpop.f32.mrf.mxu0
      %v1257 = vpop.f32.mrf.mxu0
      %v1258 = vadd.f32 0.0, %v1257
      %v1259 = vpop.f32.mrf.mxu0
      %1260 = vmatprep.mubr.bf16.mxu0 0
      %1261 = vmatmul.mubr.bf16.gmra.mxu0 %v953
      %v1262 = vpop.f32.mrf.mxu0
      %v1263 = vadd.f32 0.0, %v1262
      %v1264 = vpop.f32.mrf.mxu0
      %v1265 = vpop.f32.mrf.mxu0
      %v1266 = vadd.f32 0.0, %v1265
      %v1267 = vpop.f32.mrf.mxu0
      %1268 = vmatprep.mubr.bf16.mxu0 0
      %1269 = vmatmul.mubr.bf16.gmra.mxu0 %v956
      %v1270 = vpop.f32.mrf.mxu0
      %v1271 = vadd.f32 0.0, %v1270
      %v1272 = vpop.f32.mrf.mxu0
      %v1273 = vpop.f32.mrf.mxu0
      %v1274 = vadd.f32 0.0, %v1273
      %v1275 = vpop.f32.mrf.mxu0
      %1276 = vmatprep.mubr.bf16.mxu0 0
      %1277 = vmatmul.mubr.bf16.gmra.mxu0 %v959
      %v1278 = vpop.f32.mrf.mxu0
      %v1279 = vadd.f32 0.0, %v1278
      %v1280 = vpop.f32.mrf.mxu0
      %v1281 = vpop.f32.mrf.mxu0
      %v1282 = vadd.f32 0.0, %v1281
      %v1283 = vpop.f32.mrf.mxu0
      %1284 = vmatprep.mubr.bf16.mxu0 0
      %1285 = vmatmul.mubr.bf16.gmra.mxu0 %v962
      %v1286 = vpop.f32.mrf.mxu0
      %v1287 = vadd.f32 0.0, %v1286
      %v1288 = vpop.f32.mrf.mxu0
      %v1289 = vpop.f32.mrf.mxu0
      %v1290 = vadd.f32 0.0, %v1289
      %v1291 = vpop.f32.mrf.mxu0
      %1292 = vmatprep.mubr.bf16.mxu0 0
      %1293 = vmatmul.mubr.bf16.gmra.mxu0 %v965
      %v1294 = vpop.f32.mrf.mxu0
      %v1295 = vadd.f32 0.0, %v1294
      %v1296 = vpop.f32.mrf.mxu0
      %v1297 = vpop.f32.mrf.mxu0
      %v1298 = vadd.f32 0.0, %v1297
      %v1299 = vpop.f32.mrf.mxu0
      %1300 = vmatprep.mubr.bf16.mxu0 0
      %1301 = vmatmul.mubr.bf16.gmra.mxu0 %v968
      %v1302 = vpop.f32.mrf.mxu0
      %v1303 = vadd.f32 0.0, %v1302
      %v1304 = vpop.f32.mrf.mxu0
      %v1305 = vpop.f32.mrf.mxu0
      %v1306 = vadd.f32 0.0, %v1305
      %v1307 = vpop.f32.mrf.mxu0
      %1308 = vmatprep.mubr.bf16.mxu0 0
      %1309 = vmatmul.mubr.bf16.gmra.mxu0 %v971
      %v1310 = vpop.f32.mrf.mxu0
      %v1311 = vadd.f32 0.0, %v1310
      %v1312 = vpop.f32.mrf.mxu0
      %v1313 = vpop.f32.mrf.mxu0
      %v1314 = vadd.f32 0.0, %v1313
      %v1315 = vpop.f32.mrf.mxu0
      %1316 = vmatprep.mubr.bf16.mxu0 0
      %1317 = vmatmul.mubr.bf16.gmra.mxu0 %v974
      %v1318 = vpop.f32.mrf.mxu0
      %v1319 = vadd.f32 0.0, %v1318
      %v1320 = vpop.f32.mrf.mxu0
      %v1321 = vpop.f32.mrf.mxu0
      %v1322 = vadd.f32 0.0, %v1321
      %v1323 = vpop.f32.mrf.mxu0
      %1324 = vmatprep.mubr.bf16.mxu0 0
      %1325 = vmatmul.mubr.bf16.gmra.mxu0 %v977
      %v1326 = vpop.f32.mrf.mxu0
      %v1327 = vadd.f32 0.0, %v1326
      %v1328 = vpop.f32.mrf.mxu0
      %v1329 = vpop.f32.mrf.mxu0
      %v1330 = vadd.f32 0.0, %v1329
      %v1331 = vpop.f32.mrf.mxu0
      %1332 = vmatprep.mubr.bf16.mxu0 0
      %1333 = vmatmul.mubr.bf16.gmra.mxu0 %v980
      %v1334 = vpop.f32.mrf.mxu0
      %v1335 = vadd.f32 0.0, %v1334
      %v1336 = vpop.f32.mrf.mxu0
      %v1337 = vpop.f32.mrf.mxu0
      %v1338 = vadd.f32 0.0, %v1337
      %v1339 = vpop.f32.mrf.mxu0
      %1340 = vmatprep.mubr.bf16.mxu0 0
      %1341 = vmatmul.mubr.bf16.gmra.mxu0 %v983
      %v1342 = vpop.f32.mrf.mxu0
      %v1343 = vadd.f32 0.0, %v1342
      %v1344 = vpop.f32.mrf.mxu0
      %v1345 = vpop.f32.mrf.mxu0
      %v1346 = vadd.f32 0.0, %v1345
      %v1347 = vpop.f32.mrf.mxu0
      %1348 = vmatprep.mubr.bf16.mxu0 0
      %1349 = vmatmul.mubr.bf16.gmra.mxu0 %v986
      %v1350 = vpop.f32.mrf.mxu0
      %v1351 = vadd.f32 0.0, %v1350
      %v1352 = vpop.f32.mrf.mxu0
      %v1353 = vpop.f32.mrf.mxu0
      %v1354 = vadd.f32 0.0, %v1353
      %v1355 = vpop.f32.mrf.mxu0
      %1356 = vmatprep.mubr.bf16.mxu0 0
      %1357 = vmatmul.mubr.bf16.gmra.mxu0 %v989
      %v1358 = vpop.f32.mrf.mxu0
      %v1359 = vadd.f32 0.0, %v1358
      %v1360 = vpop.f32.mrf.mxu0
      %v1361 = vpop.f32.mrf.mxu0
      %v1362 = vadd.f32 0.0, %v1361
      %v1363 = vpop.f32.mrf.mxu0
      %1364 = vmatprep.mubr.bf16.mxu0 0
      %1365 = vmatmul.mubr.bf16.gmra.mxu0 %v992
      %v1366 = vpop.f32.mrf.mxu0
      %v1367 = vadd.f32 0.0, %v1366
      %v1368 = vpop.f32.mrf.mxu0
      %v1369 = vpop.f32.mrf.mxu0
      %v1370 = vadd.f32 0.0, %v1369
      %v1371 = vpop.f32.mrf.mxu0
      %1372 = vmatprep.mubr.bf16.mxu0 0
      %1373 = vmatmul.mubr.bf16.gmra.mxu0 %v995
      %v1374 = vpop.f32.mrf.mxu0
      %v1375 = vadd.f32 0.0, %v1374
      %v1376 = vpop.f32.mrf.mxu0
      %v1377 = vpop.f32.mrf.mxu0
      %v1378 = vadd.f32 0.0, %v1377
      %v1379 = vpop.f32.mrf.mxu0
      %1380 = vmatprep.mubr.bf16.mxu0 0
      %1381 = vmatmul.mubr.bf16.gmra.mxu0 %v998
      %v1382 = vpop.f32.mrf.mxu0
      %v1383 = vadd.f32 0.0, %v1382
      %v1384 = vpop.f32.mrf.mxu0
      %v1385 = vpop.f32.mrf.mxu0
      %v1386 = vadd.f32 0.0, %v1385
      %v1387 = vpop.f32.mrf.mxu0
      %1388 = vmatprep.mubr.bf16.mxu0 0
      %1389 = vmatmul.mubr.bf16.gmra.mxu0 %v1001
      %v1390 = vpop.f32.mrf.mxu0
      %v1391 = vadd.f32 0.0, %v1390
      %v1392 = vpop.f32.mrf.mxu0
      %v1393 = vpop.f32.mrf.mxu0
      %v1394 = vadd.f32 0.0, %v1393
      %v1395 = vpop.f32.mrf.mxu0
      %1396 = vmatprep.mubr.bf16.mxu0 0
      %1397 = vmatmul.mubr.bf16.gmra.mxu0 %v1004
      %v1398 = vpop.f32.mrf.mxu0
      %v1399 = vadd.f32 0.0, %v1398
      %v1400 = vpop.f32.mrf.mxu0
      %v1401 = vpop.f32.mrf.mxu0
      %v1402 = vadd.f32 0.0, %v1401
      %v1403 = vpop.f32.mrf.mxu0
      %1404 = vmatprep.mubr.bf16.mxu0 0
      %1405 = vmatmul.mubr.bf16.gmra.mxu0 %v1007
      %v1406 = vpop.f32.mrf.mxu0
      %v1407 = vadd.f32 0.0, %v1406
      %v1408 = vpop.f32.mrf.mxu0
      %v1409 = vpop.f32.mrf.mxu0
      %v1410 = vadd.f32 0.0, %v1409
      %v1411 = vpop.f32.mrf.mxu0
      %1412 = vmatprep.mubr.bf16.mxu0 0
      %1413 = vmatmul.mubr.bf16.gmra.mxu0 %v1010
      %v1414 = vpop.f32.mrf.mxu0
      %v1415 = vadd.f32 0.0, %v1414
      %v1416 = vpop.f32.mrf.mxu0
      %v1417 = vpop.f32.mrf.mxu0
      %v1418 = vadd.f32 0.0, %v1417
      %v1419 = vpop.f32.mrf.mxu0
      %1420 = vmatprep.mubr.bf16.mxu0 0
      %1421 = vmatmul.mubr.bf16.gmra.mxu0 %v1013
      %v1422 = vpop.f32.mrf.mxu0
      %v1423 = vadd.f32 0.0, %v1422
      %v1424 = vpop.f32.mrf.mxu0
      %v1425 = vpop.f32.mrf.mxu0
      %v1426 = vadd.f32 0.0, %v1425
      %v1427 = vpop.f32.mrf.mxu0
      %1428 = vmatprep.mubr.bf16.mxu0 0
      %1429 = vmatmul.mubr.bf16.gmra.mxu0 %v1016
      %v1430 = vpop.f32.mrf.mxu0
      %v1431 = vadd.f32 0.0, %v1430
      %v1432 = vpop.f32.mrf.mxu0
      %v1433 = vpop.f32.mrf.mxu0
      %v1434 = vadd.f32 0.0, %v1433
      %v1435 = vpop.f32.mrf.mxu0
      %1436 = vmatprep.mubr.bf16.mxu0 0
      %1437 = vmatmul.mubr.bf16.gmra.mxu0 %v1019
      %v1438 = vpop.f32.mrf.mxu0
      %v1439 = vadd.f32 0.0, %v1438
      %v1440 = vpop.f32.mrf.mxu0
      %v1441 = vpop.f32.mrf.mxu0
      %v1442 = vadd.f32 0.0, %v1441
      %v1443 = vpop.f32.mrf.mxu0
      %1444 = vmatprep.mubr.bf16.mxu0 0
      %1445 = vmatmul.mubr.bf16.gmra.mxu0 %v1022
      %v1446 = vpop.f32.mrf.mxu0
      %v1447 = vadd.f32 0.0, %v1446
      %v1448 = vpop.f32.mrf.mxu0
      %v1449 = vpop.f32.mrf.mxu0
      %v1450 = vadd.f32 0.0, %v1449
      %v1451 = vpop.f32.mrf.mxu0
      %1452 = vmatprep.mubr.bf16.mxu0 0
      %1453 = vmatmul.mubr.bf16.gmra.mxu0 %v1025
      %v1454 = vpop.f32.mrf.mxu0
      %v1455 = vadd.f32 0.0, %v1454
      %v1456 = vpop.f32.mrf.mxu0
      %v1457 = vpop.f32.mrf.mxu0
      %v1458 = vadd.f32 0.0, %v1457
      %v1459 = vpop.f32.mrf.mxu0
      %1460 = vmatprep.mubr.bf16.mxu0 0
      %1461 = vmatmul.mubr.bf16.gmra.mxu0 %v1028
      %v1462 = vpop.f32.mrf.mxu0
      %v1463 = vadd.f32 0.0, %v1462
      %v1464 = vpop.f32.mrf.mxu0
      %v1465 = vpop.f32.mrf.mxu0
      %v1466 = vadd.f32 0.0, %v1465
      %v1467 = vpop.f32.mrf.mxu0
      %1468 = vmatprep.mubr.bf16.mxu0 0
      %1469 = vmatmul.mubr.bf16.gmra.mxu0 %v1031
      %v1470 = vpop.f32.mrf.mxu0
      %v1471 = vadd.f32 0.0, %v1470
      %v1472 = vpop.f32.mrf.mxu0
      %v1473 = vpop.f32.mrf.mxu0
      %v1474 = vadd.f32 0.0, %v1473
      %v1475 = vpop.f32.mrf.mxu0
      %1476 = vmatprep.mubr.bf16.mxu0 0
      %1477 = vmatmul.mubr.bf16.gmra.mxu0 %v1034
      %v1478 = vpop.f32.mrf.mxu0
      %v1479 = vadd.f32 0.0, %v1478
      %v1480 = vpop.f32.mrf.mxu0
      %v1481 = vpop.f32.mrf.mxu0
      %v1482 = vadd.f32 0.0, %v1481
      %v1483 = vpop.f32.mrf.mxu0
      %1484 = vmatprep.mubr.bf16.mxu0 0
      %1485 = vmatmul.mubr.bf16.gmra.mxu0 %v1037
      %v1486 = vpop.f32.mrf.mxu0
      %v1487 = vadd.f32 0.0, %v1486
      %v1488 = vpop.f32.mrf.mxu0
      %v1489 = vpop.f32.mrf.mxu0
      %v1490 = vadd.f32 0.0, %v1489
      %v1491 = vpop.f32.mrf.mxu0
      %1492 = vmatprep.mubr.bf16.mxu0 0
      %1493 = vmatmul.mubr.bf16.gmra.mxu0 %v1040
      %v1494 = vpop.f32.mrf.mxu0
      %v1495 = vadd.f32 0.0, %v1494
      %v1496 = vpop.f32.mrf.mxu0
      %v1497 = vpop.f32.mrf.mxu0
      %v1498 = vadd.f32 0.0, %v1497
      %v1499 = vpop.f32.mrf.mxu0
      %1500 = vmatprep.mubr.bf16.mxu0 0
      %1501 = vmatmul.mubr.bf16.gmra.mxu0 %v1043
      %v1502 = vpop.f32.mrf.mxu0
      %v1503 = vadd.f32 0.0, %v1502
      %v1504 = vpop.f32.mrf.mxu0
      %v1505 = vpop.f32.mrf.mxu0
      %v1506 = vpop.f32.mrf.mxu0
      %1507 = vdwg.mxu0
      %v1509 = vsel %vm452, %v672, 0
      %v1512 = vsel %vm452, %v673, 0
      %v1515 = vsel %vm452, %v674, 0
      %v1518 = vsel %vm452, %v675, 0
      %v1521 = vsel %vm452, %v676, 0
      %v1524 = vsel %vm452, %v677, 0
      %v1527 = vsel %vm452, %v678, 0
      %v1530 = vsel %vm452, %v679, 0
      %v1533 = vsel %vm452, %v680, 0
      %v1536 = vsel %vm452, %v681, 0
      %v1539 = vsel %vm452, %v682, 0
      %v1542 = vsel %vm452, %v683, 0
      %v1545 = vsel %vm452, %v684, 0
      %v1548 = vsel %vm452, %v685, 0
      %v1551 = vsel %vm452, %v686, 0
      %v1554 = vsel %vm452, %v687, 0
      %v1557 = vsel %vm452, %v688, 0
      %v1560 = vsel %vm452, %v689, 0
      %v1563 = vsel %vm452, %v690, 0
      %v1566 = vsel %vm452, %v691, 0
      %v1569 = vsel %vm452, %v692, 0
      %v1572 = vsel %vm452, %v693, 0
      %v1575 = vsel %vm452, %v694, 0
      %v1578 = vsel %vm452, %v695, 0
      %v1581 = vsel %vm452, %v696, 0
      %v1584 = vsel %vm452, %v697, 0
      %v1587 = vsel %vm452, %v698, 0
      %v1590 = vsel %vm452, %v699, 0
      %v1593 = vsel %vm452, %v700, 0
      %v1596 = vsel %vm452, %v701, 0
      %v1599 = vsel %vm452, %v702, 0
      %v1602 = vsel %vm452, %v703, 0
      %v1605 = vsel %vm452, %v704, 0
      %v1608 = vsel %vm452, %v705, 0
      %v1611 = vsel %vm452, %v706, 0
      %v1614 = vsel %vm452, %v707, 0
      %v1617 = vsel %vm452, %v708, 0
      %v1620 = vsel %vm452, %v709, 0
      %v1623 = vsel %vm452, %v710, 0
      %v1626 = vsel %vm452, %v711, 0
      %v1629 = vsel %vm452, %v712, 0
      %v1632 = vsel %vm452, %v713, 0
      %v1635 = vsel %vm452, %v714, 0
      %v1638 = vsel %vm452, %v715, 0
      %v1641 = vsel %vm452, %v716, 0
      %v1644 = vsel %vm452, %v717, 0
      %v1647 = vsel %vm452, %v718, 0
      %v1650 = vsel %vm452, %v719, 0
      %v1653 = vsel %vm452, %v720, 0
      %v1656 = vsel %vm452, %v721, 0
      %v1659 = vsel %vm452, %v722, 0
      %v1662 = vsel %vm452, %v723, 0
      %v1665 = vsel %vm452, %v724, 0
      %v1668 = vand.u32 %v725, %v1048
      %1670 = vmatprep.subr.bf16.mxu0 0
      %1671 = vmatpush1.bf16.msra.mxu0 0
      %1672 = vmatprep.subr.bf16.mxu0 0
      %1673 = vmatpush1.bf16.msra.mxu0 0
      %1674 = vmatprep.subr.bf16.mxu0 0
      %1675 = vmatpush1.bf16.msra.mxu0 0
      %1676 = vmatprep.subr.bf16.mxu0 0
      %1677 = vmatpush1.bf16.msra.mxu0 0
      %1678 = vmatprep.subr.bf16.mxu0 0
      %1679 = vmatpush1.bf16.msra.mxu0 0
      %1680 = vmatprep.subr.bf16.mxu0 0
      %1681 = vmatpush1.bf16.msra.mxu0 0
      %1682 = vmatprep.subr.bf16.mxu0 0
      %1683 = vmatpush1.bf16.msra.mxu0 0
      %1684 = vmatprep.subr.bf16.mxu0 0
      %1685 = vmatpush1.bf16.msra.mxu0 %v1668
      %1686 = vmatprep.subr.bf16.mxu0 0
      %1687 = vmatpush2.bf16.msra.mxu0 0
      %1688 = vmatprep.subr.bf16.mxu0 0
      %1689 = vmatpush2.bf16.msra.mxu0 0
      %1690 = vmatprep.subr.bf16.mxu0 0
      %1691 = vmatpush2.bf16.msra.mxu0 0
      %1692 = vmatprep.subr.bf16.mxu0 0
      %1693 = vmatpush2.bf16.msra.mxu0 0
      %1694 = vmatprep.subr.bf16.mxu0 0
      %1695 = vmatpush2.bf16.msra.mxu0 0
      %1696 = vmatprep.subr.bf16.mxu0 0
      %1697 = vmatpush2.bf16.msra.mxu0 0
      %1698 = vmatprep.subr.bf16.mxu0 0
      %1699 = vmatpush2.bf16.msra.mxu0 0
      %1700 = vmatprep.subr.bf16.mxu0 0
      %1701 = vmatpush2.bf16.msra.mxu0 0
      %1702 = vmatprep.mubr.bf16.mxu0 0
      %1703 = vmatmul.mubr.bf16.gmra.mxu0 %v1509
      %v1704 = vpop.f32.mrf.mxu0
      %v1705 = vadd.f32 %v1087, %v1704
      %v1706 = vpop.f32.mrf.mxu0
      %v1707 = vpop.f32.mrf.mxu0
      %v1708 = vadd.f32 %v1090, %v1707
      %v1709 = vpop.f32.mrf.mxu0
      %1710 = vmatprep.mubr.bf16.mxu0 0
      %1711 = vmatmul.mubr.bf16.gmra.mxu0 %v1512
      %v1712 = vpop.f32.mrf.mxu0
      %v1713 = vadd.f32 %v1095, %v1712
      %v1714 = vpop.f32.mrf.mxu0
      %v1715 = vpop.f32.mrf.mxu0
      %v1716 = vadd.f32 %v1098, %v1715
      %v1717 = vpop.f32.mrf.mxu0
      %1718 = vmatprep.mubr.bf16.mxu0 0
      %1719 = vmatmul.mubr.bf16.gmra.mxu0 %v1515
      %v1720 = vpop.f32.mrf.mxu0
      %v1721 = vadd.f32 %v1103, %v1720
      %v1722 = vpop.f32.mrf.mxu0
      %v1723 = vpop.f32.mrf.mxu0
      %v1724 = vadd.f32 %v1106, %v1723
      %v1725 = vpop.f32.mrf.mxu0
      %1726 = vmatprep.mubr.bf16.mxu0 0
      %1727 = vmatmul.mubr.bf16.gmra.mxu0 %v1518
      %v1728 = vpop.f32.mrf.mxu0
      %v1729 = vadd.f32 %v1111, %v1728
      %v1730 = vpop.f32.mrf.mxu0
      %v1731 = vpop.f32.mrf.mxu0
      %v1732 = vadd.f32 %v1114, %v1731
      %v1733 = vpop.f32.mrf.mxu0
      %1734 = vmatprep.mubr.bf16.mxu0 0
      %1735 = vmatmul.mubr.bf16.gmra.mxu0 %v1521
      %v1736 = vpop.f32.mrf.mxu0
      %v1737 = vadd.f32 %v1119, %v1736
      %v1738 = vpop.f32.mrf.mxu0
      %v1739 = vpop.f32.mrf.mxu0
      %v1740 = vadd.f32 %v1122, %v1739
      %v1741 = vpop.f32.mrf.mxu0
      %1742 = vmatprep.mubr.bf16.mxu0 0
      %1743 = vmatmul.mubr.bf16.gmra.mxu0 %v1524
      %v1744 = vpop.f32.mrf.mxu0
      %v1745 = vadd.f32 %v1127, %v1744
      %v1746 = vpop.f32.mrf.mxu0
      %v1747 = vpop.f32.mrf.mxu0
      %v1748 = vadd.f32 %v1130, %v1747
      %v1749 = vpop.f32.mrf.mxu0
      %1750 = vmatprep.mubr.bf16.mxu0 0
      %1751 = vmatmul.mubr.bf16.gmra.mxu0 %v1527
      %v1752 = vpop.f32.mrf.mxu0
      %v1753 = vadd.f32 %v1135, %v1752
      %v1754 = vpop.f32.mrf.mxu0
      %v1755 = vpop.f32.mrf.mxu0
      %v1756 = vadd.f32 %v1138, %v1755
      %v1757 = vpop.f32.mrf.mxu0
      %1758 = vmatprep.mubr.bf16.mxu0 0
      %1759 = vmatmul.mubr.bf16.gmra.mxu0 %v1530
      %v1760 = vpop.f32.mrf.mxu0
      %v1761 = vadd.f32 %v1143, %v1760
      %v1762 = vpop.f32.mrf.mxu0
      %v1763 = vpop.f32.mrf.mxu0
      %v1764 = vadd.f32 %v1146, %v1763
      %v1765 = vpop.f32.mrf.mxu0
      %1766 = vmatprep.mubr.bf16.mxu0 0
      %1767 = vmatmul.mubr.bf16.gmra.mxu0 %v1533
      %v1768 = vpop.f32.mrf.mxu0
      %v1769 = vadd.f32 %v1151, %v1768
      %v1770 = vpop.f32.mrf.mxu0
      %v1771 = vpop.f32.mrf.mxu0
      %v1772 = vadd.f32 %v1154, %v1771
      %v1773 = vpop.f32.mrf.mxu0
      %1774 = vmatprep.mubr.bf16.mxu0 0
      %1775 = vmatmul.mubr.bf16.gmra.mxu0 %v1536
      %v1776 = vpop.f32.mrf.mxu0
      %v1777 = vadd.f32 %v1159, %v1776
      %v1778 = vpop.f32.mrf.mxu0
      %v1779 = vpop.f32.mrf.mxu0
      %v1780 = vadd.f32 %v1162, %v1779
      %v1781 = vpop.f32.mrf.mxu0
      %1782 = vmatprep.mubr.bf16.mxu0 0
      %1783 = vmatmul.mubr.bf16.gmra.mxu0 %v1539
      %v1784 = vpop.f32.mrf.mxu0
      %v1785 = vadd.f32 %v1167, %v1784
      %v1786 = vpop.f32.mrf.mxu0
      %v1787 = vpop.f32.mrf.mxu0
      %v1788 = vadd.f32 %v1170, %v1787
      %v1789 = vpop.f32.mrf.mxu0
      %1790 = vmatprep.mubr.bf16.mxu0 0
      %1791 = vmatmul.mubr.bf16.gmra.mxu0 %v1542
      %v1792 = vpop.f32.mrf.mxu0
      %v1793 = vadd.f32 %v1175, %v1792
      %v1794 = vpop.f32.mrf.mxu0
      %v1795 = vpop.f32.mrf.mxu0
      %v1796 = vadd.f32 %v1178, %v1795
      %v1797 = vpop.f32.mrf.mxu0
      %1798 = vmatprep.mubr.bf16.mxu0 0
      %1799 = vmatmul.mubr.bf16.gmra.mxu0 %v1545
      %v1800 = vpop.f32.mrf.mxu0
      %v1801 = vadd.f32 %v1183, %v1800
      %v1802 = vpop.f32.mrf.mxu0
      %v1803 = vpop.f32.mrf.mxu0
      %v1804 = vadd.f32 %v1186, %v1803
      %v1805 = vpop.f32.mrf.mxu0
      %1806 = vmatprep.mubr.bf16.mxu0 0
      %1807 = vmatmul.mubr.bf16.gmra.mxu0 %v1548
      %v1808 = vpop.f32.mrf.mxu0
      %v1809 = vadd.f32 %v1191, %v1808
      %v1810 = vpop.f32.mrf.mxu0
      %v1811 = vpop.f32.mrf.mxu0
      %v1812 = vadd.f32 %v1194, %v1811
      %v1813 = vpop.f32.mrf.mxu0
      %1814 = vmatprep.mubr.bf16.mxu0 0
      %1815 = vmatmul.mubr.bf16.gmra.mxu0 %v1551
      %v1816 = vpop.f32.mrf.mxu0
      %v1817 = vadd.f32 %v1199, %v1816
      %v1818 = vpop.f32.mrf.mxu0
      %v1819 = vpop.f32.mrf.mxu0
      %v1820 = vadd.f32 %v1202, %v1819
      %v1821 = vpop.f32.mrf.mxu0
      %1822 = vmatprep.mubr.bf16.mxu0 0
      %1823 = vmatmul.mubr.bf16.gmra.mxu0 %v1554
      %v1824 = vpop.f32.mrf.mxu0
      %v1825 = vadd.f32 %v1207, %v1824
      %v1826 = vpop.f32.mrf.mxu0
      %v1827 = vpop.f32.mrf.mxu0
      %v1828 = vadd.f32 %v1210, %v1827
      %v1829 = vpop.f32.mrf.mxu0
      %1830 = vmatprep.mubr.bf16.mxu0 0
      %1831 = vmatmul.mubr.bf16.gmra.mxu0 %v1557
      %v1832 = vpop.f32.mrf.mxu0
      %v1833 = vadd.f32 %v1215, %v1832
      %v1834 = vpop.f32.mrf.mxu0
      %v1835 = vpop.f32.mrf.mxu0
      %v1836 = vadd.f32 %v1218, %v1835
      %v1837 = vpop.f32.mrf.mxu0
      %1838 = vmatprep.mubr.bf16.mxu0 0
      %1839 = vmatmul.mubr.bf16.gmra.mxu0 %v1560
      %v1840 = vpop.f32.mrf.mxu0
      %v1841 = vadd.f32 %v1223, %v1840
      %v1842 = vpop.f32.mrf.mxu0
      %v1843 = vpop.f32.mrf.mxu0
      %v1844 = vadd.f32 %v1226, %v1843
      %v1845 = vpop.f32.mrf.mxu0
      %1846 = vmatprep.mubr.bf16.mxu0 0
      %1847 = vmatmul.mubr.bf16.gmra.mxu0 %v1563
      %v1848 = vpop.f32.mrf.mxu0
      %v1849 = vadd.f32 %v1231, %v1848
      %v1850 = vpop.f32.mrf.mxu0
      %v1851 = vpop.f32.mrf.mxu0
      %v1852 = vadd.f32 %v1234, %v1851
      %v1853 = vpop.f32.mrf.mxu0
      %1854 = vmatprep.mubr.bf16.mxu0 0
      %1855 = vmatmul.mubr.bf16.gmra.mxu0 %v1566
      %v1856 = vpop.f32.mrf.mxu0
      %v1857 = vadd.f32 %v1239, %v1856
      %v1858 = vpop.f32.mrf.mxu0
      %v1859 = vpop.f32.mrf.mxu0
      %v1860 = vadd.f32 %v1242, %v1859
      %v1861 = vpop.f32.mrf.mxu0
      %1862 = vmatprep.mubr.bf16.mxu0 0
      %1863 = vmatmul.mubr.bf16.gmra.mxu0 %v1569
      %v1864 = vpop.f32.mrf.mxu0
      %v1865 = vadd.f32 %v1247, %v1864
      %v1866 = vpop.f32.mrf.mxu0
      %v1867 = vpop.f32.mrf.mxu0
      %v1868 = vadd.f32 %v1250, %v1867
      %v1869 = vpop.f32.mrf.mxu0
      %1870 = vmatprep.mubr.bf16.mxu0 0
      %1871 = vmatmul.mubr.bf16.gmra.mxu0 %v1572
      %v1872 = vpop.f32.mrf.mxu0
      %v1873 = vadd.f32 %v1255, %v1872
      %v1874 = vpop.f32.mrf.mxu0
      %v1875 = vpop.f32.mrf.mxu0
      %v1876 = vadd.f32 %v1258, %v1875
      %v1877 = vpop.f32.mrf.mxu0
      %1878 = vmatprep.mubr.bf16.mxu0 0
      %1879 = vmatmul.mubr.bf16.gmra.mxu0 %v1575
      %v1880 = vpop.f32.mrf.mxu0
      %v1881 = vadd.f32 %v1263, %v1880
      %v1882 = vpop.f32.mrf.mxu0
      %v1883 = vpop.f32.mrf.mxu0
      %v1884 = vadd.f32 %v1266, %v1883
      %v1885 = vpop.f32.mrf.mxu0
      %1886 = vmatprep.mubr.bf16.mxu0 0
      %1887 = vmatmul.mubr.bf16.gmra.mxu0 %v1578
      %v1888 = vpop.f32.mrf.mxu0
      %v1889 = vadd.f32 %v1271, %v1888
      %v1890 = vpop.f32.mrf.mxu0
      %v1891 = vpop.f32.mrf.mxu0
      %v1892 = vadd.f32 %v1274, %v1891
      %v1893 = vpop.f32.mrf.mxu0
      %1894 = vmatprep.mubr.bf16.mxu0 0
      %1895 = vmatmul.mubr.bf16.gmra.mxu0 %v1581
      %v1896 = vpop.f32.mrf.mxu0
      %v1897 = vadd.f32 %v1279, %v1896
      %v1898 = vpop.f32.mrf.mxu0
      %v1899 = vpop.f32.mrf.mxu0
      %v1900 = vadd.f32 %v1282, %v1899
      %v1901 = vpop.f32.mrf.mxu0
      %1902 = vmatprep.mubr.bf16.mxu0 0
      %1903 = vmatmul.mubr.bf16.gmra.mxu0 %v1584
      %v1904 = vpop.f32.mrf.mxu0
      %v1905 = vadd.f32 %v1287, %v1904
      %v1906 = vpop.f32.mrf.mxu0
      %v1907 = vpop.f32.mrf.mxu0
      %v1908 = vadd.f32 %v1290, %v1907
      %v1909 = vpop.f32.mrf.mxu0
      %1910 = vmatprep.mubr.bf16.mxu0 0
      %1911 = vmatmul.mubr.bf16.gmra.mxu0 %v1587
      %v1912 = vpop.f32.mrf.mxu0
      %v1913 = vadd.f32 %v1295, %v1912
      %v1914 = vpop.f32.mrf.mxu0
      %v1915 = vpop.f32.mrf.mxu0
      %v1916 = vadd.f32 %v1298, %v1915
      %v1917 = vpop.f32.mrf.mxu0
      %1918 = vmatprep.mubr.bf16.mxu0 0
      %1919 = vmatmul.mubr.bf16.gmra.mxu0 %v1590
      %v1920 = vpop.f32.mrf.mxu0
      %v1921 = vadd.f32 %v1303, %v1920
      %v1922 = vpop.f32.mrf.mxu0
      %v1923 = vpop.f32.mrf.mxu0
      %v1924 = vadd.f32 %v1306, %v1923
      %v1925 = vpop.f32.mrf.mxu0
      %1926 = vmatprep.mubr.bf16.mxu0 0
      %1927 = vmatmul.mubr.bf16.gmra.mxu0 %v1593
      %v1928 = vpop.f32.mrf.mxu0
      %v1929 = vadd.f32 %v1311, %v1928
      %v1930 = vpop.f32.mrf.mxu0
      %v1931 = vpop.f32.mrf.mxu0
      %v1932 = vadd.f32 %v1314, %v1931
      %v1933 = vpop.f32.mrf.mxu0
      %1934 = vmatprep.mubr.bf16.mxu0 0
      %1935 = vmatmul.mubr.bf16.gmra.mxu0 %v1596
      %v1936 = vpop.f32.mrf.mxu0
      %v1937 = vadd.f32 %v1319, %v1936
      %v1938 = vpop.f32.mrf.mxu0
      %v1939 = vpop.f32.mrf.mxu0
      %v1940 = vadd.f32 %v1322, %v1939
      %v1941 = vpop.f32.mrf.mxu0
      %1942 = vmatprep.mubr.bf16.mxu0 0
      %1943 = vmatmul.mubr.bf16.gmra.mxu0 %v1599
      %v1944 = vpop.f32.mrf.mxu0
      %v1945 = vadd.f32 %v1327, %v1944
      %v1946 = vpop.f32.mrf.mxu0
      %v1947 = vpop.f32.mrf.mxu0
      %v1948 = vadd.f32 %v1330, %v1947
      %v1949 = vpop.f32.mrf.mxu0
      %1950 = vmatprep.mubr.bf16.mxu0 0
      %1951 = vmatmul.mubr.bf16.gmra.mxu0 %v1602
      %v1952 = vpop.f32.mrf.mxu0
      %v1953 = vadd.f32 %v1335, %v1952
      %v1954 = vpop.f32.mrf.mxu0
      %v1955 = vpop.f32.mrf.mxu0
      %v1956 = vadd.f32 %v1338, %v1955
      %v1957 = vpop.f32.mrf.mxu0
      %1958 = vmatprep.mubr.bf16.mxu0 0
      %1959 = vmatmul.mubr.bf16.gmra.mxu0 %v1605
      %v1960 = vpop.f32.mrf.mxu0
      %v1961 = vadd.f32 %v1343, %v1960
      %v1962 = vpop.f32.mrf.mxu0
      %v1963 = vpop.f32.mrf.mxu0
      %v1964 = vadd.f32 %v1346, %v1963
      %v1965 = vpop.f32.mrf.mxu0
      %1966 = vmatprep.mubr.bf16.mxu0 0
      %1967 = vmatmul.mubr.bf16.gmra.mxu0 %v1608
      %v1968 = vpop.f32.mrf.mxu0
      %v1969 = vadd.f32 %v1351, %v1968
      %v1970 = vpop.f32.mrf.mxu0
      %v1971 = vpop.f32.mrf.mxu0
      %v1972 = vadd.f32 %v1354, %v1971
      %v1973 = vpop.f32.mrf.mxu0
      %1974 = vmatprep.mubr.bf16.mxu0 0
      %1975 = vmatmul.mubr.bf16.gmra.mxu0 %v1611
      %v1976 = vpop.f32.mrf.mxu0
      %v1977 = vadd.f32 %v1359, %v1976
      %v1978 = vpop.f32.mrf.mxu0
      %v1979 = vpop.f32.mrf.mxu0
      %v1980 = vadd.f32 %v1362, %v1979
      %v1981 = vpop.f32.mrf.mxu0
      %1982 = vmatprep.mubr.bf16.mxu0 0
      %1983 = vmatmul.mubr.bf16.gmra.mxu0 %v1614
      %v1984 = vpop.f32.mrf.mxu0
      %v1985 = vadd.f32 %v1367, %v1984
      %v1986 = vpop.f32.mrf.mxu0
      %v1987 = vpop.f32.mrf.mxu0
      %v1988 = vadd.f32 %v1370, %v1987
      %v1989 = vpop.f32.mrf.mxu0
      %1990 = vmatprep.mubr.bf16.mxu0 0
      %1991 = vmatmul.mubr.bf16.gmra.mxu0 %v1617
      %v1992 = vpop.f32.mrf.mxu0
      %v1993 = vadd.f32 %v1375, %v1992
      %v1994 = vpop.f32.mrf.mxu0
      %v1995 = vpop.f32.mrf.mxu0
      %v1996 = vadd.f32 %v1378, %v1995
      %v1997 = vpop.f32.mrf.mxu0
      %1998 = vmatprep.mubr.bf16.mxu0 0
      %1999 = vmatmul.mubr.bf16.gmra.mxu0 %v1620
      %v2000 = vpop.f32.mrf.mxu0
      %v2001 = vadd.f32 %v1383, %v2000
      %v2002 = vpop.f32.mrf.mxu0
      %v2003 = vpop.f32.mrf.mxu0
      %v2004 = vadd.f32 %v1386, %v2003
      %v2005 = vpop.f32.mrf.mxu0
      %2006 = vmatprep.mubr.bf16.mxu0 0
      %2007 = vmatmul.mubr.bf16.gmra.mxu0 %v1623
      %v2008 = vpop.f32.mrf.mxu0
      %v2009 = vadd.f32 %v1391, %v2008
      %v2010 = vpop.f32.mrf.mxu0
      %v2011 = vpop.f32.mrf.mxu0
      %v2012 = vadd.f32 %v1394, %v2011
      %v2013 = vpop.f32.mrf.mxu0
      %2014 = vmatprep.mubr.bf16.mxu0 0
      %2015 = vmatmul.mubr.bf16.gmra.mxu0 %v1626
      %v2016 = vpop.f32.mrf.mxu0
      %v2017 = vadd.f32 %v1399, %v2016
      %v2018 = vpop.f32.mrf.mxu0
      %v2019 = vpop.f32.mrf.mxu0
      %v2020 = vadd.f32 %v1402, %v2019
      %v2021 = vpop.f32.mrf.mxu0
      %2022 = vmatprep.mubr.bf16.mxu0 0
      %2023 = vmatmul.mubr.bf16.gmra.mxu0 %v1629
      %v2024 = vpop.f32.mrf.mxu0
      %v2025 = vadd.f32 %v1407, %v2024
      %v2026 = vpop.f32.mrf.mxu0
      %v2027 = vpop.f32.mrf.mxu0
      %v2028 = vadd.f32 %v1410, %v2027
      %v2029 = vpop.f32.mrf.mxu0
      %2030 = vmatprep.mubr.bf16.mxu0 0
      %2031 = vmatmul.mubr.bf16.gmra.mxu0 %v1632
      %v2032 = vpop.f32.mrf.mxu0
      %v2033 = vadd.f32 %v1415, %v2032
      %v2034 = vpop.f32.mrf.mxu0
      %v2035 = vpop.f32.mrf.mxu0
      %v2036 = vadd.f32 %v1418, %v2035
      %v2037 = vpop.f32.mrf.mxu0
      %2038 = vmatprep.mubr.bf16.mxu0 0
      %2039 = vmatmul.mubr.bf16.gmra.mxu0 %v1635
      %v2040 = vpop.f32.mrf.mxu0
      %v2041 = vadd.f32 %v1423, %v2040
      %v2042 = vpop.f32.mrf.mxu0
      %v2043 = vpop.f32.mrf.mxu0
      %v2044 = vadd.f32 %v1426, %v2043
      %v2045 = vpop.f32.mrf.mxu0
      %2046 = vmatprep.mubr.bf16.mxu0 0
      %2047 = vmatmul.mubr.bf16.gmra.mxu0 %v1638
      %v2048 = vpop.f32.mrf.mxu0
      %v2049 = vadd.f32 %v1431, %v2048
      %v2050 = vpop.f32.mrf.mxu0
      %v2051 = vpop.f32.mrf.mxu0
      %v2052 = vadd.f32 %v1434, %v2051
      %v2053 = vpop.f32.mrf.mxu0
      %2054 = vmatprep.mubr.bf16.mxu0 0
      %2055 = vmatmul.mubr.bf16.gmra.mxu0 %v1641
      %v2056 = vpop.f32.mrf.mxu0
      %v2057 = vadd.f32 %v1439, %v2056
      %v2058 = vpop.f32.mrf.mxu0
      %v2059 = vpop.f32.mrf.mxu0
      %v2060 = vadd.f32 %v1442, %v2059
      %v2061 = vpop.f32.mrf.mxu0
      %2062 = vmatprep.mubr.bf16.mxu0 0
      %2063 = vmatmul.mubr.bf16.gmra.mxu0 %v1644
      %v2064 = vpop.f32.mrf.mxu0
      %v2065 = vadd.f32 %v1447, %v2064
      %v2066 = vpop.f32.mrf.mxu0
      %v2067 = vpop.f32.mrf.mxu0
      %v2068 = vadd.f32 %v1450, %v2067
      %v2069 = vpop.f32.mrf.mxu0
      %2070 = vmatprep.mubr.bf16.mxu0 0
      %2071 = vmatmul.mubr.bf16.gmra.mxu0 %v1647
      %v2072 = vpop.f32.mrf.mxu0
      %v2073 = vadd.f32 %v1455, %v2072
      %v2074 = vpop.f32.mrf.mxu0
      %v2075 = vpop.f32.mrf.mxu0
      %v2076 = vadd.f32 %v1458, %v2075
      %v2077 = vpop.f32.mrf.mxu0
      %2078 = vmatprep.mubr.bf16.mxu0 0
      %2079 = vmatmul.mubr.bf16.gmra.mxu0 %v1650
      %v2080 = vpop.f32.mrf.mxu0
      %v2081 = vadd.f32 %v1463, %v2080
      %v2082 = vpop.f32.mrf.mxu0
      %v2083 = vpop.f32.mrf.mxu0
      %v2084 = vadd.f32 %v1466, %v2083
      %v2085 = vpop.f32.mrf.mxu0
      %2086 = vmatprep.mubr.bf16.mxu0 0
      %2087 = vmatmul.mubr.bf16.gmra.mxu0 %v1653
      %v2088 = vpop.f32.mrf.mxu0
      %v2089 = vadd.f32 %v1471, %v2088
      %v2090 = vpop.f32.mrf.mxu0
      %v2091 = vpop.f32.mrf.mxu0
      %v2092 = vadd.f32 %v1474, %v2091
      %v2093 = vpop.f32.mrf.mxu0
      %2094 = vmatprep.mubr.bf16.mxu0 0
      %2095 = vmatmul.mubr.bf16.gmra.mxu0 %v1656
      %v2096 = vpop.f32.mrf.mxu0
      %v2097 = vadd.f32 %v1479, %v2096
      %v2098 = vpop.f32.mrf.mxu0
      %v2099 = vpop.f32.mrf.mxu0
      %v2100 = vadd.f32 %v1482, %v2099
      %v2101 = vpop.f32.mrf.mxu0
      %2102 = vmatprep.mubr.bf16.mxu0 0
      %2103 = vmatmul.mubr.bf16.gmra.mxu0 %v1659
      %v2104 = vpop.f32.mrf.mxu0
      %v2105 = vadd.f32 %v1487, %v2104
      %v2106 = vpop.f32.mrf.mxu0
      %v2107 = vpop.f32.mrf.mxu0
      %v2108 = vadd.f32 %v1490, %v2107
      %v2109 = vpop.f32.mrf.mxu0
      %2110 = vmatprep.mubr.bf16.mxu0 0
      %2111 = vmatmul.mubr.bf16.gmra.mxu0 %v1662
      %v2112 = vpop.f32.mrf.mxu0
      %v2113 = vadd.f32 %v1495, %v2112
      %v2114 = vpop.f32.mrf.mxu0
      %v2115 = vpop.f32.mrf.mxu0
      %v2116 = vadd.f32 %v1498, %v2115
      %v2117 = vpop.f32.mrf.mxu0
      %2118 = vmatprep.mubr.bf16.mxu0 0
      %2119 = vmatmul.mubr.bf16.gmra.mxu0 %v1665
      %v2120 = vpop.f32.mrf.mxu0
      %v2121 = vadd.f32 %v1503, %v2120
      %v2122 = vpop.f32.mrf.mxu0
      %v2123 = vpop.f32.mrf.mxu0
      %v2124 = vpop.f32.mrf.mxu0
      %2125 = vdwg.mxu0
      %v2126 = vld [vmem:[#allocation2 + $0x2] sm:$0xff]
      %v2127 = vld [vmem:[#allocation2 + $0xa] sm:$0xff]
      %v2128 = vld [vmem:[#allocation2 + $0x12] sm:$0xff]
      %v2129 = vld [vmem:[#allocation2 + $0x1a] sm:$0xff]
      %v2130 = vld [vmem:[#allocation2 + $0x22] sm:$0xff]
      %v2131 = vld [vmem:[#allocation2 + $0x2a] sm:$0xff]
      %v2132 = vld [vmem:[#allocation2 + $0x32] sm:$0xff]
      %v2133 = vld [vmem:[#allocation2 + $0x3a] sm:$0xff]
      %v2134 = vld [vmem:[#allocation2 + $0x42] sm:$0xff]
      %v2135 = vld [vmem:[#allocation2 + $0x4a] sm:$0xff]
      %v2136 = vld [vmem:[#allocation2 + $0x52] sm:$0xff]
      %v2137 = vld [vmem:[#allocation2 + $0x5a] sm:$0xff]
      %v2138 = vld [vmem:[#allocation2 + $0x62] sm:$0xff]
      %v2139 = vld [vmem:[#allocation2 + $0x6a] sm:$0xff]
      %v2140 = vld [vmem:[#allocation2 + $0x72] sm:$0xff]
      %v2141 = vld [vmem:[#allocation2 + $0x7a] sm:$0xff]
      %v2142 = vld [vmem:[#allocation2 + $0x82] sm:$0xff]
      %v2143 = vld [vmem:[#allocation2 + $0x8a] sm:$0xff]
      %v2144 = vld [vmem:[#allocation2 + $0x92] sm:$0xff]
      %v2145 = vld [vmem:[#allocation2 + $0x9a] sm:$0xff]
      %v2146 = vld [vmem:[#allocation2 + $0xa2] sm:$0xff]
      %v2147 = vld [vmem:[#allocation2 + $0xaa] sm:$0xff]
      %v2148 = vld [vmem:[#allocation2 + $0xb2] sm:$0xff]
      %v2149 = vld [vmem:[#allocation2 + $0xba] sm:$0xff]
      %v2150 = vld [vmem:[#allocation2 + $0xc2] sm:$0xff]
      %v2151 = vld [vmem:[#allocation2 + $0xca] sm:$0xff]
      %v2152 = vld [vmem:[#allocation2 + $0xd2] sm:$0xff]
      %v2153 = vld [vmem:[#allocation2 + $0xda] sm:$0xff]
      %v2154 = vld [vmem:[#allocation2 + $0xe2] sm:$0xff]
      %v2155 = vld [vmem:[#allocation2 + $0xea] sm:$0xff]
      %v2156 = vld [vmem:[#allocation2 + $0xf2] sm:$0xff]
      %v2157 = vld [vmem:[#allocation2 + $0xfa] sm:$0xff]
      %v2158 = vld [vmem:[#allocation2 + $0x102] sm:$0xff]
      %v2159 = vld [vmem:[#allocation2 + $0x10a] sm:$0xff]
      %v2160 = vld [vmem:[#allocation2 + $0x112] sm:$0xff]
      %v2161 = vld [vmem:[#allocation2 + $0x11a] sm:$0xff]
      %v2162 = vld [vmem:[#allocation2 + $0x122] sm:$0xff]
      %v2163 = vld [vmem:[#allocation2 + $0x12a] sm:$0xff]
      %v2164 = vld [vmem:[#allocation2 + $0x132] sm:$0xff]
      %v2165 = vld [vmem:[#allocation2 + $0x13a] sm:$0xff]
      %v2166 = vld [vmem:[#allocation2 + $0x142] sm:$0xff]
      %v2167 = vld [vmem:[#allocation2 + $0x14a] sm:$0xff]
      %v2168 = vld [vmem:[#allocation2 + $0x152] sm:$0xff]
      %v2169 = vld [vmem:[#allocation2 + $0x15a] sm:$0xff]
      %v2170 = vld [vmem:[#allocation2 + $0x162] sm:$0xff]
      %v2171 = vld [vmem:[#allocation2 + $0x16a] sm:$0xff]
      %v2172 = vld [vmem:[#allocation2 + $0x172] sm:$0xff]
      %v2173 = vld [vmem:[#allocation2 + $0x17a] sm:$0xff]
      %v2174 = vld [vmem:[#allocation2 + $0x182] sm:$0xff]
      %v2175 = vld [vmem:[#allocation2 + $0x18a] sm:$0xff]
      %v2176 = vld [vmem:[#allocation2 + $0x192] sm:$0xff]
      %v2177 = vld [vmem:[#allocation2 + $0x19a] sm:$0xff]
      %v2178 = vld [vmem:[#allocation2 + $0x1a2] sm:$0xff]
      %v2179 = vld [vmem:[#allocation2 + $0x1aa] sm:$0xff]
      %v2180 = vld [vmem:[#allocation2 + $0x1b2] sm:$0xff]
      %v2181 = vld [vmem:[#allocation2 + $0x1ba] sm:$0xff]
      %v2182 = vld [vmem:[#allocation2 + $0x1c2] sm:$0xff]
      %v2183 = vld [vmem:[#allocation2 + $0x1ca] sm:$0xff]
      %v2184 = vld [vmem:[#allocation2 + $0x1d2] sm:$0xff]
      %v2185 = vld [vmem:[#allocation2 + $0x1da] sm:$0xff]
      %v2186 = vld [vmem:[#allocation2 + $0x1e2] sm:$0xff]
      %v2187 = vld [vmem:[#allocation2 + $0x1ea] sm:$0xff]
      %v2188 = vld [vmem:[#allocation2 + $0x1f2] sm:$0xff]
      %v2189 = vld [vmem:[#allocation2 + $0x1fa] sm:$0xff]
      %v2190 = vld [vmem:[#allocation2 + $0x202] sm:$0xff]
      %v2191 = vld [vmem:[#allocation2 + $0x20a] sm:$0xff]
      %v2192 = vld [vmem:[#allocation2 + $0x212] sm:$0xff]
      %v2193 = vld [vmem:[#allocation2 + $0x21a] sm:$0xff]
      %v2194 = vld [vmem:[#allocation2 + $0x222] sm:$0xff]
      %v2195 = vld [vmem:[#allocation2 + $0x22a] sm:$0xff]
      %v2196 = vld [vmem:[#allocation2 + $0x232] sm:$0xff]
      %v2197 = vld [vmem:[#allocation2 + $0x23a] sm:$0xff]
      %v2198 = vld [vmem:[#allocation2 + $0x242] sm:$0xff]
      %v2199 = vld [vmem:[#allocation2 + $0x24a] sm:$0xff]
      %v2200 = vld [vmem:[#allocation2 + $0x252] sm:$0xff]
      %v2201 = vld [vmem:[#allocation2 + $0x25a] sm:$0xff]
      %v2202 = vld [vmem:[#allocation2 + $0x262] sm:$0xff]
      %v2203 = vld [vmem:[#allocation2 + $0x26a] sm:$0xff]
      %v2204 = vld [vmem:[#allocation2 + $0x272] sm:$0xff]
      %v2205 = vld [vmem:[#allocation2 + $0x27a] sm:$0xff]
      %v2206 = vld [vmem:[#allocation2 + $0x282] sm:$0xff]
      %v2207 = vld [vmem:[#allocation2 + $0x28a] sm:$0xff]
      %v2208 = vld [vmem:[#allocation2 + $0x292] sm:$0xff]
      %v2209 = vld [vmem:[#allocation2 + $0x29a] sm:$0xff]
      %v2210 = vld [vmem:[#allocation2 + $0x2a2] sm:$0xff]
      %v2211 = vld [vmem:[#allocation2 + $0x2aa] sm:$0xff]
      %v2212 = vld [vmem:[#allocation2 + $0x2b2] sm:$0xff]
      %v2213 = vld [vmem:[#allocation2 + $0x2ba] sm:$0xff]
      %v2214 = vld [vmem:[#allocation2 + $0x2c2] sm:$0xff]
      %v2215 = vld [vmem:[#allocation2 + $0x2ca] sm:$0xff]
      %v2216 = vld [vmem:[#allocation2 + $0x2d2] sm:$0xff]
      %v2217 = vld [vmem:[#allocation2 + $0x2da] sm:$0xff]
      %v2218 = vld [vmem:[#allocation2 + $0x2e2] sm:$0xff]
      %v2219 = vld [vmem:[#allocation2 + $0x2ea] sm:$0xff]
      %v2220 = vld [vmem:[#allocation2 + $0x2f2] sm:$0xff]
      %v2221 = vld [vmem:[#allocation2 + $0x2fa] sm:$0xff]
      %v2222 = vld [vmem:[#allocation2 + $0x302] sm:$0xff]
      %v2223 = vld [vmem:[#allocation2 + $0x30a] sm:$0xff]
      %v2224 = vld [vmem:[#allocation2 + $0x312] sm:$0xff]
      %v2225 = vld [vmem:[#allocation2 + $0x31a] sm:$0xff]
      %v2226 = vld [vmem:[#allocation2 + $0x322] sm:$0xff]
      %v2227 = vld [vmem:[#allocation2 + $0x32a] sm:$0xff]
      %v2228 = vld [vmem:[#allocation2 + $0x332] sm:$0xff]
      %v2229 = vld [vmem:[#allocation2 + $0x33a] sm:$0xff]
      %v2230 = vld [vmem:[#allocation2 + $0x342] sm:$0x3f]
      %v2231 = vpack.c.bf16 %v2127, %v2126
      %v2232 = vpack.c.bf16 %v2129, %v2128
      %v2233 = vpack.c.bf16 %v2131, %v2130
      %v2234 = vpack.c.bf16 %v2133, %v2132
      %v2235 = vpack.c.bf16 %v2135, %v2134
      %v2236 = vpack.c.bf16 %v2137, %v2136
      %v2237 = vpack.c.bf16 %v2139, %v2138
      %v2238 = vpack.c.bf16 %v2141, %v2140
      %v2239 = vpack.c.bf16 %v2143, %v2142
      %v2240 = vpack.c.bf16 %v2145, %v2144
      %v2241 = vpack.c.bf16 %v2147, %v2146
      %v2242 = vpack.c.bf16 %v2149, %v2148
      %v2243 = vpack.c.bf16 %v2151, %v2150
      %v2244 = vpack.c.bf16 %v2153, %v2152
      %v2245 = vpack.c.bf16 %v2155, %v2154
      %v2246 = vpack.c.bf16 %v2157, %v2156
      %v2247 = vpack.c.bf16 %v2159, %v2158
      %v2248 = vpack.c.bf16 %v2161, %v2160
      %v2249 = vpack.c.bf16 %v2163, %v2162
      %v2250 = vpack.c.bf16 %v2165, %v2164
      %v2251 = vpack.c.bf16 %v2167, %v2166
      %v2252 = vpack.c.bf16 %v2169, %v2168
      %v2253 = vpack.c.bf16 %v2171, %v2170
      %v2254 = vpack.c.bf16 %v2173, %v2172
      %v2255 = vpack.c.bf16 %v2175, %v2174
      %v2256 = vpack.c.bf16 %v2177, %v2176
      %v2257 = vpack.c.bf16 %v2179, %v2178
      %v2258 = vpack.c.bf16 %v2181, %v2180
      %v2259 = vpack.c.bf16 %v2183, %v2182
      %v2260 = vpack.c.bf16 %v2185, %v2184
      %v2261 = vpack.c.bf16 %v2187, %v2186
      %v2262 = vpack.c.bf16 %v2189, %v2188
      %v2263 = vpack.c.bf16 %v2191, %v2190
      %v2264 = vpack.c.bf16 %v2193, %v2192
      %v2265 = vpack.c.bf16 %v2195, %v2194
      %v2266 = vpack.c.bf16 %v2197, %v2196
      %v2267 = vpack.c.bf16 %v2199, %v2198
      %v2268 = vpack.c.bf16 %v2201, %v2200
      %v2269 = vpack.c.bf16 %v2203, %v2202
      %v2270 = vpack.c.bf16 %v2205, %v2204
      %v2271 = vpack.c.bf16 %v2207, %v2206
      %v2272 = vpack.c.bf16 %v2209, %v2208
      %v2273 = vpack.c.bf16 %v2211, %v2210
      %v2274 = vpack.c.bf16 %v2213, %v2212
      %v2275 = vpack.c.bf16 %v2215, %v2214
      %v2276 = vpack.c.bf16 %v2217, %v2216
      %v2277 = vpack.c.bf16 %v2219, %v2218
      %v2278 = vpack.c.bf16 %v2221, %v2220
      %v2279 = vpack.c.bf16 %v2223, %v2222
      %v2280 = vpack.c.bf16 %v2225, %v2224
      %v2281 = vpack.c.bf16 %v2227, %v2226
      %v2282 = vpack.c.bf16 %v2229, %v2228
      %v2283 = vpack.c.bf16 %v2230, %v2230
      %s2284 = scalar_lea.vmem %s1, 4
      %v2285 = vld [vmem:[%s2284] sm:$0x3]
      %v2287 = vsel %vm452, %v2231, 0
      %v2290 = vsel %vm452, %v2232, 0
      %v2293 = vsel %vm452, %v2233, 0
      %v2296 = vsel %vm452, %v2234, 0
      %v2299 = vsel %vm452, %v2235, 0
      %v2302 = vsel %vm452, %v2236, 0
      %v2305 = vsel %vm452, %v2237, 0
      %v2308 = vsel %vm452, %v2238, 0
      %v2311 = vsel %vm452, %v2239, 0
      %v2314 = vsel %vm452, %v2240, 0
      %v2317 = vsel %vm452, %v2241, 0
      %v2320 = vsel %vm452, %v2242, 0
      %v2323 = vsel %vm452, %v2243, 0
      %v2326 = vsel %vm452, %v2244, 0
      %v2329 = vsel %vm452, %v2245, 0
      %v2332 = vsel %vm452, %v2246, 0
      %v2335 = vsel %vm452, %v2247, 0
      %v2338 = vsel %vm452, %v2248, 0
      %v2341 = vsel %vm452, %v2249, 0
      %v2344 = vsel %vm452, %v2250, 0
      %v2347 = vsel %vm452, %v2251, 0
      %v2350 = vsel %vm452, %v2252, 0
      %v2353 = vsel %vm452, %v2253, 0
      %v2356 = vsel %vm452, %v2254, 0
      %v2359 = vsel %vm452, %v2255, 0
      %v2362 = vsel %vm452, %v2256, 0
      %v2365 = vsel %vm452, %v2257, 0
      %v2368 = vsel %vm452, %v2258, 0
      %v2371 = vsel %vm452, %v2259, 0
      %v2374 = vsel %vm452, %v2260, 0
      %v2377 = vsel %vm452, %v2261, 0
      %v2380 = vsel %vm452, %v2262, 0
      %v2383 = vsel %vm452, %v2263, 0
      %v2386 = vsel %vm452, %v2264, 0
      %v2389 = vsel %vm452, %v2265, 0
      %v2392 = vsel %vm452, %v2266, 0
      %v2395 = vsel %vm452, %v2267, 0
      %v2398 = vsel %vm452, %v2268, 0
      %v2401 = vsel %vm452, %v2269, 0
      %v2404 = vsel %vm452, %v2270, 0
      %v2407 = vsel %vm452, %v2271, 0
      %v2410 = vsel %vm452, %v2272, 0
      %v2413 = vsel %vm452, %v2273, 0
      %v2416 = vsel %vm452, %v2274, 0
      %v2419 = vsel %vm452, %v2275, 0
      %v2422 = vsel %vm452, %v2276, 0
      %v2425 = vsel %vm452, %v2277, 0
      %v2428 = vsel %vm452, %v2278, 0
      %v2431 = vsel %vm452, %v2279, 0
      %v2434 = vsel %vm452, %v2280, 0
      %v2437 = vsel %vm452, %v2281, 0
      %v2440 = vsel %vm452, %v2282, 0
      %v2443 = vsel %vm452, %v2283, 0
      %v2446 = vand.u32 %v2285, %v1048
      %2448 = vmatprep.subr.bf16.mxu0 0
      %2449 = vmatpush1.bf16.msra.mxu0 0
      %2450 = vmatprep.subr.bf16.mxu0 0
      %2451 = vmatpush1.bf16.msra.mxu0 0
      %2452 = vmatprep.subr.bf16.mxu0 0
      %2453 = vmatpush1.bf16.msra.mxu0 0
      %2454 = vmatprep.subr.bf16.mxu0 0
      %2455 = vmatpush1.bf16.msra.mxu0 0
      %2456 = vmatprep.subr.bf16.mxu0 0
      %2457 = vmatpush1.bf16.msra.mxu0 0
      %2458 = vmatprep.subr.bf16.mxu0 0
      %2459 = vmatpush1.bf16.msra.mxu0 0
      %2460 = vmatprep.subr.bf16.mxu0 0
      %2461 = vmatpush1.bf16.msra.mxu0 0
      %2462 = vmatprep.subr.bf16.mxu0 0
      %2463 = vmatpush1.bf16.msra.mxu0 %v2446
      %2464 = vmatprep.subr.bf16.mxu0 0
      %2465 = vmatpush2.bf16.msra.mxu0 0
      %2466 = vmatprep.subr.bf16.mxu0 0
      %2467 = vmatpush2.bf16.msra.mxu0 0
      %2468 = vmatprep.subr.bf16.mxu0 0
      %2469 = vmatpush2.bf16.msra.mxu0 0
      %2470 = vmatprep.subr.bf16.mxu0 0
      %2471 = vmatpush2.bf16.msra.mxu0 0
      %2472 = vmatprep.subr.bf16.mxu0 0
      %2473 = vmatpush2.bf16.msra.mxu0 0
      %2474 = vmatprep.subr.bf16.mxu0 0
      %2475 = vmatpush2.bf16.msra.mxu0 0
      %2476 = vmatprep.subr.bf16.mxu0 0
      %2477 = vmatpush2.bf16.msra.mxu0 0
      %2478 = vmatprep.subr.bf16.mxu0 0
      %2479 = vmatpush2.bf16.msra.mxu0 0
      %2480 = vmatprep.mubr.bf16.mxu0 0
      %2481 = vmatmul.mubr.bf16.gmra.mxu0 %v2287
      %v2482 = vpop.f32.mrf.mxu0
      %v2483 = vadd.f32 0.0, %v2482
      %v2484 = vpop.f32.mrf.mxu0
      %v2485 = vpop.f32.mrf.mxu0
      %v2486 = vadd.f32 0.0, %v2485
      %v2487 = vpop.f32.mrf.mxu0
      %2488 = vmatprep.mubr.bf16.mxu0 0
      %2489 = vmatmul.mubr.bf16.gmra.mxu0 %v2290
      %v2490 = vpop.f32.mrf.mxu0
      %v2491 = vadd.f32 0.0, %v2490
      %v2492 = vpop.f32.mrf.mxu0
      %v2493 = vpop.f32.mrf.mxu0
      %v2494 = vadd.f32 0.0, %v2493
      %v2495 = vpop.f32.mrf.mxu0
      %2496 = vmatprep.mubr.bf16.mxu0 0
      %2497 = vmatmul.mubr.bf16.gmra.mxu0 %v2293
      %v2498 = vpop.f32.mrf.mxu0
      %v2499 = vadd.f32 0.0, %v2498
      %v2500 = vpop.f32.mrf.mxu0
      %v2501 = vpop.f32.mrf.mxu0
      %v2502 = vadd.f32 0.0, %v2501
      %v2503 = vpop.f32.mrf.mxu0
      %2504 = vmatprep.mubr.bf16.mxu0 0
      %2505 = vmatmul.mubr.bf16.gmra.mxu0 %v2296
      %v2506 = vpop.f32.mrf.mxu0
      %v2507 = vadd.f32 0.0, %v2506
      %v2508 = vpop.f32.mrf.mxu0
      %v2509 = vpop.f32.mrf.mxu0
      %v2510 = vadd.f32 0.0, %v2509
      %v2511 = vpop.f32.mrf.mxu0
      %2512 = vmatprep.mubr.bf16.mxu0 0
      %2513 = vmatmul.mubr.bf16.gmra.mxu0 %v2299
      %v2514 = vpop.f32.mrf.mxu0
      %v2515 = vadd.f32 0.0, %v2514
      %v2516 = vpop.f32.mrf.mxu0
      %v2517 = vpop.f32.mrf.mxu0
      %v2518 = vadd.f32 0.0, %v2517
      %v2519 = vpop.f32.mrf.mxu0
      %2520 = vmatprep.mubr.bf16.mxu0 0
      %2521 = vmatmul.mubr.bf16.gmra.mxu0 %v2302
      %v2522 = vpop.f32.mrf.mxu0
      %v2523 = vadd.f32 0.0, %v2522
      %v2524 = vpop.f32.mrf.mxu0
      %v2525 = vpop.f32.mrf.mxu0
      %v2526 = vadd.f32 0.0, %v2525
      %v2527 = vpop.f32.mrf.mxu0
      %2528 = vmatprep.mubr.bf16.mxu0 0
      %2529 = vmatmul.mubr.bf16.gmra.mxu0 %v2305
      %v2530 = vpop.f32.mrf.mxu0
      %v2531 = vadd.f32 0.0, %v2530
      %v2532 = vpop.f32.mrf.mxu0
      %v2533 = vpop.f32.mrf.mxu0
      %v2534 = vadd.f32 0.0, %v2533
      %v2535 = vpop.f32.mrf.mxu0
      %2536 = vmatprep.mubr.bf16.mxu0 0
      %2537 = vmatmul.mubr.bf16.gmra.mxu0 %v2308
      %v2538 = vpop.f32.mrf.mxu0
      %v2539 = vadd.f32 0.0, %v2538
      %v2540 = vpop.f32.mrf.mxu0
      %v2541 = vpop.f32.mrf.mxu0
      %v2542 = vadd.f32 0.0, %v2541
      %v2543 = vpop.f32.mrf.mxu0
      %2544 = vmatprep.mubr.bf16.mxu0 0
      %2545 = vmatmul.mubr.bf16.gmra.mxu0 %v2311
      %v2546 = vpop.f32.mrf.mxu0
      %v2547 = vadd.f32 0.0, %v2546
      %v2548 = vpop.f32.mrf.mxu0
      %v2549 = vpop.f32.mrf.mxu0
      %v2550 = vadd.f32 0.0, %v2549
      %v2551 = vpop.f32.mrf.mxu0
      %2552 = vmatprep.mubr.bf16.mxu0 0
      %2553 = vmatmul.mubr.bf16.gmra.mxu0 %v2314
      %v2554 = vpop.f32.mrf.mxu0
      %v2555 = vadd.f32 0.0, %v2554
      %v2556 = vpop.f32.mrf.mxu0
      %v2557 = vpop.f32.mrf.mxu0
      %v2558 = vadd.f32 0.0, %v2557
      %v2559 = vpop.f32.mrf.mxu0
      %2560 = vmatprep.mubr.bf16.mxu0 0
      %2561 = vmatmul.mubr.bf16.gmra.mxu0 %v2317
      %v2562 = vpop.f32.mrf.mxu0
      %v2563 = vadd.f32 0.0, %v2562
      %v2564 = vpop.f32.mrf.mxu0
      %v2565 = vpop.f32.mrf.mxu0
      %v2566 = vadd.f32 0.0, %v2565
      %v2567 = vpop.f32.mrf.mxu0
      %2568 = vmatprep.mubr.bf16.mxu0 0
      %2569 = vmatmul.mubr.bf16.gmra.mxu0 %v2320
      %v2570 = vpop.f32.mrf.mxu0
      %v2571 = vadd.f32 0.0, %v2570
      %v2572 = vpop.f32.mrf.mxu0
      %v2573 = vpop.f32.mrf.mxu0
      %v2574 = vadd.f32 0.0, %v2573
      %v2575 = vpop.f32.mrf.mxu0
      %2576 = vmatprep.mubr.bf16.mxu0 0
      %2577 = vmatmul.mubr.bf16.gmra.mxu0 %v2323
      %v2578 = vpop.f32.mrf.mxu0
      %v2579 = vadd.f32 0.0, %v2578
      %v2580 = vpop.f32.mrf.mxu0
      %v2581 = vpop.f32.mrf.mxu0
      %v2582 = vadd.f32 0.0, %v2581
      %v2583 = vpop.f32.mrf.mxu0
      %2584 = vmatprep.mubr.bf16.mxu0 0
      %2585 = vmatmul.mubr.bf16.gmra.mxu0 %v2326
      %v2586 = vpop.f32.mrf.mxu0
      %v2587 = vadd.f32 0.0, %v2586
      %v2588 = vpop.f32.mrf.mxu0
      %v2589 = vpop.f32.mrf.mxu0
      %v2590 = vadd.f32 0.0, %v2589
      %v2591 = vpop.f32.mrf.mxu0
      %2592 = vmatprep.mubr.bf16.mxu0 0
      %2593 = vmatmul.mubr.bf16.gmra.mxu0 %v2329
      %v2594 = vpop.f32.mrf.mxu0
      %v2595 = vadd.f32 0.0, %v2594
      %v2596 = vpop.f32.mrf.mxu0
      %v2597 = vpop.f32.mrf.mxu0
      %v2598 = vadd.f32 0.0, %v2597
      %v2599 = vpop.f32.mrf.mxu0
      %2600 = vmatprep.mubr.bf16.mxu0 0
      %2601 = vmatmul.mubr.bf16.gmra.mxu0 %v2332
      %v2602 = vpop.f32.mrf.mxu0
      %v2603 = vadd.f32 0.0, %v2602
      %v2604 = vpop.f32.mrf.mxu0
      %v2605 = vpop.f32.mrf.mxu0
      %v2606 = vadd.f32 0.0, %v2605
      %v2607 = vpop.f32.mrf.mxu0
      %2608 = vmatprep.mubr.bf16.mxu0 0
      %2609 = vmatmul.mubr.bf16.gmra.mxu0 %v2335
      %v2610 = vpop.f32.mrf.mxu0
      %v2611 = vadd.f32 0.0, %v2610
      %v2612 = vpop.f32.mrf.mxu0
      %v2613 = vpop.f32.mrf.mxu0
      %v2614 = vadd.f32 0.0, %v2613
      %v2615 = vpop.f32.mrf.mxu0
      %2616 = vmatprep.mubr.bf16.mxu0 0
      %2617 = vmatmul.mubr.bf16.gmra.mxu0 %v2338
      %v2618 = vpop.f32.mrf.mxu0
      %v2619 = vadd.f32 0.0, %v2618
      %v2620 = vpop.f32.mrf.mxu0
      %v2621 = vpop.f32.mrf.mxu0
      %v2622 = vadd.f32 0.0, %v2621
      %v2623 = vpop.f32.mrf.mxu0
      %2624 = vmatprep.mubr.bf16.mxu0 0
      %2625 = vmatmul.mubr.bf16.gmra.mxu0 %v2341
      %v2626 = vpop.f32.mrf.mxu0
      %v2627 = vadd.f32 0.0, %v2626
      %v2628 = vpop.f32.mrf.mxu0
      %v2629 = vpop.f32.mrf.mxu0
      %v2630 = vadd.f32 0.0, %v2629
      %v2631 = vpop.f32.mrf.mxu0
      %2632 = vmatprep.mubr.bf16.mxu0 0
      %2633 = vmatmul.mubr.bf16.gmra.mxu0 %v2344
      %v2634 = vpop.f32.mrf.mxu0
      %v2635 = vadd.f32 0.0, %v2634
      %v2636 = vpop.f32.mrf.mxu0
      %v2637 = vpop.f32.mrf.mxu0
      %v2638 = vadd.f32 0.0, %v2637
      %v2639 = vpop.f32.mrf.mxu0
      %2640 = vmatprep.mubr.bf16.mxu0 0
      %2641 = vmatmul.mubr.bf16.gmra.mxu0 %v2347
      %v2642 = vpop.f32.mrf.mxu0
      %v2643 = vadd.f32 0.0, %v2642
      %v2644 = vpop.f32.mrf.mxu0
      %v2645 = vpop.f32.mrf.mxu0
      %v2646 = vadd.f32 0.0, %v2645
      %v2647 = vpop.f32.mrf.mxu0
      %2648 = vmatprep.mubr.bf16.mxu0 0
      %2649 = vmatmul.mubr.bf16.gmra.mxu0 %v2350
      %v2650 = vpop.f32.mrf.mxu0
      %v2651 = vadd.f32 0.0, %v2650
      %v2652 = vpop.f32.mrf.mxu0
      %v2653 = vpop.f32.mrf.mxu0
      %v2654 = vadd.f32 0.0, %v2653
      %v2655 = vpop.f32.mrf.mxu0
      %2656 = vmatprep.mubr.bf16.mxu0 0
      %2657 = vmatmul.mubr.bf16.gmra.mxu0 %v2353
      %v2658 = vpop.f32.mrf.mxu0
      %v2659 = vadd.f32 0.0, %v2658
      %v2660 = vpop.f32.mrf.mxu0
      %v2661 = vpop.f32.mrf.mxu0
      %v2662 = vadd.f32 0.0, %v2661
      %v2663 = vpop.f32.mrf.mxu0
      %2664 = vmatprep.mubr.bf16.mxu0 0
      %2665 = vmatmul.mubr.bf16.gmra.mxu0 %v2356
      %v2666 = vpop.f32.mrf.mxu0
      %v2667 = vadd.f32 0.0, %v2666
      %v2668 = vpop.f32.mrf.mxu0
      %v2669 = vpop.f32.mrf.mxu0
      %v2670 = vadd.f32 0.0, %v2669
      %v2671 = vpop.f32.mrf.mxu0
      %2672 = vmatprep.mubr.bf16.mxu0 0
      %2673 = vmatmul.mubr.bf16.gmra.mxu0 %v2359
      %v2674 = vpop.f32.mrf.mxu0
      %v2675 = vadd.f32 0.0, %v2674
      %v2676 = vpop.f32.mrf.mxu0
      %v2677 = vpop.f32.mrf.mxu0
      %v2678 = vadd.f32 0.0, %v2677
      %v2679 = vpop.f32.mrf.mxu0
      %2680 = vmatprep.mubr.bf16.mxu0 0
      %2681 = vmatmul.mubr.bf16.gmra.mxu0 %v2362
      %v2682 = vpop.f32.mrf.mxu0
      %v2683 = vadd.f32 0.0, %v2682
      %v2684 = vpop.f32.mrf.mxu0
      %v2685 = vpop.f32.mrf.mxu0
      %v2686 = vadd.f32 0.0, %v2685
      %v2687 = vpop.f32.mrf.mxu0
      %2688 = vmatprep.mubr.bf16.mxu0 0
      %2689 = vmatmul.mubr.bf16.gmra.mxu0 %v2365
      %v2690 = vpop.f32.mrf.mxu0
      %v2691 = vadd.f32 0.0, %v2690
      %v2692 = vpop.f32.mrf.mxu0
      %v2693 = vpop.f32.mrf.mxu0
      %v2694 = vadd.f32 0.0, %v2693
      %v2695 = vpop.f32.mrf.mxu0
      %2696 = vmatprep.mubr.bf16.mxu0 0
      %2697 = vmatmul.mubr.bf16.gmra.mxu0 %v2368
      %v2698 = vpop.f32.mrf.mxu0
      %v2699 = vadd.f32 0.0, %v2698
      %v2700 = vpop.f32.mrf.mxu0
      %v2701 = vpop.f32.mrf.mxu0
      %v2702 = vadd.f32 0.0, %v2701
      %v2703 = vpop.f32.mrf.mxu0
      %2704 = vmatprep.mubr.bf16.mxu0 0
      %2705 = vmatmul.mubr.bf16.gmra.mxu0 %v2371
      %v2706 = vpop.f32.mrf.mxu0
      %v2707 = vadd.f32 0.0, %v2706
      %v2708 = vpop.f32.mrf.mxu0
      %v2709 = vpop.f32.mrf.mxu0
      %v2710 = vadd.f32 0.0, %v2709
      %v2711 = vpop.f32.mrf.mxu0
      %2712 = vmatprep.mubr.bf16.mxu0 0
      %2713 = vmatmul.mubr.bf16.gmra.mxu0 %v2374
      %v2714 = vpop.f32.mrf.mxu0
      %v2715 = vadd.f32 0.0, %v2714
      %v2716 = vpop.f32.mrf.mxu0
      %v2717 = vpop.f32.mrf.mxu0
      %v2718 = vadd.f32 0.0, %v2717
      %v2719 = vpop.f32.mrf.mxu0
      %2720 = vmatprep.mubr.bf16.mxu0 0
      %2721 = vmatmul.mubr.bf16.gmra.mxu0 %v2377
      %v2722 = vpop.f32.mrf.mxu0
      %v2723 = vadd.f32 0.0, %v2722
      %v2724 = vpop.f32.mrf.mxu0
      %v2725 = vpop.f32.mrf.mxu0
      %v2726 = vadd.f32 0.0, %v2725
      %v2727 = vpop.f32.mrf.mxu0
      %2728 = vmatprep.mubr.bf16.mxu0 0
      %2729 = vmatmul.mubr.bf16.gmra.mxu0 %v2380
      %v2730 = vpop.f32.mrf.mxu0
      %v2731 = vadd.f32 0.0, %v2730
      %v2732 = vpop.f32.mrf.mxu0
      %v2733 = vpop.f32.mrf.mxu0
      %v2734 = vadd.f32 0.0, %v2733
      %v2735 = vpop.f32.mrf.mxu0
      %2736 = vmatprep.mubr.bf16.mxu0 0
      %2737 = vmatmul.mubr.bf16.gmra.mxu0 %v2383
      %v2738 = vpop.f32.mrf.mxu0
      %v2739 = vadd.f32 0.0, %v2738
      %v2740 = vpop.f32.mrf.mxu0
      %v2741 = vpop.f32.mrf.mxu0
      %v2742 = vadd.f32 0.0, %v2741
      %v2743 = vpop.f32.mrf.mxu0
      %2744 = vmatprep.mubr.bf16.mxu0 0
      %2745 = vmatmul.mubr.bf16.gmra.mxu0 %v2386
      %v2746 = vpop.f32.mrf.mxu0
      %v2747 = vadd.f32 0.0, %v2746
      %v2748 = vpop.f32.mrf.mxu0
      %v2749 = vpop.f32.mrf.mxu0
      %v2750 = vadd.f32 0.0, %v2749
      %v2751 = vpop.f32.mrf.mxu0
      %2752 = vmatprep.mubr.bf16.mxu0 0
      %2753 = vmatmul.mubr.bf16.gmra.mxu0 %v2389
      %v2754 = vpop.f32.mrf.mxu0
      %v2755 = vadd.f32 0.0, %v2754
      %v2756 = vpop.f32.mrf.mxu0
      %v2757 = vpop.f32.mrf.mxu0
      %v2758 = vadd.f32 0.0, %v2757
      %v2759 = vpop.f32.mrf.mxu0
      %2760 = vmatprep.mubr.bf16.mxu0 0
      %2761 = vmatmul.mubr.bf16.gmra.mxu0 %v2392
      %v2762 = vpop.f32.mrf.mxu0
      %v2763 = vadd.f32 0.0, %v2762
      %v2764 = vpop.f32.mrf.mxu0
      %v2765 = vpop.f32.mrf.mxu0
      %v2766 = vadd.f32 0.0, %v2765
      %v2767 = vpop.f32.mrf.mxu0
      %2768 = vmatprep.mubr.bf16.mxu0 0
      %2769 = vmatmul.mubr.bf16.gmra.mxu0 %v2395
      %v2770 = vpop.f32.mrf.mxu0
      %v2771 = vadd.f32 0.0, %v2770
      %v2772 = vpop.f32.mrf.mxu0
      %v2773 = vpop.f32.mrf.mxu0
      %v2774 = vadd.f32 0.0, %v2773
      %v2775 = vpop.f32.mrf.mxu0
      %2776 = vmatprep.mubr.bf16.mxu0 0
      %2777 = vmatmul.mubr.bf16.gmra.mxu0 %v2398
      %v2778 = vpop.f32.mrf.mxu0
      %v2779 = vadd.f32 0.0, %v2778
      %v2780 = vpop.f32.mrf.mxu0
      %v2781 = vpop.f32.mrf.mxu0
      %v2782 = vadd.f32 0.0, %v2781
      %v2783 = vpop.f32.mrf.mxu0
      %2784 = vmatprep.mubr.bf16.mxu0 0
      %2785 = vmatmul.mubr.bf16.gmra.mxu0 %v2401
      %v2786 = vpop.f32.mrf.mxu0
      %v2787 = vadd.f32 0.0, %v2786
      %v2788 = vpop.f32.mrf.mxu0
      %v2789 = vpop.f32.mrf.mxu0
      %v2790 = vadd.f32 0.0, %v2789
      %v2791 = vpop.f32.mrf.mxu0
      %2792 = vmatprep.mubr.bf16.mxu0 0
      %2793 = vmatmul.mubr.bf16.gmra.mxu0 %v2404
      %v2794 = vpop.f32.mrf.mxu0
      %v2795 = vadd.f32 0.0, %v2794
      %v2796 = vpop.f32.mrf.mxu0
      %v2797 = vpop.f32.mrf.mxu0
      %v2798 = vadd.f32 0.0, %v2797
      %v2799 = vpop.f32.mrf.mxu0
      %2800 = vmatprep.mubr.bf16.mxu0 0
      %2801 = vmatmul.mubr.bf16.gmra.mxu0 %v2407
      %v2802 = vpop.f32.mrf.mxu0
      %v2803 = vadd.f32 0.0, %v2802
      %v2804 = vpop.f32.mrf.mxu0
      %v2805 = vpop.f32.mrf.mxu0
      %v2806 = vadd.f32 0.0, %v2805
      %v2807 = vpop.f32.mrf.mxu0
      %2808 = vmatprep.mubr.bf16.mxu0 0
      %2809 = vmatmul.mubr.bf16.gmra.mxu0 %v2410
      %v2810 = vpop.f32.mrf.mxu0
      %v2811 = vadd.f32 0.0, %v2810
      %v2812 = vpop.f32.mrf.mxu0
      %v2813 = vpop.f32.mrf.mxu0
      %v2814 = vadd.f32 0.0, %v2813
      %v2815 = vpop.f32.mrf.mxu0
      %2816 = vmatprep.mubr.bf16.mxu0 0
      %2817 = vmatmul.mubr.bf16.gmra.mxu0 %v2413
      %v2818 = vpop.f32.mrf.mxu0
      %v2819 = vadd.f32 0.0, %v2818
      %v2820 = vpop.f32.mrf.mxu0
      %v2821 = vpop.f32.mrf.mxu0
      %v2822 = vadd.f32 0.0, %v2821
      %v2823 = vpop.f32.mrf.mxu0
      %2824 = vmatprep.mubr.bf16.mxu0 0
      %2825 = vmatmul.mubr.bf16.gmra.mxu0 %v2416
      %v2826 = vpop.f32.mrf.mxu0
      %v2827 = vadd.f32 0.0, %v2826
      %v2828 = vpop.f32.mrf.mxu0
      %v2829 = vpop.f32.mrf.mxu0
      %v2830 = vadd.f32 0.0, %v2829
      %v2831 = vpop.f32.mrf.mxu0
      %2832 = vmatprep.mubr.bf16.mxu0 0
      %2833 = vmatmul.mubr.bf16.gmra.mxu0 %v2419
      %v2834 = vpop.f32.mrf.mxu0
      %v2835 = vadd.f32 0.0, %v2834
      %v2836 = vpop.f32.mrf.mxu0
      %v2837 = vpop.f32.mrf.mxu0
      %v2838 = vadd.f32 0.0, %v2837
      %v2839 = vpop.f32.mrf.mxu0
      %2840 = vmatprep.mubr.bf16.mxu0 0
      %2841 = vmatmul.mubr.bf16.gmra.mxu0 %v2422
      %v2842 = vpop.f32.mrf.mxu0
      %v2843 = vadd.f32 0.0, %v2842
      %v2844 = vpop.f32.mrf.mxu0
      %v2845 = vpop.f32.mrf.mxu0
      %v2846 = vadd.f32 0.0, %v2845
      %v2847 = vpop.f32.mrf.mxu0
      %2848 = vmatprep.mubr.bf16.mxu0 0
      %2849 = vmatmul.mubr.bf16.gmra.mxu0 %v2425
      %v2850 = vpop.f32.mrf.mxu0
      %v2851 = vadd.f32 0.0, %v2850
      %v2852 = vpop.f32.mrf.mxu0
      %v2853 = vpop.f32.mrf.mxu0
      %v2854 = vadd.f32 0.0, %v2853
      %v2855 = vpop.f32.mrf.mxu0
      %2856 = vmatprep.mubr.bf16.mxu0 0
      %2857 = vmatmul.mubr.bf16.gmra.mxu0 %v2428
      %v2858 = vpop.f32.mrf.mxu0
      %v2859 = vadd.f32 0.0, %v2858
      %v2860 = vpop.f32.mrf.mxu0
      %v2861 = vpop.f32.mrf.mxu0
      %v2862 = vadd.f32 0.0, %v2861
      %v2863 = vpop.f32.mrf.mxu0
      %2864 = vmatprep.mubr.bf16.mxu0 0
      %2865 = vmatmul.mubr.bf16.gmra.mxu0 %v2431
      %v2866 = vpop.f32.mrf.mxu0
      %v2867 = vadd.f32 0.0, %v2866
      %v2868 = vpop.f32.mrf.mxu0
      %v2869 = vpop.f32.mrf.mxu0
      %v2870 = vadd.f32 0.0, %v2869
      %v2871 = vpop.f32.mrf.mxu0
      %2872 = vmatprep.mubr.bf16.mxu0 0
      %2873 = vmatmul.mubr.bf16.gmra.mxu0 %v2434
      %v2874 = vpop.f32.mrf.mxu0
      %v2875 = vadd.f32 0.0, %v2874
      %v2876 = vpop.f32.mrf.mxu0
      %v2877 = vpop.f32.mrf.mxu0
      %v2878 = vadd.f32 0.0, %v2877
      %v2879 = vpop.f32.mrf.mxu0
      %2880 = vmatprep.mubr.bf16.mxu0 0
      %2881 = vmatmul.mubr.bf16.gmra.mxu0 %v2437
      %v2882 = vpop.f32.mrf.mxu0
      %v2883 = vadd.f32 0.0, %v2882
      %v2884 = vpop.f32.mrf.mxu0
      %v2885 = vpop.f32.mrf.mxu0
      %v2886 = vadd.f32 0.0, %v2885
      %v2887 = vpop.f32.mrf.mxu0
      %2888 = vmatprep.mubr.bf16.mxu0 0
      %2889 = vmatmul.mubr.bf16.gmra.mxu0 %v2440
      %v2890 = vpop.f32.mrf.mxu0
      %v2891 = vadd.f32 0.0, %v2890
      %v2892 = vpop.f32.mrf.mxu0
      %v2893 = vpop.f32.mrf.mxu0
      %v2894 = vadd.f32 0.0, %v2893
      %v2895 = vpop.f32.mrf.mxu0
      %2896 = vmatprep.mubr.bf16.mxu0 0
      %2897 = vmatmul.mubr.bf16.gmra.mxu0 %v2443
      %v2898 = vpop.f32.mrf.mxu0
      %v2899 = vadd.f32 0.0, %v2898
      %v2900 = vpop.f32.mrf.mxu0
      %v2901 = vpop.f32.mrf.mxu0
      %v2902 = vpop.f32.mrf.mxu0
      %2903 = vdwg.mxu0
      %v2904 = vadd.f32 %v1705, %v2483
      %v2905 = vadd.f32 %v1708, %v2486
      %v2906 = vadd.f32 %v1713, %v2491
      %v2907 = vadd.f32 %v1716, %v2494
      %v2908 = vadd.f32 %v1721, %v2499
      %v2909 = vadd.f32 %v1724, %v2502
      %v2910 = vadd.f32 %v1729, %v2507
      %v2911 = vadd.f32 %v1732, %v2510
      %v2912 = vadd.f32 %v1737, %v2515
      %v2913 = vadd.f32 %v1740, %v2518
      %v2914 = vadd.f32 %v1745, %v2523
      %v2915 = vadd.f32 %v1748, %v2526
      %v2916 = vadd.f32 %v1753, %v2531
      %v2917 = vadd.f32 %v1756, %v2534
      %v2918 = vadd.f32 %v1761, %v2539
      %v2919 = vadd.f32 %v1764, %v2542
      %v2920 = vadd.f32 %v1769, %v2547
      %v2921 = vadd.f32 %v1772, %v2550
      %v2922 = vadd.f32 %v1777, %v2555
      %v2923 = vadd.f32 %v1780, %v2558
      %v2924 = vadd.f32 %v1785, %v2563
      %v2925 = vadd.f32 %v1788, %v2566
      %v2926 = vadd.f32 %v1793, %v2571
      %v2927 = vadd.f32 %v1796, %v2574
      %v2928 = vadd.f32 %v1801, %v2579
      %v2929 = vadd.f32 %v1804, %v2582
      %v2930 = vadd.f32 %v1809, %v2587
      %v2931 = vadd.f32 %v1812, %v2590
      %v2932 = vadd.f32 %v1817, %v2595
      %v2933 = vadd.f32 %v1820, %v2598
      %v2934 = vadd.f32 %v1825, %v2603
      %v2935 = vadd.f32 %v1828, %v2606
      %v2936 = vadd.f32 %v1833, %v2611
      %v2937 = vadd.f32 %v1836, %v2614
      %v2938 = vadd.f32 %v1841, %v2619
      %v2939 = vadd.f32 %v1844, %v2622
      %v2940 = vadd.f32 %v1849, %v2627
      %v2941 = vadd.f32 %v1852, %v2630
      %v2942 = vadd.f32 %v1857, %v2635
      %v2943 = vadd.f32 %v1860, %v2638
      %v2944 = vadd.f32 %v1865, %v2643
      %v2945 = vadd.f32 %v1868, %v2646
      %v2946 = vadd.f32 %v1873, %v2651
      %v2947 = vadd.f32 %v1876, %v2654
      %v2948 = vadd.f32 %v1881, %v2659
      %v2949 = vadd.f32 %v1884, %v2662
      %v2950 = vadd.f32 %v1889, %v2667
      %v2951 = vadd.f32 %v1892, %v2670
      %v2952 = vadd.f32 %v1897, %v2675
      %v2953 = vadd.f32 %v1900, %v2678
      %v2954 = vadd.f32 %v1905, %v2683
      %v2955 = vadd.f32 %v1908, %v2686
      %v2956 = vadd.f32 %v1913, %v2691
      %v2957 = vadd.f32 %v1916, %v2694
      %v2958 = vadd.f32 %v1921, %v2699
      %v2959 = vadd.f32 %v1924, %v2702
      %v2960 = vadd.f32 %v1929, %v2707
      %v2961 = vadd.f32 %v1932, %v2710
      %v2962 = vadd.f32 %v1937, %v2715
      %v2963 = vadd.f32 %v1940, %v2718
      %v2964 = vadd.f32 %v1945, %v2723
      %v2965 = vadd.f32 %v1948, %v2726
      %v2966 = vadd.f32 %v1953, %v2731
      %v2967 = vadd.f32 %v1956, %v2734
      %v2968 = vadd.f32 %v1961, %v2739
      %v2969 = vadd.f32 %v1964, %v2742
      %v2970 = vadd.f32 %v1969, %v2747
      %v2971 = vadd.f32 %v1972, %v2750
      %v2972 = vadd.f32 %v1977, %v2755
      %v2973 = vadd.f32 %v1980, %v2758
      %v2974 = vadd.f32 %v1985, %v2763
      %v2975 = vadd.f32 %v1988, %v2766
      %v2976 = vadd.f32 %v1993, %v2771
      %v2977 = vadd.f32 %v1996, %v2774
      %v2978 = vadd.f32 %v2001, %v2779
      %v2979 = vadd.f32 %v2004, %v2782
      %v2980 = vadd.f32 %v2009, %v2787
      %v2981 = vadd.f32 %v2012, %v2790
      %v2982 = vadd.f32 %v2017, %v2795
      %v2983 = vadd.f32 %v2020, %v2798
      %v2984 = vadd.f32 %v2025, %v2803
      %v2985 = vadd.f32 %v2028, %v2806
      %v2986 = vadd.f32 %v2033, %v2811
      %v2987 = vadd.f32 %v2036, %v2814
      %v2988 = vadd.f32 %v2041, %v2819
      %v2989 = vadd.f32 %v2044, %v2822
      %v2990 = vadd.f32 %v2049, %v2827
      %v2991 = vadd.f32 %v2052, %v2830
      %v2992 = vadd.f32 %v2057, %v2835
      %v2993 = vadd.f32 %v2060, %v2838
      %v2994 = vadd.f32 %v2065, %v2843
      %v2995 = vadd.f32 %v2068, %v2846
      %v2996 = vadd.f32 %v2073, %v2851
      %v2997 = vadd.f32 %v2076, %v2854
      %v2998 = vadd.f32 %v2081, %v2859
      %v2999 = vadd.f32 %v2084, %v2862
      %v3000 = vadd.f32 %v2089, %v2867
      %v3001 = vadd.f32 %v2092, %v2870
      %v3002 = vadd.f32 %v2097, %v2875
      %v3003 = vadd.f32 %v2100, %v2878
      %v3004 = vadd.f32 %v2105, %v2883
      %v3005 = vadd.f32 %v2108, %v2886
      %v3006 = vadd.f32 %v2113, %v2891
      %v3007 = vadd.f32 %v2116, %v2894
      %v3008 = vadd.f32 %v2121, %v2899
      %v3009 = vld [vmem:[#allocation2 + $0x1e] sm:$0xff]
      %v3010 = vld [vmem:[#allocation2 + $0x26] sm:$0xff]
      %v3011 = vld [vmem:[#allocation2 + $0x2e] sm:$0xff]
      %v3012 = vld [vmem:[#allocation2 + $0x36] sm:$0xff]
      %v3013 = vld [vmem:[#allocation2 + $0x3e] sm:$0xff]
      %v3014 = vld [vmem:[#allocation2 + $0x46] sm:$0xff]
      %v3015 = vld [vmem:[#allocation2 + $0x4e] sm:$0xff]
      %v3016 = vld [vmem:[#allocation2 + $0x56] sm:$0xff]
      %v3017 = vld [vmem:[#allocation2 + $0x5e] sm:$0xff]
      %v3018 = vld [vmem:[#allocation2 + $0x66] sm:$0xff]
      %v3019 = vld [vmem:[#allocation2 + $0x6e] sm:$0xff]
      %v3020 = vld [vmem:[#allocation2 + $0x76] sm:$0xff]
      %v3021 = vld [vmem:[#allocation2 + $0x7e] sm:$0xff]
      %v3022 = vld [vmem:[#allocation2 + $0x86] sm:$0xff]
      %v3023 = vld [vmem:[#allocation2 + $0x8e] sm:$0xff]
      %v3024 = vld [vmem:[#allocation2 + $0x96] sm:$0xff]
      %v3025 = vld [vmem:[#allocation2 + $0x9e] sm:$0xff]
      %v3026 = vld [vmem:[#allocation2 + $0xa6] sm:$0xff]
      %v3027 = vld [vmem:[#allocation2 + $0xae] sm:$0xff]
      %v3028 = vld [vmem:[#allocation2 + $0xb6] sm:$0xff]
      %v3029 = vld [vmem:[#allocation2 + $0xbe] sm:$0xff]
      %v3030 = vld [vmem:[#allocation2 + $0xc6] sm:$0xff]
      %v3031 = vld [vmem:[#allocation2 + $0xce] sm:$0xff]
      %v3032 = vld [vmem:[#allocation2 + $0xd6] sm:$0xff]
      %v3033 = vld [vmem:[#allocation2 + $0xde] sm:$0xff]
      %v3034 = vld [vmem:[#allocation2 + $0xe6] sm:$0xff]
      %v3035 = vld [vmem:[#allocation2 + $0xee] sm:$0xff]
      %v3036 = vld [vmem:[#allocation2 + $0xf6] sm:$0xff]
      %v3037 = vld [vmem:[#allocation2 + $0xfe] sm:$0xff]
      %v3038 = vld [vmem:[#allocation2 + $0x106] sm:$0xff]
      %v3039 = vld [vmem:[#allocation2 + $0x10e] sm:$0xff]
      %v3040 = vld [vmem:[#allocation2 + $0x116] sm:$0xff]
      %v3041 = vld [vmem:[#allocation2 + $0x11e] sm:$0xff]
      %v3042 = vld [vmem:[#allocation2 + $0x126] sm:$0xff]
      %v3043 = vld [vmem:[#allocation2 + $0x12e] sm:$0xff]
      %v3044 = vld [vmem:[#allocation2 + $0x136] sm:$0xff]
      %v3045 = vld [vmem:[#allocation2 + $0x13e] sm:$0xff]
      %v3046 = vld [vmem:[#allocation2 + $0x146] sm:$0xff]
      %v3047 = vld [vmem:[#allocation2 + $0x14e] sm:$0xff]
      %v3048 = vld [vmem:[#allocation2 + $0x156] sm:$0xff]
      %v3049 = vld [vmem:[#allocation2 + $0x15e] sm:$0xff]
      %v3050 = vld [vmem:[#allocation2 + $0x166] sm:$0xff]
      %v3051 = vld [vmem:[#allocation2 + $0x16e] sm:$0xff]
      %v3052 = vld [vmem:[#allocation2 + $0x176] sm:$0xff]
      %v3053 = vld [vmem:[#allocation2 + $0x17e] sm:$0xff]
      %v3054 = vld [vmem:[#allocation2 + $0x186] sm:$0xff]
      %v3055 = vld [vmem:[#allocation2 + $0x18e] sm:$0xff]
      %v3056 = vld [vmem:[#allocation2 + $0x196] sm:$0xff]
      %v3057 = vld [vmem:[#allocation2 + $0x19e] sm:$0xff]
      %v3058 = vld [vmem:[#allocation2 + $0x1a6] sm:$0xff]
      %v3059 = vld [vmem:[#allocation2 + $0x1ae] sm:$0xff]
      %v3060 = vld [vmem:[#allocation2 + $0x1b6] sm:$0xff]
      %v3061 = vld [vmem:[#allocation2 + $0x1be] sm:$0xff]
      %v3062 = vld [vmem:[#allocation2 + $0x1c6] sm:$0xff]
      %v3063 = vld [vmem:[#allocation2 + $0x1ce] sm:$0xff]
      %v3064 = vld [vmem:[#allocation2 + $0x1d6] sm:$0xff]
      %v3065 = vld [vmem:[#allocation2 + $0x1de] sm:$0xff]
      %v3066 = vld [vmem:[#allocation2 + $0x1e6] sm:$0xff]
      %v3067 = vld [vmem:[#allocation2 + $0x1ee] sm:$0xff]
      %v3068 = vld [vmem:[#allocation2 + $0x1f6] sm:$0xff]
      %v3069 = vld [vmem:[#allocation2 + $0x1fe] sm:$0xff]
      %v3070 = vld [vmem:[#allocation2 + $0x206] sm:$0xff]
      %v3071 = vld [vmem:[#allocation2 + $0x20e] sm:$0xff]
      %v3072 = vld [vmem:[#allocation2 + $0x216] sm:$0xff]
      %v3073 = vld [vmem:[#allocation2 + $0x21e] sm:$0xff]
      %v3074 = vld [vmem:[#allocation2 + $0x226] sm:$0xff]
      %v3075 = vld [vmem:[#allocation2 + $0x22e] sm:$0xff]
      %v3076 = vld [vmem:[#allocation2 + $0x236] sm:$0xff]
      %v3077 = vld [vmem:[#allocation2 + $0x23e] sm:$0xff]
      %v3078 = vld [vmem:[#allocation2 + $0x246] sm:$0xff]
      %v3079 = vld [vmem:[#allocation2 + $0x24e] sm:$0xff]
      %v3080 = vld [vmem:[#allocation2 + $0x256] sm:$0xff]
      %v3081 = vld [vmem:[#allocation2 + $0x25e] sm:$0xff]
      %v3082 = vld [vmem:[#allocation2 + $0x266] sm:$0xff]
      %v3083 = vld [vmem:[#allocation2 + $0x26e] sm:$0xff]
      %v3084 = vld [vmem:[#allocation2 + $0x276] sm:$0xff]
      %v3085 = vld [vmem:[#allocation2 + $0x27e] sm:$0xff]
      %v3086 = vld [vmem:[#allocation2 + $0x286] sm:$0xff]
      %v3087 = vld [vmem:[#allocation2 + $0x28e] sm:$0xff]
      %v3088 = vld [vmem:[#allocation2 + $0x296] sm:$0xff]
      %v3089 = vld [vmem:[#allocation2 + $0x29e] sm:$0xff]
      %v3090 = vld [vmem:[#allocation2 + $0x2a6] sm:$0xff]
      %v3091 = vld [vmem:[#allocation2 + $0x2ae] sm:$0xff]
      %v3092 = vld [vmem:[#allocation2 + $0x2b6] sm:$0xff]
      %v3093 = vld [vmem:[#allocation2 + $0x2be] sm:$0xff]
      %v3094 = vld [vmem:[#allocation2 + $0x2c6] sm:$0xff]
      %v3095 = vld [vmem:[#allocation2 + $0x2ce] sm:$0xff]
      %v3096 = vld [vmem:[#allocation2 + $0x2d6] sm:$0xff]
      %v3097 = vld [vmem:[#allocation2 + $0x2de] sm:$0xff]
      %v3098 = vld [vmem:[#allocation2 + $0x2e6] sm:$0xff]
      %v3099 = vld [vmem:[#allocation2 + $0x2ee] sm:$0xff]
      %v3100 = vld [vmem:[#allocation2 + $0x2f6] sm:$0xff]
      %v3101 = vld [vmem:[#allocation2 + $0x2fe] sm:$0xff]
      %v3102 = vld [vmem:[#allocation2 + $0x306] sm:$0xff]
      %v3103 = vld [vmem:[#allocation2 + $0x30e] sm:$0xff]
      %v3104 = vld [vmem:[#allocation2 + $0x316] sm:$0xff]
      %v3105 = vld [vmem:[#allocation2 + $0x31e] sm:$0xff]
      %v3106 = vld [vmem:[#allocation2 + $0x326] sm:$0xff]
      %v3107 = vld [vmem:[#allocation2 + $0x32e] sm:$0xff]
      %v3108 = vld [vmem:[#allocation2 + $0x336] sm:$0xff]
      %v3109 = vld [vmem:[#allocation2 + $0x33e] sm:$0xff]
      %v3110 = vld [vmem:[#allocation2 + $0x346] sm:$0xff]
      %v3111 = vld [vmem:[#allocation2 + $0x34e] sm:$0xff]
      %v3112 = vld [vmem:[#allocation2 + $0x356] sm:$0xff]
      %v3113 = vld [vmem:[#allocation2 + $0x35e] sm:$0x3f]
      %v3114 = vpack.c.bf16 %v3010, %v3009
      %v3115 = vpack.c.bf16 %v3012, %v3011
      %v3116 = vpack.c.bf16 %v3014, %v3013
      %v3117 = vpack.c.bf16 %v3016, %v3015
      %v3118 = vpack.c.bf16 %v3018, %v3017
      %v3119 = vpack.c.bf16 %v3020, %v3019
      %v3120 = vpack.c.bf16 %v3022, %v3021
      %v3121 = vpack.c.bf16 %v3024, %v3023
      %v3122 = vpack.c.bf16 %v3026, %v3025
      %v3123 = vpack.c.bf16 %v3028, %v3027
      %v3124 = vpack.c.bf16 %v3030, %v3029
      %v3125 = vpack.c.bf16 %v3032, %v3031
      %v3126 = vpack.c.bf16 %v3034, %v3033
      %v3127 = vpack.c.bf16 %v3036, %v3035
      %v3128 = vpack.c.bf16 %v3038, %v3037
      %v3129 = vpack.c.bf16 %v3040, %v3039
      %v3130 = vpack.c.bf16 %v3042, %v3041
      %v3131 = vpack.c.bf16 %v3044, %v3043
      %v3132 = vpack.c.bf16 %v3046, %v3045
      %v3133 = vpack.c.bf16 %v3048, %v3047
      %v3134 = vpack.c.bf16 %v3050, %v3049
      %v3135 = vpack.c.bf16 %v3052, %v3051
      %v3136 = vpack.c.bf16 %v3054, %v3053
      %v3137 = vpack.c.bf16 %v3056, %v3055
      %v3138 = vpack.c.bf16 %v3058, %v3057
      %v3139 = vpack.c.bf16 %v3060, %v3059
      %v3140 = vpack.c.bf16 %v3062, %v3061
      %v3141 = vpack.c.bf16 %v3064, %v3063
      %v3142 = vpack.c.bf16 %v3066, %v3065
      %v3143 = vpack.c.bf16 %v3068, %v3067
      %v3144 = vpack.c.bf16 %v3070, %v3069
      %v3145 = vpack.c.bf16 %v3072, %v3071
      %v3146 = vpack.c.bf16 %v3074, %v3073
      %v3147 = vpack.c.bf16 %v3076, %v3075
      %v3148 = vpack.c.bf16 %v3078, %v3077
      %v3149 = vpack.c.bf16 %v3080, %v3079
      %v3150 = vpack.c.bf16 %v3082, %v3081
      %v3151 = vpack.c.bf16 %v3084, %v3083
      %v3152 = vpack.c.bf16 %v3086, %v3085
      %v3153 = vpack.c.bf16 %v3088, %v3087
      %v3154 = vpack.c.bf16 %v3090, %v3089
      %v3155 = vpack.c.bf16 %v3092, %v3091
      %v3156 = vpack.c.bf16 %v3094, %v3093
      %v3157 = vpack.c.bf16 %v3096, %v3095
      %v3158 = vpack.c.bf16 %v3098, %v3097
      %v3159 = vpack.c.bf16 %v3100, %v3099
      %v3160 = vpack.c.bf16 %v3102, %v3101
      %v3161 = vpack.c.bf16 %v3104, %v3103
      %v3162 = vpack.c.bf16 %v3106, %v3105
      %v3163 = vpack.c.bf16 %v3108, %v3107
      %v3164 = vpack.c.bf16 %v3110, %v3109
      %v3165 = vpack.c.bf16 %v3112, %v3111
      %v3166 = vpack.c.bf16 %v3113, %v3113
      %s3167 = scalar_lea.vmem %s1, 6
      %v3168 = vld [vmem:[%s3167] sm:$0x3]
      %v3170 = vsel %vm452, %v3114, 0
      %v3173 = vsel %vm452, %v3115, 0
      %v3176 = vsel %vm452, %v3116, 0
      %v3179 = vsel %vm452, %v3117, 0
      %v3182 = vsel %vm452, %v3118, 0
      %v3185 = vsel %vm452, %v3119, 0
      %v3188 = vsel %vm452, %v3120, 0
      %v3191 = vsel %vm452, %v3121, 0
      %v3194 = vsel %vm452, %v3122, 0
      %v3197 = vsel %vm452, %v3123, 0
      %v3200 = vsel %vm452, %v3124, 0
      %v3203 = vsel %vm452, %v3125, 0
      %v3206 = vsel %vm452, %v3126, 0
      %v3209 = vsel %vm452, %v3127, 0
      %v3212 = vsel %vm452, %v3128, 0
      %v3215 = vsel %vm452, %v3129, 0
      %v3218 = vsel %vm452, %v3130, 0
      %v3221 = vsel %vm452, %v3131, 0
      %v3224 = vsel %vm452, %v3132, 0
      %v3227 = vsel %vm452, %v3133, 0
      %v3230 = vsel %vm452, %v3134, 0
      %v3233 = vsel %vm452, %v3135, 0
      %v3236 = vsel %vm452, %v3136, 0
      %v3239 = vsel %vm452, %v3137, 0
      %v3242 = vsel %vm452, %v3138, 0
      %v3245 = vsel %vm452, %v3139, 0
      %v3248 = vsel %vm452, %v3140, 0
      %v3251 = vsel %vm452, %v3141, 0
      %v3254 = vsel %vm452, %v3142, 0
      %v3257 = vsel %vm452, %v3143, 0
      %v3260 = vsel %vm452, %v3144, 0
      %v3263 = vsel %vm452, %v3145, 0
      %v3266 = vsel %vm452, %v3146, 0
      %v3269 = vsel %vm452, %v3147, 0
      %v3272 = vsel %vm452, %v3148, 0
      %v3275 = vsel %vm452, %v3149, 0
      %v3278 = vsel %vm452, %v3150, 0
      %v3281 = vsel %vm452, %v3151, 0
      %v3284 = vsel %vm452, %v3152, 0
      %v3287 = vsel %vm452, %v3153, 0
      %v3290 = vsel %vm452, %v3154, 0
      %v3293 = vsel %vm452, %v3155, 0
      %v3296 = vsel %vm452, %v3156, 0
      %v3299 = vsel %vm452, %v3157, 0
      %v3302 = vsel %vm452, %v3158, 0
      %v3305 = vsel %vm452, %v3159, 0
      %v3308 = vsel %vm452, %v3160, 0
      %v3311 = vsel %vm452, %v3161, 0
      %v3314 = vsel %vm452, %v3162, 0
      %v3317 = vsel %vm452, %v3163, 0
      %v3320 = vsel %vm452, %v3164, 0
      %v3323 = vsel %vm452, %v3165, 0
      %v3326 = vsel %vm452, %v3166, 0
      %v3329 = vand.u32 %v3168, %v1048
      %3331 = vmatprep.subr.bf16.mxu0 0
      %3332 = vmatpush1.bf16.msra.mxu0 0
      %3333 = vmatprep.subr.bf16.mxu0 0
      %3334 = vmatpush1.bf16.msra.mxu0 0
      %3335 = vmatprep.subr.bf16.mxu0 0
      %3336 = vmatpush1.bf16.msra.mxu0 0
      %3337 = vmatprep.subr.bf16.mxu0 0
      %3338 = vmatpush1.bf16.msra.mxu0 0
      %3339 = vmatprep.subr.bf16.mxu0 0
      %3340 = vmatpush1.bf16.msra.mxu0 0
      %3341 = vmatprep.subr.bf16.mxu0 0
      %3342 = vmatpush1.bf16.msra.mxu0 0
      %3343 = vmatprep.subr.bf16.mxu0 0
      %3344 = vmatpush1.bf16.msra.mxu0 0
      %3345 = vmatprep.subr.bf16.mxu0 0
      %3346 = vmatpush1.bf16.msra.mxu0 %v3329
      %3347 = vmatprep.subr.bf16.mxu0 0
      %3348 = vmatpush2.bf16.msra.mxu0 0
      %3349 = vmatprep.subr.bf16.mxu0 0
      %3350 = vmatpush2.bf16.msra.mxu0 0
      %3351 = vmatprep.subr.bf16.mxu0 0
      %3352 = vmatpush2.bf16.msra.mxu0 0
      %3353 = vmatprep.subr.bf16.mxu0 0
      %3354 = vmatpush2.bf16.msra.mxu0 0
      %3355 = vmatprep.subr.bf16.mxu0 0
      %3356 = vmatpush2.bf16.msra.mxu0 0
      %3357 = vmatprep.subr.bf16.mxu0 0
      %3358 = vmatpush2.bf16.msra.mxu0 0
      %3359 = vmatprep.subr.bf16.mxu0 0
      %3360 = vmatpush2.bf16.msra.mxu0 0
      %3361 = vmatprep.subr.bf16.mxu0 0
      %3362 = vmatpush2.bf16.msra.mxu0 0
      %3363 = vmatprep.mubr.bf16.mxu0 0
      %3364 = vmatmul.mubr.bf16.gmra.mxu0 %v3170
      %v3365 = vpop.f32.mrf.mxu0
      %v3366 = vadd.f32 0.0, %v3365
      %v3367 = vpop.f32.mrf.mxu0
      %v3368 = vpop.f32.mrf.mxu0
      %v3369 = vadd.f32 0.0, %v3368
      %v3370 = vpop.f32.mrf.mxu0
      %3371 = vmatprep.mubr.bf16.mxu0 0
      %3372 = vmatmul.mubr.bf16.gmra.mxu0 %v3173
      %v3373 = vpop.f32.mrf.mxu0
      %v3374 = vadd.f32 0.0, %v3373
      %v3375 = vpop.f32.mrf.mxu0
      %v3376 = vpop.f32.mrf.mxu0
      %v3377 = vadd.f32 0.0, %v3376
      %v3378 = vpop.f32.mrf.mxu0
      %3379 = vmatprep.mubr.bf16.mxu0 0
      %3380 = vmatmul.mubr.bf16.gmra.mxu0 %v3176
      %v3381 = vpop.f32.mrf.mxu0
      %v3382 = vadd.f32 0.0, %v3381
      %v3383 = vpop.f32.mrf.mxu0
      %v3384 = vpop.f32.mrf.mxu0
      %v3385 = vadd.f32 0.0, %v3384
      %v3386 = vpop.f32.mrf.mxu0
      %3387 = vmatprep.mubr.bf16.mxu0 0
      %3388 = vmatmul.mubr.bf16.gmra.mxu0 %v3179
      %v3389 = vpop.f32.mrf.mxu0
      %v3390 = vadd.f32 0.0, %v3389
      %v3391 = vpop.f32.mrf.mxu0
      %v3392 = vpop.f32.mrf.mxu0
      %v3393 = vadd.f32 0.0, %v3392
      %v3394 = vpop.f32.mrf.mxu0
      %3395 = vmatprep.mubr.bf16.mxu0 0
      %3396 = vmatmul.mubr.bf16.gmra.mxu0 %v3182
      %v3397 = vpop.f32.mrf.mxu0
      %v3398 = vadd.f32 0.0, %v3397
      %v3399 = vpop.f32.mrf.mxu0
      %v3400 = vpop.f32.mrf.mxu0
      %v3401 = vadd.f32 0.0, %v3400
      %v3402 = vpop.f32.mrf.mxu0
      %3403 = vmatprep.mubr.bf16.mxu0 0
      %3404 = vmatmul.mubr.bf16.gmra.mxu0 %v3185
      %v3405 = vpop.f32.mrf.mxu0
      %v3406 = vadd.f32 0.0, %v3405
      %v3407 = vpop.f32.mrf.mxu0
      %v3408 = vpop.f32.mrf.mxu0
      %v3409 = vadd.f32 0.0, %v3408
      %v3410 = vpop.f32.mrf.mxu0
      %3411 = vmatprep.mubr.bf16.mxu0 0
      %3412 = vmatmul.mubr.bf16.gmra.mxu0 %v3188
      %v3413 = vpop.f32.mrf.mxu0
      %v3414 = vadd.f32 0.0, %v3413
      %v3415 = vpop.f32.mrf.mxu0
      %v3416 = vpop.f32.mrf.mxu0
      %v3417 = vadd.f32 0.0, %v3416
      %v3418 = vpop.f32.mrf.mxu0
      %3419 = vmatprep.mubr.bf16.mxu0 0
      %3420 = vmatmul.mubr.bf16.gmra.mxu0 %v3191
      %v3421 = vpop.f32.mrf.mxu0
      %v3422 = vadd.f32 0.0, %v3421
      %v3423 = vpop.f32.mrf.mxu0
      %v3424 = vpop.f32.mrf.mxu0
      %v3425 = vadd.f32 0.0, %v3424
      %v3426 = vpop.f32.mrf.mxu0
      %3427 = vmatprep.mubr.bf16.mxu0 0
      %3428 = vmatmul.mubr.bf16.gmra.mxu0 %v3194
      %v3429 = vpop.f32.mrf.mxu0
      %v3430 = vadd.f32 0.0, %v3429
      %v3431 = vpop.f32.mrf.mxu0
      %v3432 = vpop.f32.mrf.mxu0
      %v3433 = vadd.f32 0.0, %v3432
      %v3434 = vpop.f32.mrf.mxu0
      %3435 = vmatprep.mubr.bf16.mxu0 0
      %3436 = vmatmul.mubr.bf16.gmra.mxu0 %v3197
      %v3437 = vpop.f32.mrf.mxu0
      %v3438 = vadd.f32 0.0, %v3437
      %v3439 = vpop.f32.mrf.mxu0
      %v3440 = vpop.f32.mrf.mxu0
      %v3441 = vadd.f32 0.0, %v3440
      %v3442 = vpop.f32.mrf.mxu0
      %3443 = vmatprep.mubr.bf16.mxu0 0
      %3444 = vmatmul.mubr.bf16.gmra.mxu0 %v3200
      %v3445 = vpop.f32.mrf.mxu0
      %v3446 = vadd.f32 0.0, %v3445
      %v3447 = vpop.f32.mrf.mxu0
      %v3448 = vpop.f32.mrf.mxu0
      %v3449 = vadd.f32 0.0, %v3448
      %v3450 = vpop.f32.mrf.mxu0
      %3451 = vmatprep.mubr.bf16.mxu0 0
      %3452 = vmatmul.mubr.bf16.gmra.mxu0 %v3203
      %v3453 = vpop.f32.mrf.mxu0
      %v3454 = vadd.f32 0.0, %v3453
      %v3455 = vpop.f32.mrf.mxu0
      %v3456 = vpop.f32.mrf.mxu0
      %v3457 = vadd.f32 0.0, %v3456
      %v3458 = vpop.f32.mrf.mxu0
      %3459 = vmatprep.mubr.bf16.mxu0 0
      %3460 = vmatmul.mubr.bf16.gmra.mxu0 %v3206
      %v3461 = vpop.f32.mrf.mxu0
      %v3462 = vadd.f32 0.0, %v3461
      %v3463 = vpop.f32.mrf.mxu0
      %v3464 = vpop.f32.mrf.mxu0
      %v3465 = vadd.f32 0.0, %v3464
      %v3466 = vpop.f32.mrf.mxu0
      %3467 = vmatprep.mubr.bf16.mxu0 0
      %3468 = vmatmul.mubr.bf16.gmra.mxu0 %v3209
      %v3469 = vpop.f32.mrf.mxu0
      %v3470 = vadd.f32 0.0, %v3469
      %v3471 = vpop.f32.mrf.mxu0
      %v3472 = vpop.f32.mrf.mxu0
      %v3473 = vadd.f32 0.0, %v3472
      %v3474 = vpop.f32.mrf.mxu0
      %3475 = vmatprep.mubr.bf16.mxu0 0
      %3476 = vmatmul.mubr.bf16.gmra.mxu0 %v3212
      %v3477 = vpop.f32.mrf.mxu0
      %v3478 = vadd.f32 0.0, %v3477
      %v3479 = vpop.f32.mrf.mxu0
      %v3480 = vpop.f32.mrf.mxu0
      %v3481 = vadd.f32 0.0, %v3480
      %v3482 = vpop.f32.mrf.mxu0
      %3483 = vmatprep.mubr.bf16.mxu0 0
      %3484 = vmatmul.mubr.bf16.gmra.mxu0 %v3215
      %v3485 = vpop.f32.mrf.mxu0
      %v3486 = vadd.f32 0.0, %v3485
      %v3487 = vpop.f32.mrf.mxu0
      %v3488 = vpop.f32.mrf.mxu0
      %v3489 = vadd.f32 0.0, %v3488
      %v3490 = vpop.f32.mrf.mxu0
      %3491 = vmatprep.mubr.bf16.mxu0 0
      %3492 = vmatmul.mubr.bf16.gmra.mxu0 %v3218
      %v3493 = vpop.f32.mrf.mxu0
      %v3494 = vadd.f32 0.0, %v3493
      %v3495 = vpop.f32.mrf.mxu0
      %v3496 = vpop.f32.mrf.mxu0
      %v3497 = vadd.f32 0.0, %v3496
      %v3498 = vpop.f32.mrf.mxu0
      %3499 = vmatprep.mubr.bf16.mxu0 0
      %3500 = vmatmul.mubr.bf16.gmra.mxu0 %v3221
      %v3501 = vpop.f32.mrf.mxu0
      %v3502 = vadd.f32 0.0, %v3501
      %v3503 = vpop.f32.mrf.mxu0
      %v3504 = vpop.f32.mrf.mxu0
      %v3505 = vadd.f32 0.0, %v3504
      %v3506 = vpop.f32.mrf.mxu0
      %3507 = vmatprep.mubr.bf16.mxu0 0
      %3508 = vmatmul.mubr.bf16.gmra.mxu0 %v3224
      %v3509 = vpop.f32.mrf.mxu0
      %v3510 = vadd.f32 0.0, %v3509
      %v3511 = vpop.f32.mrf.mxu0
      %v3512 = vpop.f32.mrf.mxu0
      %v3513 = vadd.f32 0.0, %v3512
      %v3514 = vpop.f32.mrf.mxu0
      %3515 = vmatprep.mubr.bf16.mxu0 0
      %3516 = vmatmul.mubr.bf16.gmra.mxu0 %v3227
      %v3517 = vpop.f32.mrf.mxu0
      %v3518 = vadd.f32 0.0, %v3517
      %v3519 = vpop.f32.mrf.mxu0
      %v3520 = vpop.f32.mrf.mxu0
      %v3521 = vadd.f32 0.0, %v3520
      %v3522 = vpop.f32.mrf.mxu0
      %3523 = vmatprep.mubr.bf16.mxu0 0
      %3524 = vmatmul.mubr.bf16.gmra.mxu0 %v3230
      %v3525 = vpop.f32.mrf.mxu0
      %v3526 = vadd.f32 0.0, %v3525
      %v3527 = vpop.f32.mrf.mxu0
      %v3528 = vpop.f32.mrf.mxu0
      %v3529 = vadd.f32 0.0, %v3528
      %v3530 = vpop.f32.mrf.mxu0
      %3531 = vmatprep.mubr.bf16.mxu0 0
      %3532 = vmatmul.mubr.bf16.gmra.mxu0 %v3233
      %v3533 = vpop.f32.mrf.mxu0
      %v3534 = vadd.f32 0.0, %v3533
      %v3535 = vpop.f32.mrf.mxu0
      %v3536 = vpop.f32.mrf.mxu0
      %v3537 = vadd.f32 0.0, %v3536
      %v3538 = vpop.f32.mrf.mxu0
      %3539 = vmatprep.mubr.bf16.mxu0 0
      %3540 = vmatmul.mubr.bf16.gmra.mxu0 %v3236
      %v3541 = vpop.f32.mrf.mxu0
      %v3542 = vadd.f32 0.0, %v3541
      %v3543 = vpop.f32.mrf.mxu0
      %v3544 = vpop.f32.mrf.mxu0
      %v3545 = vadd.f32 0.0, %v3544
      %v3546 = vpop.f32.mrf.mxu0
      %3547 = vmatprep.mubr.bf16.mxu0 0
      %3548 = vmatmul.mubr.bf16.gmra.mxu0 %v3239
      %v3549 = vpop.f32.mrf.mxu0
      %v3550 = vadd.f32 0.0, %v3549
      %v3551 = vpop.f32.mrf.mxu0
      %v3552 = vpop.f32.mrf.mxu0
      %v3553 = vadd.f32 0.0, %v3552
      %v3554 = vpop.f32.mrf.mxu0
      %3555 = vmatprep.mubr.bf16.mxu0 0
      %3556 = vmatmul.mubr.bf16.gmra.mxu0 %v3242
      %v3557 = vpop.f32.mrf.mxu0
      %v3558 = vadd.f32 0.0, %v3557
      %v3559 = vpop.f32.mrf.mxu0
      %v3560 = vpop.f32.mrf.mxu0
      %v3561 = vadd.f32 0.0, %v3560
      %v3562 = vpop.f32.mrf.mxu0
      %3563 = vmatprep.mubr.bf16.mxu0 0
      %3564 = vmatmul.mubr.bf16.gmra.mxu0 %v3245
      %v3565 = vpop.f32.mrf.mxu0
      %v3566 = vadd.f32 0.0, %v3565
      %v3567 = vpop.f32.mrf.mxu0
      %v3568 = vpop.f32.mrf.mxu0
      %v3569 = vadd.f32 0.0, %v3568
      %v3570 = vpop.f32.mrf.mxu0
      %3571 = vmatprep.mubr.bf16.mxu0 0
      %3572 = vmatmul.mubr.bf16.gmra.mxu0 %v3248
      %v3573 = vpop.f32.mrf.mxu0
      %v3574 = vadd.f32 0.0, %v3573
      %v3575 = vpop.f32.mrf.mxu0
      %v3576 = vpop.f32.mrf.mxu0
      %v3577 = vadd.f32 0.0, %v3576
      %v3578 = vpop.f32.mrf.mxu0
      %3579 = vmatprep.mubr.bf16.mxu0 0
      %3580 = vmatmul.mubr.bf16.gmra.mxu0 %v3251
      %v3581 = vpop.f32.mrf.mxu0
      %v3582 = vadd.f32 0.0, %v3581
      %v3583 = vpop.f32.mrf.mxu0
      %v3584 = vpop.f32.mrf.mxu0
      %v3585 = vadd.f32 0.0, %v3584
      %v3586 = vpop.f32.mrf.mxu0
      %3587 = vmatprep.mubr.bf16.mxu0 0
      %3588 = vmatmul.mubr.bf16.gmra.mxu0 %v3254
      %v3589 = vpop.f32.mrf.mxu0
      %v3590 = vadd.f32 0.0, %v3589
      %v3591 = vpop.f32.mrf.mxu0
      %v3592 = vpop.f32.mrf.mxu0
      %v3593 = vadd.f32 0.0, %v3592
      %v3594 = vpop.f32.mrf.mxu0
      %3595 = vmatprep.mubr.bf16.mxu0 0
      %3596 = vmatmul.mubr.bf16.gmra.mxu0 %v3257
      %v3597 = vpop.f32.mrf.mxu0
      %v3598 = vadd.f32 0.0, %v3597
      %v3599 = vpop.f32.mrf.mxu0
      %v3600 = vpop.f32.mrf.mxu0
      %v3601 = vadd.f32 0.0, %v3600
      %v3602 = vpop.f32.mrf.mxu0
      %3603 = vmatprep.mubr.bf16.mxu0 0
      %3604 = vmatmul.mubr.bf16.gmra.mxu0 %v3260
      %v3605 = vpop.f32.mrf.mxu0
      %v3606 = vadd.f32 0.0, %v3605
      %v3607 = vpop.f32.mrf.mxu0
      %v3608 = vpop.f32.mrf.mxu0
      %v3609 = vadd.f32 0.0, %v3608
      %v3610 = vpop.f32.mrf.mxu0
      %3611 = vmatprep.mubr.bf16.mxu0 0
      %3612 = vmatmul.mubr.bf16.gmra.mxu0 %v3263
      %v3613 = vpop.f32.mrf.mxu0
      %v3614 = vadd.f32 0.0, %v3613
      %v3615 = vpop.f32.mrf.mxu0
      %v3616 = vpop.f32.mrf.mxu0
      %v3617 = vadd.f32 0.0, %v3616
      %v3618 = vpop.f32.mrf.mxu0
      %3619 = vmatprep.mubr.bf16.mxu0 0
      %3620 = vmatmul.mubr.bf16.gmra.mxu0 %v3266
      %v3621 = vpop.f32.mrf.mxu0
      %v3622 = vadd.f32 0.0, %v3621
      %v3623 = vpop.f32.mrf.mxu0
      %v3624 = vpop.f32.mrf.mxu0
      %v3625 = vadd.f32 0.0, %v3624
      %v3626 = vpop.f32.mrf.mxu0
      %3627 = vmatprep.mubr.bf16.mxu0 0
      %3628 = vmatmul.mubr.bf16.gmra.mxu0 %v3269
      %v3629 = vpop.f32.mrf.mxu0
      %v3630 = vadd.f32 0.0, %v3629
      %v3631 = vpop.f32.mrf.mxu0
      %v3632 = vpop.f32.mrf.mxu0
      %v3633 = vadd.f32 0.0, %v3632
      %v3634 = vpop.f32.mrf.mxu0
      %3635 = vmatprep.mubr.bf16.mxu0 0
      %3636 = vmatmul.mubr.bf16.gmra.mxu0 %v3272
      %v3637 = vpop.f32.mrf.mxu0
      %v3638 = vadd.f32 0.0, %v3637
      %v3639 = vpop.f32.mrf.mxu0
      %v3640 = vpop.f32.mrf.mxu0
      %v3641 = vadd.f32 0.0, %v3640
      %v3642 = vpop.f32.mrf.mxu0
      %3643 = vmatprep.mubr.bf16.mxu0 0
      %3644 = vmatmul.mubr.bf16.gmra.mxu0 %v3275
      %v3645 = vpop.f32.mrf.mxu0
      %v3646 = vadd.f32 0.0, %v3645
      %v3647 = vpop.f32.mrf.mxu0
      %v3648 = vpop.f32.mrf.mxu0
      %v3649 = vadd.f32 0.0, %v3648
      %v3650 = vpop.f32.mrf.mxu0
      %3651 = vmatprep.mubr.bf16.mxu0 0
      %3652 = vmatmul.mubr.bf16.gmra.mxu0 %v3278
      %v3653 = vpop.f32.mrf.mxu0
      %v3654 = vadd.f32 0.0, %v3653
      %v3655 = vpop.f32.mrf.mxu0
      %v3656 = vpop.f32.mrf.mxu0
      %v3657 = vadd.f32 0.0, %v3656
      %v3658 = vpop.f32.mrf.mxu0
      %3659 = vmatprep.mubr.bf16.mxu0 0
      %3660 = vmatmul.mubr.bf16.gmra.mxu0 %v3281
      %v3661 = vpop.f32.mrf.mxu0
      %v3662 = vadd.f32 0.0, %v3661
      %v3663 = vpop.f32.mrf.mxu0
      %v3664 = vpop.f32.mrf.mxu0
      %v3665 = vadd.f32 0.0, %v3664
      %v3666 = vpop.f32.mrf.mxu0
      %3667 = vmatprep.mubr.bf16.mxu0 0
      %3668 = vmatmul.mubr.bf16.gmra.mxu0 %v3284
      %v3669 = vpop.f32.mrf.mxu0
      %v3670 = vadd.f32 0.0, %v3669
      %v3671 = vpop.f32.mrf.mxu0
      %v3672 = vpop.f32.mrf.mxu0
      %v3673 = vadd.f32 0.0, %v3672
      %v3674 = vpop.f32.mrf.mxu0
      %3675 = vmatprep.mubr.bf16.mxu0 0
      %3676 = vmatmul.mubr.bf16.gmra.mxu0 %v3287
      %v3677 = vpop.f32.mrf.mxu0
      %v3678 = vadd.f32 0.0, %v3677
      %v3679 = vpop.f32.mrf.mxu0
      %v3680 = vpop.f32.mrf.mxu0
      %v3681 = vadd.f32 0.0, %v3680
      %v3682 = vpop.f32.mrf.mxu0
      %3683 = vmatprep.mubr.bf16.mxu0 0
      %3684 = vmatmul.mubr.bf16.gmra.mxu0 %v3290
      %v3685 = vpop.f32.mrf.mxu0
      %v3686 = vadd.f32 0.0, %v3685
      %v3687 = vpop.f32.mrf.mxu0
      %v3688 = vpop.f32.mrf.mxu0
      %v3689 = vadd.f32 0.0, %v3688
      %v3690 = vpop.f32.mrf.mxu0
      %3691 = vmatprep.mubr.bf16.mxu0 0
      %3692 = vmatmul.mubr.bf16.gmra.mxu0 %v3293
      %v3693 = vpop.f32.mrf.mxu0
      %v3694 = vadd.f32 0.0, %v3693
      %v3695 = vpop.f32.mrf.mxu0
      %v3696 = vpop.f32.mrf.mxu0
      %v3697 = vadd.f32 0.0, %v3696
      %v3698 = vpop.f32.mrf.mxu0
      %3699 = vmatprep.mubr.bf16.mxu0 0
      %3700 = vmatmul.mubr.bf16.gmra.mxu0 %v3296
      %v3701 = vpop.f32.mrf.mxu0
      %v3702 = vadd.f32 0.0, %v3701
      %v3703 = vpop.f32.mrf.mxu0
      %v3704 = vpop.f32.mrf.mxu0
      %v3705 = vadd.f32 0.0, %v3704
      %v3706 = vpop.f32.mrf.mxu0
      %3707 = vmatprep.mubr.bf16.mxu0 0
      %3708 = vmatmul.mubr.bf16.gmra.mxu0 %v3299
      %v3709 = vpop.f32.mrf.mxu0
      %v3710 = vadd.f32 0.0, %v3709
      %v3711 = vpop.f32.mrf.mxu0
      %v3712 = vpop.f32.mrf.mxu0
      %v3713 = vadd.f32 0.0, %v3712
      %v3714 = vpop.f32.mrf.mxu0
      %3715 = vmatprep.mubr.bf16.mxu0 0
      %3716 = vmatmul.mubr.bf16.gmra.mxu0 %v3302
      %v3717 = vpop.f32.mrf.mxu0
      %v3718 = vadd.f32 0.0, %v3717
      %v3719 = vpop.f32.mrf.mxu0
      %v3720 = vpop.f32.mrf.mxu0
      %v3721 = vadd.f32 0.0, %v3720
      %v3722 = vpop.f32.mrf.mxu0
      %3723 = vmatprep.mubr.bf16.mxu0 0
      %3724 = vmatmul.mubr.bf16.gmra.mxu0 %v3305
      %v3725 = vpop.f32.mrf.mxu0
      %v3726 = vadd.f32 0.0, %v3725
      %v3727 = vpop.f32.mrf.mxu0
      %v3728 = vpop.f32.mrf.mxu0
      %v3729 = vadd.f32 0.0, %v3728
      %v3730 = vpop.f32.mrf.mxu0
      %3731 = vmatprep.mubr.bf16.mxu0 0
      %3732 = vmatmul.mubr.bf16.gmra.mxu0 %v3308
      %v3733 = vpop.f32.mrf.mxu0
      %v3734 = vadd.f32 0.0, %v3733
      %v3735 = vpop.f32.mrf.mxu0
      %v3736 = vpop.f32.mrf.mxu0
      %v3737 = vadd.f32 0.0, %v3736
      %v3738 = vpop.f32.mrf.mxu0
      %3739 = vmatprep.mubr.bf16.mxu0 0
      %3740 = vmatmul.mubr.bf16.gmra.mxu0 %v3311
      %v3741 = vpop.f32.mrf.mxu0
      %v3742 = vadd.f32 0.0, %v3741
      %v3743 = vpop.f32.mrf.mxu0
      %v3744 = vpop.f32.mrf.mxu0
      %v3745 = vadd.f32 0.0, %v3744
      %v3746 = vpop.f32.mrf.mxu0
      %3747 = vmatprep.mubr.bf16.mxu0 0
      %3748 = vmatmul.mubr.bf16.gmra.mxu0 %v3314
      %v3749 = vpop.f32.mrf.mxu0
      %v3750 = vadd.f32 0.0, %v3749
      %v3751 = vpop.f32.mrf.mxu0
      %v3752 = vpop.f32.mrf.mxu0
      %v3753 = vadd.f32 0.0, %v3752
      %v3754 = vpop.f32.mrf.mxu0
      %3755 = vmatprep.mubr.bf16.mxu0 0
      %3756 = vmatmul.mubr.bf16.gmra.mxu0 %v3317
      %v3757 = vpop.f32.mrf.mxu0
      %v3758 = vadd.f32 0.0, %v3757
      %v3759 = vpop.f32.mrf.mxu0
      %v3760 = vpop.f32.mrf.mxu0
      %v3761 = vadd.f32 0.0, %v3760
      %v3762 = vpop.f32.mrf.mxu0
      %3763 = vmatprep.mubr.bf16.mxu0 0
      %3764 = vmatmul.mubr.bf16.gmra.mxu0 %v3320
      %v3765 = vpop.f32.mrf.mxu0
      %v3766 = vadd.f32 0.0, %v3765
      %v3767 = vpop.f32.mrf.mxu0
      %v3768 = vpop.f32.mrf.mxu0
      %v3769 = vadd.f32 0.0, %v3768
      %v3770 = vpop.f32.mrf.mxu0
      %3771 = vmatprep.mubr.bf16.mxu0 0
      %3772 = vmatmul.mubr.bf16.gmra.mxu0 %v3323
      %v3773 = vpop.f32.mrf.mxu0
      %v3774 = vadd.f32 0.0, %v3773
      %v3775 = vpop.f32.mrf.mxu0
      %v3776 = vpop.f32.mrf.mxu0
      %v3777 = vadd.f32 0.0, %v3776
      %v3778 = vpop.f32.mrf.mxu0
      %3779 = vmatprep.mubr.bf16.mxu0 0
      %3780 = vmatmul.mubr.bf16.gmra.mxu0 %v3326
      %v3781 = vpop.f32.mrf.mxu0
      %v3782 = vadd.f32 0.0, %v3781
      %v3783 = vpop.f32.mrf.mxu0
      %v3784 = vpop.f32.mrf.mxu0
      %v3785 = vpop.f32.mrf.mxu0
      %3786 = vdwg.mxu0
      %v3787 = vadd.f32 %v2904, %v3366
      %v3788 = vadd.f32 %v2905, %v3369
      %v3789 = vadd.f32 %v2906, %v3374
      %v3790 = vadd.f32 %v2907, %v3377
      %v3791 = vadd.f32 %v2908, %v3382
      %v3792 = vadd.f32 %v2909, %v3385
      %v3793 = vadd.f32 %v2910, %v3390
      %v3794 = vadd.f32 %v2911, %v3393
      %v3795 = vadd.f32 %v2912, %v3398
      %v3796 = vadd.f32 %v2913, %v3401
      %v3797 = vadd.f32 %v2914, %v3406
      %v3798 = vadd.f32 %v2915, %v3409
      %v3799 = vadd.f32 %v2916, %v3414
      %v3800 = vadd.f32 %v2917, %v3417
      %v3801 = vadd.f32 %v2918, %v3422
      %v3802 = vadd.f32 %v2919, %v3425
      %v3803 = vadd.f32 %v2920, %v3430
      %v3804 = vadd.f32 %v2921, %v3433
      %v3805 = vadd.f32 %v2922, %v3438
      %v3806 = vadd.f32 %v2923, %v3441
      %v3807 = vadd.f32 %v2924, %v3446
      %v3808 = vadd.f32 %v2925, %v3449
      %v3809 = vadd.f32 %v2926, %v3454
      %v3810 = vadd.f32 %v2927, %v3457
      %v3811 = vadd.f32 %v2928, %v3462
      %v3812 = vadd.f32 %v2929, %v3465
      %v3813 = vadd.f32 %v2930, %v3470
      %v3814 = vadd.f32 %v2931, %v3473
      %v3815 = vadd.f32 %v2932, %v3478
      %v3816 = vadd.f32 %v2933, %v3481
      %v3817 = vadd.f32 %v2934, %v3486
      %v3818 = vadd.f32 %v2935, %v3489
      %v3819 = vadd.f32 %v2936, %v3494
      %v3820 = vadd.f32 %v2937, %v3497
      %v3821 = vadd.f32 %v2938, %v3502
      %v3822 = vadd.f32 %v2939, %v3505
      %v3823 = vadd.f32 %v2940, %v3510
      %v3824 = vadd.f32 %v2941, %v3513
      %v3825 = vadd.f32 %v2942, %v3518
      %v3826 = vadd.f32 %v2943, %v3521
      %v3827 = vadd.f32 %v2944, %v3526
      %v3828 = vadd.f32 %v2945, %v3529
      %v3829 = vadd.f32 %v2946, %v3534
      %v3830 = vadd.f32 %v2947, %v3537
      %v3831 = vadd.f32 %v2948, %v3542
      %v3832 = vadd.f32 %v2949, %v3545
      %v3833 = vadd.f32 %v2950, %v3550
      %v3834 = vadd.f32 %v2951, %v3553
      %v3835 = vadd.f32 %v2952, %v3558
      %v3836 = vadd.f32 %v2953, %v3561
      %v3837 = vadd.f32 %v2954, %v3566
      %v3838 = vadd.f32 %v2955, %v3569
      %v3839 = vadd.f32 %v2956, %v3574
      %v3840 = vadd.f32 %v2957, %v3577
      %v3841 = vadd.f32 %v2958, %v3582
      %v3842 = vadd.f32 %v2959, %v3585
      %v3843 = vadd.f32 %v2960, %v3590
      %v3844 = vadd.f32 %v2961, %v3593
      %v3845 = vadd.f32 %v2962, %v3598
      %v3846 = vadd.f32 %v2963, %v3601
      %v3847 = vadd.f32 %v2964, %v3606
      %v3848 = vadd.f32 %v2965, %v3609
      %v3849 = vadd.f32 %v2966, %v3614
      %v3850 = vadd.f32 %v2967, %v3617
      %v3851 = vadd.f32 %v2968, %v3622
      %v3852 = vadd.f32 %v2969, %v3625
      %v3853 = vadd.f32 %v2970, %v3630
      %v3854 = vadd.f32 %v2971, %v3633
      %v3855 = vadd.f32 %v2972, %v3638
      %v3856 = vadd.f32 %v2973, %v3641
      %v3857 = vadd.f32 %v2974, %v3646
      %v3858 = vadd.f32 %v2975, %v3649
      %v3859 = vadd.f32 %v2976, %v3654
      %v3860 = vadd.f32 %v2977, %v3657
      %v3861 = vadd.f32 %v2978, %v3662
      %v3862 = vadd.f32 %v2979, %v3665
      %v3863 = vadd.f32 %v2980, %v3670
      %v3864 = vadd.f32 %v2981, %v3673
      %v3865 = vadd.f32 %v2982, %v3678
      %v3866 = vadd.f32 %v2983, %v3681
      %v3867 = vadd.f32 %v2984, %v3686
      %v3868 = vadd.f32 %v2985, %v3689
      %v3869 = vadd.f32 %v2986, %v3694
      %v3870 = vadd.f32 %v2987, %v3697
      %v3871 = vadd.f32 %v2988, %v3702
      %v3872 = vadd.f32 %v2989, %v3705
      %v3873 = vadd.f32 %v2990, %v3710
      %v3874 = vadd.f32 %v2991, %v3713
      %v3875 = vadd.f32 %v2992, %v3718
      %v3876 = vadd.f32 %v2993, %v3721
      %v3877 = vadd.f32 %v2994, %v3726
      %v3878 = vadd.f32 %v2995, %v3729
      %v3879 = vadd.f32 %v2996, %v3734
      %v3880 = vadd.f32 %v2997, %v3737
      %v3881 = vadd.f32 %v2998, %v3742
      %v3882 = vadd.f32 %v2999, %v3745
      %v3883 = vadd.f32 %v3000, %v3750
      %v3884 = vadd.f32 %v3001, %v3753
      %v3885 = vadd.f32 %v3002, %v3758
      %v3886 = vadd.f32 %v3003, %v3761
      %v3887 = vadd.f32 %v3004, %v3766
      %v3888 = vadd.f32 %v3005, %v3769
      %v3889 = vadd.f32 %v3006, %v3774
      %v3890 = vadd.f32 %v3007, %v3777
      %v3891 = vadd.f32 %v3008, %v3782
      %v3892 = vld [vmem:[#allocation2 + $0x1f] sm:$0xff]
      %v3893 = vld [vmem:[#allocation2 + $0x27] sm:$0xff]
      %v3894 = vld [vmem:[#allocation2 + $0x2f] sm:$0xff]
      %v3895 = vld [vmem:[#allocation2 + $0x37] sm:$0xff]
      %v3896 = vld [vmem:[#allocation2 + $0x3f] sm:$0xff]
      %v3897 = vld [vmem:[#allocation2 + $0x47] sm:$0xff]
      %v3898 = vld [vmem:[#allocation2 + $0x4f] sm:$0xff]
      %v3899 = vld [vmem:[#allocation2 + $0x57] sm:$0xff]
      %v3900 = vld [vmem:[#allocation2 + $0x5f] sm:$0xff]
      %v3901 = vld [vmem:[#allocation2 + $0x67] sm:$0xff]
      %v3902 = vld [vmem:[#allocation2 + $0x6f] sm:$0xff]
      %v3903 = vld [vmem:[#allocation2 + $0x77] sm:$0xff]
      %v3904 = vld [vmem:[#allocation2 + $0x7f] sm:$0xff]
      %v3905 = vld [vmem:[#allocation2 + $0x87] sm:$0xff]
      %v3906 = vld [vmem:[#allocation2 + $0x8f] sm:$0xff]
      %v3907 = vld [vmem:[#allocation2 + $0x97] sm:$0xff]
      %v3908 = vld [vmem:[#allocation2 + $0x9f] sm:$0xff]
      %v3909 = vld [vmem:[#allocation2 + $0xa7] sm:$0xff]
      %v3910 = vld [vmem:[#allocation2 + $0xaf] sm:$0xff]
      %v3911 = vld [vmem:[#allocation2 + $0xb7] sm:$0xff]
      %v3912 = vld [vmem:[#allocation2 + $0xbf] sm:$0xff]
      %v3913 = vld [vmem:[#allocation2 + $0xc7] sm:$0xff]
      %v3914 = vld [vmem:[#allocation2 + $0xcf] sm:$0xff]
      %v3915 = vld [vmem:[#allocation2 + $0xd7] sm:$0xff]
      %v3916 = vld [vmem:[#allocation2 + $0xdf] sm:$0xff]
      %v3917 = vld [vmem:[#allocation2 + $0xe7] sm:$0xff]
      %v3918 = vld [vmem:[#allocation2 + $0xef] sm:$0xff]
      %v3919 = vld [vmem:[#allocation2 + $0xf7] sm:$0xff]
      %v3920 = vld [vmem:[#allocation2 + $0xff] sm:$0xff]
      %v3921 = vld [vmem:[#allocation2 + $0x107] sm:$0xff]
      %v3922 = vld [vmem:[#allocation2 + $0x10f] sm:$0xff]
      %v3923 = vld [vmem:[#allocation2 + $0x117] sm:$0xff]
      %v3924 = vld [vmem:[#allocation2 + $0x11f] sm:$0xff]
      %v3925 = vld [vmem:[#allocation2 + $0x127] sm:$0xff]
      %v3926 = vld [vmem:[#allocation2 + $0x12f] sm:$0xff]
      %v3927 = vld [vmem:[#allocation2 + $0x137] sm:$0xff]
      %v3928 = vld [vmem:[#allocation2 + $0x13f] sm:$0xff]
      %v3929 = vld [vmem:[#allocation2 + $0x147] sm:$0xff]
      %v3930 = vld [vmem:[#allocation2 + $0x14f] sm:$0xff]
      %v3931 = vld [vmem:[#allocation2 + $0x157] sm:$0xff]
      %v3932 = vld [vmem:[#allocation2 + $0x15f] sm:$0xff]
      %v3933 = vld [vmem:[#allocation2 + $0x167] sm:$0xff]
      %v3934 = vld [vmem:[#allocation2 + $0x16f] sm:$0xff]
      %v3935 = vld [vmem:[#allocation2 + $0x177] sm:$0xff]
      %v3936 = vld [vmem:[#allocation2 + $0x17f] sm:$0xff]
      %v3937 = vld [vmem:[#allocation2 + $0x187] sm:$0xff]
      %v3938 = vld [vmem:[#allocation2 + $0x18f] sm:$0xff]
      %v3939 = vld [vmem:[#allocation2 + $0x197] sm:$0xff]
      %v3940 = vld [vmem:[#allocation2 + $0x19f] sm:$0xff]
      %v3941 = vld [vmem:[#allocation2 + $0x1a7] sm:$0xff]
      %v3942 = vld [vmem:[#allocation2 + $0x1af] sm:$0xff]
      %v3943 = vld [vmem:[#allocation2 + $0x1b7] sm:$0xff]
      %v3944 = vld [vmem:[#allocation2 + $0x1bf] sm:$0xff]
      %v3945 = vld [vmem:[#allocation2 + $0x1c7] sm:$0xff]
      %v3946 = vld [vmem:[#allocation2 + $0x1cf] sm:$0xff]
      %v3947 = vld [vmem:[#allocation2 + $0x1d7] sm:$0xff]
      %v3948 = vld [vmem:[#allocation2 + $0x1df] sm:$0xff]
      %v3949 = vld [vmem:[#allocation2 + $0x1e7] sm:$0xff]
      %v3950 = vld [vmem:[#allocation2 + $0x1ef] sm:$0xff]
      %v3951 = vld [vmem:[#allocation2 + $0x1f7] sm:$0xff]
      %v3952 = vld [vmem:[#allocation2 + $0x1ff] sm:$0xff]
      %v3953 = vld [vmem:[#allocation2 + $0x207] sm:$0xff]
      %v3954 = vld [vmem:[#allocation2 + $0x20f] sm:$0xff]
      %v3955 = vld [vmem:[#allocation2 + $0x217] sm:$0xff]
      %v3956 = vld [vmem:[#allocation2 + $0x21f] sm:$0xff]
      %v3957 = vld [vmem:[#allocation2 + $0x227] sm:$0xff]
      %v3958 = vld [vmem:[#allocation2 + $0x22f] sm:$0xff]
      %v3959 = vld [vmem:[#allocation2 + $0x237] sm:$0xff]
      %v3960 = vld [vmem:[#allocation2 + $0x23f] sm:$0xff]
      %v3961 = vld [vmem:[#allocation2 + $0x247] sm:$0xff]
      %v3962 = vld [vmem:[#allocation2 + $0x24f] sm:$0xff]
      %v3963 = vld [vmem:[#allocation2 + $0x257] sm:$0xff]
      %v3964 = vld [vmem:[#allocation2 + $0x25f] sm:$0xff]
      %v3965 = vld [vmem:[#allocation2 + $0x267] sm:$0xff]
      %v3966 = vld [vmem:[#allocation2 + $0x26f] sm:$0xff]
      %v3967 = vld [vmem:[#allocation2 + $0x277] sm:$0xff]
      %v3968 = vld [vmem:[#allocation2 + $0x27f] sm:$0xff]
      %v3969 = vld [vmem:[#allocation2 + $0x287] sm:$0xff]
      %v3970 = vld [vmem:[#allocation2 + $0x28f] sm:$0xff]
      %v3971 = vld [vmem:[#allocation2 + $0x297] sm:$0xff]
      %v3972 = vld [vmem:[#allocation2 + $0x29f] sm:$0xff]
      %v3973 = vld [vmem:[#allocation2 + $0x2a7] sm:$0xff]
      %v3974 = vld [vmem:[#allocation2 + $0x2af] sm:$0xff]
      %v3975 = vld [vmem:[#allocation2 + $0x2b7] sm:$0xff]
      %v3976 = vld [vmem:[#allocation2 + $0x2bf] sm:$0xff]
      %v3977 = vld [vmem:[#allocation2 + $0x2c7] sm:$0xff]
      %v3978 = vld [vmem:[#allocation2 + $0x2cf] sm:$0xff]
      %v3979 = vld [vmem:[#allocation2 + $0x2d7] sm:$0xff]
      %v3980 = vld [vmem:[#allocation2 + $0x2df] sm:$0xff]
      %v3981 = vld [vmem:[#allocation2 + $0x2e7] sm:$0xff]
      %v3982 = vld [vmem:[#allocation2 + $0x2ef] sm:$0xff]
      %v3983 = vld [vmem:[#allocation2 + $0x2f7] sm:$0xff]
      %v3984 = vld [vmem:[#allocation2 + $0x2ff] sm:$0xff]
      %v3985 = vld [vmem:[#allocation2 + $0x307] sm:$0xff]
      %v3986 = vld [vmem:[#allocation2 + $0x30f] sm:$0xff]
      %v3987 = vld [vmem:[#allocation2 + $0x317] sm:$0xff]
      %v3988 = vld [vmem:[#allocation2 + $0x31f] sm:$0xff]
      %v3989 = vld [vmem:[#allocation2 + $0x327] sm:$0xff]
      %v3990 = vld [vmem:[#allocation2 + $0x32f] sm:$0xff]
      %v3991 = vld [vmem:[#allocation2 + $0x337] sm:$0xff]
      %v3992 = vld [vmem:[#allocation2 + $0x33f] sm:$0xff]
      %v3993 = vld [vmem:[#allocation2 + $0x347] sm:$0xff]
      %v3994 = vld [vmem:[#allocation2 + $0x34f] sm:$0xff]
      %v3995 = vld [vmem:[#allocation2 + $0x357] sm:$0xff]
      %v3996 = vld [vmem:[#allocation2 + $0x35f] sm:$0x3f]
      %v3997 = vpack.c.bf16 %v3893, %v3892
      %v3998 = vpack.c.bf16 %v3895, %v3894
      %v3999 = vpack.c.bf16 %v3897, %v3896
      %v4000 = vpack.c.bf16 %v3899, %v3898
      %v4001 = vpack.c.bf16 %v3901, %v3900
      %v4002 = vpack.c.bf16 %v3903, %v3902
      %v4003 = vpack.c.bf16 %v3905, %v3904
      %v4004 = vpack.c.bf16 %v3907, %v3906
      %v4005 = vpack.c.bf16 %v3909, %v3908
      %v4006 = vpack.c.bf16 %v3911, %v3910
      %v4007 = vpack.c.bf16 %v3913, %v3912
      %v4008 = vpack.c.bf16 %v3915, %v3914
      %v4009 = vpack.c.bf16 %v3917, %v3916
      %v4010 = vpack.c.bf16 %v3919, %v3918
      %v4011 = vpack.c.bf16 %v3921, %v3920
      %v4012 = vpack.c.bf16 %v3923, %v3922
      %v4013 = vpack.c.bf16 %v3925, %v3924
      %v4014 = vpack.c.bf16 %v3927, %v3926
      %v4015 = vpack.c.bf16 %v3929, %v3928
      %v4016 = vpack.c.bf16 %v3931, %v3930
      %v4017 = vpack.c.bf16 %v3933, %v3932
      %v4018 = vpack.c.bf16 %v3935, %v3934
      %v4019 = vpack.c.bf16 %v3937, %v3936
      %v4020 = vpack.c.bf16 %v3939, %v3938
      %v4021 = vpack.c.bf16 %v3941, %v3940
      %v4022 = vpack.c.bf16 %v3943, %v3942
      %v4023 = vpack.c.bf16 %v3945, %v3944
      %v4024 = vpack.c.bf16 %v3947, %v3946
      %v4025 = vpack.c.bf16 %v3949, %v3948
      %v4026 = vpack.c.bf16 %v3951, %v3950
      %v4027 = vpack.c.bf16 %v3953, %v3952
      %v4028 = vpack.c.bf16 %v3955, %v3954
      %v4029 = vpack.c.bf16 %v3957, %v3956
      %v4030 = vpack.c.bf16 %v3959, %v3958
      %v4031 = vpack.c.bf16 %v3961, %v3960
      %v4032 = vpack.c.bf16 %v3963, %v3962
      %v4033 = vpack.c.bf16 %v3965, %v3964
      %v4034 = vpack.c.bf16 %v3967, %v3966
      %v4035 = vpack.c.bf16 %v3969, %v3968
      %v4036 = vpack.c.bf16 %v3971, %v3970
      %v4037 = vpack.c.bf16 %v3973, %v3972
      %v4038 = vpack.c.bf16 %v3975, %v3974
      %v4039 = vpack.c.bf16 %v3977, %v3976
      %v4040 = vpack.c.bf16 %v3979, %v3978
      %v4041 = vpack.c.bf16 %v3981, %v3980
      %v4042 = vpack.c.bf16 %v3983, %v3982
      %v4043 = vpack.c.bf16 %v3985, %v3984
      %v4044 = vpack.c.bf16 %v3987, %v3986
      %v4045 = vpack.c.bf16 %v3989, %v3988
      %v4046 = vpack.c.bf16 %v3991, %v3990
      %v4047 = vpack.c.bf16 %v3993, %v3992
      %v4048 = vpack.c.bf16 %v3995, %v3994
      %v4049 = vpack.c.bf16 %v3996, %v3996
      %s4050 = scalar_lea.vmem %s1, 8
      %v4051 = vld [vmem:[%s4050] sm:$0x3]
      %v4053 = vsel %vm452, %v3997, 0
      %v4056 = vsel %vm452, %v3998, 0
      %v4059 = vsel %vm452, %v3999, 0
      %v4062 = vsel %vm452, %v4000, 0
      %v4065 = vsel %vm452, %v4001, 0
      %v4068 = vsel %vm452, %v4002, 0
      %v4071 = vsel %vm452, %v4003, 0
      %v4074 = vsel %vm452, %v4004, 0
      %v4077 = vsel %vm452, %v4005, 0
      %v4080 = vsel %vm452, %v4006, 0
      %v4083 = vsel %vm452, %v4007, 0
      %v4086 = vsel %vm452, %v4008, 0
      %v4089 = vsel %vm452, %v4009, 0
      %v4092 = vsel %vm452, %v4010, 0
      %v4095 = vsel %vm452, %v4011, 0
      %v4098 = vsel %vm452, %v4012, 0
      %v4101 = vsel %vm452, %v4013, 0
      %v4104 = vsel %vm452, %v4014, 0
      %v4107 = vsel %vm452, %v4015, 0
      %v4110 = vsel %vm452, %v4016, 0
      %v4113 = vsel %vm452, %v4017, 0
      %v4116 = vsel %vm452, %v4018, 0
      %v4119 = vsel %vm452, %v4019, 0
      %v4122 = vsel %vm452, %v4020, 0
      %v4125 = vsel %vm452, %v4021, 0
      %v4128 = vsel %vm452, %v4022, 0
      %v4131 = vsel %vm452, %v4023, 0
      %v4134 = vsel %vm452, %v4024, 0
      %v4137 = vsel %vm452, %v4025, 0
      %v4140 = vsel %vm452, %v4026, 0
      %v4143 = vsel %vm452, %v4027, 0
      %v4146 = vsel %vm452, %v4028, 0
      %v4149 = vsel %vm452, %v4029, 0
      %v4152 = vsel %vm452, %v4030, 0
      %v4155 = vsel %vm452, %v4031, 0
      %v4158 = vsel %vm452, %v4032, 0
      %v4161 = vsel %vm452, %v4033, 0
      %v4164 = vsel %vm452, %v4034, 0
      %v4167 = vsel %vm452, %v4035, 0
      %v4170 = vsel %vm452, %v4036, 0
      %v4173 = vsel %vm452, %v4037, 0
      %v4176 = vsel %vm452, %v4038, 0
      %v4179 = vsel %vm452, %v4039, 0
      %v4182 = vsel %vm452, %v4040, 0
      %v4185 = vsel %vm452, %v4041, 0
      %v4188 = vsel %vm452, %v4042, 0
      %v4191 = vsel %vm452, %v4043, 0
      %v4194 = vsel %vm452, %v4044, 0
      %v4197 = vsel %vm452, %v4045, 0
      %v4200 = vsel %vm452, %v4046, 0
      %v4203 = vsel %vm452, %v4047, 0
      %v4206 = vsel %vm452, %v4048, 0
      %v4209 = vsel %vm452, %v4049, 0
      %v4212 = vand.u32 %v4051, %v1048
      %4214 = vmatprep.subr.bf16.mxu0 0
      %4215 = vmatpush1.bf16.msra.mxu0 0
      %4216 = vmatprep.subr.bf16.mxu0 0
      %4217 = vmatpush1.bf16.msra.mxu0 0
      %4218 = vmatprep.subr.bf16.mxu0 0
      %4219 = vmatpush1.bf16.msra.mxu0 0
      %4220 = vmatprep.subr.bf16.mxu0 0
      %4221 = vmatpush1.bf16.msra.mxu0 0
      %4222 = vmatprep.subr.bf16.mxu0 0
      %4223 = vmatpush1.bf16.msra.mxu0 0
      %4224 = vmatprep.subr.bf16.mxu0 0
      %4225 = vmatpush1.bf16.msra.mxu0 0
      %4226 = vmatprep.subr.bf16.mxu0 0
      %4227 = vmatpush1.bf16.msra.mxu0 0
      %4228 = vmatprep.subr.bf16.mxu0 0
      %4229 = vmatpush1.bf16.msra.mxu0 %v4212
      %4230 = vmatprep.subr.bf16.mxu0 0
      %4231 = vmatpush2.bf16.msra.mxu0 0
      %4232 = vmatprep.subr.bf16.mxu0 0
      %4233 = vmatpush2.bf16.msra.mxu0 0
      %4234 = vmatprep.subr.bf16.mxu0 0
      %4235 = vmatpush2.bf16.msra.mxu0 0
      %4236 = vmatprep.subr.bf16.mxu0 0
      %4237 = vmatpush2.bf16.msra.mxu0 0
      %4238 = vmatprep.subr.bf16.mxu0 0
      %4239 = vmatpush2.bf16.msra.mxu0 0
      %4240 = vmatprep.subr.bf16.mxu0 0
      %4241 = vmatpush2.bf16.msra.mxu0 0
      %4242 = vmatprep.subr.bf16.mxu0 0
      %4243 = vmatpush2.bf16.msra.mxu0 0
      %4244 = vmatprep.subr.bf16.mxu0 0
      %4245 = vmatpush2.bf16.msra.mxu0 0
      %4246 = vmatprep.mubr.bf16.mxu0 0
      %4247 = vmatmul.mubr.bf16.gmra.mxu0 %v4053
      %v4248 = vpop.f32.mrf.mxu0
      %v4249 = vadd.f32 0.0, %v4248
      %v4250 = vpop.f32.mrf.mxu0
      %v4251 = vpop.f32.mrf.mxu0
      %v4252 = vadd.f32 0.0, %v4251
      %v4253 = vpop.f32.mrf.mxu0
      %4254 = vmatprep.mubr.bf16.mxu0 0
      %4255 = vmatmul.mubr.bf16.gmra.mxu0 %v4056
      %v4256 = vpop.f32.mrf.mxu0
      %v4257 = vadd.f32 0.0, %v4256
      %v4258 = vpop.f32.mrf.mxu0
      %v4259 = vpop.f32.mrf.mxu0
      %v4260 = vadd.f32 0.0, %v4259
      %v4261 = vpop.f32.mrf.mxu0
      %4262 = vmatprep.mubr.bf16.mxu0 0
      %4263 = vmatmul.mubr.bf16.gmra.mxu0 %v4059
      %v4264 = vpop.f32.mrf.mxu0
      %v4265 = vadd.f32 0.0, %v4264
      %v4266 = vpop.f32.mrf.mxu0
      %v4267 = vpop.f32.mrf.mxu0
      %v4268 = vadd.f32 0.0, %v4267
      %v4269 = vpop.f32.mrf.mxu0
      %4270 = vmatprep.mubr.bf16.mxu0 0
      %4271 = vmatmul.mubr.bf16.gmra.mxu0 %v4062
      %v4272 = vpop.f32.mrf.mxu0
      %v4273 = vadd.f32 0.0, %v4272
      %v4274 = vpop.f32.mrf.mxu0
      %v4275 = vpop.f32.mrf.mxu0
      %v4276 = vadd.f32 0.0, %v4275
      %v4277 = vpop.f32.mrf.mxu0
      %4278 = vmatprep.mubr.bf16.mxu0 0
      %4279 = vmatmul.mubr.bf16.gmra.mxu0 %v4065
      %v4280 = vpop.f32.mrf.mxu0
      %v4281 = vadd.f32 0.0, %v4280
      %v4282 = vpop.f32.mrf.mxu0
      %v4283 = vpop.f32.mrf.mxu0
      %v4284 = vadd.f32 0.0, %v4283
      %v4285 = vpop.f32.mrf.mxu0
      %4286 = vmatprep.mubr.bf16.mxu0 0
      %4287 = vmatmul.mubr.bf16.gmra.mxu0 %v4068
      %v4288 = vpop.f32.mrf.mxu0
      %v4289 = vadd.f32 0.0, %v4288
      %v4290 = vpop.f32.mrf.mxu0
      %v4291 = vpop.f32.mrf.mxu0
      %v4292 = vadd.f32 0.0, %v4291
      %v4293 = vpop.f32.mrf.mxu0
      %4294 = vmatprep.mubr.bf16.mxu0 0
      %4295 = vmatmul.mubr.bf16.gmra.mxu0 %v4071
      %v4296 = vpop.f32.mrf.mxu0
      %v4297 = vadd.f32 0.0, %v4296
      %v4298 = vpop.f32.mrf.mxu0
      %v4299 = vpop.f32.mrf.mxu0
      %v4300 = vadd.f32 0.0, %v4299
      %v4301 = vpop.f32.mrf.mxu0
      %4302 = vmatprep.mubr.bf16.mxu0 0
      %4303 = vmatmul.mubr.bf16.gmra.mxu0 %v4074
      %v4304 = vpop.f32.mrf.mxu0
      %v4305 = vadd.f32 0.0, %v4304
      %v4306 = vpop.f32.mrf.mxu0
      %v4307 = vpop.f32.mrf.mxu0
      %v4308 = vadd.f32 0.0, %v4307
      %v4309 = vpop.f32.mrf.mxu0
      %4310 = vmatprep.mubr.bf16.mxu0 0
      %4311 = vmatmul.mubr.bf16.gmra.mxu0 %v4077
      %v4312 = vpop.f32.mrf.mxu0
      %v4313 = vadd.f32 0.0, %v4312
      %v4314 = vpop.f32.mrf.mxu0
      %v4315 = vpop.f32.mrf.mxu0
      %v4316 = vadd.f32 0.0, %v4315
      %v4317 = vpop.f32.mrf.mxu0
      %4318 = vmatprep.mubr.bf16.mxu0 0
      %4319 = vmatmul.mubr.bf16.gmra.mxu0 %v4080
      %v4320 = vpop.f32.mrf.mxu0
      %v4321 = vadd.f32 0.0, %v4320
      %v4322 = vpop.f32.mrf.mxu0
      %v4323 = vpop.f32.mrf.mxu0
      %v4324 = vadd.f32 0.0, %v4323
      %v4325 = vpop.f32.mrf.mxu0
      %4326 = vmatprep.mubr.bf16.mxu0 0
      %4327 = vmatmul.mubr.bf16.gmra.mxu0 %v4083
      %v4328 = vpop.f32.mrf.mxu0
      %v4329 = vadd.f32 0.0, %v4328
      %v4330 = vpop.f32.mrf.mxu0
      %v4331 = vpop.f32.mrf.mxu0
      %v4332 = vadd.f32 0.0, %v4331
      %v4333 = vpop.f32.mrf.mxu0
      %4334 = vmatprep.mubr.bf16.mxu0 0
      %4335 = vmatmul.mubr.bf16.gmra.mxu0 %v4086
      %v4336 = vpop.f32.mrf.mxu0
      %v4337 = vadd.f32 0.0, %v4336
      %v4338 = vpop.f32.mrf.mxu0
      %v4339 = vpop.f32.mrf.mxu0
      %v4340 = vadd.f32 0.0, %v4339
      %v4341 = vpop.f32.mrf.mxu0
      %4342 = vmatprep.mubr.bf16.mxu0 0
      %4343 = vmatmul.mubr.bf16.gmra.mxu0 %v4089
      %v4344 = vpop.f32.mrf.mxu0
      %v4345 = vadd.f32 0.0, %v4344
      %v4346 = vpop.f32.mrf.mxu0
      %v4347 = vpop.f32.mrf.mxu0
      %v4348 = vadd.f32 0.0, %v4347
      %v4349 = vpop.f32.mrf.mxu0
      %4350 = vmatprep.mubr.bf16.mxu0 0
      %4351 = vmatmul.mubr.bf16.gmra.mxu0 %v4092
      %v4352 = vpop.f32.mrf.mxu0
      %v4353 = vadd.f32 0.0, %v4352
      %v4354 = vpop.f32.mrf.mxu0
      %v4355 = vpop.f32.mrf.mxu0
      %v4356 = vadd.f32 0.0, %v4355
      %v4357 = vpop.f32.mrf.mxu0
      %4358 = vmatprep.mubr.bf16.mxu0 0
      %4359 = vmatmul.mubr.bf16.gmra.mxu0 %v4095
      %v4360 = vpop.f32.mrf.mxu0
      %v4361 = vadd.f32 0.0, %v4360
      %v4362 = vpop.f32.mrf.mxu0
      %v4363 = vpop.f32.mrf.mxu0
      %v4364 = vadd.f32 0.0, %v4363
      %v4365 = vpop.f32.mrf.mxu0
      %4366 = vmatprep.mubr.bf16.mxu0 0
      %4367 = vmatmul.mubr.bf16.gmra.mxu0 %v4098
      %v4368 = vpop.f32.mrf.mxu0
      %v4369 = vadd.f32 0.0, %v4368
      %v4370 = vpop.f32.mrf.mxu0
      %v4371 = vpop.f32.mrf.mxu0
      %v4372 = vadd.f32 0.0, %v4371
      %v4373 = vpop.f32.mrf.mxu0
      %4374 = vmatprep.mubr.bf16.mxu0 0
      %4375 = vmatmul.mubr.bf16.gmra.mxu0 %v4101
      %v4376 = vpop.f32.mrf.mxu0
      %v4377 = vadd.f32 0.0, %v4376
      %v4378 = vpop.f32.mrf.mxu0
      %v4379 = vpop.f32.mrf.mxu0
      %v4380 = vadd.f32 0.0, %v4379
      %v4381 = vpop.f32.mrf.mxu0
      %4382 = vmatprep.mubr.bf16.mxu0 0
      %4383 = vmatmul.mubr.bf16.gmra.mxu0 %v4104
      %v4384 = vpop.f32.mrf.mxu0
      %v4385 = vadd.f32 0.0, %v4384
      %v4386 = vpop.f32.mrf.mxu0
      %v4387 = vpop.f32.mrf.mxu0
      %v4388 = vadd.f32 0.0, %v4387
      %v4389 = vpop.f32.mrf.mxu0
      %4390 = vmatprep.mubr.bf16.mxu0 0
      %4391 = vmatmul.mubr.bf16.gmra.mxu0 %v4107
      %v4392 = vpop.f32.mrf.mxu0
      %v4393 = vadd.f32 0.0, %v4392
      %v4394 = vpop.f32.mrf.mxu0
      %v4395 = vpop.f32.mrf.mxu0
      %v4396 = vadd.f32 0.0, %v4395
      %v4397 = vpop.f32.mrf.mxu0
      %4398 = vmatprep.mubr.bf16.mxu0 0
      %4399 = vmatmul.mubr.bf16.gmra.mxu0 %v4110
      %v4400 = vpop.f32.mrf.mxu0
      %v4401 = vadd.f32 0.0, %v4400
      %v4402 = vpop.f32.mrf.mxu0
      %v4403 = vpop.f32.mrf.mxu0
      %v4404 = vadd.f32 0.0, %v4403
      %v4405 = vpop.f32.mrf.mxu0
      %4406 = vmatprep.mubr.bf16.mxu0 0
      %4407 = vmatmul.mubr.bf16.gmra.mxu0 %v4113
      %v4408 = vpop.f32.mrf.mxu0
      %v4409 = vadd.f32 0.0, %v4408
      %v4410 = vpop.f32.mrf.mxu0
      %v4411 = vpop.f32.mrf.mxu0
      %v4412 = vadd.f32 0.0, %v4411
      %v4413 = vpop.f32.mrf.mxu0
      %4414 = vmatprep.mubr.bf16.mxu0 0
      %4415 = vmatmul.mubr.bf16.gmra.mxu0 %v4116
      %v4416 = vpop.f32.mrf.mxu0
      %v4417 = vadd.f32 0.0, %v4416
      %v4418 = vpop.f32.mrf.mxu0
      %v4419 = vpop.f32.mrf.mxu0
      %v4420 = vadd.f32 0.0, %v4419
      %v4421 = vpop.f32.mrf.mxu0
      %4422 = vmatprep.mubr.bf16.mxu0 0
      %4423 = vmatmul.mubr.bf16.gmra.mxu0 %v4119
      %v4424 = vpop.f32.mrf.mxu0
      %v4425 = vadd.f32 0.0, %v4424
      %v4426 = vpop.f32.mrf.mxu0
      %v4427 = vpop.f32.mrf.mxu0
      %v4428 = vadd.f32 0.0, %v4427
      %v4429 = vpop.f32.mrf.mxu0
      %4430 = vmatprep.mubr.bf16.mxu0 0
      %4431 = vmatmul.mubr.bf16.gmra.mxu0 %v4122
      %v4432 = vpop.f32.mrf.mxu0
      %v4433 = vadd.f32 0.0, %v4432
      %v4434 = vpop.f32.mrf.mxu0
      %v4435 = vpop.f32.mrf.mxu0
      %v4436 = vadd.f32 0.0, %v4435
      %v4437 = vpop.f32.mrf.mxu0
      %4438 = vmatprep.mubr.bf16.mxu0 0
      %4439 = vmatmul.mubr.bf16.gmra.mxu0 %v4125
      %v4440 = vpop.f32.mrf.mxu0
      %v4441 = vadd.f32 0.0, %v4440
      %v4442 = vpop.f32.mrf.mxu0
      %v4443 = vpop.f32.mrf.mxu0
      %v4444 = vadd.f32 0.0, %v4443
      %v4445 = vpop.f32.mrf.mxu0
      %4446 = vmatprep.mubr.bf16.mxu0 0
      %4447 = vmatmul.mubr.bf16.gmra.mxu0 %v4128
      %v4448 = vpop.f32.mrf.mxu0
      %v4449 = vadd.f32 0.0, %v4448
      %v4450 = vpop.f32.mrf.mxu0
      %v4451 = vpop.f32.mrf.mxu0
      %v4452 = vadd.f32 0.0, %v4451
      %v4453 = vpop.f32.mrf.mxu0
      %4454 = vmatprep.mubr.bf16.mxu0 0
      %4455 = vmatmul.mubr.bf16.gmra.mxu0 %v4131
      %v4456 = vpop.f32.mrf.mxu0
      %v4457 = vadd.f32 0.0, %v4456
      %v4458 = vpop.f32.mrf.mxu0
      %v4459 = vpop.f32.mrf.mxu0
      %v4460 = vadd.f32 0.0, %v4459
      %v4461 = vpop.f32.mrf.mxu0
      %4462 = vmatprep.mubr.bf16.mxu0 0
      %4463 = vmatmul.mubr.bf16.gmra.mxu0 %v4134
      %v4464 = vpop.f32.mrf.mxu0
      %v4465 = vadd.f32 0.0, %v4464
      %v4466 = vpop.f32.mrf.mxu0
      %v4467 = vpop.f32.mrf.mxu0
      %v4468 = vadd.f32 0.0, %v4467
      %v4469 = vpop.f32.mrf.mxu0
      %4470 = vmatprep.mubr.bf16.mxu0 0
      %4471 = vmatmul.mubr.bf16.gmra.mxu0 %v4137
      %v4472 = vpop.f32.mrf.mxu0
      %v4473 = vadd.f32 0.0, %v4472
      %v4474 = vpop.f32.mrf.mxu0
      %v4475 = vpop.f32.mrf.mxu0
      %v4476 = vadd.f32 0.0, %v4475
      %v4477 = vpop.f32.mrf.mxu0
      %4478 = vmatprep.mubr.bf16.mxu0 0
      %4479 = vmatmul.mubr.bf16.gmra.mxu0 %v4140
      %v4480 = vpop.f32.mrf.mxu0
      %v4481 = vadd.f32 0.0, %v4480
      %v4482 = vpop.f32.mrf.mxu0
      %v4483 = vpop.f32.mrf.mxu0
      %v4484 = vadd.f32 0.0, %v4483
      %v4485 = vpop.f32.mrf.mxu0
      %4486 = vmatprep.mubr.bf16.mxu0 0
      %4487 = vmatmul.mubr.bf16.gmra.mxu0 %v4143
      %v4488 = vpop.f32.mrf.mxu0
      %v4489 = vadd.f32 0.0, %v4488
      %v4490 = vpop.f32.mrf.mxu0
      %v4491 = vpop.f32.mrf.mxu0
      %v4492 = vadd.f32 0.0, %v4491
      %v4493 = vpop.f32.mrf.mxu0
      %4494 = vmatprep.mubr.bf16.mxu0 0
      %4495 = vmatmul.mubr.bf16.gmra.mxu0 %v4146
      %v4496 = vpop.f32.mrf.mxu0
      %v4497 = vadd.f32 0.0, %v4496
      %v4498 = vpop.f32.mrf.mxu0
      %v4499 = vpop.f32.mrf.mxu0
      %v4500 = vadd.f32 0.0, %v4499
      %v4501 = vpop.f32.mrf.mxu0
      %4502 = vmatprep.mubr.bf16.mxu0 0
      %4503 = vmatmul.mubr.bf16.gmra.mxu0 %v4149
      %v4504 = vpop.f32.mrf.mxu0
      %v4505 = vadd.f32 0.0, %v4504
      %v4506 = vpop.f32.mrf.mxu0
      %v4507 = vpop.f32.mrf.mxu0
      %v4508 = vadd.f32 0.0, %v4507
      %v4509 = vpop.f32.mrf.mxu0
      %4510 = vmatprep.mubr.bf16.mxu0 0
      %4511 = vmatmul.mubr.bf16.gmra.mxu0 %v4152
      %v4512 = vpop.f32.mrf.mxu0
      %v4513 = vadd.f32 0.0, %v4512
      %v4514 = vpop.f32.mrf.mxu0
      %v4515 = vpop.f32.mrf.mxu0
      %v4516 = vadd.f32 0.0, %v4515
      %v4517 = vpop.f32.mrf.mxu0
      %4518 = vmatprep.mubr.bf16.mxu0 0
      %4519 = vmatmul.mubr.bf16.gmra.mxu0 %v4155
      %v4520 = vpop.f32.mrf.mxu0
      %v4521 = vadd.f32 0.0, %v4520
      %v4522 = vpop.f32.mrf.mxu0
      %v4523 = vpop.f32.mrf.mxu0
      %v4524 = vadd.f32 0.0, %v4523
      %v4525 = vpop.f32.mrf.mxu0
      %4526 = vmatprep.mubr.bf16.mxu0 0
      %4527 = vmatmul.mubr.bf16.gmra.mxu0 %v4158
      %v4528 = vpop.f32.mrf.mxu0
      %v4529 = vadd.f32 0.0, %v4528
      %v4530 = vpop.f32.mrf.mxu0
      %v4531 = vpop.f32.mrf.mxu0
      %v4532 = vadd.f32 0.0, %v4531
      %v4533 = vpop.f32.mrf.mxu0
      %4534 = vmatprep.mubr.bf16.mxu0 0
      %4535 = vmatmul.mubr.bf16.gmra.mxu0 %v4161
      %v4536 = vpop.f32.mrf.mxu0
      %v4537 = vadd.f32 0.0, %v4536
      %v4538 = vpop.f32.mrf.mxu0
      %v4539 = vpop.f32.mrf.mxu0
      %v4540 = vadd.f32 0.0, %v4539
      %v4541 = vpop.f32.mrf.mxu0
      %4542 = vmatprep.mubr.bf16.mxu0 0
      %4543 = vmatmul.mubr.bf16.gmra.mxu0 %v4164
      %v4544 = vpop.f32.mrf.mxu0
      %v4545 = vadd.f32 0.0, %v4544
      %v4546 = vpop.f32.mrf.mxu0
      %v4547 = vpop.f32.mrf.mxu0
      %v4548 = vadd.f32 0.0, %v4547
      %v4549 = vpop.f32.mrf.mxu0
      %4550 = vmatprep.mubr.bf16.mxu0 0
      %4551 = vmatmul.mubr.bf16.gmra.mxu0 %v4167
      %v4552 = vpop.f32.mrf.mxu0
      %v4553 = vadd.f32 0.0, %v4552
      %v4554 = vpop.f32.mrf.mxu0
      %v4555 = vpop.f32.mrf.mxu0
      %v4556 = vadd.f32 0.0, %v4555
      %v4557 = vpop.f32.mrf.mxu0
      %4558 = vmatprep.mubr.bf16.mxu0 0
      %4559 = vmatmul.mubr.bf16.gmra.mxu0 %v4170
      %v4560 = vpop.f32.mrf.mxu0
      %v4561 = vadd.f32 0.0, %v4560
      %v4562 = vpop.f32.mrf.mxu0
      %v4563 = vpop.f32.mrf.mxu0
      %v4564 = vadd.f32 0.0, %v4563
      %v4565 = vpop.f32.mrf.mxu0
      %4566 = vmatprep.mubr.bf16.mxu0 0
      %4567 = vmatmul.mubr.bf16.gmra.mxu0 %v4173
      %v4568 = vpop.f32.mrf.mxu0
      %v4569 = vadd.f32 0.0, %v4568
      %v4570 = vpop.f32.mrf.mxu0
      %v4571 = vpop.f32.mrf.mxu0
      %v4572 = vadd.f32 0.0, %v4571
      %v4573 = vpop.f32.mrf.mxu0
      %4574 = vmatprep.mubr.bf16.mxu0 0
      %4575 = vmatmul.mubr.bf16.gmra.mxu0 %v4176
      %v4576 = vpop.f32.mrf.mxu0
      %v4577 = vadd.f32 0.0, %v4576
      %v4578 = vpop.f32.mrf.mxu0
      %v4579 = vpop.f32.mrf.mxu0
      %v4580 = vadd.f32 0.0, %v4579
      %v4581 = vpop.f32.mrf.mxu0
      %4582 = vmatprep.mubr.bf16.mxu0 0
      %4583 = vmatmul.mubr.bf16.gmra.mxu0 %v4179
      %v4584 = vpop.f32.mrf.mxu0
      %v4585 = vadd.f32 0.0, %v4584
      %v4586 = vpop.f32.mrf.mxu0
      %v4587 = vpop.f32.mrf.mxu0
      %v4588 = vadd.f32 0.0, %v4587
      %v4589 = vpop.f32.mrf.mxu0
      %4590 = vmatprep.mubr.bf16.mxu0 0
      %4591 = vmatmul.mubr.bf16.gmra.mxu0 %v4182
      %v4592 = vpop.f32.mrf.mxu0
      %v4593 = vadd.f32 0.0, %v4592
      %v4594 = vpop.f32.mrf.mxu0
      %v4595 = vpop.f32.mrf.mxu0
      %v4596 = vadd.f32 0.0, %v4595
      %v4597 = vpop.f32.mrf.mxu0
      %4598 = vmatprep.mubr.bf16.mxu0 0
      %4599 = vmatmul.mubr.bf16.gmra.mxu0 %v4185
      %v4600 = vpop.f32.mrf.mxu0
      %v4601 = vadd.f32 0.0, %v4600
      %v4602 = vpop.f32.mrf.mxu0
      %v4603 = vpop.f32.mrf.mxu0
      %v4604 = vadd.f32 0.0, %v4603
      %v4605 = vpop.f32.mrf.mxu0
      %4606 = vmatprep.mubr.bf16.mxu0 0
      %4607 = vmatmul.mubr.bf16.gmra.mxu0 %v4188
      %v4608 = vpop.f32.mrf.mxu0
      %v4609 = vadd.f32 0.0, %v4608
      %v4610 = vpop.f32.mrf.mxu0
      %v4611 = vpop.f32.mrf.mxu0
      %v4612 = vadd.f32 0.0, %v4611
      %v4613 = vpop.f32.mrf.mxu0
      %4614 = vmatprep.mubr.bf16.mxu0 0
      %4615 = vmatmul.mubr.bf16.gmra.mxu0 %v4191
      %v4616 = vpop.f32.mrf.mxu0
      %v4617 = vadd.f32 0.0, %v4616
      %v4618 = vpop.f32.mrf.mxu0
      %v4619 = vpop.f32.mrf.mxu0
      %v4620 = vadd.f32 0.0, %v4619
      %v4621 = vpop.f32.mrf.mxu0
      %4622 = vmatprep.mubr.bf16.mxu0 0
      %4623 = vmatmul.mubr.bf16.gmra.mxu0 %v4194
      %v4624 = vpop.f32.mrf.mxu0
      %v4625 = vadd.f32 0.0, %v4624
      %v4626 = vpop.f32.mrf.mxu0
      %v4627 = vpop.f32.mrf.mxu0
      %v4628 = vadd.f32 0.0, %v4627
      %v4629 = vpop.f32.mrf.mxu0
      %4630 = vmatprep.mubr.bf16.mxu0 0
      %4631 = vmatmul.mubr.bf16.gmra.mxu0 %v4197
      %v4632 = vpop.f32.mrf.mxu0
      %v4633 = vadd.f32 0.0, %v4632
      %v4634 = vpop.f32.mrf.mxu0
      %v4635 = vpop.f32.mrf.mxu0
      %v4636 = vadd.f32 0.0, %v4635
      %v4637 = vpop.f32.mrf.mxu0
      %4638 = vmatprep.mubr.bf16.mxu0 0
      %4639 = vmatmul.mubr.bf16.gmra.mxu0 %v4200
      %v4640 = vpop.f32.mrf.mxu0
      %v4641 = vadd.f32 0.0, %v4640
      %v4642 = vpop.f32.mrf.mxu0
      %v4643 = vpop.f32.mrf.mxu0
      %v4644 = vadd.f32 0.0, %v4643
      %v4645 = vpop.f32.mrf.mxu0
      %4646 = vmatprep.mubr.bf16.mxu0 0
      %4647 = vmatmul.mubr.bf16.gmra.mxu0 %v4203
      %v4648 = vpop.f32.mrf.mxu0
      %v4649 = vadd.f32 0.0, %v4648
      %v4650 = vpop.f32.mrf.mxu0
      %v4651 = vpop.f32.mrf.mxu0
      %v4652 = vadd.f32 0.0, %v4651
      %v4653 = vpop.f32.mrf.mxu0
      %4654 = vmatprep.mubr.bf16.mxu0 0
      %4655 = vmatmul.mubr.bf16.gmra.mxu0 %v4206
      %v4656 = vpop.f32.mrf.mxu0
      %v4657 = vadd.f32 0.0, %v4656
      %v4658 = vpop.f32.mrf.mxu0
      %v4659 = vpop.f32.mrf.mxu0
      %v4660 = vadd.f32 0.0, %v4659
      %v4661 = vpop.f32.mrf.mxu0
      %4662 = vmatprep.mubr.bf16.mxu0 0
      %4663 = vmatmul.mubr.bf16.gmra.mxu0 %v4209
      %v4664 = vpop.f32.mrf.mxu0
      %v4665 = vadd.f32 0.0, %v4664
      %v4666 = vpop.f32.mrf.mxu0
      %v4667 = vpop.f32.mrf.mxu0
      %v4668 = vpop.f32.mrf.mxu0
      %4669 = vdwg.mxu0
      %v4670 = vadd.f32 %v3787, %v4249
      %v4671 = vadd.f32 %v3788, %v4252
      %v4672 = vadd.f32 %v3789, %v4257
      %v4673 = vadd.f32 %v3790, %v4260
      %v4674 = vadd.f32 %v3791, %v4265
      %v4675 = vadd.f32 %v3792, %v4268
      %v4676 = vadd.f32 %v3793, %v4273
      %v4677 = vadd.f32 %v3794, %v4276
      %v4678 = vadd.f32 %v3795, %v4281
      %v4679 = vadd.f32 %v3796, %v4284
      %v4680 = vadd.f32 %v3797, %v4289
      %v4681 = vadd.f32 %v3798, %v4292
      %v4682 = vadd.f32 %v3799, %v4297
      %v4683 = vadd.f32 %v3800, %v4300
      %v4684 = vadd.f32 %v3801, %v4305
      %v4685 = vadd.f32 %v3802, %v4308
      %v4686 = vadd.f32 %v3803, %v4313
      %v4687 = vadd.f32 %v3804, %v4316
      %v4688 = vadd.f32 %v3805, %v4321
      %v4689 = vadd.f32 %v3806, %v4324
      %v4690 = vadd.f32 %v3807, %v4329
      %v4691 = vadd.f32 %v3808, %v4332
      %v4692 = vadd.f32 %v3809, %v4337
      %v4693 = vadd.f32 %v3810, %v4340
      %v4694 = vadd.f32 %v3811, %v4345
      %v4695 = vadd.f32 %v3812, %v4348
      %v4696 = vadd.f32 %v3813, %v4353
      %v4697 = vadd.f32 %v3814, %v4356
      %v4698 = vadd.f32 %v3815, %v4361
      %v4699 = vadd.f32 %v3816, %v4364
      %v4700 = vadd.f32 %v3817, %v4369
      %v4701 = vadd.f32 %v3818, %v4372
      %v4702 = vadd.f32 %v3819, %v4377
      %v4703 = vadd.f32 %v3820, %v4380
      %v4704 = vadd.f32 %v3821, %v4385
      %v4705 = vadd.f32 %v3822, %v4388
      %v4706 = vadd.f32 %v3823, %v4393
      %v4707 = vadd.f32 %v3824, %v4396
      %v4708 = vadd.f32 %v3825, %v4401
      %v4709 = vadd.f32 %v3826, %v4404
      %v4710 = vadd.f32 %v3827, %v4409
      %v4711 = vadd.f32 %v3828, %v4412
      %v4712 = vadd.f32 %v3829, %v4417
      %v4713 = vadd.f32 %v3830, %v4420
      %v4714 = vadd.f32 %v3831, %v4425
      %v4715 = vadd.f32 %v3832, %v4428
      %v4716 = vadd.f32 %v3833, %v4433
      %v4717 = vadd.f32 %v3834, %v4436
      %v4718 = vadd.f32 %v3835, %v4441
      %v4719 = vadd.f32 %v3836, %v4444
      %v4720 = vadd.f32 %v3837, %v4449
      %v4721 = vadd.f32 %v3838, %v4452
      %v4722 = vadd.f32 %v3839, %v4457
      %v4723 = vadd.f32 %v3840, %v4460
      %v4724 = vadd.f32 %v3841, %v4465
      %v4725 = vadd.f32 %v3842, %v4468
      %v4726 = vadd.f32 %v3843, %v4473
      %v4727 = vadd.f32 %v3844, %v4476
      %v4728 = vadd.f32 %v3845, %v4481
      %v4729 = vadd.f32 %v3846, %v4484
      %v4730 = vadd.f32 %v3847, %v4489
      %v4731 = vadd.f32 %v3848, %v4492
      %v4732 = vadd.f32 %v3849, %v4497
      %v4733 = vadd.f32 %v3850, %v4500
      %v4734 = vadd.f32 %v3851, %v4505
      %v4735 = vadd.f32 %v3852, %v4508
      %v4736 = vadd.f32 %v3853, %v4513
      %v4737 = vadd.f32 %v3854, %v4516
      %v4738 = vadd.f32 %v3855, %v4521
      %v4739 = vadd.f32 %v3856, %v4524
      %v4740 = vadd.f32 %v3857, %v4529
      %v4741 = vadd.f32 %v3858, %v4532
      %v4742 = vadd.f32 %v3859, %v4537
      %v4743 = vadd.f32 %v3860, %v4540
      %v4744 = vadd.f32 %v3861, %v4545
      %v4745 = vadd.f32 %v3862, %v4548
      %v4746 = vadd.f32 %v3863, %v4553
      %v4747 = vadd.f32 %v3864, %v4556
      %v4748 = vadd.f32 %v3865, %v4561
      %v4749 = vadd.f32 %v3866, %v4564
      %v4750 = vadd.f32 %v3867, %v4569
      %v4751 = vadd.f32 %v3868, %v4572
      %v4752 = vadd.f32 %v3869, %v4577
      %v4753 = vadd.f32 %v3870, %v4580
      %v4754 = vadd.f32 %v3871, %v4585
      %v4755 = vadd.f32 %v3872, %v4588
      %v4756 = vadd.f32 %v3873, %v4593
      %v4757 = vadd.f32 %v3874, %v4596
      %v4758 = vadd.f32 %v3875, %v4601
      %v4759 = vadd.f32 %v3876, %v4604
      %v4760 = vadd.f32 %v3877, %v4609
      %v4761 = vadd.f32 %v3878, %v4612
      %v4762 = vadd.f32 %v3879, %v4617
      %v4763 = vadd.f32 %v3880, %v4620
      %v4764 = vadd.f32 %v3881, %v4625
      %v4765 = vadd.f32 %v3882, %v4628
      %v4766 = vadd.f32 %v3883, %v4633
      %v4767 = vadd.f32 %v3884, %v4636
      %v4768 = vadd.f32 %v3885, %v4641
      %v4769 = vadd.f32 %v3886, %v4644
      %v4770 = vadd.f32 %v3887, %v4649
      %v4771 = vadd.f32 %v3888, %v4652
      %v4772 = vadd.f32 %v3889, %v4657
      %v4773 = vadd.f32 %v3890, %v4660
      %v4774 = vadd.f32 %v3891, %v4665
      %v4775 = vld [vmem:[#allocation2 + $0x20] sm:$0xff]
      %v4776 = vld [vmem:[#allocation2 + $0x28] sm:$0xff]
      %v4777 = vld [vmem:[#allocation2 + $0x30] sm:$0xff]
      %v4778 = vld [vmem:[#allocation2 + $0x38] sm:$0xff]
      %v4779 = vld [vmem:[#allocation2 + $0x40] sm:$0xff]
      %v4780 = vld [vmem:[#allocation2 + $0x48] sm:$0xff]
      %v4781 = vld [vmem:[#allocation2 + $0x50] sm:$0xff]
      %v4782 = vld [vmem:[#allocation2 + $0x58] sm:$0xff]
      %v4783 = vld [vmem:[#allocation2 + $0x60] sm:$0xff]
      %v4784 = vld [vmem:[#allocation2 + $0x68] sm:$0xff]
      %v4785 = vld [vmem:[#allocation2 + $0x70] sm:$0xff]
      %v4786 = vld [vmem:[#allocation2 + $0x78] sm:$0xff]
      %v4787 = vld [vmem:[#allocation2 + $0x80] sm:$0xff]
      %v4788 = vld [vmem:[#allocation2 + $0x88] sm:$0xff]
      %v4789 = vld [vmem:[#allocation2 + $0x90] sm:$0xff]
      %v4790 = vld [vmem:[#allocation2 + $0x98] sm:$0xff]
      %v4791 = vld [vmem:[#allocation2 + $0xa0] sm:$0xff]
      %v4792 = vld [vmem:[#allocation2 + $0xa8] sm:$0xff]
      %v4793 = vld [vmem:[#allocation2 + $0xb0] sm:$0xff]
      %v4794 = vld [vmem:[#allocation2 + $0xb8] sm:$0xff]
      %v4795 = vld [vmem:[#allocation2 + $0xc0] sm:$0xff]
      %v4796 = vld [vmem:[#allocation2 + $0xc8] sm:$0xff]
      %v4797 = vld [vmem:[#allocation2 + $0xd0] sm:$0xff]
      %v4798 = vld [vmem:[#allocation2 + $0xd8] sm:$0xff]
      %v4799 = vld [vmem:[#allocation2 + $0xe0] sm:$0xff]
      %v4800 = vld [vmem:[#allocation2 + $0xe8] sm:$0xff]
      %v4801 = vld [vmem:[#allocation2 + $0xf0] sm:$0xff]
      %v4802 = vld [vmem:[#allocation2 + $0xf8] sm:$0xff]
      %v4803 = vld [vmem:[#allocation2 + $0x100] sm:$0xff]
      %v4804 = vld [vmem:[#allocation2 + $0x108] sm:$0xff]
      %v4805 = vld [vmem:[#allocation2 + $0x110] sm:$0xff]
      %v4806 = vld [vmem:[#allocation2 + $0x118] sm:$0xff]
      %v4807 = vld [vmem:[#allocation2 + $0x120] sm:$0xff]
      %v4808 = vld [vmem:[#allocation2 + $0x128] sm:$0xff]
      %v4809 = vld [vmem:[#allocation2 + $0x130] sm:$0xff]
      %v4810 = vld [vmem:[#allocation2 + $0x138] sm:$0xff]
      %v4811 = vld [vmem:[#allocation2 + $0x140] sm:$0xff]
      %v4812 = vld [vmem:[#allocation2 + $0x148] sm:$0xff]
      %v4813 = vld [vmem:[#allocation2 + $0x150] sm:$0xff]
      %v4814 = vld [vmem:[#allocation2 + $0x158] sm:$0xff]
      %v4815 = vld [vmem:[#allocation2 + $0x160] sm:$0xff]
      %v4816 = vld [vmem:[#allocation2 + $0x168] sm:$0xff]
      %v4817 = vld [vmem:[#allocation2 + $0x170] sm:$0xff]
      %v4818 = vld [vmem:[#allocation2 + $0x178] sm:$0xff]
      %v4819 = vld [vmem:[#allocation2 + $0x180] sm:$0xff]
      %v4820 = vld [vmem:[#allocation2 + $0x188] sm:$0xff]
      %v4821 = vld [vmem:[#allocation2 + $0x190] sm:$0xff]
      %v4822 = vld [vmem:[#allocation2 + $0x198] sm:$0xff]
      %v4823 = vld [vmem:[#allocation2 + $0x1a0] sm:$0xff]
      %v4824 = vld [vmem:[#allocation2 + $0x1a8] sm:$0xff]
      %v4825 = vld [vmem:[#allocation2 + $0x1b0] sm:$0xff]
      %v4826 = vld [vmem:[#allocation2 + $0x1b8] sm:$0xff]
      %v4827 = vld [vmem:[#allocation2 + $0x1c0] sm:$0xff]
      %v4828 = vld [vmem:[#allocation2 + $0x1c8] sm:$0xff]
      %v4829 = vld [vmem:[#allocation2 + $0x1d0] sm:$0xff]
      %v4830 = vld [vmem:[#allocation2 + $0x1d8] sm:$0xff]
      %v4831 = vld [vmem:[#allocation2 + $0x1e0] sm:$0xff]
      %v4832 = vld [vmem:[#allocation2 + $0x1e8] sm:$0xff]
      %v4833 = vld [vmem:[#allocation2 + $0x1f0] sm:$0xff]
      %v4834 = vld [vmem:[#allocation2 + $0x1f8] sm:$0xff]
      %v4835 = vld [vmem:[#allocation2 + $0x200] sm:$0xff]
      %v4836 = vld [vmem:[#allocation2 + $0x208] sm:$0xff]
      %v4837 = vld [vmem:[#allocation2 + $0x210] sm:$0xff]
      %v4838 = vld [vmem:[#allocation2 + $0x218] sm:$0xff]
      %v4839 = vld [vmem:[#allocation2 + $0x220] sm:$0xff]
      %v4840 = vld [vmem:[#allocation2 + $0x228] sm:$0xff]
      %v4841 = vld [vmem:[#allocation2 + $0x230] sm:$0xff]
      %v4842 = vld [vmem:[#allocation2 + $0x238] sm:$0xff]
      %v4843 = vld [vmem:[#allocation2 + $0x240] sm:$0xff]
      %v4844 = vld [vmem:[#allocation2 + $0x248] sm:$0xff]
      %v4845 = vld [vmem:[#allocation2 + $0x250] sm:$0xff]
      %v4846 = vld [vmem:[#allocation2 + $0x258] sm:$0xff]
      %v4847 = vld [vmem:[#allocation2 + $0x260] sm:$0xff]
      %v4848 = vld [vmem:[#allocation2 + $0x268] sm:$0xff]
      %v4849 = vld [vmem:[#allocation2 + $0x270] sm:$0xff]
      %v4850 = vld [vmem:[#allocation2 + $0x278] sm:$0xff]
      %v4851 = vld [vmem:[#allocation2 + $0x280] sm:$0xff]
      %v4852 = vld [vmem:[#allocation2 + $0x288] sm:$0xff]
      %v4853 = vld [vmem:[#allocation2 + $0x290] sm:$0xff]
      %v4854 = vld [vmem:[#allocation2 + $0x298] sm:$0xff]
      %v4855 = vld [vmem:[#allocation2 + $0x2a0] sm:$0xff]
      %v4856 = vld [vmem:[#allocation2 + $0x2a8] sm:$0xff]
      %v4857 = vld [vmem:[#allocation2 + $0x2b0] sm:$0xff]
      %v4858 = vld [vmem:[#allocation2 + $0x2b8] sm:$0xff]
      %v4859 = vld [vmem:[#allocation2 + $0x2c0] sm:$0xff]
      %v4860 = vld [vmem:[#allocation2 + $0x2c8] sm:$0xff]
      %v4861 = vld [vmem:[#allocation2 + $0x2d0] sm:$0xff]
      %v4862 = vld [vmem:[#allocation2 + $0x2d8] sm:$0xff]
      %v4863 = vld [vmem:[#allocation2 + $0x2e0] sm:$0xff]
      %v4864 = vld [vmem:[#allocation2 + $0x2e8] sm:$0xff]
      %v4865 = vld [vmem:[#allocation2 + $0x2f0] sm:$0xff]
      %v4866 = vld [vmem:[#allocation2 + $0x2f8] sm:$0xff]
      %v4867 = vld [vmem:[#allocation2 + $0x300] sm:$0xff]
      %v4868 = vld [vmem:[#allocation2 + $0x308] sm:$0xff]
      %v4869 = vld [vmem:[#allocation2 + $0x310] sm:$0xff]
      %v4870 = vld [vmem:[#allocation2 + $0x318] sm:$0xff]
      %v4871 = vld [vmem:[#allocation2 + $0x320] sm:$0xff]
      %v4872 = vld [vmem:[#allocation2 + $0x328] sm:$0xff]
      %v4873 = vld [vmem:[#allocation2 + $0x330] sm:$0xff]
      %v4874 = vld [vmem:[#allocation2 + $0x338] sm:$0xff]
      %v4875 = vld [vmem:[#allocation2 + $0x340] sm:$0xff]
      %v4876 = vld [vmem:[#allocation2 + $0x348] sm:$0xff]
      %v4877 = vld [vmem:[#allocation2 + $0x350] sm:$0xff]
      %v4878 = vld [vmem:[#allocation2 + $0x358] sm:$0xff]
      %v4879 = vld [vmem:[#allocation2 + $0x360] sm:$0x3f]
      %v4880 = vpack.c.bf16 %v4776, %v4775
      %v4881 = vpack.c.bf16 %v4778, %v4777
      %v4882 = vpack.c.bf16 %v4780, %v4779
      %v4883 = vpack.c.bf16 %v4782, %v4781
      %v4884 = vpack.c.bf16 %v4784, %v4783
      %v4885 = vpack.c.bf16 %v4786, %v4785
      %v4886 = vpack.c.bf16 %v4788, %v4787
      %v4887 = vpack.c.bf16 %v4790, %v4789
      %v4888 = vpack.c.bf16 %v4792, %v4791
      %v4889 = vpack.c.bf16 %v4794, %v4793
      %v4890 = vpack.c.bf16 %v4796, %v4795
      %v4891 = vpack.c.bf16 %v4798, %v4797
      %v4892 = vpack.c.bf16 %v4800, %v4799
      %v4893 = vpack.c.bf16 %v4802, %v4801
      %v4894 = vpack.c.bf16 %v4804, %v4803
      %v4895 = vpack.c.bf16 %v4806, %v4805
      %v4896 = vpack.c.bf16 %v4808, %v4807
      %v4897 = vpack.c.bf16 %v4810, %v4809
      %v4898 = vpack.c.bf16 %v4812, %v4811
      %v4899 = vpack.c.bf16 %v4814, %v4813
      %v4900 = vpack.c.bf16 %v4816, %v4815
      %v4901 = vpack.c.bf16 %v4818, %v4817
      %v4902 = vpack.c.bf16 %v4820, %v4819
      %v4903 = vpack.c.bf16 %v4822, %v4821
      %v4904 = vpack.c.bf16 %v4824, %v4823
      %v4905 = vpack.c.bf16 %v4826, %v4825
      %v4906 = vpack.c.bf16 %v4828, %v4827
      %v4907 = vpack.c.bf16 %v4830, %v4829
      %v4908 = vpack.c.bf16 %v4832, %v4831
      %v4909 = vpack.c.bf16 %v4834, %v4833
      %v4910 = vpack.c.bf16 %v4836, %v4835
      %v4911 = vpack.c.bf16 %v4838, %v4837
      %v4912 = vpack.c.bf16 %v4840, %v4839
      %v4913 = vpack.c.bf16 %v4842, %v4841
      %v4914 = vpack.c.bf16 %v4844, %v4843
      %v4915 = vpack.c.bf16 %v4846, %v4845
      %v4916 = vpack.c.bf16 %v4848, %v4847
      %v4917 = vpack.c.bf16 %v4850, %v4849
      %v4918 = vpack.c.bf16 %v4852, %v4851
      %v4919 = vpack.c.bf16 %v4854, %v4853
      %v4920 = vpack.c.bf16 %v4856, %v4855
      %v4921 = vpack.c.bf16 %v4858, %v4857
      %v4922 = vpack.c.bf16 %v4860, %v4859
      %v4923 = vpack.c.bf16 %v4862, %v4861
      %v4924 = vpack.c.bf16 %v4864, %v4863
      %v4925 = vpack.c.bf16 %v4866, %v4865
      %v4926 = vpack.c.bf16 %v4868, %v4867
      %v4927 = vpack.c.bf16 %v4870, %v4869
      %v4928 = vpack.c.bf16 %v4872, %v4871
      %v4929 = vpack.c.bf16 %v4874, %v4873
      %v4930 = vpack.c.bf16 %v4876, %v4875
      %v4931 = vpack.c.bf16 %v4878, %v4877
      %v4932 = vpack.c.bf16 %v4879, %v4879
      %s4933 = scalar_lea.vmem %s1, 10
      %v4934 = vld [vmem:[%s4933] sm:$0x3]
      %v4936 = vsel %vm452, %v4880, 0
      %v4939 = vsel %vm452, %v4881, 0
      %v4942 = vsel %vm452, %v4882, 0
      %v4945 = vsel %vm452, %v4883, 0
      %v4948 = vsel %vm452, %v4884, 0
      %v4951 = vsel %vm452, %v4885, 0
      %v4954 = vsel %vm452, %v4886, 0
      %v4957 = vsel %vm452, %v4887, 0
      %v4960 = vsel %vm452, %v4888, 0
      %v4963 = vsel %vm452, %v4889, 0
      %v4966 = vsel %vm452, %v4890, 0
      %v4969 = vsel %vm452, %v4891, 0
      %v4972 = vsel %vm452, %v4892, 0
      %v4975 = vsel %vm452, %v4893, 0
      %v4978 = vsel %vm452, %v4894, 0
      %v4981 = vsel %vm452, %v4895, 0
      %v4984 = vsel %vm452, %v4896, 0
      %v4987 = vsel %vm452, %v4897, 0
      %v4990 = vsel %vm452, %v4898, 0
      %v4993 = vsel %vm452, %v4899, 0
      %v4996 = vsel %vm452, %v4900, 0
      %v4999 = vsel %vm452, %v4901, 0
      %v5002 = vsel %vm452, %v4902, 0
      %v5005 = vsel %vm452, %v4903, 0
      %v5008 = vsel %vm452, %v4904, 0
      %v5011 = vsel %vm452, %v4905, 0
      %v5014 = vsel %vm452, %v4906, 0
      %v5017 = vsel %vm452, %v4907, 0
      %v5020 = vsel %vm452, %v4908, 0
      %v5023 = vsel %vm452, %v4909, 0
      %v5026 = vsel %vm452, %v4910, 0
      %v5029 = vsel %vm452, %v4911, 0
      %v5032 = vsel %vm452, %v4912, 0
      %v5035 = vsel %vm452, %v4913, 0
      %v5038 = vsel %vm452, %v4914, 0
      %v5041 = vsel %vm452, %v4915, 0
      %v5044 = vsel %vm452, %v4916, 0
      %v5047 = vsel %vm452, %v4917, 0
      %v5050 = vsel %vm452, %v4918, 0
      %v5053 = vsel %vm452, %v4919, 0
      %v5056 = vsel %vm452, %v4920, 0
      %v5059 = vsel %vm452, %v4921, 0
      %v5062 = vsel %vm452, %v4922, 0
      %v5065 = vsel %vm452, %v4923, 0
      %v5068 = vsel %vm452, %v4924, 0
      %v5071 = vsel %vm452, %v4925, 0
      %v5074 = vsel %vm452, %v4926, 0
      %v5077 = vsel %vm452, %v4927, 0
      %v5080 = vsel %vm452, %v4928, 0
      %v5083 = vsel %vm452, %v4929, 0
      %v5086 = vsel %vm452, %v4930, 0
      %v5089 = vsel %vm452, %v4931, 0
      %v5092 = vsel %vm452, %v4932, 0
      %v5095 = vand.u32 %v4934, %v1048
      %5097 = vmatprep.subr.bf16.mxu0 0
      %5098 = vmatpush1.bf16.msra.mxu0 0
      %5099 = vmatprep.subr.bf16.mxu0 0
      %5100 = vmatpush1.bf16.msra.mxu0 0
      %5101 = vmatprep.subr.bf16.mxu0 0
      %5102 = vmatpush1.bf16.msra.mxu0 0
      %5103 = vmatprep.subr.bf16.mxu0 0
      %5104 = vmatpush1.bf16.msra.mxu0 0
      %5105 = vmatprep.subr.bf16.mxu0 0
      %5106 = vmatpush1.bf16.msra.mxu0 0
      %5107 = vmatprep.subr.bf16.mxu0 0
      %5108 = vmatpush1.bf16.msra.mxu0 0
      %5109 = vmatprep.subr.bf16.mxu0 0
      %5110 = vmatpush1.bf16.msra.mxu0 0
      %5111 = vmatprep.subr.bf16.mxu0 0
      %5112 = vmatpush1.bf16.msra.mxu0 %v5095
      %5113 = vmatprep.subr.bf16.mxu0 0
      %5114 = vmatpush2.bf16.msra.mxu0 0
      %5115 = vmatprep.subr.bf16.mxu0 0
      %5116 = vmatpush2.bf16.msra.mxu0 0
      %5117 = vmatprep.subr.bf16.mxu0 0
      %5118 = vmatpush2.bf16.msra.mxu0 0
      %5119 = vmatprep.subr.bf16.mxu0 0
      %5120 = vmatpush2.bf16.msra.mxu0 0
      %5121 = vmatprep.subr.bf16.mxu0 0
      %5122 = vmatpush2.bf16.msra.mxu0 0
      %5123 = vmatprep.subr.bf16.mxu0 0
      %5124 = vmatpush2.bf16.msra.mxu0 0
      %5125 = vmatprep.subr.bf16.mxu0 0
      %5126 = vmatpush2.bf16.msra.mxu0 0
      %5127 = vmatprep.subr.bf16.mxu0 0
      %5128 = vmatpush2.bf16.msra.mxu0 0
      %5129 = vmatprep.mubr.bf16.mxu0 0
      %5130 = vmatmul.mubr.bf16.gmra.mxu0 %v4936
      %v5131 = vpop.f32.mrf.mxu0
      %v5132 = vadd.f32 0.0, %v5131
      %v5133 = vpop.f32.mrf.mxu0
      %v5134 = vpop.f32.mrf.mxu0
      %v5135 = vadd.f32 0.0, %v5134
      %v5136 = vpop.f32.mrf.mxu0
      %5137 = vmatprep.mubr.bf16.mxu0 0
      %5138 = vmatmul.mubr.bf16.gmra.mxu0 %v4939
      %v5139 = vpop.f32.mrf.mxu0
      %v5140 = vadd.f32 0.0, %v5139
      %v5141 = vpop.f32.mrf.mxu0
      %v5142 = vpop.f32.mrf.mxu0
      %v5143 = vadd.f32 0.0, %v5142
      %v5144 = vpop.f32.mrf.mxu0
      %5145 = vmatprep.mubr.bf16.mxu0 0
      %5146 = vmatmul.mubr.bf16.gmra.mxu0 %v4942
      %v5147 = vpop.f32.mrf.mxu0
      %v5148 = vadd.f32 0.0, %v5147
      %v5149 = vpop.f32.mrf.mxu0
      %v5150 = vpop.f32.mrf.mxu0
      %v5151 = vadd.f32 0.0, %v5150
      %v5152 = vpop.f32.mrf.mxu0
      %5153 = vmatprep.mubr.bf16.mxu0 0
      %5154 = vmatmul.mubr.bf16.gmra.mxu0 %v4945
      %v5155 = vpop.f32.mrf.mxu0
      %v5156 = vadd.f32 0.0, %v5155
      %v5157 = vpop.f32.mrf.mxu0
      %v5158 = vpop.f32.mrf.mxu0
      %v5159 = vadd.f32 0.0, %v5158
      %v5160 = vpop.f32.mrf.mxu0
      %5161 = vmatprep.mubr.bf16.mxu0 0
      %5162 = vmatmul.mubr.bf16.gmra.mxu0 %v4948
      %v5163 = vpop.f32.mrf.mxu0
      %v5164 = vadd.f32 0.0, %v5163
      %v5165 = vpop.f32.mrf.mxu0
      %v5166 = vpop.f32.mrf.mxu0
      %v5167 = vadd.f32 0.0, %v5166
      %v5168 = vpop.f32.mrf.mxu0
      %5169 = vmatprep.mubr.bf16.mxu0 0
      %5170 = vmatmul.mubr.bf16.gmra.mxu0 %v4951
      %v5171 = vpop.f32.mrf.mxu0
      %v5172 = vadd.f32 0.0, %v5171
      %v5173 = vpop.f32.mrf.mxu0
      %v5174 = vpop.f32.mrf.mxu0
      %v5175 = vadd.f32 0.0, %v5174
      %v5176 = vpop.f32.mrf.mxu0
      %5177 = vmatprep.mubr.bf16.mxu0 0
      %5178 = vmatmul.mubr.bf16.gmra.mxu0 %v4954
      %v5179 = vpop.f32.mrf.mxu0
      %v5180 = vadd.f32 0.0, %v5179
      %v5181 = vpop.f32.mrf.mxu0
      %v5182 = vpop.f32.mrf.mxu0
      %v5183 = vadd.f32 0.0, %v5182
      %v5184 = vpop.f32.mrf.mxu0
      %5185 = vmatprep.mubr.bf16.mxu0 0
      %5186 = vmatmul.mubr.bf16.gmra.mxu0 %v4957
      %v5187 = vpop.f32.mrf.mxu0
      %v5188 = vadd.f32 0.0, %v5187
      %v5189 = vpop.f32.mrf.mxu0
      %v5190 = vpop.f32.mrf.mxu0
      %v5191 = vadd.f32 0.0, %v5190
      %v5192 = vpop.f32.mrf.mxu0
      %5193 = vmatprep.mubr.bf16.mxu0 0
      %5194 = vmatmul.mubr.bf16.gmra.mxu0 %v4960
      %v5195 = vpop.f32.mrf.mxu0
      %v5196 = vadd.f32 0.0, %v5195
      %v5197 = vpop.f32.mrf.mxu0
      %v5198 = vpop.f32.mrf.mxu0
      %v5199 = vadd.f32 0.0, %v5198
      %v5200 = vpop.f32.mrf.mxu0
      %5201 = vmatprep.mubr.bf16.mxu0 0
      %5202 = vmatmul.mubr.bf16.gmra.mxu0 %v4963
      %v5203 = vpop.f32.mrf.mxu0
      %v5204 = vadd.f32 0.0, %v5203
      %v5205 = vpop.f32.mrf.mxu0
      %v5206 = vpop.f32.mrf.mxu0
      %v5207 = vadd.f32 0.0, %v5206
      %v5208 = vpop.f32.mrf.mxu0
      %5209 = vmatprep.mubr.bf16.mxu0 0
      %5210 = vmatmul.mubr.bf16.gmra.mxu0 %v4966
      %v5211 = vpop.f32.mrf.mxu0
      %v5212 = vadd.f32 0.0, %v5211
      %v5213 = vpop.f32.mrf.mxu0
      %v5214 = vpop.f32.mrf.mxu0
      %v5215 = vadd.f32 0.0, %v5214
      %v5216 = vpop.f32.mrf.mxu0
      %5217 = vmatprep.mubr.bf16.mxu0 0
      %5218 = vmatmul.mubr.bf16.gmra.mxu0 %v4969
      %v5219 = vpop.f32.mrf.mxu0
      %v5220 = vadd.f32 0.0, %v5219
      %v5221 = vpop.f32.mrf.mxu0
      %v5222 = vpop.f32.mrf.mxu0
      %v5223 = vadd.f32 0.0, %v5222
      %v5224 = vpop.f32.mrf.mxu0
      %5225 = vmatprep.mubr.bf16.mxu0 0
      %5226 = vmatmul.mubr.bf16.gmra.mxu0 %v4972
      %v5227 = vpop.f32.mrf.mxu0
      %v5228 = vadd.f32 0.0, %v5227
      %v5229 = vpop.f32.mrf.mxu0
      %v5230 = vpop.f32.mrf.mxu0
      %v5231 = vadd.f32 0.0, %v5230
      %v5232 = vpop.f32.mrf.mxu0
      %5233 = vmatprep.mubr.bf16.mxu0 0
      %5234 = vmatmul.mubr.bf16.gmra.mxu0 %v4975
      %v5235 = vpop.f32.mrf.mxu0
      %v5236 = vadd.f32 0.0, %v5235
      %v5237 = vpop.f32.mrf.mxu0
      %v5238 = vpop.f32.mrf.mxu0
      %v5239 = vadd.f32 0.0, %v5238
      %v5240 = vpop.f32.mrf.mxu0
      %5241 = vmatprep.mubr.bf16.mxu0 0
      %5242 = vmatmul.mubr.bf16.gmra.mxu0 %v4978
      %v5243 = vpop.f32.mrf.mxu0
      %v5244 = vadd.f32 0.0, %v5243
      %v5245 = vpop.f32.mrf.mxu0
      %v5246 = vpop.f32.mrf.mxu0
      %v5247 = vadd.f32 0.0, %v5246
      %v5248 = vpop.f32.mrf.mxu0
      %5249 = vmatprep.mubr.bf16.mxu0 0
      %5250 = vmatmul.mubr.bf16.gmra.mxu0 %v4981
      %v5251 = vpop.f32.mrf.mxu0
      %v5252 = vadd.f32 0.0, %v5251
      %v5253 = vpop.f32.mrf.mxu0
      %v5254 = vpop.f32.mrf.mxu0
      %v5255 = vadd.f32 0.0, %v5254
      %v5256 = vpop.f32.mrf.mxu0
      %5257 = vmatprep.mubr.bf16.mxu0 0
      %5258 = vmatmul.mubr.bf16.gmra.mxu0 %v4984
      %v5259 = vpop.f32.mrf.mxu0
      %v5260 = vadd.f32 0.0, %v5259
      %v5261 = vpop.f32.mrf.mxu0
      %v5262 = vpop.f32.mrf.mxu0
      %v5263 = vadd.f32 0.0, %v5262
      %v5264 = vpop.f32.mrf.mxu0
      %5265 = vmatprep.mubr.bf16.mxu0 0
      %5266 = vmatmul.mubr.bf16.gmra.mxu0 %v4987
      %v5267 = vpop.f32.mrf.mxu0
      %v5268 = vadd.f32 0.0, %v5267
      %v5269 = vpop.f32.mrf.mxu0
      %v5270 = vpop.f32.mrf.mxu0
      %v5271 = vadd.f32 0.0, %v5270
      %v5272 = vpop.f32.mrf.mxu0
      %5273 = vmatprep.mubr.bf16.mxu0 0
      %5274 = vmatmul.mubr.bf16.gmra.mxu0 %v4990
      %v5275 = vpop.f32.mrf.mxu0
      %v5276 = vadd.f32 0.0, %v5275
      %v5277 = vpop.f32.mrf.mxu0
      %v5278 = vpop.f32.mrf.mxu0
      %v5279 = vadd.f32 0.0, %v5278
      %v5280 = vpop.f32.mrf.mxu0
      %5281 = vmatprep.mubr.bf16.mxu0 0
      %5282 = vmatmul.mubr.bf16.gmra.mxu0 %v4993
      %v5283 = vpop.f32.mrf.mxu0
      %v5284 = vadd.f32 0.0, %v5283
      %v5285 = vpop.f32.mrf.mxu0
      %v5286 = vpop.f32.mrf.mxu0
      %v5287 = vadd.f32 0.0, %v5286
      %v5288 = vpop.f32.mrf.mxu0
      %5289 = vmatprep.mubr.bf16.mxu0 0
      %5290 = vmatmul.mubr.bf16.gmra.mxu0 %v4996
      %v5291 = vpop.f32.mrf.mxu0
      %v5292 = vadd.f32 0.0, %v5291
      %v5293 = vpop.f32.mrf.mxu0
      %v5294 = vpop.f32.mrf.mxu0
      %v5295 = vadd.f32 0.0, %v5294
      %v5296 = vpop.f32.mrf.mxu0
      %5297 = vmatprep.mubr.bf16.mxu0 0
      %5298 = vmatmul.mubr.bf16.gmra.mxu0 %v4999
      %v5299 = vpop.f32.mrf.mxu0
      %v5300 = vadd.f32 0.0, %v5299
      %v5301 = vpop.f32.mrf.mxu0
      %v5302 = vpop.f32.mrf.mxu0
      %v5303 = vadd.f32 0.0, %v5302
      %v5304 = vpop.f32.mrf.mxu0
      %5305 = vmatprep.mubr.bf16.mxu0 0
      %5306 = vmatmul.mubr.bf16.gmra.mxu0 %v5002
      %v5307 = vpop.f32.mrf.mxu0
      %v5308 = vadd.f32 0.0, %v5307
      %v5309 = vpop.f32.mrf.mxu0
      %v5310 = vpop.f32.mrf.mxu0
      %v5311 = vadd.f32 0.0, %v5310
      %v5312 = vpop.f32.mrf.mxu0
      %5313 = vmatprep.mubr.bf16.mxu0 0
      %5314 = vmatmul.mubr.bf16.gmra.mxu0 %v5005
      %v5315 = vpop.f32.mrf.mxu0
      %v5316 = vadd.f32 0.0, %v5315
      %v5317 = vpop.f32.mrf.mxu0
      %v5318 = vpop.f32.mrf.mxu0
      %v5319 = vadd.f32 0.0, %v5318
      %v5320 = vpop.f32.mrf.mxu0
      %5321 = vmatprep.mubr.bf16.mxu0 0
      %5322 = vmatmul.mubr.bf16.gmra.mxu0 %v5008
      %v5323 = vpop.f32.mrf.mxu0
      %v5324 = vadd.f32 0.0, %v5323
      %v5325 = vpop.f32.mrf.mxu0
      %v5326 = vpop.f32.mrf.mxu0
      %v5327 = vadd.f32 0.0, %v5326
      %v5328 = vpop.f32.mrf.mxu0
      %5329 = vmatprep.mubr.bf16.mxu0 0
      %5330 = vmatmul.mubr.bf16.gmra.mxu0 %v5011
      %v5331 = vpop.f32.mrf.mxu0
      %v5332 = vadd.f32 0.0, %v5331
      %v5333 = vpop.f32.mrf.mxu0
      %v5334 = vpop.f32.mrf.mxu0
      %v5335 = vadd.f32 0.0, %v5334
      %v5336 = vpop.f32.mrf.mxu0
      %5337 = vmatprep.mubr.bf16.mxu0 0
      %5338 = vmatmul.mubr.bf16.gmra.mxu0 %v5014
      %v5339 = vpop.f32.mrf.mxu0
      %v5340 = vadd.f32 0.0, %v5339
      %v5341 = vpop.f32.mrf.mxu0
      %v5342 = vpop.f32.mrf.mxu0
      %v5343 = vadd.f32 0.0, %v5342
      %v5344 = vpop.f32.mrf.mxu0
      %5345 = vmatprep.mubr.bf16.mxu0 0
      %5346 = vmatmul.mubr.bf16.gmra.mxu0 %v5017
      %v5347 = vpop.f32.mrf.mxu0
      %v5348 = vadd.f32 0.0, %v5347
      %v5349 = vpop.f32.mrf.mxu0
      %v5350 = vpop.f32.mrf.mxu0
      %v5351 = vadd.f32 0.0, %v5350
      %v5352 = vpop.f32.mrf.mxu0
      %5353 = vmatprep.mubr.bf16.mxu0 0
      %5354 = vmatmul.mubr.bf16.gmra.mxu0 %v5020
      %v5355 = vpop.f32.mrf.mxu0
      %v5356 = vadd.f32 0.0, %v5355
      %v5357 = vpop.f32.mrf.mxu0
      %v5358 = vpop.f32.mrf.mxu0
      %v5359 = vadd.f32 0.0, %v5358
      %v5360 = vpop.f32.mrf.mxu0
      %5361 = vmatprep.mubr.bf16.mxu0 0
      %5362 = vmatmul.mubr.bf16.gmra.mxu0 %v5023
      %v5363 = vpop.f32.mrf.mxu0
      %v5364 = vadd.f32 0.0, %v5363
      %v5365 = vpop.f32.mrf.mxu0
      %v5366 = vpop.f32.mrf.mxu0
      %v5367 = vadd.f32 0.0, %v5366
      %v5368 = vpop.f32.mrf.mxu0
      %5369 = vmatprep.mubr.bf16.mxu0 0
      %5370 = vmatmul.mubr.bf16.gmra.mxu0 %v5026
      %v5371 = vpop.f32.mrf.mxu0
      %v5372 = vadd.f32 0.0, %v5371
      %v5373 = vpop.f32.mrf.mxu0
      %v5374 = vpop.f32.mrf.mxu0
      %v5375 = vadd.f32 0.0, %v5374
      %v5376 = vpop.f32.mrf.mxu0
      %5377 = vmatprep.mubr.bf16.mxu0 0
      %5378 = vmatmul.mubr.bf16.gmra.mxu0 %v5029
      %v5379 = vpop.f32.mrf.mxu0
      %v5380 = vadd.f32 0.0, %v5379
      %v5381 = vpop.f32.mrf.mxu0
      %v5382 = vpop.f32.mrf.mxu0
      %v5383 = vadd.f32 0.0, %v5382
      %v5384 = vpop.f32.mrf.mxu0
      %5385 = vmatprep.mubr.bf16.mxu0 0
      %5386 = vmatmul.mubr.bf16.gmra.mxu0 %v5032
      %v5387 = vpop.f32.mrf.mxu0
      %v5388 = vadd.f32 0.0, %v5387
      %v5389 = vpop.f32.mrf.mxu0
      %v5390 = vpop.f32.mrf.mxu0
      %v5391 = vadd.f32 0.0, %v5390
      %v5392 = vpop.f32.mrf.mxu0
      %5393 = vmatprep.mubr.bf16.mxu0 0
      %5394 = vmatmul.mubr.bf16.gmra.mxu0 %v5035
      %v5395 = vpop.f32.mrf.mxu0
      %v5396 = vadd.f32 0.0, %v5395
      %v5397 = vpop.f32.mrf.mxu0
      %v5398 = vpop.f32.mrf.mxu0
      %v5399 = vadd.f32 0.0, %v5398
      %v5400 = vpop.f32.mrf.mxu0
      %5401 = vmatprep.mubr.bf16.mxu0 0
      %5402 = vmatmul.mubr.bf16.gmra.mxu0 %v5038
      %v5403 = vpop.f32.mrf.mxu0
      %v5404 = vadd.f32 0.0, %v5403
      %v5405 = vpop.f32.mrf.mxu0
      %v5406 = vpop.f32.mrf.mxu0
      %v5407 = vadd.f32 0.0, %v5406
      %v5408 = vpop.f32.mrf.mxu0
      %5409 = vmatprep.mubr.bf16.mxu0 0
      %5410 = vmatmul.mubr.bf16.gmra.mxu0 %v5041
      %v5411 = vpop.f32.mrf.mxu0
      %v5412 = vadd.f32 0.0, %v5411
      %v5413 = vpop.f32.mrf.mxu0
      %v5414 = vpop.f32.mrf.mxu0
      %v5415 = vadd.f32 0.0, %v5414
      %v5416 = vpop.f32.mrf.mxu0
      %5417 = vmatprep.mubr.bf16.mxu0 0
      %5418 = vmatmul.mubr.bf16.gmra.mxu0 %v5044
      %v5419 = vpop.f32.mrf.mxu0
      %v5420 = vadd.f32 0.0, %v5419
      %v5421 = vpop.f32.mrf.mxu0
      %v5422 = vpop.f32.mrf.mxu0
      %v5423 = vadd.f32 0.0, %v5422
      %v5424 = vpop.f32.mrf.mxu0
      %5425 = vmatprep.mubr.bf16.mxu0 0
      %5426 = vmatmul.mubr.bf16.gmra.mxu0 %v5047
      %v5427 = vpop.f32.mrf.mxu0
      %v5428 = vadd.f32 0.0, %v5427
      %v5429 = vpop.f32.mrf.mxu0
      %v5430 = vpop.f32.mrf.mxu0
      %v5431 = vadd.f32 0.0, %v5430
      %v5432 = vpop.f32.mrf.mxu0
      %5433 = vmatprep.mubr.bf16.mxu0 0
      %5434 = vmatmul.mubr.bf16.gmra.mxu0 %v5050
      %v5435 = vpop.f32.mrf.mxu0
      %v5436 = vadd.f32 0.0, %v5435
      %v5437 = vpop.f32.mrf.mxu0
      %v5438 = vpop.f32.mrf.mxu0
      %v5439 = vadd.f32 0.0, %v5438
      %v5440 = vpop.f32.mrf.mxu0
      %5441 = vmatprep.mubr.bf16.mxu0 0
      %5442 = vmatmul.mubr.bf16.gmra.mxu0 %v5053
      %v5443 = vpop.f32.mrf.mxu0
      %v5444 = vadd.f32 0.0, %v5443
      %v5445 = vpop.f32.mrf.mxu0
      %v5446 = vpop.f32.mrf.mxu0
      %v5447 = vadd.f32 0.0, %v5446
      %v5448 = vpop.f32.mrf.mxu0
      %5449 = vmatprep.mubr.bf16.mxu0 0
      %5450 = vmatmul.mubr.bf16.gmra.mxu0 %v5056
      %v5451 = vpop.f32.mrf.mxu0
      %v5452 = vadd.f32 0.0, %v5451
      %v5453 = vpop.f32.mrf.mxu0
      %v5454 = vpop.f32.mrf.mxu0
      %v5455 = vadd.f32 0.0, %v5454
      %v5456 = vpop.f32.mrf.mxu0
      %5457 = vmatprep.mubr.bf16.mxu0 0
      %5458 = vmatmul.mubr.bf16.gmra.mxu0 %v5059
      %v5459 = vpop.f32.mrf.mxu0
      %v5460 = vadd.f32 0.0, %v5459
      %v5461 = vpop.f32.mrf.mxu0
      %v5462 = vpop.f32.mrf.mxu0
      %v5463 = vadd.f32 0.0, %v5462
      %v5464 = vpop.f32.mrf.mxu0
      %5465 = vmatprep.mubr.bf16.mxu0 0
      %5466 = vmatmul.mubr.bf16.gmra.mxu0 %v5062
      %v5467 = vpop.f32.mrf.mxu0
      %v5468 = vadd.f32 0.0, %v5467
      %v5469 = vpop.f32.mrf.mxu0
      %v5470 = vpop.f32.mrf.mxu0
      %v5471 = vadd.f32 0.0, %v5470
      %v5472 = vpop.f32.mrf.mxu0
      %5473 = vmatprep.mubr.bf16.mxu0 0
      %5474 = vmatmul.mubr.bf16.gmra.mxu0 %v5065
      %v5475 = vpop.f32.mrf.mxu0
      %v5476 = vadd.f32 0.0, %v5475
      %v5477 = vpop.f32.mrf.mxu0
      %v5478 = vpop.f32.mrf.mxu0
      %v5479 = vadd.f32 0.0, %v5478
      %v5480 = vpop.f32.mrf.mxu0
      %5481 = vmatprep.mubr.bf16.mxu0 0
      %5482 = vmatmul.mubr.bf16.gmra.mxu0 %v5068
      %v5483 = vpop.f32.mrf.mxu0
      %v5484 = vadd.f32 0.0, %v5483
      %v5485 = vpop.f32.mrf.mxu0
      %v5486 = vpop.f32.mrf.mxu0
      %v5487 = vadd.f32 0.0, %v5486
      %v5488 = vpop.f32.mrf.mxu0
      %5489 = vmatprep.mubr.bf16.mxu0 0
      %5490 = vmatmul.mubr.bf16.gmra.mxu0 %v5071
      %v5491 = vpop.f32.mrf.mxu0
      %v5492 = vadd.f32 0.0, %v5491
      %v5493 = vpop.f32.mrf.mxu0
      %v5494 = vpop.f32.mrf.mxu0
      %v5495 = vadd.f32 0.0, %v5494
      %v5496 = vpop.f32.mrf.mxu0
      %5497 = vmatprep.mubr.bf16.mxu0 0
      %5498 = vmatmul.mubr.bf16.gmra.mxu0 %v5074
      %v5499 = vpop.f32.mrf.mxu0
      %v5500 = vadd.f32 0.0, %v5499
      %v5501 = vpop.f32.mrf.mxu0
      %v5502 = vpop.f32.mrf.mxu0
      %v5503 = vadd.f32 0.0, %v5502
      %v5504 = vpop.f32.mrf.mxu0
      %5505 = vmatprep.mubr.bf16.mxu0 0
      %5506 = vmatmul.mubr.bf16.gmra.mxu0 %v5077
      %v5507 = vpop.f32.mrf.mxu0
      %v5508 = vadd.f32 0.0, %v5507
      %v5509 = vpop.f32.mrf.mxu0
      %v5510 = vpop.f32.mrf.mxu0
      %v5511 = vadd.f32 0.0, %v5510
      %v5512 = vpop.f32.mrf.mxu0
      %5513 = vmatprep.mubr.bf16.mxu0 0
      %5514 = vmatmul.mubr.bf16.gmra.mxu0 %v5080
      %v5515 = vpop.f32.mrf.mxu0
      %v5516 = vadd.f32 0.0, %v5515
      %v5517 = vpop.f32.mrf.mxu0
      %v5518 = vpop.f32.mrf.mxu0
      %v5519 = vadd.f32 0.0, %v5518
      %v5520 = vpop.f32.mrf.mxu0
      %5521 = vmatprep.mubr.bf16.mxu0 0
      %5522 = vmatmul.mubr.bf16.gmra.mxu0 %v5083
      %v5523 = vpop.f32.mrf.mxu0
      %v5524 = vadd.f32 0.0, %v5523
      %v5525 = vpop.f32.mrf.mxu0
      %v5526 = vpop.f32.mrf.mxu0
      %v5527 = vadd.f32 0.0, %v5526
      %v5528 = vpop.f32.mrf.mxu0
      %5529 = vmatprep.mubr.bf16.mxu0 0
      %5530 = vmatmul.mubr.bf16.gmra.mxu0 %v5086
      %v5531 = vpop.f32.mrf.mxu0
      %v5532 = vadd.f32 0.0, %v5531
      %v5533 = vpop.f32.mrf.mxu0
      %v5534 = vpop.f32.mrf.mxu0
      %v5535 = vadd.f32 0.0, %v5534
      %v5536 = vpop.f32.mrf.mxu0
      %5537 = vmatprep.mubr.bf16.mxu0 0
      %5538 = vmatmul.mubr.bf16.gmra.mxu0 %v5089
      %v5539 = vpop.f32.mrf.mxu0
      %v5540 = vadd.f32 0.0, %v5539
      %v5541 = vpop.f32.mrf.mxu0
      %v5542 = vpop.f32.mrf.mxu0
      %v5543 = vadd.f32 0.0, %v5542
      %v5544 = vpop.f32.mrf.mxu0
      %5545 = vmatprep.mubr.bf16.mxu0 0
      %5546 = vmatmul.mubr.bf16.gmra.mxu0 %v5092
      %v5547 = vpop.f32.mrf.mxu0
      %v5548 = vadd.f32 0.0, %v5547
      %v5549 = vpop.f32.mrf.mxu0
      %v5550 = vpop.f32.mrf.mxu0
      %v5551 = vpop.f32.mrf.mxu0
      %5552 = vdwg.mxu0
      %v5553 = vadd.f32 %v4670, %v5132
      %v5554 = vadd.f32 %v4671, %v5135
      %v5555 = vadd.f32 %v4672, %v5140
      %v5556 = vadd.f32 %v4673, %v5143
      %v5557 = vadd.f32 %v4674, %v5148
      %v5558 = vadd.f32 %v4675, %v5151
      %v5559 = vadd.f32 %v4676, %v5156
      %v5560 = vadd.f32 %v4677, %v5159
      %v5561 = vadd.f32 %v4678, %v5164
      %v5562 = vadd.f32 %v4679, %v5167
      %v5563 = vadd.f32 %v4680, %v5172
      %v5564 = vadd.f32 %v4681, %v5175
      %v5565 = vadd.f32 %v4682, %v5180
      %v5566 = vadd.f32 %v4683, %v5183
      %v5567 = vadd.f32 %v4684, %v5188
      %v5568 = vadd.f32 %v4685, %v5191
      %v5569 = vadd.f32 %v4686, %v5196
      %v5570 = vadd.f32 %v4687, %v5199
      %v5571 = vadd.f32 %v4688, %v5204
      %v5572 = vadd.f32 %v4689, %v5207
      %v5573 = vadd.f32 %v4690, %v5212
      %v5574 = vadd.f32 %v4691, %v5215
      %v5575 = vadd.f32 %v4692, %v5220
      %v5576 = vadd.f32 %v4693, %v5223
      %v5577 = vadd.f32 %v4694, %v5228
      %v5578 = vadd.f32 %v4695, %v5231
      %v5579 = vadd.f32 %v4696, %v5236
      %v5580 = vadd.f32 %v4697, %v5239
      %v5581 = vadd.f32 %v4698, %v5244
      %v5582 = vadd.f32 %v4699, %v5247
      %v5583 = vadd.f32 %v4700, %v5252
      %v5584 = vadd.f32 %v4701, %v5255
      %v5585 = vadd.f32 %v4702, %v5260
      %v5586 = vadd.f32 %v4703, %v5263
      %v5587 = vadd.f32 %v4704, %v5268
      %v5588 = vadd.f32 %v4705, %v5271
      %v5589 = vadd.f32 %v4706, %v5276
      %v5590 = vadd.f32 %v4707, %v5279
      %v5591 = vadd.f32 %v4708, %v5284
      %v5592 = vadd.f32 %v4709, %v5287
      %v5593 = vadd.f32 %v4710, %v5292
      %v5594 = vadd.f32 %v4711, %v5295
      %v5595 = vadd.f32 %v4712, %v5300
      %v5596 = vadd.f32 %v4713, %v5303
      %v5597 = vadd.f32 %v4714, %v5308
      %v5598 = vadd.f32 %v4715, %v5311
      %v5599 = vadd.f32 %v4716, %v5316
      %v5600 = vadd.f32 %v4717, %v5319
      %v5601 = vadd.f32 %v4718, %v5324
      %v5602 = vadd.f32 %v4719, %v5327
      %v5603 = vadd.f32 %v4720, %v5332
      %v5604 = vadd.f32 %v4721, %v5335
      %v5605 = vadd.f32 %v4722, %v5340
      %v5606 = vadd.f32 %v4723, %v5343
      %v5607 = vadd.f32 %v4724, %v5348
      %v5608 = vadd.f32 %v4725, %v5351
      %v5609 = vadd.f32 %v4726, %v5356
      %v5610 = vadd.f32 %v4727, %v5359
      %v5611 = vadd.f32 %v4728, %v5364
      %v5612 = vadd.f32 %v4729, %v5367
      %v5613 = vadd.f32 %v4730, %v5372
      %v5614 = vadd.f32 %v4731, %v5375
      %v5615 = vadd.f32 %v4732, %v5380
      %v5616 = vadd.f32 %v4733, %v5383
      %v5617 = vadd.f32 %v4734, %v5388
      %v5618 = vadd.f32 %v4735, %v5391
      %v5619 = vadd.f32 %v4736, %v5396
      %v5620 = vadd.f32 %v4737, %v5399
      %v5621 = vadd.f32 %v4738, %v5404
      %v5622 = vadd.f32 %v4739, %v5407
      %v5623 = vadd.f32 %v4740, %v5412
      %v5624 = vadd.f32 %v4741, %v5415
      %v5625 = vadd.f32 %v4742, %v5420
      %v5626 = vadd.f32 %v4743, %v5423
      %v5627 = vadd.f32 %v4744, %v5428
      %v5628 = vadd.f32 %v4745, %v5431
      %v5629 = vadd.f32 %v4746, %v5436
      %v5630 = vadd.f32 %v4747, %v5439
      %v5631 = vadd.f32 %v4748, %v5444
      %v5632 = vadd.f32 %v4749, %v5447
      %v5633 = vadd.f32 %v4750, %v5452
      %v5634 = vadd.f32 %v4751, %v5455
      %v5635 = vadd.f32 %v4752, %v5460
      %v5636 = vadd.f32 %v4753, %v5463
      %v5637 = vadd.f32 %v4754, %v5468
      %v5638 = vadd.f32 %v4755, %v5471
      %v5639 = vadd.f32 %v4756, %v5476
      %v5640 = vadd.f32 %v4757, %v5479
      %v5641 = vadd.f32 %v4758, %v5484
      %v5642 = vadd.f32 %v4759, %v5487
      %v5643 = vadd.f32 %v4760, %v5492
      %v5644 = vadd.f32 %v4761, %v5495
      %v5645 = vadd.f32 %v4762, %v5500
      %v5646 = vadd.f32 %v4763, %v5503
      %v5647 = vadd.f32 %v4764, %v5508
      %v5648 = vadd.f32 %v4765, %v5511
      %v5649 = vadd.f32 %v4766, %v5516
      %v5650 = vadd.f32 %v4767, %v5519
      %v5651 = vadd.f32 %v4768, %v5524
      %v5652 = vadd.f32 %v4769, %v5527
      %v5653 = vadd.f32 %v4770, %v5532
      %v5654 = vadd.f32 %v4771, %v5535
      %v5655 = vadd.f32 %v4772, %v5540
      %v5656 = vadd.f32 %v4773, %v5543
      %v5657 = vadd.f32 %v4774, %v5548
      %v5658 = vld [vmem:[#allocation2 + $0x3c] sm:$0xff]
      %v5659 = vld [vmem:[#allocation2 + $0x44] sm:$0xff]
      %v5660 = vld [vmem:[#allocation2 + $0x4c] sm:$0xff]
      %v5661 = vld [vmem:[#allocation2 + $0x54] sm:$0xff]
      %v5662 = vld [vmem:[#allocation2 + $0x5c] sm:$0xff]
      %v5663 = vld [vmem:[#allocation2 + $0x64] sm:$0xff]
      %v5664 = vld [vmem:[#allocation2 + $0x6c] sm:$0xff]
      %v5665 = vld [vmem:[#allocation2 + $0x74] sm:$0xff]
      %v5666 = vld [vmem:[#allocation2 + $0x7c] sm:$0xff]
      %v5667 = vld [vmem:[#allocation2 + $0x84] sm:$0xff]
      %v5668 = vld [vmem:[#allocation2 + $0x8c] sm:$0xff]
      %v5669 = vld [vmem:[#allocation2 + $0x94] sm:$0xff]
      %v5670 = vld [vmem:[#allocation2 + $0x9c] sm:$0xff]
      %v5671 = vld [vmem:[#allocation2 + $0xa4] sm:$0xff]
      %v5672 = vld [vmem:[#allocation2 + $0xac] sm:$0xff]
      %v5673 = vld [vmem:[#allocation2 + $0xb4] sm:$0xff]
      %v5674 = vld [vmem:[#allocation2 + $0xbc] sm:$0xff]
      %v5675 = vld [vmem:[#allocation2 + $0xc4] sm:$0xff]
      %v5676 = vld [vmem:[#allocation2 + $0xcc] sm:$0xff]
      %v5677 = vld [vmem:[#allocation2 + $0xd4] sm:$0xff]
      %v5678 = vld [vmem:[#allocation2 + $0xdc] sm:$0xff]
      %v5679 = vld [vmem:[#allocation2 + $0xe4] sm:$0xff]
      %v5680 = vld [vmem:[#allocation2 + $0xec] sm:$0xff]
      %v5681 = vld [vmem:[#allocation2 + $0xf4] sm:$0xff]
      %v5682 = vld [vmem:[#allocation2 + $0xfc] sm:$0xff]
      %v5683 = vld [vmem:[#allocation2 + $0x104] sm:$0xff]
      %v5684 = vld [vmem:[#allocation2 + $0x10c] sm:$0xff]
      %v5685 = vld [vmem:[#allocation2 + $0x114] sm:$0xff]
      %v5686 = vld [vmem:[#allocation2 + $0x11c] sm:$0xff]
      %v5687 = vld [vmem:[#allocation2 + $0x124] sm:$0xff]
      %v5688 = vld [vmem:[#allocation2 + $0x12c] sm:$0xff]
      %v5689 = vld [vmem:[#allocation2 + $0x134] sm:$0xff]
      %v5690 = vld [vmem:[#allocation2 + $0x13c] sm:$0xff]
      %v5691 = vld [vmem:[#allocation2 + $0x144] sm:$0xff]
      %v5692 = vld [vmem:[#allocation2 + $0x14c] sm:$0xff]
      %v5693 = vld [vmem:[#allocation2 + $0x154] sm:$0xff]
      %v5694 = vld [vmem:[#allocation2 + $0x15c] sm:$0xff]
      %v5695 = vld [vmem:[#allocation2 + $0x164] sm:$0xff]
      %v5696 = vld [vmem:[#allocation2 + $0x16c] sm:$0xff]
      %v5697 = vld [vmem:[#allocation2 + $0x174] sm:$0xff]
      %v5698 = vld [vmem:[#allocation2 + $0x17c] sm:$0xff]
      %v5699 = vld [vmem:[#allocation2 + $0x184] sm:$0xff]
      %v5700 = vld [vmem:[#allocation2 + $0x18c] sm:$0xff]
      %v5701 = vld [vmem:[#allocation2 + $0x194] sm:$0xff]
      %v5702 = vld [vmem:[#allocation2 + $0x19c] sm:$0xff]
      %v5703 = vld [vmem:[#allocation2 + $0x1a4] sm:$0xff]
      %v5704 = vld [vmem:[#allocation2 + $0x1ac] sm:$0xff]
      %v5705 = vld [vmem:[#allocation2 + $0x1b4] sm:$0xff]
      %v5706 = vld [vmem:[#allocation2 + $0x1bc] sm:$0xff]
      %v5707 = vld [vmem:[#allocation2 + $0x1c4] sm:$0xff]
      %v5708 = vld [vmem:[#allocation2 + $0x1cc] sm:$0xff]
      %v5709 = vld [vmem:[#allocation2 + $0x1d4] sm:$0xff]
      %v5710 = vld [vmem:[#allocation2 + $0x1dc] sm:$0xff]
      %v5711 = vld [vmem:[#allocation2 + $0x1e4] sm:$0xff]
      %v5712 = vld [vmem:[#allocation2 + $0x1ec] sm:$0xff]
      %v5713 = vld [vmem:[#allocation2 + $0x1f4] sm:$0xff]
      %v5714 = vld [vmem:[#allocation2 + $0x1fc] sm:$0xff]
      %v5715 = vld [vmem:[#allocation2 + $0x204] sm:$0xff]
      %v5716 = vld [vmem:[#allocation2 + $0x20c] sm:$0xff]
      %v5717 = vld [vmem:[#allocation2 + $0x214] sm:$0xff]
      %v5718 = vld [vmem:[#allocation2 + $0x21c] sm:$0xff]
      %v5719 = vld [vmem:[#allocation2 + $0x224] sm:$0xff]
      %v5720 = vld [vmem:[#allocation2 + $0x22c] sm:$0xff]
      %v5721 = vld [vmem:[#allocation2 + $0x234] sm:$0xff]
      %v5722 = vld [vmem:[#allocation2 + $0x23c] sm:$0xff]
      %v5723 = vld [vmem:[#allocation2 + $0x244] sm:$0xff]
      %v5724 = vld [vmem:[#allocation2 + $0x24c] sm:$0xff]
      %v5725 = vld [vmem:[#allocation2 + $0x254] sm:$0xff]
      %v5726 = vld [vmem:[#allocation2 + $0x25c] sm:$0xff]
      %v5727 = vld [vmem:[#allocation2 + $0x264] sm:$0xff]
      %v5728 = vld [vmem:[#allocation2 + $0x26c] sm:$0xff]
      %v5729 = vld [vmem:[#allocation2 + $0x274] sm:$0xff]
      %v5730 = vld [vmem:[#allocation2 + $0x27c] sm:$0xff]
      %v5731 = vld [vmem:[#allocation2 + $0x284] sm:$0xff]
      %v5732 = vld [vmem:[#allocation2 + $0x28c] sm:$0xff]
      %v5733 = vld [vmem:[#allocation2 + $0x294] sm:$0xff]
      %v5734 = vld [vmem:[#allocation2 + $0x29c] sm:$0xff]
      %v5735 = vld [vmem:[#allocation2 + $0x2a4] sm:$0xff]
      %v5736 = vld [vmem:[#allocation2 + $0x2ac] sm:$0xff]
      %v5737 = vld [vmem:[#allocation2 + $0x2b4] sm:$0xff]
      %v5738 = vld [vmem:[#allocation2 + $0x2bc] sm:$0xff]
      %v5739 = vld [vmem:[#allocation2 + $0x2c4] sm:$0xff]
      %v5740 = vld [vmem:[#allocation2 + $0x2cc] sm:$0xff]
      %v5741 = vld [vmem:[#allocation2 + $0x2d4] sm:$0xff]
      %v5742 = vld [vmem:[#allocation2 + $0x2dc] sm:$0xff]
      %v5743 = vld [vmem:[#allocation2 + $0x2e4] sm:$0xff]
      %v5744 = vld [vmem:[#allocation2 + $0x2ec] sm:$0xff]
      %v5745 = vld [vmem:[#allocation2 + $0x2f4] sm:$0xff]
      %v5746 = vld [vmem:[#allocation2 + $0x2fc] sm:$0xff]
      %v5747 = vld [vmem:[#allocation2 + $0x304] sm:$0xff]
      %v5748 = vld [vmem:[#allocation2 + $0x30c] sm:$0xff]
      %v5749 = vld [vmem:[#allocation2 + $0x314] sm:$0xff]
      %v5750 = vld [vmem:[#allocation2 + $0x31c] sm:$0xff]
      %v5751 = vld [vmem:[#allocation2 + $0x324] sm:$0xff]
      %v5752 = vld [vmem:[#allocation2 + $0x32c] sm:$0xff]
      %v5753 = vld [vmem:[#allocation2 + $0x334] sm:$0xff]
      %v5754 = vld [vmem:[#allocation2 + $0x33c] sm:$0xff]
      %v5755 = vld [vmem:[#allocation2 + $0x344] sm:$0xff]
      %v5756 = vld [vmem:[#allocation2 + $0x34c] sm:$0xff]
      %v5757 = vld [vmem:[#allocation2 + $0x354] sm:$0xff]
      %v5758 = vld [vmem:[#allocation2 + $0x35c] sm:$0xff]
      %v5759 = vld [vmem:[#allocation2 + $0x364] sm:$0xff]
      %v5760 = vld [vmem:[#allocation2 + $0x36c] sm:$0xff]
      %v5761 = vld [vmem:[#allocation2 + $0x374] sm:$0xff]
      %v5762 = vld [vmem:[#allocation2 + $0x37c] sm:$0x3f]
      %v5763 = vpack.c.bf16 %v5659, %v5658
      %v5764 = vpack.c.bf16 %v5661, %v5660
      %v5765 = vpack.c.bf16 %v5663, %v5662
      %v5766 = vpack.c.bf16 %v5665, %v5664
      %v5767 = vpack.c.bf16 %v5667, %v5666
      %v5768 = vpack.c.bf16 %v5669, %v5668
      %v5769 = vpack.c.bf16 %v5671, %v5670
      %v5770 = vpack.c.bf16 %v5673, %v5672
      %v5771 = vpack.c.bf16 %v5675, %v5674
      %v5772 = vpack.c.bf16 %v5677, %v5676
      %v5773 = vpack.c.bf16 %v5679, %v5678
      %v5774 = vpack.c.bf16 %v5681, %v5680
      %v5775 = vpack.c.bf16 %v5683, %v5682
      %v5776 = vpack.c.bf16 %v5685, %v5684
      %v5777 = vpack.c.bf16 %v5687, %v5686
      %v5778 = vpack.c.bf16 %v5689, %v5688
      %v5779 = vpack.c.bf16 %v5691, %v5690
      %v5780 = vpack.c.bf16 %v5693, %v5692
      %v5781 = vpack.c.bf16 %v5695, %v5694
      %v5782 = vpack.c.bf16 %v5697, %v5696
      %v5783 = vpack.c.bf16 %v5699, %v5698
      %v5784 = vpack.c.bf16 %v5701, %v5700
      %v5785 = vpack.c.bf16 %v5703, %v5702
      %v5786 = vpack.c.bf16 %v5705, %v5704
      %v5787 = vpack.c.bf16 %v5707, %v5706
      %v5788 = vpack.c.bf16 %v5709, %v5708
      %v5789 = vpack.c.bf16 %v5711, %v5710
      %v5790 = vpack.c.bf16 %v5713, %v5712
      %v5791 = vpack.c.bf16 %v5715, %v5714
      %v5792 = vpack.c.bf16 %v5717, %v5716
      %v5793 = vpack.c.bf16 %v5719, %v5718
      %v5794 = vpack.c.bf16 %v5721, %v5720
      %v5795 = vpack.c.bf16 %v5723, %v5722
      %v5796 = vpack.c.bf16 %v5725, %v5724
      %v5797 = vpack.c.bf16 %v5727, %v5726
      %v5798 = vpack.c.bf16 %v5729, %v5728
      %v5799 = vpack.c.bf16 %v5731, %v5730
      %v5800 = vpack.c.bf16 %v5733, %v5732
      %v5801 = vpack.c.bf16 %v5735, %v5734
      %v5802 = vpack.c.bf16 %v5737, %v5736
      %v5803 = vpack.c.bf16 %v5739, %v5738
      %v5804 = vpack.c.bf16 %v5741, %v5740
      %v5805 = vpack.c.bf16 %v5743, %v5742
      %v5806 = vpack.c.bf16 %v5745, %v5744
      %v5807 = vpack.c.bf16 %v5747, %v5746
      %v5808 = vpack.c.bf16 %v5749, %v5748
      %v5809 = vpack.c.bf16 %v5751, %v5750
      %v5810 = vpack.c.bf16 %v5753, %v5752
      %v5811 = vpack.c.bf16 %v5755, %v5754
      %v5812 = vpack.c.bf16 %v5757, %v5756
      %v5813 = vpack.c.bf16 %v5759, %v5758
      %v5814 = vpack.c.bf16 %v5761, %v5760
      %v5815 = vpack.c.bf16 %v5762, %v5762
      %s5816 = scalar_lea.vmem %s1, 12
      %v5817 = vld [vmem:[%s5816] sm:$0x3]
      %v5819 = vsel %vm452, %v5763, 0
      %v5822 = vsel %vm452, %v5764, 0
      %v5825 = vsel %vm452, %v5765, 0
      %v5828 = vsel %vm452, %v5766, 0
      %v5831 = vsel %vm452, %v5767, 0
      %v5834 = vsel %vm452, %v5768, 0
      %v5837 = vsel %vm452, %v5769, 0
      %v5840 = vsel %vm452, %v5770, 0
      %v5843 = vsel %vm452, %v5771, 0
      %v5846 = vsel %vm452, %v5772, 0
      %v5849 = vsel %vm452, %v5773, 0
      %v5852 = vsel %vm452, %v5774, 0
      %v5855 = vsel %vm452, %v5775, 0
      %v5858 = vsel %vm452, %v5776, 0
      %v5861 = vsel %vm452, %v5777, 0
      %v5864 = vsel %vm452, %v5778, 0
      %v5867 = vsel %vm452, %v5779, 0
      %v5870 = vsel %vm452, %v5780, 0
      %v5873 = vsel %vm452, %v5781, 0
      %v5876 = vsel %vm452, %v5782, 0
      %v5879 = vsel %vm452, %v5783, 0
      %v5882 = vsel %vm452, %v5784, 0
      %v5885 = vsel %vm452, %v5785, 0
      %v5888 = vsel %vm452, %v5786, 0
      %v5891 = vsel %vm452, %v5787, 0
      %v5894 = vsel %vm452, %v5788, 0
      %v5897 = vsel %vm452, %v5789, 0
      %v5900 = vsel %vm452, %v5790, 0
      %v5903 = vsel %vm452, %v5791, 0
      %v5906 = vsel %vm452, %v5792, 0
      %v5909 = vsel %vm452, %v5793, 0
      %v5912 = vsel %vm452, %v5794, 0
      %v5915 = vsel %vm452, %v5795, 0
      %v5918 = vsel %vm452, %v5796, 0
      %v5921 = vsel %vm452, %v5797, 0
      %v5924 = vsel %vm452, %v5798, 0
      %v5927 = vsel %vm452, %v5799, 0
      %v5930 = vsel %vm452, %v5800, 0
      %v5933 = vsel %vm452, %v5801, 0
      %v5936 = vsel %vm452, %v5802, 0
      %v5939 = vsel %vm452, %v5803, 0
      %v5942 = vsel %vm452, %v5804, 0
      %v5945 = vsel %vm452, %v5805, 0
      %v5948 = vsel %vm452, %v5806, 0
      %v5951 = vsel %vm452, %v5807, 0
      %v5954 = vsel %vm452, %v5808, 0
      %v5957 = vsel %vm452, %v5809, 0
      %v5960 = vsel %vm452, %v5810, 0
      %v5963 = vsel %vm452, %v5811, 0
      %v5966 = vsel %vm452, %v5812, 0
      %v5969 = vsel %vm452, %v5813, 0
      %v5972 = vsel %vm452, %v5814, 0
      %v5975 = vsel %vm452, %v5815, 0
      %v5978 = vand.u32 %v5817, %v1048
      %5980 = vmatprep.subr.bf16.mxu0 0
      %5981 = vmatpush1.bf16.msra.mxu0 0
      %5982 = vmatprep.subr.bf16.mxu0 0
      %5983 = vmatpush1.bf16.msra.mxu0 0
      %5984 = vmatprep.subr.bf16.mxu0 0
      %5985 = vmatpush1.bf16.msra.mxu0 0
      %5986 = vmatprep.subr.bf16.mxu0 0
      %5987 = vmatpush1.bf16.msra.mxu0 0
      %5988 = vmatprep.subr.bf16.mxu0 0
      %5989 = vmatpush1.bf16.msra.mxu0 0
      %5990 = vmatprep.subr.bf16.mxu0 0
      %5991 = vmatpush1.bf16.msra.mxu0 0
      %5992 = vmatprep.subr.bf16.mxu0 0
      %5993 = vmatpush1.bf16.msra.mxu0 0
      %5994 = vmatprep.subr.bf16.mxu0 0
      %5995 = vmatpush1.bf16.msra.mxu0 %v5978
      %5996 = vmatprep.subr.bf16.mxu0 0
      %5997 = vmatpush2.bf16.msra.mxu0 0
      %5998 = vmatprep.subr.bf16.mxu0 0
      %5999 = vmatpush2.bf16.msra.mxu0 0
      %6000 = vmatprep.subr.bf16.mxu0 0
      %6001 = vmatpush2.bf16.msra.mxu0 0
      %6002 = vmatprep.subr.bf16.mxu0 0
      %6003 = vmatpush2.bf16.msra.mxu0 0
      %6004 = vmatprep.subr.bf16.mxu0 0
      %6005 = vmatpush2.bf16.msra.mxu0 0
      %6006 = vmatprep.subr.bf16.mxu0 0
      %6007 = vmatpush2.bf16.msra.mxu0 0
      %6008 = vmatprep.subr.bf16.mxu0 0
      %6009 = vmatpush2.bf16.msra.mxu0 0
      %6010 = vmatprep.subr.bf16.mxu0 0
      %6011 = vmatpush2.bf16.msra.mxu0 0
      %6012 = vmatprep.mubr.bf16.mxu0 0
      %6013 = vmatmul.mubr.bf16.gmra.mxu0 %v5819
      %v6014 = vpop.f32.mrf.mxu0
      %v6015 = vadd.f32 0.0, %v6014
      %v6016 = vpop.f32.mrf.mxu0
      %v6017 = vpop.f32.mrf.mxu0
      %v6018 = vadd.f32 0.0, %v6017
      %v6019 = vpop.f32.mrf.mxu0
      %6020 = vmatprep.mubr.bf16.mxu0 0
      %6021 = vmatmul.mubr.bf16.gmra.mxu0 %v5822
      %v6022 = vpop.f32.mrf.mxu0
      %v6023 = vadd.f32 0.0, %v6022
      %v6024 = vpop.f32.mrf.mxu0
      %v6025 = vpop.f32.mrf.mxu0
      %v6026 = vadd.f32 0.0, %v6025
      %v6027 = vpop.f32.mrf.mxu0
      %6028 = vmatprep.mubr.bf16.mxu0 0
      %6029 = vmatmul.mubr.bf16.gmra.mxu0 %v5825
      %v6030 = vpop.f32.mrf.mxu0
      %v6031 = vadd.f32 0.0, %v6030
      %v6032 = vpop.f32.mrf.mxu0
      %v6033 = vpop.f32.mrf.mxu0
      %v6034 = vadd.f32 0.0, %v6033
      %v6035 = vpop.f32.mrf.mxu0
      %6036 = vmatprep.mubr.bf16.mxu0 0
      %6037 = vmatmul.mubr.bf16.gmra.mxu0 %v5828
      %v6038 = vpop.f32.mrf.mxu0
      %v6039 = vadd.f32 0.0, %v6038
      %v6040 = vpop.f32.mrf.mxu0
      %v6041 = vpop.f32.mrf.mxu0
      %v6042 = vadd.f32 0.0, %v6041
      %v6043 = vpop.f32.mrf.mxu0
      %6044 = vmatprep.mubr.bf16.mxu0 0
      %6045 = vmatmul.mubr.bf16.gmra.mxu0 %v5831
      %v6046 = vpop.f32.mrf.mxu0
      %v6047 = vadd.f32 0.0, %v6046
      %v6048 = vpop.f32.mrf.mxu0
      %v6049 = vpop.f32.mrf.mxu0
      %v6050 = vadd.f32 0.0, %v6049
      %v6051 = vpop.f32.mrf.mxu0
      %6052 = vmatprep.mubr.bf16.mxu0 0
      %6053 = vmatmul.mubr.bf16.gmra.mxu0 %v5834
      %v6054 = vpop.f32.mrf.mxu0
      %v6055 = vadd.f32 0.0, %v6054
      %v6056 = vpop.f32.mrf.mxu0
      %v6057 = vpop.f32.mrf.mxu0
      %v6058 = vadd.f32 0.0, %v6057
      %v6059 = vpop.f32.mrf.mxu0
      %6060 = vmatprep.mubr.bf16.mxu0 0
      %6061 = vmatmul.mubr.bf16.gmra.mxu0 %v5837
      %v6062 = vpop.f32.mrf.mxu0
      %v6063 = vadd.f32 0.0, %v6062
      %v6064 = vpop.f32.mrf.mxu0
      %v6065 = vpop.f32.mrf.mxu0
      %v6066 = vadd.f32 0.0, %v6065
      %v6067 = vpop.f32.mrf.mxu0
      %6068 = vmatprep.mubr.bf16.mxu0 0
      %6069 = vmatmul.mubr.bf16.gmra.mxu0 %v5840
      %v6070 = vpop.f32.mrf.mxu0
      %v6071 = vadd.f32 0.0, %v6070
      %v6072 = vpop.f32.mrf.mxu0
      %v6073 = vpop.f32.mrf.mxu0
      %v6074 = vadd.f32 0.0, %v6073
      %v6075 = vpop.f32.mrf.mxu0
      %6076 = vmatprep.mubr.bf16.mxu0 0
      %6077 = vmatmul.mubr.bf16.gmra.mxu0 %v5843
      %v6078 = vpop.f32.mrf.mxu0
      %v6079 = vadd.f32 0.0, %v6078
      %v6080 = vpop.f32.mrf.mxu0
      %v6081 = vpop.f32.mrf.mxu0
      %v6082 = vadd.f32 0.0, %v6081
      %v6083 = vpop.f32.mrf.mxu0
      %6084 = vmatprep.mubr.bf16.mxu0 0
      %6085 = vmatmul.mubr.bf16.gmra.mxu0 %v5846
      %v6086 = vpop.f32.mrf.mxu0
      %v6087 = vadd.f32 0.0, %v6086
      %v6088 = vpop.f32.mrf.mxu0
      %v6089 = vpop.f32.mrf.mxu0
      %v6090 = vadd.f32 0.0, %v6089
      %v6091 = vpop.f32.mrf.mxu0
      %6092 = vmatprep.mubr.bf16.mxu0 0
      %6093 = vmatmul.mubr.bf16.gmra.mxu0 %v5849
      %v6094 = vpop.f32.mrf.mxu0
      %v6095 = vadd.f32 0.0, %v6094
      %v6096 = vpop.f32.mrf.mxu0
      %v6097 = vpop.f32.mrf.mxu0
      %v6098 = vadd.f32 0.0, %v6097
      %v6099 = vpop.f32.mrf.mxu0
      %6100 = vmatprep.mubr.bf16.mxu0 0
      %6101 = vmatmul.mubr.bf16.gmra.mxu0 %v5852
      %v6102 = vpop.f32.mrf.mxu0
      %v6103 = vadd.f32 0.0, %v6102
      %v6104 = vpop.f32.mrf.mxu0
      %v6105 = vpop.f32.mrf.mxu0
      %v6106 = vadd.f32 0.0, %v6105
      %v6107 = vpop.f32.mrf.mxu0
      %6108 = vmatprep.mubr.bf16.mxu0 0
      %6109 = vmatmul.mubr.bf16.gmra.mxu0 %v5855
      %v6110 = vpop.f32.mrf.mxu0
      %v6111 = vadd.f32 0.0, %v6110
      %v6112 = vpop.f32.mrf.mxu0
      %v6113 = vpop.f32.mrf.mxu0
      %v6114 = vadd.f32 0.0, %v6113
      %v6115 = vpop.f32.mrf.mxu0
      %6116 = vmatprep.mubr.bf16.mxu0 0
      %6117 = vmatmul.mubr.bf16.gmra.mxu0 %v5858
      %v6118 = vpop.f32.mrf.mxu0
      %v6119 = vadd.f32 0.0, %v6118
      %v6120 = vpop.f32.mrf.mxu0
      %v6121 = vpop.f32.mrf.mxu0
      %v6122 = vadd.f32 0.0, %v6121
      %v6123 = vpop.f32.mrf.mxu0
      %6124 = vmatprep.mubr.bf16.mxu0 0
      %6125 = vmatmul.mubr.bf16.gmra.mxu0 %v5861
      %v6126 = vpop.f32.mrf.mxu0
      %v6127 = vadd.f32 0.0, %v6126
      %v6128 = vpop.f32.mrf.mxu0
      %v6129 = vpop.f32.mrf.mxu0
      %v6130 = vadd.f32 0.0, %v6129
      %v6131 = vpop.f32.mrf.mxu0
      %6132 = vmatprep.mubr.bf16.mxu0 0
      %6133 = vmatmul.mubr.bf16.gmra.mxu0 %v5864
      %v6134 = vpop.f32.mrf.mxu0
      %v6135 = vadd.f32 0.0, %v6134
      %v6136 = vpop.f32.mrf.mxu0
      %v6137 = vpop.f32.mrf.mxu0
      %v6138 = vadd.f32 0.0, %v6137
      %v6139 = vpop.f32.mrf.mxu0
      %6140 = vmatprep.mubr.bf16.mxu0 0
      %6141 = vmatmul.mubr.bf16.gmra.mxu0 %v5867
      %v6142 = vpop.f32.mrf.mxu0
      %v6143 = vadd.f32 0.0, %v6142
      %v6144 = vpop.f32.mrf.mxu0
      %v6145 = vpop.f32.mrf.mxu0
      %v6146 = vadd.f32 0.0, %v6145
      %v6147 = vpop.f32.mrf.mxu0
      %6148 = vmatprep.mubr.bf16.mxu0 0
      %6149 = vmatmul.mubr.bf16.gmra.mxu0 %v5870
      %v6150 = vpop.f32.mrf.mxu0
      %v6151 = vadd.f32 0.0, %v6150
      %v6152 = vpop.f32.mrf.mxu0
      %v6153 = vpop.f32.mrf.mxu0
      %v6154 = vadd.f32 0.0, %v6153
      %v6155 = vpop.f32.mrf.mxu0
      %6156 = vmatprep.mubr.bf16.mxu0 0
      %6157 = vmatmul.mubr.bf16.gmra.mxu0 %v5873
      %v6158 = vpop.f32.mrf.mxu0
      %v6159 = vadd.f32 0.0, %v6158
      %v6160 = vpop.f32.mrf.mxu0
      %v6161 = vpop.f32.mrf.mxu0
      %v6162 = vadd.f32 0.0, %v6161
      %v6163 = vpop.f32.mrf.mxu0
      %6164 = vmatprep.mubr.bf16.mxu0 0
      %6165 = vmatmul.mubr.bf16.gmra.mxu0 %v5876
      %v6166 = vpop.f32.mrf.mxu0
      %v6167 = vadd.f32 0.0, %v6166
      %v6168 = vpop.f32.mrf.mxu0
      %v6169 = vpop.f32.mrf.mxu0
      %v6170 = vadd.f32 0.0, %v6169
      %v6171 = vpop.f32.mrf.mxu0
      %6172 = vmatprep.mubr.bf16.mxu0 0
      %6173 = vmatmul.mubr.bf16.gmra.mxu0 %v5879
      %v6174 = vpop.f32.mrf.mxu0
      %v6175 = vadd.f32 0.0, %v6174
      %v6176 = vpop.f32.mrf.mxu0
      %v6177 = vpop.f32.mrf.mxu0
      %v6178 = vadd.f32 0.0, %v6177
      %v6179 = vpop.f32.mrf.mxu0
      %6180 = vmatprep.mubr.bf16.mxu0 0
      %6181 = vmatmul.mubr.bf16.gmra.mxu0 %v5882
      %v6182 = vpop.f32.mrf.mxu0
      %v6183 = vadd.f32 0.0, %v6182
      %v6184 = vpop.f32.mrf.mxu0
      %v6185 = vpop.f32.mrf.mxu0
      %v6186 = vadd.f32 0.0, %v6185
      %v6187 = vpop.f32.mrf.mxu0
      %6188 = vmatprep.mubr.bf16.mxu0 0
      %6189 = vmatmul.mubr.bf16.gmra.mxu0 %v5885
      %v6190 = vpop.f32.mrf.mxu0
      %v6191 = vadd.f32 0.0, %v6190
      %v6192 = vpop.f32.mrf.mxu0
      %v6193 = vpop.f32.mrf.mxu0
      %v6194 = vadd.f32 0.0, %v6193
      %v6195 = vpop.f32.mrf.mxu0
      %6196 = vmatprep.mubr.bf16.mxu0 0
      %6197 = vmatmul.mubr.bf16.gmra.mxu0 %v5888
      %v6198 = vpop.f32.mrf.mxu0
      %v6199 = vadd.f32 0.0, %v6198
      %v6200 = vpop.f32.mrf.mxu0
      %v6201 = vpop.f32.mrf.mxu0
      %v6202 = vadd.f32 0.0, %v6201
      %v6203 = vpop.f32.mrf.mxu0
      %6204 = vmatprep.mubr.bf16.mxu0 0
      %6205 = vmatmul.mubr.bf16.gmra.mxu0 %v5891
      %v6206 = vpop.f32.mrf.mxu0
      %v6207 = vadd.f32 0.0, %v6206
      %v6208 = vpop.f32.mrf.mxu0
      %v6209 = vpop.f32.mrf.mxu0
      %v6210 = vadd.f32 0.0, %v6209
      %v6211 = vpop.f32.mrf.mxu0
      %6212 = vmatprep.mubr.bf16.mxu0 0
      %6213 = vmatmul.mubr.bf16.gmra.mxu0 %v5894
      %v6214 = vpop.f32.mrf.mxu0
      %v6215 = vadd.f32 0.0, %v6214
      %v6216 = vpop.f32.mrf.mxu0
      %v6217 = vpop.f32.mrf.mxu0
      %v6218 = vadd.f32 0.0, %v6217
      %v6219 = vpop.f32.mrf.mxu0
      %6220 = vmatprep.mubr.bf16.mxu0 0
      %6221 = vmatmul.mubr.bf16.gmra.mxu0 %v5897
      %v6222 = vpop.f32.mrf.mxu0
      %v6223 = vadd.f32 0.0, %v6222
      %v6224 = vpop.f32.mrf.mxu0
      %v6225 = vpop.f32.mrf.mxu0
      %v6226 = vadd.f32 0.0, %v6225
      %v6227 = vpop.f32.mrf.mxu0
      %6228 = vmatprep.mubr.bf16.mxu0 0
      %6229 = vmatmul.mubr.bf16.gmra.mxu0 %v5900
      %v6230 = vpop.f32.mrf.mxu0
      %v6231 = vadd.f32 0.0, %v6230
      %v6232 = vpop.f32.mrf.mxu0
      %v6233 = vpop.f32.mrf.mxu0
      %v6234 = vadd.f32 0.0, %v6233
      %v6235 = vpop.f32.mrf.mxu0
      %6236 = vmatprep.mubr.bf16.mxu0 0
      %6237 = vmatmul.mubr.bf16.gmra.mxu0 %v5903
      %v6238 = vpop.f32.mrf.mxu0
      %v6239 = vadd.f32 0.0, %v6238
      %v6240 = vpop.f32.mrf.mxu0
      %v6241 = vpop.f32.mrf.mxu0
      %v6242 = vadd.f32 0.0, %v6241
      %v6243 = vpop.f32.mrf.mxu0
      %6244 = vmatprep.mubr.bf16.mxu0 0
      %6245 = vmatmul.mubr.bf16.gmra.mxu0 %v5906
      %v6246 = vpop.f32.mrf.mxu0
      %v6247 = vadd.f32 0.0, %v6246
      %v6248 = vpop.f32.mrf.mxu0
      %v6249 = vpop.f32.mrf.mxu0
      %v6250 = vadd.f32 0.0, %v6249
      %v6251 = vpop.f32.mrf.mxu0
      %6252 = vmatprep.mubr.bf16.mxu0 0
      %6253 = vmatmul.mubr.bf16.gmra.mxu0 %v5909
      %v6254 = vpop.f32.mrf.mxu0
      %v6255 = vadd.f32 0.0, %v6254
      %v6256 = vpop.f32.mrf.mxu0
      %v6257 = vpop.f32.mrf.mxu0
      %v6258 = vadd.f32 0.0, %v6257
      %v6259 = vpop.f32.mrf.mxu0
      %6260 = vmatprep.mubr.bf16.mxu0 0
      %6261 = vmatmul.mubr.bf16.gmra.mxu0 %v5912
      %v6262 = vpop.f32.mrf.mxu0
      %v6263 = vadd.f32 0.0, %v6262
      %v6264 = vpop.f32.mrf.mxu0
      %v6265 = vpop.f32.mrf.mxu0
      %v6266 = vadd.f32 0.0, %v6265
      %v6267 = vpop.f32.mrf.mxu0
      %6268 = vmatprep.mubr.bf16.mxu0 0
      %6269 = vmatmul.mubr.bf16.gmra.mxu0 %v5915
      %v6270 = vpop.f32.mrf.mxu0
      %v6271 = vadd.f32 0.0, %v6270
      %v6272 = vpop.f32.mrf.mxu0
      %v6273 = vpop.f32.mrf.mxu0
      %v6274 = vadd.f32 0.0, %v6273
      %v6275 = vpop.f32.mrf.mxu0
      %6276 = vmatprep.mubr.bf16.mxu0 0
      %6277 = vmatmul.mubr.bf16.gmra.mxu0 %v5918
      %v6278 = vpop.f32.mrf.mxu0
      %v6279 = vadd.f32 0.0, %v6278
      %v6280 = vpop.f32.mrf.mxu0
      %v6281 = vpop.f32.mrf.mxu0
      %v6282 = vadd.f32 0.0, %v6281
      %v6283 = vpop.f32.mrf.mxu0
      %6284 = vmatprep.mubr.bf16.mxu0 0
      %6285 = vmatmul.mubr.bf16.gmra.mxu0 %v5921
      %v6286 = vpop.f32.mrf.mxu0
      %v6287 = vadd.f32 0.0, %v6286
      %v6288 = vpop.f32.mrf.mxu0
      %v6289 = vpop.f32.mrf.mxu0
      %v6290 = vadd.f32 0.0, %v6289
      %v6291 = vpop.f32.mrf.mxu0
      %6292 = vmatprep.mubr.bf16.mxu0 0
      %6293 = vmatmul.mubr.bf16.gmra.mxu0 %v5924
      %v6294 = vpop.f32.mrf.mxu0
      %v6295 = vadd.f32 0.0, %v6294
      %v6296 = vpop.f32.mrf.mxu0
      %v6297 = vpop.f32.mrf.mxu0
      %v6298 = vadd.f32 0.0, %v6297
      %v6299 = vpop.f32.mrf.mxu0
      %6300 = vmatprep.mubr.bf16.mxu0 0
      %6301 = vmatmul.mubr.bf16.gmra.mxu0 %v5927
      %v6302 = vpop.f32.mrf.mxu0
      %v6303 = vadd.f32 0.0, %v6302
      %v6304 = vpop.f32.mrf.mxu0
      %v6305 = vpop.f32.mrf.mxu0
      %v6306 = vadd.f32 0.0, %v6305
      %v6307 = vpop.f32.mrf.mxu0
      %6308 = vmatprep.mubr.bf16.mxu0 0
      %6309 = vmatmul.mubr.bf16.gmra.mxu0 %v5930
      %v6310 = vpop.f32.mrf.mxu0
      %v6311 = vadd.f32 0.0, %v6310
      %v6312 = vpop.f32.mrf.mxu0
      %v6313 = vpop.f32.mrf.mxu0
      %v6314 = vadd.f32 0.0, %v6313
      %v6315 = vpop.f32.mrf.mxu0
      %6316 = vmatprep.mubr.bf16.mxu0 0
      %6317 = vmatmul.mubr.bf16.gmra.mxu0 %v5933
      %v6318 = vpop.f32.mrf.mxu0
      %v6319 = vadd.f32 0.0, %v6318
      %v6320 = vpop.f32.mrf.mxu0
      %v6321 = vpop.f32.mrf.mxu0
      %v6322 = vadd.f32 0.0, %v6321
      %v6323 = vpop.f32.mrf.mxu0
      %6324 = vmatprep.mubr.bf16.mxu0 0
      %6325 = vmatmul.mubr.bf16.gmra.mxu0 %v5936
      %v6326 = vpop.f32.mrf.mxu0
      %v6327 = vadd.f32 0.0, %v6326
      %v6328 = vpop.f32.mrf.mxu0
      %v6329 = vpop.f32.mrf.mxu0
      %v6330 = vadd.f32 0.0, %v6329
      %v6331 = vpop.f32.mrf.mxu0
      %6332 = vmatprep.mubr.bf16.mxu0 0
      %6333 = vmatmul.mubr.bf16.gmra.mxu0 %v5939
      %v6334 = vpop.f32.mrf.mxu0
      %v6335 = vadd.f32 0.0, %v6334
      %v6336 = vpop.f32.mrf.mxu0
      %v6337 = vpop.f32.mrf.mxu0
      %v6338 = vadd.f32 0.0, %v6337
      %v6339 = vpop.f32.mrf.mxu0
      %6340 = vmatprep.mubr.bf16.mxu0 0
      %6341 = vmatmul.mubr.bf16.gmra.mxu0 %v5942
      %v6342 = vpop.f32.mrf.mxu0
      %v6343 = vadd.f32 0.0, %v6342
      %v6344 = vpop.f32.mrf.mxu0
      %v6345 = vpop.f32.mrf.mxu0
      %v6346 = vadd.f32 0.0, %v6345
      %v6347 = vpop.f32.mrf.mxu0
      %6348 = vmatprep.mubr.bf16.mxu0 0
      %6349 = vmatmul.mubr.bf16.gmra.mxu0 %v5945
      %v6350 = vpop.f32.mrf.mxu0
      %v6351 = vadd.f32 0.0, %v6350
      %v6352 = vpop.f32.mrf.mxu0
      %v6353 = vpop.f32.mrf.mxu0
      %v6354 = vadd.f32 0.0, %v6353
      %v6355 = vpop.f32.mrf.mxu0
      %6356 = vmatprep.mubr.bf16.mxu0 0
      %6357 = vmatmul.mubr.bf16.gmra.mxu0 %v5948
      %v6358 = vpop.f32.mrf.mxu0
      %v6359 = vadd.f32 0.0, %v6358
      %v6360 = vpop.f32.mrf.mxu0
      %v6361 = vpop.f32.mrf.mxu0
      %v6362 = vadd.f32 0.0, %v6361
      %v6363 = vpop.f32.mrf.mxu0
      %6364 = vmatprep.mubr.bf16.mxu0 0
      %6365 = vmatmul.mubr.bf16.gmra.mxu0 %v5951
      %v6366 = vpop.f32.mrf.mxu0
      %v6367 = vadd.f32 0.0, %v6366
      %v6368 = vpop.f32.mrf.mxu0
      %v6369 = vpop.f32.mrf.mxu0
      %v6370 = vadd.f32 0.0, %v6369
      %v6371 = vpop.f32.mrf.mxu0
      %6372 = vmatprep.mubr.bf16.mxu0 0
      %6373 = vmatmul.mubr.bf16.gmra.mxu0 %v5954
      %v6374 = vpop.f32.mrf.mxu0
      %v6375 = vadd.f32 0.0, %v6374
      %v6376 = vpop.f32.mrf.mxu0
      %v6377 = vpop.f32.mrf.mxu0
      %v6378 = vadd.f32 0.0, %v6377
      %v6379 = vpop.f32.mrf.mxu0
      %6380 = vmatprep.mubr.bf16.mxu0 0
      %6381 = vmatmul.mubr.bf16.gmra.mxu0 %v5957
      %v6382 = vpop.f32.mrf.mxu0
      %v6383 = vadd.f32 0.0, %v6382
      %v6384 = vpop.f32.mrf.mxu0
      %v6385 = vpop.f32.mrf.mxu0
      %v6386 = vadd.f32 0.0, %v6385
      %v6387 = vpop.f32.mrf.mxu0
      %6388 = vmatprep.mubr.bf16.mxu0 0
      %6389 = vmatmul.mubr.bf16.gmra.mxu0 %v5960
      %v6390 = vpop.f32.mrf.mxu0
      %v6391 = vadd.f32 0.0, %v6390
      %v6392 = vpop.f32.mrf.mxu0
      %v6393 = vpop.f32.mrf.mxu0
      %v6394 = vadd.f32 0.0, %v6393
      %v6395 = vpop.f32.mrf.mxu0
      %6396 = vmatprep.mubr.bf16.mxu0 0
      %6397 = vmatmul.mubr.bf16.gmra.mxu0 %v5963
      %v6398 = vpop.f32.mrf.mxu0
      %v6399 = vadd.f32 0.0, %v6398
      %v6400 = vpop.f32.mrf.mxu0
      %v6401 = vpop.f32.mrf.mxu0
      %v6402 = vadd.f32 0.0, %v6401
      %v6403 = vpop.f32.mrf.mxu0
      %6404 = vmatprep.mubr.bf16.mxu0 0
      %6405 = vmatmul.mubr.bf16.gmra.mxu0 %v5966
      %v6406 = vpop.f32.mrf.mxu0
      %v6407 = vadd.f32 0.0, %v6406
      %v6408 = vpop.f32.mrf.mxu0
      %v6409 = vpop.f32.mrf.mxu0
      %v6410 = vadd.f32 0.0, %v6409
      %v6411 = vpop.f32.mrf.mxu0
      %6412 = vmatprep.mubr.bf16.mxu0 0
      %6413 = vmatmul.mubr.bf16.gmra.mxu0 %v5969
      %v6414 = vpop.f32.mrf.mxu0
      %v6415 = vadd.f32 0.0, %v6414
      %v6416 = vpop.f32.mrf.mxu0
      %v6417 = vpop.f32.mrf.mxu0
      %v6418 = vadd.f32 0.0, %v6417
      %v6419 = vpop.f32.mrf.mxu0
      %6420 = vmatprep.mubr.bf16.mxu0 0
      %6421 = vmatmul.mubr.bf16.gmra.mxu0 %v5972
      %v6422 = vpop.f32.mrf.mxu0
      %v6423 = vadd.f32 0.0, %v6422
      %v6424 = vpop.f32.mrf.mxu0
      %v6425 = vpop.f32.mrf.mxu0
      %v6426 = vadd.f32 0.0, %v6425
      %v6427 = vpop.f32.mrf.mxu0
      %6428 = vmatprep.mubr.bf16.mxu0 0
      %6429 = vmatmul.mubr.bf16.gmra.mxu0 %v5975
      %v6430 = vpop.f32.mrf.mxu0
      %v6431 = vadd.f32 0.0, %v6430
      %v6432 = vpop.f32.mrf.mxu0
      %v6433 = vpop.f32.mrf.mxu0
      %v6434 = vpop.f32.mrf.mxu0
      %6435 = vdwg.mxu0
      %v6436 = vadd.f32 %v5553, %v6015
      %v6437 = vadd.f32 %v5554, %v6018
      %v6438 = vadd.f32 %v5555, %v6023
      %v6439 = vadd.f32 %v5556, %v6026
      %v6440 = vadd.f32 %v5557, %v6031
      %v6441 = vadd.f32 %v5558, %v6034
      %v6442 = vadd.f32 %v5559, %v6039
      %v6443 = vadd.f32 %v5560, %v6042
      %v6444 = vadd.f32 %v5561, %v6047
      %v6445 = vadd.f32 %v5562, %v6050
      %v6446 = vadd.f32 %v5563, %v6055
      %v6447 = vadd.f32 %v5564, %v6058
      %v6448 = vadd.f32 %v5565, %v6063
      %v6449 = vadd.f32 %v5566, %v6066
      %v6450 = vadd.f32 %v5567, %v6071
      %v6451 = vadd.f32 %v5568, %v6074
      %v6452 = vadd.f32 %v5569, %v6079
      %v6453 = vadd.f32 %v5570, %v6082
      %v6454 = vadd.f32 %v5571, %v6087
      %v6455 = vadd.f32 %v5572, %v6090
      %v6456 = vadd.f32 %v5573, %v6095
      %v6457 = vadd.f32 %v5574, %v6098
      %v6458 = vadd.f32 %v5575, %v6103
      %v6459 = vadd.f32 %v5576, %v6106
      %v6460 = vadd.f32 %v5577, %v6111
      %v6461 = vadd.f32 %v5578, %v6114
      %v6462 = vadd.f32 %v5579, %v6119
      %v6463 = vadd.f32 %v5580, %v6122
      %v6464 = vadd.f32 %v5581, %v6127
      %v6465 = vadd.f32 %v5582, %v6130
      %v6466 = vadd.f32 %v5583, %v6135
      %v6467 = vadd.f32 %v5584, %v6138
      %v6468 = vadd.f32 %v5585, %v6143
      %v6469 = vadd.f32 %v5586, %v6146
      %v6470 = vadd.f32 %v5587, %v6151
      %v6471 = vadd.f32 %v5588, %v6154
      %v6472 = vadd.f32 %v5589, %v6159
      %v6473 = vadd.f32 %v5590, %v6162
      %v6474 = vadd.f32 %v5591, %v6167
      %v6475 = vadd.f32 %v5592, %v6170
      %v6476 = vadd.f32 %v5593, %v6175
      %v6477 = vadd.f32 %v5594, %v6178
      %v6478 = vadd.f32 %v5595, %v6183
      %v6479 = vadd.f32 %v5596, %v6186
      %v6480 = vadd.f32 %v5597, %v6191
      %v6481 = vadd.f32 %v5598, %v6194
      %v6482 = vadd.f32 %v5599, %v6199
      %v6483 = vadd.f32 %v5600, %v6202
      %v6484 = vadd.f32 %v5601, %v6207
      %v6485 = vadd.f32 %v5602, %v6210
      %v6486 = vadd.f32 %v5603, %v6215
      %v6487 = vadd.f32 %v5604, %v6218
      %v6488 = vadd.f32 %v5605, %v6223
      %v6489 = vadd.f32 %v5606, %v6226
      %v6490 = vadd.f32 %v5607, %v6231
      %v6491 = vadd.f32 %v5608, %v6234
      %v6492 = vadd.f32 %v5609, %v6239
      %v6493 = vadd.f32 %v5610, %v6242
      %v6494 = vadd.f32 %v5611, %v6247
      %v6495 = vadd.f32 %v5612, %v6250
      %v6496 = vadd.f32 %v5613, %v6255
      %v6497 = vadd.f32 %v5614, %v6258
      %v6498 = vadd.f32 %v5615, %v6263
      %v6499 = vadd.f32 %v5616, %v6266
      %v6500 = vadd.f32 %v5617, %v6271
      %v6501 = vadd.f32 %v5618, %v6274
      %v6502 = vadd.f32 %v5619, %v6279
      %v6503 = vadd.f32 %v5620, %v6282
      %v6504 = vadd.f32 %v5621, %v6287
      %v6505 = vadd.f32 %v5622, %v6290
      %v6506 = vadd.f32 %v5623, %v6295
      %v6507 = vadd.f32 %v5624, %v6298
      %v6508 = vadd.f32 %v5625, %v6303
      %v6509 = vadd.f32 %v5626, %v6306
      %v6510 = vadd.f32 %v5627, %v6311
      %v6511 = vadd.f32 %v5628, %v6314
      %v6512 = vadd.f32 %v5629, %v6319
      %v6513 = vadd.f32 %v5630, %v6322
      %v6514 = vadd.f32 %v5631, %v6327
      %v6515 = vadd.f32 %v5632, %v6330
      %v6516 = vadd.f32 %v5633, %v6335
      %v6517 = vadd.f32 %v5634, %v6338
      %v6518 = vadd.f32 %v5635, %v6343
      %v6519 = vadd.f32 %v5636, %v6346
      %v6520 = vadd.f32 %v5637, %v6351
      %v6521 = vadd.f32 %v5638, %v6354
      %v6522 = vadd.f32 %v5639, %v6359
      %v6523 = vadd.f32 %v5640, %v6362
      %v6524 = vadd.f32 %v5641, %v6367
      %v6525 = vadd.f32 %v5642, %v6370
      %v6526 = vadd.f32 %v5643, %v6375
      %v6527 = vadd.f32 %v5644, %v6378
      %v6528 = vadd.f32 %v5645, %v6383
      %v6529 = vadd.f32 %v5646, %v6386
      %v6530 = vadd.f32 %v5647, %v6391
      %v6531 = vadd.f32 %v5648, %v6394
      %v6532 = vadd.f32 %v5649, %v6399
      %v6533 = vadd.f32 %v5650, %v6402
      %v6534 = vadd.f32 %v5651, %v6407
      %v6535 = vadd.f32 %v5652, %v6410
      %v6536 = vadd.f32 %v5653, %v6415
      %v6537 = vadd.f32 %v5654, %v6418
      %v6538 = vadd.f32 %v5655, %v6423
      %v6539 = vadd.f32 %v5656, %v6426
      %v6540 = vadd.f32 %v5657, %v6431
      %v6541 = vld [vmem:[#allocation2 + $0x3d] sm:$0xff]
      %v6542 = vld [vmem:[#allocation2 + $0x45] sm:$0xff]
      %v6543 = vld [vmem:[#allocation2 + $0x4d] sm:$0xff]
      %v6544 = vld [vmem:[#allocation2 + $0x55] sm:$0xff]
      %v6545 = vld [vmem:[#allocation2 + $0x5d] sm:$0xff]
      %v6546 = vld [vmem:[#allocation2 + $0x65] sm:$0xff]
      %v6547 = vld [vmem:[#allocation2 + $0x6d] sm:$0xff]
      %v6548 = vld [vmem:[#allocation2 + $0x75] sm:$0xff]
      %v6549 = vld [vmem:[#allocation2 + $0x7d] sm:$0xff]
      %v6550 = vld [vmem:[#allocation2 + $0x85] sm:$0xff]
      %v6551 = vld [vmem:[#allocation2 + $0x8d] sm:$0xff]
      %v6552 = vld [vmem:[#allocation2 + $0x95] sm:$0xff]
      %v6553 = vld [vmem:[#allocation2 + $0x9d] sm:$0xff]
      %v6554 = vld [vmem:[#allocation2 + $0xa5] sm:$0xff]
      %v6555 = vld [vmem:[#allocation2 + $0xad] sm:$0xff]
      %v6556 = vld [vmem:[#allocation2 + $0xb5] sm:$0xff]
      %v6557 = vld [vmem:[#allocation2 + $0xbd] sm:$0xff]
      %v6558 = vld [vmem:[#allocation2 + $0xc5] sm:$0xff]
      %v6559 = vld [vmem:[#allocation2 + $0xcd] sm:$0xff]
      %v6560 = vld [vmem:[#allocation2 + $0xd5] sm:$0xff]
      %v6561 = vld [vmem:[#allocation2 + $0xdd] sm:$0xff]
      %v6562 = vld [vmem:[#allocation2 + $0xe5] sm:$0xff]
      %v6563 = vld [vmem:[#allocation2 + $0xed] sm:$0xff]
      %v6564 = vld [vmem:[#allocation2 + $0xf5] sm:$0xff]
      %v6565 = vld [vmem:[#allocation2 + $0xfd] sm:$0xff]
      %v6566 = vld [vmem:[#allocation2 + $0x105] sm:$0xff]
      %v6567 = vld [vmem:[#allocation2 + $0x10d] sm:$0xff]
      %v6568 = vld [vmem:[#allocation2 + $0x115] sm:$0xff]
      %v6569 = vld [vmem:[#allocation2 + $0x11d] sm:$0xff]
      %v6570 = vld [vmem:[#allocation2 + $0x125] sm:$0xff]
      %v6571 = vld [vmem:[#allocation2 + $0x12d] sm:$0xff]
      %v6572 = vld [vmem:[#allocation2 + $0x135] sm:$0xff]
      %v6573 = vld [vmem:[#allocation2 + $0x13d] sm:$0xff]
      %v6574 = vld [vmem:[#allocation2 + $0x145] sm:$0xff]
      %v6575 = vld [vmem:[#allocation2 + $0x14d] sm:$0xff]
      %v6576 = vld [vmem:[#allocation2 + $0x155] sm:$0xff]
      %v6577 = vld [vmem:[#allocation2 + $0x15d] sm:$0xff]
      %v6578 = vld [vmem:[#allocation2 + $0x165] sm:$0xff]
      %v6579 = vld [vmem:[#allocation2 + $0x16d] sm:$0xff]
      %v6580 = vld [vmem:[#allocation2 + $0x175] sm:$0xff]
      %v6581 = vld [vmem:[#allocation2 + $0x17d] sm:$0xff]
      %v6582 = vld [vmem:[#allocation2 + $0x185] sm:$0xff]
      %v6583 = vld [vmem:[#allocation2 + $0x18d] sm:$0xff]
      %v6584 = vld [vmem:[#allocation2 + $0x195] sm:$0xff]
      %v6585 = vld [vmem:[#allocation2 + $0x19d] sm:$0xff]
      %v6586 = vld [vmem:[#allocation2 + $0x1a5] sm:$0xff]
      %v6587 = vld [vmem:[#allocation2 + $0x1ad] sm:$0xff]
      %v6588 = vld [vmem:[#allocation2 + $0x1b5] sm:$0xff]
      %v6589 = vld [vmem:[#allocation2 + $0x1bd] sm:$0xff]
      %v6590 = vld [vmem:[#allocation2 + $0x1c5] sm:$0xff]
      %v6591 = vld [vmem:[#allocation2 + $0x1cd] sm:$0xff]
      %v6592 = vld [vmem:[#allocation2 + $0x1d5] sm:$0xff]
      %v6593 = vld [vmem:[#allocation2 + $0x1dd] sm:$0xff]
      %v6594 = vld [vmem:[#allocation2 + $0x1e5] sm:$0xff]
      %v6595 = vld [vmem:[#allocation2 + $0x1ed] sm:$0xff]
      %v6596 = vld [vmem:[#allocation2 + $0x1f5] sm:$0xff]
      %v6597 = vld [vmem:[#allocation2 + $0x1fd] sm:$0xff]
      %v6598 = vld [vmem:[#allocation2 + $0x205] sm:$0xff]
      %v6599 = vld [vmem:[#allocation2 + $0x20d] sm:$0xff]
      %v6600 = vld [vmem:[#allocation2 + $0x215] sm:$0xff]
      %v6601 = vld [vmem:[#allocation2 + $0x21d] sm:$0xff]
      %v6602 = vld [vmem:[#allocation2 + $0x225] sm:$0xff]
      %v6603 = vld [vmem:[#allocation2 + $0x22d] sm:$0xff]
      %v6604 = vld [vmem:[#allocation2 + $0x235] sm:$0xff]
      %v6605 = vld [vmem:[#allocation2 + $0x23d] sm:$0xff]
      %v6606 = vld [vmem:[#allocation2 + $0x245] sm:$0xff]
      %v6607 = vld [vmem:[#allocation2 + $0x24d] sm:$0xff]
      %v6608 = vld [vmem:[#allocation2 + $0x255] sm:$0xff]
      %v6609 = vld [vmem:[#allocation2 + $0x25d] sm:$0xff]
      %v6610 = vld [vmem:[#allocation2 + $0x265] sm:$0xff]
      %v6611 = vld [vmem:[#allocation2 + $0x26d] sm:$0xff]
      %v6612 = vld [vmem:[#allocation2 + $0x275] sm:$0xff]
      %v6613 = vld [vmem:[#allocation2 + $0x27d] sm:$0xff]
      %v6614 = vld [vmem:[#allocation2 + $0x285] sm:$0xff]
      %v6615 = vld [vmem:[#allocation2 + $0x28d] sm:$0xff]
      %v6616 = vld [vmem:[#allocation2 + $0x295] sm:$0xff]
      %v6617 = vld [vmem:[#allocation2 + $0x29d] sm:$0xff]
      %v6618 = vld [vmem:[#allocation2 + $0x2a5] sm:$0xff]
      %v6619 = vld [vmem:[#allocation2 + $0x2ad] sm:$0xff]
      %v6620 = vld [vmem:[#allocation2 + $0x2b5] sm:$0xff]
      %v6621 = vld [vmem:[#allocation2 + $0x2bd] sm:$0xff]
      %v6622 = vld [vmem:[#allocation2 + $0x2c5] sm:$0xff]
      %v6623 = vld [vmem:[#allocation2 + $0x2cd] sm:$0xff]
      %v6624 = vld [vmem:[#allocation2 + $0x2d5] sm:$0xff]
      %v6625 = vld [vmem:[#allocation2 + $0x2dd] sm:$0xff]
      %v6626 = vld [vmem:[#allocation2 + $0x2e5] sm:$0xff]
      %v6627 = vld [vmem:[#allocation2 + $0x2ed] sm:$0xff]
      %v6628 = vld [vmem:[#allocation2 + $0x2f5] sm:$0xff]
      %v6629 = vld [vmem:[#allocation2 + $0x2fd] sm:$0xff]
      %v6630 = vld [vmem:[#allocation2 + $0x305] sm:$0xff]
      %v6631 = vld [vmem:[#allocation2 + $0x30d] sm:$0xff]
      %v6632 = vld [vmem:[#allocation2 + $0x315] sm:$0xff]
      %v6633 = vld [vmem:[#allocation2 + $0x31d] sm:$0xff]
      %v6634 = vld [vmem:[#allocation2 + $0x325] sm:$0xff]
      %v6635 = vld [vmem:[#allocation2 + $0x32d] sm:$0xff]
      %v6636 = vld [vmem:[#allocation2 + $0x335] sm:$0xff]
      %v6637 = vld [vmem:[#allocation2 + $0x33d] sm:$0xff]
      %v6638 = vld [vmem:[#allocation2 + $0x345] sm:$0xff]
      %v6639 = vld [vmem:[#allocation2 + $0x34d] sm:$0xff]
      %v6640 = vld [vmem:[#allocation2 + $0x355] sm:$0xff]
      %v6641 = vld [vmem:[#allocation2 + $0x35d] sm:$0xff]
      %v6642 = vld [vmem:[#allocation2 + $0x365] sm:$0xff]
      %v6643 = vld [vmem:[#allocation2 + $0x36d] sm:$0xff]
      %v6644 = vld [vmem:[#allocation2 + $0x375] sm:$0xff]
      %v6645 = vld [vmem:[#allocation2 + $0x37d] sm:$0x3f]
      %v6646 = vpack.c.bf16 %v6542, %v6541
      %v6647 = vpack.c.bf16 %v6544, %v6543
      %v6648 = vpack.c.bf16 %v6546, %v6545
      %v6649 = vpack.c.bf16 %v6548, %v6547
      %v6650 = vpack.c.bf16 %v6550, %v6549
      %v6651 = vpack.c.bf16 %v6552, %v6551
      %v6652 = vpack.c.bf16 %v6554, %v6553
      %v6653 = vpack.c.bf16 %v6556, %v6555
      %v6654 = vpack.c.bf16 %v6558, %v6557
      %v6655 = vpack.c.bf16 %v6560, %v6559
      %v6656 = vpack.c.bf16 %v6562, %v6561
      %v6657 = vpack.c.bf16 %v6564, %v6563
      %v6658 = vpack.c.bf16 %v6566, %v6565
      %v6659 = vpack.c.bf16 %v6568, %v6567
      %v6660 = vpack.c.bf16 %v6570, %v6569
      %v6661 = vpack.c.bf16 %v6572, %v6571
      %v6662 = vpack.c.bf16 %v6574, %v6573
      %v6663 = vpack.c.bf16 %v6576, %v6575
      %v6664 = vpack.c.bf16 %v6578, %v6577
      %v6665 = vpack.c.bf16 %v6580, %v6579
      %v6666 = vpack.c.bf16 %v6582, %v6581
      %v6667 = vpack.c.bf16 %v6584, %v6583
      %v6668 = vpack.c.bf16 %v6586, %v6585
      %v6669 = vpack.c.bf16 %v6588, %v6587
      %v6670 = vpack.c.bf16 %v6590, %v6589
      %v6671 = vpack.c.bf16 %v6592, %v6591
      %v6672 = vpack.c.bf16 %v6594, %v6593
      %v6673 = vpack.c.bf16 %v6596, %v6595
      %v6674 = vpack.c.bf16 %v6598, %v6597
      %v6675 = vpack.c.bf16 %v6600, %v6599
      %v6676 = vpack.c.bf16 %v6602, %v6601
      %v6677 = vpack.c.bf16 %v6604, %v6603
      %v6678 = vpack.c.bf16 %v6606, %v6605
      %v6679 = vpack.c.bf16 %v6608, %v6607
      %v6680 = vpack.c.bf16 %v6610, %v6609
      %v6681 = vpack.c.bf16 %v6612, %v6611
      %v6682 = vpack.c.bf16 %v6614, %v6613
      %v6683 = vpack.c.bf16 %v6616, %v6615
      %v6684 = vpack.c.bf16 %v6618, %v6617
      %v6685 = vpack.c.bf16 %v6620, %v6619
      %v6686 = vpack.c.bf16 %v6622, %v6621
      %v6687 = vpack.c.bf16 %v6624, %v6623
      %v6688 = vpack.c.bf16 %v6626, %v6625
      %v6689 = vpack.c.bf16 %v6628, %v6627
      %v6690 = vpack.c.bf16 %v6630, %v6629
      %v6691 = vpack.c.bf16 %v6632, %v6631
      %v6692 = vpack.c.bf16 %v6634, %v6633
      %v6693 = vpack.c.bf16 %v6636, %v6635
      %v6694 = vpack.c.bf16 %v6638, %v6637
      %v6695 = vpack.c.bf16 %v6640, %v6639
      %v6696 = vpack.c.bf16 %v6642, %v6641
      %v6697 = vpack.c.bf16 %v6644, %v6643
      %v6698 = vpack.c.bf16 %v6645, %v6645
      %s6699 = scalar_lea.vmem %s1, 14
      %v6700 = vld [vmem:[%s6699] sm:$0x3]
      %v6702 = vsel %vm452, %v6646, 0
      %v6705 = vsel %vm452, %v6647, 0
      %v6708 = vsel %vm452, %v6648, 0
      %v6711 = vsel %vm452, %v6649, 0
      %v6714 = vsel %vm452, %v6650, 0
      %v6717 = vsel %vm452, %v6651, 0
      %v6720 = vsel %vm452, %v6652, 0
      %v6723 = vsel %vm452, %v6653, 0
      %v6726 = vsel %vm452, %v6654, 0
      %v6729 = vsel %vm452, %v6655, 0
      %v6732 = vsel %vm452, %v6656, 0
      %v6735 = vsel %vm452, %v6657, 0
      %v6738 = vsel %vm452, %v6658, 0
      %v6741 = vsel %vm452, %v6659, 0
      %v6744 = vsel %vm452, %v6660, 0
      %v6747 = vsel %vm452, %v6661, 0
      %v6750 = vsel %vm452, %v6662, 0
      %v6753 = vsel %vm452, %v6663, 0
      %v6756 = vsel %vm452, %v6664, 0
      %v6759 = vsel %vm452, %v6665, 0
      %v6762 = vsel %vm452, %v6666, 0
      %v6765 = vsel %vm452, %v6667, 0
      %v6768 = vsel %vm452, %v6668, 0
      %v6771 = vsel %vm452, %v6669, 0
      %v6774 = vsel %vm452, %v6670, 0
      %v6777 = vsel %vm452, %v6671, 0
      %v6780 = vsel %vm452, %v6672, 0
      %v6783 = vsel %vm452, %v6673, 0
      %v6786 = vsel %vm452, %v6674, 0
      %v6789 = vsel %vm452, %v6675, 0
      %v6792 = vsel %vm452, %v6676, 0
      %v6795 = vsel %vm452, %v6677, 0
      %v6798 = vsel %vm452, %v6678, 0
      %v6801 = vsel %vm452, %v6679, 0
      %v6804 = vsel %vm452, %v6680, 0
      %v6807 = vsel %vm452, %v6681, 0
      %v6810 = vsel %vm452, %v6682, 0
      %v6813 = vsel %vm452, %v6683, 0
      %v6816 = vsel %vm452, %v6684, 0
      %v6819 = vsel %vm452, %v6685, 0
      %v6822 = vsel %vm452, %v6686, 0
      %v6825 = vsel %vm452, %v6687, 0
      %v6828 = vsel %vm452, %v6688, 0
      %v6831 = vsel %vm452, %v6689, 0
      %v6834 = vsel %vm452, %v6690, 0
      %v6837 = vsel %vm452, %v6691, 0
      %v6840 = vsel %vm452, %v6692, 0
      %v6843 = vsel %vm452, %v6693, 0
      %v6846 = vsel %vm452, %v6694, 0
      %v6849 = vsel %vm452, %v6695, 0
      %v6852 = vsel %vm452, %v6696, 0
      %v6855 = vsel %vm452, %v6697, 0
      %v6858 = vsel %vm452, %v6698, 0
      %v6861 = vand.u32 %v6700, %v1048
      %6863 = vmatprep.subr.bf16.mxu0 0
      %6864 = vmatpush1.bf16.msra.mxu0 0
      %6865 = vmatprep.subr.bf16.mxu0 0
      %6866 = vmatpush1.bf16.msra.mxu0 0
      %6867 = vmatprep.subr.bf16.mxu0 0
      %6868 = vmatpush1.bf16.msra.mxu0 0
      %6869 = vmatprep.subr.bf16.mxu0 0
      %6870 = vmatpush1.bf16.msra.mxu0 0
      %6871 = vmatprep.subr.bf16.mxu0 0
      %6872 = vmatpush1.bf16.msra.mxu0 0
      %6873 = vmatprep.subr.bf16.mxu0 0
      %6874 = vmatpush1.bf16.msra.mxu0 0
      %6875 = vmatprep.subr.bf16.mxu0 0
      %6876 = vmatpush1.bf16.msra.mxu0 0
      %6877 = vmatprep.subr.bf16.mxu0 0
      %6878 = vmatpush1.bf16.msra.mxu0 %v6861
      %6879 = vmatprep.subr.bf16.mxu0 0
      %6880 = vmatpush2.bf16.msra.mxu0 0
      %6881 = vmatprep.subr.bf16.mxu0 0
      %6882 = vmatpush2.bf16.msra.mxu0 0
      %6883 = vmatprep.subr.bf16.mxu0 0
      %6884 = vmatpush2.bf16.msra.mxu0 0
      %6885 = vmatprep.subr.bf16.mxu0 0
      %6886 = vmatpush2.bf16.msra.mxu0 0
      %6887 = vmatprep.subr.bf16.mxu0 0
      %6888 = vmatpush2.bf16.msra.mxu0 0
      %6889 = vmatprep.subr.bf16.mxu0 0
      %6890 = vmatpush2.bf16.msra.mxu0 0
      %6891 = vmatprep.subr.bf16.mxu0 0
      %6892 = vmatpush2.bf16.msra.mxu0 0
      %6893 = vmatprep.subr.bf16.mxu0 0
      %6894 = vmatpush2.bf16.msra.mxu0 0
      %6895 = vmatprep.mubr.bf16.mxu0 0
      %6896 = vmatmul.mubr.bf16.gmra.mxu0 %v6702
      %v6897 = vpop.f32.mrf.mxu0
      %v6898 = vadd.f32 0.0, %v6897
      %v6899 = vpop.f32.mrf.mxu0
      %v6900 = vpop.f32.mrf.mxu0
      %v6901 = vadd.f32 0.0, %v6900
      %v6902 = vpop.f32.mrf.mxu0
      %6903 = vmatprep.mubr.bf16.mxu0 0
      %6904 = vmatmul.mubr.bf16.gmra.mxu0 %v6705
      %v6905 = vpop.f32.mrf.mxu0
      %v6906 = vadd.f32 0.0, %v6905
      %v6907 = vpop.f32.mrf.mxu0
      %v6908 = vpop.f32.mrf.mxu0
      %v6909 = vadd.f32 0.0, %v6908
      %v6910 = vpop.f32.mrf.mxu0
      %6911 = vmatprep.mubr.bf16.mxu0 0
      %6912 = vmatmul.mubr.bf16.gmra.mxu0 %v6708
      %v6913 = vpop.f32.mrf.mxu0
      %v6914 = vadd.f32 0.0, %v6913
      %v6915 = vpop.f32.mrf.mxu0
      %v6916 = vpop.f32.mrf.mxu0
      %v6917 = vadd.f32 0.0, %v6916
      %v6918 = vpop.f32.mrf.mxu0
      %6919 = vmatprep.mubr.bf16.mxu0 0
      %6920 = vmatmul.mubr.bf16.gmra.mxu0 %v6711
      %v6921 = vpop.f32.mrf.mxu0
      %v6922 = vadd.f32 0.0, %v6921
      %v6923 = vpop.f32.mrf.mxu0
      %v6924 = vpop.f32.mrf.mxu0
      %v6925 = vadd.f32 0.0, %v6924
      %v6926 = vpop.f32.mrf.mxu0
      %6927 = vmatprep.mubr.bf16.mxu0 0
      %6928 = vmatmul.mubr.bf16.gmra.mxu0 %v6714
      %v6929 = vpop.f32.mrf.mxu0
      %v6930 = vadd.f32 0.0, %v6929
      %v6931 = vpop.f32.mrf.mxu0
      %v6932 = vpop.f32.mrf.mxu0
      %v6933 = vadd.f32 0.0, %v6932
      %v6934 = vpop.f32.mrf.mxu0
      %6935 = vmatprep.mubr.bf16.mxu0 0
      %6936 = vmatmul.mubr.bf16.gmra.mxu0 %v6717
      %v6937 = vpop.f32.mrf.mxu0
      %v6938 = vadd.f32 0.0, %v6937
      %v6939 = vpop.f32.mrf.mxu0
      %v6940 = vpop.f32.mrf.mxu0
      %v6941 = vadd.f32 0.0, %v6940
      %v6942 = vpop.f32.mrf.mxu0
      %6943 = vmatprep.mubr.bf16.mxu0 0
      %6944 = vmatmul.mubr.bf16.gmra.mxu0 %v6720
      %v6945 = vpop.f32.mrf.mxu0
      %v6946 = vadd.f32 0.0, %v6945
      %v6947 = vpop.f32.mrf.mxu0
      %v6948 = vpop.f32.mrf.mxu0
      %v6949 = vadd.f32 0.0, %v6948
      %v6950 = vpop.f32.mrf.mxu0
      %6951 = vmatprep.mubr.bf16.mxu0 0
      %6952 = vmatmul.mubr.bf16.gmra.mxu0 %v6723
      %v6953 = vpop.f32.mrf.mxu0
      %v6954 = vadd.f32 0.0, %v6953
      %v6955 = vpop.f32.mrf.mxu0
      %v6956 = vpop.f32.mrf.mxu0
      %v6957 = vadd.f32 0.0, %v6956
      %v6958 = vpop.f32.mrf.mxu0
      %6959 = vmatprep.mubr.bf16.mxu0 0
      %6960 = vmatmul.mubr.bf16.gmra.mxu0 %v6726
      %v6961 = vpop.f32.mrf.mxu0
      %v6962 = vadd.f32 0.0, %v6961
      %v6963 = vpop.f32.mrf.mxu0
      %v6964 = vpop.f32.mrf.mxu0
      %v6965 = vadd.f32 0.0, %v6964
      %v6966 = vpop.f32.mrf.mxu0
      %6967 = vmatprep.mubr.bf16.mxu0 0
      %6968 = vmatmul.mubr.bf16.gmra.mxu0 %v6729
      %v6969 = vpop.f32.mrf.mxu0
      %v6970 = vadd.f32 0.0, %v6969
      %v6971 = vpop.f32.mrf.mxu0
      %v6972 = vpop.f32.mrf.mxu0
      %v6973 = vadd.f32 0.0, %v6972
      %v6974 = vpop.f32.mrf.mxu0
      %6975 = vmatprep.mubr.bf16.mxu0 0
      %6976 = vmatmul.mubr.bf16.gmra.mxu0 %v6732
      %v6977 = vpop.f32.mrf.mxu0
      %v6978 = vadd.f32 0.0, %v6977
      %v6979 = vpop.f32.mrf.mxu0
      %v6980 = vpop.f32.mrf.mxu0
      %v6981 = vadd.f32 0.0, %v6980
      %v6982 = vpop.f32.mrf.mxu0
      %6983 = vmatprep.mubr.bf16.mxu0 0
      %6984 = vmatmul.mubr.bf16.gmra.mxu0 %v6735
      %v6985 = vpop.f32.mrf.mxu0
      %v6986 = vadd.f32 0.0, %v6985
      %v6987 = vpop.f32.mrf.mxu0
      %v6988 = vpop.f32.mrf.mxu0
      %v6989 = vadd.f32 0.0, %v6988
      %v6990 = vpop.f32.mrf.mxu0
      %6991 = vmatprep.mubr.bf16.mxu0 0
      %6992 = vmatmul.mubr.bf16.gmra.mxu0 %v6738
      %v6993 = vpop.f32.mrf.mxu0
      %v6994 = vadd.f32 0.0, %v6993
      %v6995 = vpop.f32.mrf.mxu0
      %v6996 = vpop.f32.mrf.mxu0
      %v6997 = vadd.f32 0.0, %v6996
      %v6998 = vpop.f32.mrf.mxu0
      %6999 = vmatprep.mubr.bf16.mxu0 0
      %7000 = vmatmul.mubr.bf16.gmra.mxu0 %v6741
      %v7001 = vpop.f32.mrf.mxu0
      %v7002 = vadd.f32 0.0, %v7001
      %v7003 = vpop.f32.mrf.mxu0
      %v7004 = vpop.f32.mrf.mxu0
      %v7005 = vadd.f32 0.0, %v7004
      %v7006 = vpop.f32.mrf.mxu0
      %7007 = vmatprep.mubr.bf16.mxu0 0
      %7008 = vmatmul.mubr.bf16.gmra.mxu0 %v6744
      %v7009 = vpop.f32.mrf.mxu0
      %v7010 = vadd.f32 0.0, %v7009
      %v7011 = vpop.f32.mrf.mxu0
      %v7012 = vpop.f32.mrf.mxu0
      %v7013 = vadd.f32 0.0, %v7012
      %v7014 = vpop.f32.mrf.mxu0
      %7015 = vmatprep.mubr.bf16.mxu0 0
      %7016 = vmatmul.mubr.bf16.gmra.mxu0 %v6747
      %v7017 = vpop.f32.mrf.mxu0
      %v7018 = vadd.f32 0.0, %v7017
      %v7019 = vpop.f32.mrf.mxu0
      %v7020 = vpop.f32.mrf.mxu0
      %v7021 = vadd.f32 0.0, %v7020
      %v7022 = vpop.f32.mrf.mxu0
      %7023 = vmatprep.mubr.bf16.mxu0 0
      %7024 = vmatmul.mubr.bf16.gmra.mxu0 %v6750
      %v7025 = vpop.f32.mrf.mxu0
      %v7026 = vadd.f32 0.0, %v7025
      %v7027 = vpop.f32.mrf.mxu0
      %v7028 = vpop.f32.mrf.mxu0
      %v7029 = vadd.f32 0.0, %v7028
      %v7030 = vpop.f32.mrf.mxu0
      %7031 = vmatprep.mubr.bf16.mxu0 0
      %7032 = vmatmul.mubr.bf16.gmra.mxu0 %v6753
      %v7033 = vpop.f32.mrf.mxu0
      %v7034 = vadd.f32 0.0, %v7033
      %v7035 = vpop.f32.mrf.mxu0
      %v7036 = vpop.f32.mrf.mxu0
      %v7037 = vadd.f32 0.0, %v7036
      %v7038 = vpop.f32.mrf.mxu0
      %7039 = vmatprep.mubr.bf16.mxu0 0
      %7040 = vmatmul.mubr.bf16.gmra.mxu0 %v6756
      %v7041 = vpop.f32.mrf.mxu0
      %v7042 = vadd.f32 0.0, %v7041
      %v7043 = vpop.f32.mrf.mxu0
      %v7044 = vpop.f32.mrf.mxu0
      %v7045 = vadd.f32 0.0, %v7044
      %v7046 = vpop.f32.mrf.mxu0
      %7047 = vmatprep.mubr.bf16.mxu0 0
      %7048 = vmatmul.mubr.bf16.gmra.mxu0 %v6759
      %v7049 = vpop.f32.mrf.mxu0
      %v7050 = vadd.f32 0.0, %v7049
      %v7051 = vpop.f32.mrf.mxu0
      %v7052 = vpop.f32.mrf.mxu0
      %v7053 = vadd.f32 0.0, %v7052
      %v7054 = vpop.f32.mrf.mxu0
      %7055 = vmatprep.mubr.bf16.mxu0 0
      %7056 = vmatmul.mubr.bf16.gmra.mxu0 %v6762
      %v7057 = vpop.f32.mrf.mxu0
      %v7058 = vadd.f32 0.0, %v7057
      %v7059 = vpop.f32.mrf.mxu0
      %v7060 = vpop.f32.mrf.mxu0
      %v7061 = vadd.f32 0.0, %v7060
      %v7062 = vpop.f32.mrf.mxu0
      %7063 = vmatprep.mubr.bf16.mxu0 0
      %7064 = vmatmul.mubr.bf16.gmra.mxu0 %v6765
      %v7065 = vpop.f32.mrf.mxu0
      %v7066 = vadd.f32 0.0, %v7065
      %v7067 = vpop.f32.mrf.mxu0
      %v7068 = vpop.f32.mrf.mxu0
      %v7069 = vadd.f32 0.0, %v7068
      %v7070 = vpop.f32.mrf.mxu0
      %7071 = vmatprep.mubr.bf16.mxu0 0
      %7072 = vmatmul.mubr.bf16.gmra.mxu0 %v6768
      %v7073 = vpop.f32.mrf.mxu0
      %v7074 = vadd.f32 0.0, %v7073
      %v7075 = vpop.f32.mrf.mxu0
      %v7076 = vpop.f32.mrf.mxu0
      %v7077 = vadd.f32 0.0, %v7076
      %v7078 = vpop.f32.mrf.mxu0
      %7079 = vmatprep.mubr.bf16.mxu0 0
      %7080 = vmatmul.mubr.bf16.gmra.mxu0 %v6771
      %v7081 = vpop.f32.mrf.mxu0
      %v7082 = vadd.f32 0.0, %v7081
      %v7083 = vpop.f32.mrf.mxu0
      %v7084 = vpop.f32.mrf.mxu0
      %v7085 = vadd.f32 0.0, %v7084
      %v7086 = vpop.f32.mrf.mxu0
      %7087 = vmatprep.mubr.bf16.mxu0 0
      %7088 = vmatmul.mubr.bf16.gmra.mxu0 %v6774
      %v7089 = vpop.f32.mrf.mxu0
      %v7090 = vadd.f32 0.0, %v7089
      %v7091 = vpop.f32.mrf.mxu0
      %v7092 = vpop.f32.mrf.mxu0
      %v7093 = vadd.f32 0.0, %v7092
      %v7094 = vpop.f32.mrf.mxu0
      %7095 = vmatprep.mubr.bf16.mxu0 0
      %7096 = vmatmul.mubr.bf16.gmra.mxu0 %v6777
      %v7097 = vpop.f32.mrf.mxu0
      %v7098 = vadd.f32 0.0, %v7097
      %v7099 = vpop.f32.mrf.mxu0
      %v7100 = vpop.f32.mrf.mxu0
      %v7101 = vadd.f32 0.0, %v7100
      %v7102 = vpop.f32.mrf.mxu0
      %7103 = vmatprep.mubr.bf16.mxu0 0
      %7104 = vmatmul.mubr.bf16.gmra.mxu0 %v6780
      %v7105 = vpop.f32.mrf.mxu0
      %v7106 = vadd.f32 0.0, %v7105
      %v7107 = vpop.f32.mrf.mxu0
      %v7108 = vpop.f32.mrf.mxu0
      %v7109 = vadd.f32 0.0, %v7108
      %v7110 = vpop.f32.mrf.mxu0
      %7111 = vmatprep.mubr.bf16.mxu0 0
      %7112 = vmatmul.mubr.bf16.gmra.mxu0 %v6783
      %v7113 = vpop.f32.mrf.mxu0
      %v7114 = vadd.f32 0.0, %v7113
      %v7115 = vpop.f32.mrf.mxu0
      %v7116 = vpop.f32.mrf.mxu0
      %v7117 = vadd.f32 0.0, %v7116
      %v7118 = vpop.f32.mrf.mxu0
      %7119 = vmatprep.mubr.bf16.mxu0 0
      %7120 = vmatmul.mubr.bf16.gmra.mxu0 %v6786
      %v7121 = vpop.f32.mrf.mxu0
      %v7122 = vadd.f32 0.0, %v7121
      %v7123 = vpop.f32.mrf.mxu0
      %v7124 = vpop.f32.mrf.mxu0
      %v7125 = vadd.f32 0.0, %v7124
      %v7126 = vpop.f32.mrf.mxu0
      %7127 = vmatprep.mubr.bf16.mxu0 0
      %7128 = vmatmul.mubr.bf16.gmra.mxu0 %v6789
      %v7129 = vpop.f32.mrf.mxu0
      %v7130 = vadd.f32 0.0, %v7129
      %v7131 = vpop.f32.mrf.mxu0
      %v7132 = vpop.f32.mrf.mxu0
      %v7133 = vadd.f32 0.0, %v7132
      %v7134 = vpop.f32.mrf.mxu0
      %7135 = vmatprep.mubr.bf16.mxu0 0
      %7136 = vmatmul.mubr.bf16.gmra.mxu0 %v6792
      %v7137 = vpop.f32.mrf.mxu0
      %v7138 = vadd.f32 0.0, %v7137
      %v7139 = vpop.f32.mrf.mxu0
      %v7140 = vpop.f32.mrf.mxu0
      %v7141 = vadd.f32 0.0, %v7140
      %v7142 = vpop.f32.mrf.mxu0
      %7143 = vmatprep.mubr.bf16.mxu0 0
      %7144 = vmatmul.mubr.bf16.gmra.mxu0 %v6795
      %v7145 = vpop.f32.mrf.mxu0
      %v7146 = vadd.f32 0.0, %v7145
      %v7147 = vpop.f32.mrf.mxu0
      %v7148 = vpop.f32.mrf.mxu0
      %v7149 = vadd.f32 0.0, %v7148
      %v7150 = vpop.f32.mrf.mxu0
      %7151 = vmatprep.mubr.bf16.mxu0 0
      %7152 = vmatmul.mubr.bf16.gmra.mxu0 %v6798
      %v7153 = vpop.f32.mrf.mxu0
      %v7154 = vadd.f32 0.0, %v7153
      %v7155 = vpop.f32.mrf.mxu0
      %v7156 = vpop.f32.mrf.mxu0
      %v7157 = vadd.f32 0.0, %v7156
      %v7158 = vpop.f32.mrf.mxu0
      %7159 = vmatprep.mubr.bf16.mxu0 0
      %7160 = vmatmul.mubr.bf16.gmra.mxu0 %v6801
      %v7161 = vpop.f32.mrf.mxu0
      %v7162 = vadd.f32 0.0, %v7161
      %v7163 = vpop.f32.mrf.mxu0
      %v7164 = vpop.f32.mrf.mxu0
      %v7165 = vadd.f32 0.0, %v7164
      %v7166 = vpop.f32.mrf.mxu0
      %7167 = vmatprep.mubr.bf16.mxu0 0
      %7168 = vmatmul.mubr.bf16.gmra.mxu0 %v6804
      %v7169 = vpop.f32.mrf.mxu0
      %v7170 = vadd.f32 0.0, %v7169
      %v7171 = vpop.f32.mrf.mxu0
      %v7172 = vpop.f32.mrf.mxu0
      %v7173 = vadd.f32 0.0, %v7172
      %v7174 = vpop.f32.mrf.mxu0
      %7175 = vmatprep.mubr.bf16.mxu0 0
      %7176 = vmatmul.mubr.bf16.gmra.mxu0 %v6807
      %v7177 = vpop.f32.mrf.mxu0
      %v7178 = vadd.f32 0.0, %v7177
      %v7179 = vpop.f32.mrf.mxu0
      %v7180 = vpop.f32.mrf.mxu0
      %v7181 = vadd.f32 0.0, %v7180
      %v7182 = vpop.f32.mrf.mxu0
      %7183 = vmatprep.mubr.bf16.mxu0 0
      %7184 = vmatmul.mubr.bf16.gmra.mxu0 %v6810
      %v7185 = vpop.f32.mrf.mxu0
      %v7186 = vadd.f32 0.0, %v7185
      %v7187 = vpop.f32.mrf.mxu0
      %v7188 = vpop.f32.mrf.mxu0
      %v7189 = vadd.f32 0.0, %v7188
      %v7190 = vpop.f32.mrf.mxu0
      %7191 = vmatprep.mubr.bf16.mxu0 0
      %7192 = vmatmul.mubr.bf16.gmra.mxu0 %v6813
      %v7193 = vpop.f32.mrf.mxu0
      %v7194 = vadd.f32 0.0, %v7193
      %v7195 = vpop.f32.mrf.mxu0
      %v7196 = vpop.f32.mrf.mxu0
      %v7197 = vadd.f32 0.0, %v7196
      %v7198 = vpop.f32.mrf.mxu0
      %7199 = vmatprep.mubr.bf16.mxu0 0
      %7200 = vmatmul.mubr.bf16.gmra.mxu0 %v6816
      %v7201 = vpop.f32.mrf.mxu0
      %v7202 = vadd.f32 0.0, %v7201
      %v7203 = vpop.f32.mrf.mxu0
      %v7204 = vpop.f32.mrf.mxu0
      %v7205 = vadd.f32 0.0, %v7204
      %v7206 = vpop.f32.mrf.mxu0
      %7207 = vmatprep.mubr.bf16.mxu0 0
      %7208 = vmatmul.mubr.bf16.gmra.mxu0 %v6819
      %v7209 = vpop.f32.mrf.mxu0
      %v7210 = vadd.f32 0.0, %v7209
      %v7211 = vpop.f32.mrf.mxu0
      %v7212 = vpop.f32.mrf.mxu0
      %v7213 = vadd.f32 0.0, %v7212
      %v7214 = vpop.f32.mrf.mxu0
      %7215 = vmatprep.mubr.bf16.mxu0 0
      %7216 = vmatmul.mubr.bf16.gmra.mxu0 %v6822
      %v7217 = vpop.f32.mrf.mxu0
      %v7218 = vadd.f32 0.0, %v7217
      %v7219 = vpop.f32.mrf.mxu0
      %v7220 = vpop.f32.mrf.mxu0
      %v7221 = vadd.f32 0.0, %v7220
      %v7222 = vpop.f32.mrf.mxu0
      %7223 = vmatprep.mubr.bf16.mxu0 0
      %7224 = vmatmul.mubr.bf16.gmra.mxu0 %v6825
      %v7225 = vpop.f32.mrf.mxu0
      %v7226 = vadd.f32 0.0, %v7225
      %v7227 = vpop.f32.mrf.mxu0
      %v7228 = vpop.f32.mrf.mxu0
      %v7229 = vadd.f32 0.0, %v7228
      %v7230 = vpop.f32.mrf.mxu0
      %7231 = vmatprep.mubr.bf16.mxu0 0
      %7232 = vmatmul.mubr.bf16.gmra.mxu0 %v6828
      %v7233 = vpop.f32.mrf.mxu0
      %v7234 = vadd.f32 0.0, %v7233
      %v7235 = vpop.f32.mrf.mxu0
      %v7236 = vpop.f32.mrf.mxu0
      %v7237 = vadd.f32 0.0, %v7236
      %v7238 = vpop.f32.mrf.mxu0
      %7239 = vmatprep.mubr.bf16.mxu0 0
      %7240 = vmatmul.mubr.bf16.gmra.mxu0 %v6831
      %v7241 = vpop.f32.mrf.mxu0
      %v7242 = vadd.f32 0.0, %v7241
      %v7243 = vpop.f32.mrf.mxu0
      %v7244 = vpop.f32.mrf.mxu0
      %v7245 = vadd.f32 0.0, %v7244
      %v7246 = vpop.f32.mrf.mxu0
      %7247 = vmatprep.mubr.bf16.mxu0 0
      %7248 = vmatmul.mubr.bf16.gmra.mxu0 %v6834
      %v7249 = vpop.f32.mrf.mxu0
      %v7250 = vadd.f32 0.0, %v7249
      %v7251 = vpop.f32.mrf.mxu0
      %v7252 = vpop.f32.mrf.mxu0
      %v7253 = vadd.f32 0.0, %v7252
      %v7254 = vpop.f32.mrf.mxu0
      %7255 = vmatprep.mubr.bf16.mxu0 0
      %7256 = vmatmul.mubr.bf16.gmra.mxu0 %v6837
      %v7257 = vpop.f32.mrf.mxu0
      %v7258 = vadd.f32 0.0, %v7257
      %v7259 = vpop.f32.mrf.mxu0
      %v7260 = vpop.f32.mrf.mxu0
      %v7261 = vadd.f32 0.0, %v7260
      %v7262 = vpop.f32.mrf.mxu0
      %7263 = vmatprep.mubr.bf16.mxu0 0
      %7264 = vmatmul.mubr.bf16.gmra.mxu0 %v6840
      %v7265 = vpop.f32.mrf.mxu0
      %v7266 = vadd.f32 0.0, %v7265
      %v7267 = vpop.f32.mrf.mxu0
      %v7268 = vpop.f32.mrf.mxu0
      %v7269 = vadd.f32 0.0, %v7268
      %v7270 = vpop.f32.mrf.mxu0
      %7271 = vmatprep.mubr.bf16.mxu0 0
      %7272 = vmatmul.mubr.bf16.gmra.mxu0 %v6843
      %v7273 = vpop.f32.mrf.mxu0
      %v7274 = vadd.f32 0.0, %v7273
      %v7275 = vpop.f32.mrf.mxu0
      %v7276 = vpop.f32.mrf.mxu0
      %v7277 = vadd.f32 0.0, %v7276
      %v7278 = vpop.f32.mrf.mxu0
      %7279 = vmatprep.mubr.bf16.mxu0 0
      %7280 = vmatmul.mubr.bf16.gmra.mxu0 %v6846
      %v7281 = vpop.f32.mrf.mxu0
      %v7282 = vadd.f32 0.0, %v7281
      %v7283 = vpop.f32.mrf.mxu0
      %v7284 = vpop.f32.mrf.mxu0
      %v7285 = vadd.f32 0.0, %v7284
      %v7286 = vpop.f32.mrf.mxu0
      %7287 = vmatprep.mubr.bf16.mxu0 0
      %7288 = vmatmul.mubr.bf16.gmra.mxu0 %v6849
      %v7289 = vpop.f32.mrf.mxu0
      %v7290 = vadd.f32 0.0, %v7289
      %v7291 = vpop.f32.mrf.mxu0
      %v7292 = vpop.f32.mrf.mxu0
      %v7293 = vadd.f32 0.0, %v7292
      %v7294 = vpop.f32.mrf.mxu0
      %7295 = vmatprep.mubr.bf16.mxu0 0
      %7296 = vmatmul.mubr.bf16.gmra.mxu0 %v6852
      %v7297 = vpop.f32.mrf.mxu0
      %v7298 = vadd.f32 0.0, %v7297
      %v7299 = vpop.f32.mrf.mxu0
      %v7300 = vpop.f32.mrf.mxu0
      %v7301 = vadd.f32 0.0, %v7300
      %v7302 = vpop.f32.mrf.mxu0
      %7303 = vmatprep.mubr.bf16.mxu0 0
      %7304 = vmatmul.mubr.bf16.gmra.mxu0 %v6855
      %v7305 = vpop.f32.mrf.mxu0
      %v7306 = vadd.f32 0.0, %v7305
      %v7307 = vpop.f32.mrf.mxu0
      %v7308 = vpop.f32.mrf.mxu0
      %v7309 = vadd.f32 0.0, %v7308
      %v7310 = vpop.f32.mrf.mxu0
      %7311 = vmatprep.mubr.bf16.mxu0 0
      %7312 = vmatmul.mubr.bf16.gmra.mxu0 %v6858
      %v7313 = vpop.f32.mrf.mxu0
      %v7314 = vadd.f32 0.0, %v7313
      %v7315 = vpop.f32.mrf.mxu0
      %v7316 = vpop.f32.mrf.mxu0
      %v7317 = vpop.f32.mrf.mxu0
      %7318 = vdwg.mxu0
      %v7319 = vadd.f32 %v6436, %v6898
      %v7320 = vadd.f32 %v6437, %v6901
      %v7321 = vadd.f32 %v6438, %v6906
      %v7322 = vadd.f32 %v6439, %v6909
      %v7323 = vadd.f32 %v6440, %v6914
      %v7324 = vadd.f32 %v6441, %v6917
      %v7325 = vadd.f32 %v6442, %v6922
      %v7326 = vadd.f32 %v6443, %v6925
      %v7327 = vadd.f32 %v6444, %v6930
      %v7328 = vadd.f32 %v6445, %v6933
      %v7329 = vadd.f32 %v6446, %v6938
      %v7330 = vadd.f32 %v6447, %v6941
      %v7331 = vadd.f32 %v6448, %v6946
      %v7332 = vadd.f32 %v6449, %v6949
      %v7333 = vadd.f32 %v6450, %v6954
      %v7334 = vadd.f32 %v6451, %v6957
      %v7335 = vadd.f32 %v6452, %v6962
      %v7336 = vadd.f32 %v6453, %v6965
      %v7337 = vadd.f32 %v6454, %v6970
      %v7338 = vadd.f32 %v6455, %v6973
      %v7339 = vadd.f32 %v6456, %v6978
      %v7340 = vadd.f32 %v6457, %v6981
      %v7341 = vadd.f32 %v6458, %v6986
      %v7342 = vadd.f32 %v6459, %v6989
      %v7343 = vadd.f32 %v6460, %v6994
      %v7344 = vadd.f32 %v6461, %v6997
      %v7345 = vadd.f32 %v6462, %v7002
      %v7346 = vadd.f32 %v6463, %v7005
      %v7347 = vadd.f32 %v6464, %v7010
      %v7348 = vadd.f32 %v6465, %v7013
      %v7349 = vadd.f32 %v6466, %v7018
      %v7350 = vadd.f32 %v6467, %v7021
      %v7351 = vadd.f32 %v6468, %v7026
      %v7352 = vadd.f32 %v6469, %v7029
      %v7353 = vadd.f32 %v6470, %v7034
      %v7354 = vadd.f32 %v6471, %v7037
      %v7355 = vadd.f32 %v6472, %v7042
      %v7356 = vadd.f32 %v6473, %v7045
      %v7357 = vadd.f32 %v6474, %v7050
      %v7358 = vadd.f32 %v6475, %v7053
      %v7359 = vadd.f32 %v6476, %v7058
      %v7360 = vadd.f32 %v6477, %v7061
      %v7361 = vadd.f32 %v6478, %v7066
      %v7362 = vadd.f32 %v6479, %v7069
      %v7363 = vadd.f32 %v6480, %v7074
      %v7364 = vadd.f32 %v6481, %v7077
      %v7365 = vadd.f32 %v6482, %v7082
      %v7366 = vadd.f32 %v6483, %v7085
      %v7367 = vadd.f32 %v6484, %v7090
      %v7368 = vadd.f32 %v6485, %v7093
      %v7369 = vadd.f32 %v6486, %v7098
      %v7370 = vadd.f32 %v6487, %v7101
      %v7371 = vadd.f32 %v6488, %v7106
      %v7372 = vadd.f32 %v6489, %v7109
      %v7373 = vadd.f32 %v6490, %v7114
      %v7374 = vadd.f32 %v6491, %v7117
      %v7375 = vadd.f32 %v6492, %v7122
      %v7376 = vadd.f32 %v6493, %v7125
      %v7377 = vadd.f32 %v6494, %v7130
      %v7378 = vadd.f32 %v6495, %v7133
      %v7379 = vadd.f32 %v6496, %v7138
      %v7380 = vadd.f32 %v6497, %v7141
      %v7381 = vadd.f32 %v6498, %v7146
      %v7382 = vadd.f32 %v6499, %v7149
      %v7383 = vadd.f32 %v6500, %v7154
      %v7384 = vadd.f32 %v6501, %v7157
      %v7385 = vadd.f32 %v6502, %v7162
      %v7386 = vadd.f32 %v6503, %v7165
      %v7387 = vadd.f32 %v6504, %v7170
      %v7388 = vadd.f32 %v6505, %v7173
      %v7389 = vadd.f32 %v6506, %v7178
      %v7390 = vadd.f32 %v6507, %v7181
      %v7391 = vadd.f32 %v6508, %v7186
      %v7392 = vadd.f32 %v6509, %v7189
      %v7393 = vadd.f32 %v6510, %v7194
      %v7394 = vadd.f32 %v6511, %v7197
      %v7395 = vadd.f32 %v6512, %v7202
      %v7396 = vadd.f32 %v6513, %v7205
      %v7397 = vadd.f32 %v6514, %v7210
      %v7398 = vadd.f32 %v6515, %v7213
      %v7399 = vadd.f32 %v6516, %v7218
      %v7400 = vadd.f32 %v6517, %v7221
      %v7401 = vadd.f32 %v6518, %v7226
      %v7402 = vadd.f32 %v6519, %v7229
      %v7403 = vadd.f32 %v6520, %v7234
      %v7404 = vadd.f32 %v6521, %v7237
      %v7405 = vadd.f32 %v6522, %v7242
      %v7406 = vadd.f32 %v6523, %v7245
      %v7407 = vadd.f32 %v6524, %v7250
      %v7408 = vadd.f32 %v6525, %v7253
      %v7409 = vadd.f32 %v6526, %v7258
      %v7410 = vadd.f32 %v6527, %v7261
      %v7411 = vadd.f32 %v6528, %v7266
      %v7412 = vadd.f32 %v6529, %v7269
      %v7413 = vadd.f32 %v6530, %v7274
      %v7414 = vadd.f32 %v6531, %v7277
      %v7415 = vadd.f32 %v6532, %v7282
      %v7416 = vadd.f32 %v6533, %v7285
      %v7417 = vadd.f32 %v6534, %v7290
      %v7418 = vadd.f32 %v6535, %v7293
      %v7419 = vadd.f32 %v6536, %v7298
      %v7420 = vadd.f32 %v6537, %v7301
      %v7421 = vadd.f32 %v6538, %v7306
      %v7422 = vadd.f32 %v6539, %v7309
      %v7423 = vadd.f32 %v6540, %v7314
      %v7424 = vld [vmem:[#allocation2 + $0x3e] sm:$0xff]
      %v7425 = vld [vmem:[#allocation2 + $0x46] sm:$0xff]
      %v7426 = vld [vmem:[#allocation2 + $0x4e] sm:$0xff]
      %v7427 = vld [vmem:[#allocation2 + $0x56] sm:$0xff]
      %v7428 = vld [vmem:[#allocation2 + $0x5e] sm:$0xff]
      %v7429 = vld [vmem:[#allocation2 + $0x66] sm:$0xff]
      %v7430 = vld [vmem:[#allocation2 + $0x6e] sm:$0xff]
      %v7431 = vld [vmem:[#allocation2 + $0x76] sm:$0xff]
      %v7432 = vld [vmem:[#allocation2 + $0x7e] sm:$0xff]
      %v7433 = vld [vmem:[#allocation2 + $0x86] sm:$0xff]
      %v7434 = vld [vmem:[#allocation2 + $0x8e] sm:$0xff]
      %v7435 = vld [vmem:[#allocation2 + $0x96] sm:$0xff]
      %v7436 = vld [vmem:[#allocation2 + $0x9e] sm:$0xff]
      %v7437 = vld [vmem:[#allocation2 + $0xa6] sm:$0xff]
      %v7438 = vld [vmem:[#allocation2 + $0xae] sm:$0xff]
      %v7439 = vld [vmem:[#allocation2 + $0xb6] sm:$0xff]
      %v7440 = vld [vmem:[#allocation2 + $0xbe] sm:$0xff]
      %v7441 = vld [vmem:[#allocation2 + $0xc6] sm:$0xff]
      %v7442 = vld [vmem:[#allocation2 + $0xce] sm:$0xff]
      %v7443 = vld [vmem:[#allocation2 + $0xd6] sm:$0xff]
      %v7444 = vld [vmem:[#allocation2 + $0xde] sm:$0xff]
      %v7445 = vld [vmem:[#allocation2 + $0xe6] sm:$0xff]
      %v7446 = vld [vmem:[#allocation2 + $0xee] sm:$0xff]
      %v7447 = vld [vmem:[#allocation2 + $0xf6] sm:$0xff]
      %v7448 = vld [vmem:[#allocation2 + $0xfe] sm:$0xff]
      %v7449 = vld [vmem:[#allocation2 + $0x106] sm:$0xff]
      %v7450 = vld [vmem:[#allocation2 + $0x10e] sm:$0xff]
      %v7451 = vld [vmem:[#allocation2 + $0x116] sm:$0xff]
      %v7452 = vld [vmem:[#allocation2 + $0x11e] sm:$0xff]
      %v7453 = vld [vmem:[#allocation2 + $0x126] sm:$0xff]
      %v7454 = vld [vmem:[#allocation2 + $0x12e] sm:$0xff]
      %v7455 = vld [vmem:[#allocation2 + $0x136] sm:$0xff]
      %v7456 = vld [vmem:[#allocation2 + $0x13e] sm:$0xff]
      %v7457 = vld [vmem:[#allocation2 + $0x146] sm:$0xff]
      %v7458 = vld [vmem:[#allocation2 + $0x14e] sm:$0xff]
      %v7459 = vld [vmem:[#allocation2 + $0x156] sm:$0xff]
      %v7460 = vld [vmem:[#allocation2 + $0x15e] sm:$0xff]
      %v7461 = vld [vmem:[#allocation2 + $0x166] sm:$0xff]
      %v7462 = vld [vmem:[#allocation2 + $0x16e] sm:$0xff]
      %v7463 = vld [vmem:[#allocation2 + $0x176] sm:$0xff]
      %v7464 = vld [vmem:[#allocation2 + $0x17e] sm:$0xff]
      %v7465 = vld [vmem:[#allocation2 + $0x186] sm:$0xff]
      %v7466 = vld [vmem:[#allocation2 + $0x18e] sm:$0xff]
      %v7467 = vld [vmem:[#allocation2 + $0x196] sm:$0xff]
      %v7468 = vld [vmem:[#allocation2 + $0x19e] sm:$0xff]
      %v7469 = vld [vmem:[#allocation2 + $0x1a6] sm:$0xff]
      %v7470 = vld [vmem:[#allocation2 + $0x1ae] sm:$0xff]
      %v7471 = vld [vmem:[#allocation2 + $0x1b6] sm:$0xff]
      %v7472 = vld [vmem:[#allocation2 + $0x1be] sm:$0xff]
      %v7473 = vld [vmem:[#allocation2 + $0x1c6] sm:$0xff]
      %v7474 = vld [vmem:[#allocation2 + $0x1ce] sm:$0xff]
      %v7475 = vld [vmem:[#allocation2 + $0x1d6] sm:$0xff]
      %v7476 = vld [vmem:[#allocation2 + $0x1de] sm:$0xff]
      %v7477 = vld [vmem:[#allocation2 + $0x1e6] sm:$0xff]
      %v7478 = vld [vmem:[#allocation2 + $0x1ee] sm:$0xff]
      %v7479 = vld [vmem:[#allocation2 + $0x1f6] sm:$0xff]
      %v7480 = vld [vmem:[#allocation2 + $0x1fe] sm:$0xff]
      %v7481 = vld [vmem:[#allocation2 + $0x206] sm:$0xff]
      %v7482 = vld [vmem:[#allocation2 + $0x20e] sm:$0xff]
      %v7483 = vld [vmem:[#allocation2 + $0x216] sm:$0xff]
      %v7484 = vld [vmem:[#allocation2 + $0x21e] sm:$0xff]
      %v7485 = vld [vmem:[#allocation2 + $0x226] sm:$0xff]
      %v7486 = vld [vmem:[#allocation2 + $0x22e] sm:$0xff]
      %v7487 = vld [vmem:[#allocation2 + $0x236] sm:$0xff]
      %v7488 = vld [vmem:[#allocation2 + $0x23e] sm:$0xff]
      %v7489 = vld [vmem:[#allocation2 + $0x246] sm:$0xff]
      %v7490 = vld [vmem:[#allocation2 + $0x24e] sm:$0xff]
      %v7491 = vld [vmem:[#allocation2 + $0x256] sm:$0xff]
      %v7492 = vld [vmem:[#allocation2 + $0x25e] sm:$0xff]
      %v7493 = vld [vmem:[#allocation2 + $0x266] sm:$0xff]
      %v7494 = vld [vmem:[#allocation2 + $0x26e] sm:$0xff]
      %v7495 = vld [vmem:[#allocation2 + $0x276] sm:$0xff]
      %v7496 = vld [vmem:[#allocation2 + $0x27e] sm:$0xff]
      %v7497 = vld [vmem:[#allocation2 + $0x286] sm:$0xff]
      %v7498 = vld [vmem:[#allocation2 + $0x28e] sm:$0xff]
      %v7499 = vld [vmem:[#allocation2 + $0x296] sm:$0xff]
      %v7500 = vld [vmem:[#allocation2 + $0x29e] sm:$0xff]
      %v7501 = vld [vmem:[#allocation2 + $0x2a6] sm:$0xff]
      %v7502 = vld [vmem:[#allocation2 + $0x2ae] sm:$0xff]
      %v7503 = vld [vmem:[#allocation2 + $0x2b6] sm:$0xff]
      %v7504 = vld [vmem:[#allocation2 + $0x2be] sm:$0xff]
      %v7505 = vld [vmem:[#allocation2 + $0x2c6] sm:$0xff]
      %v7506 = vld [vmem:[#allocation2 + $0x2ce] sm:$0xff]
      %v7507 = vld [vmem:[#allocation2 + $0x2d6] sm:$0xff]
      %v7508 = vld [vmem:[#allocation2 + $0x2de] sm:$0xff]
      %v7509 = vld [vmem:[#allocation2 + $0x2e6] sm:$0xff]
      %v7510 = vld [vmem:[#allocation2 + $0x2ee] sm:$0xff]
      %v7511 = vld [vmem:[#allocation2 + $0x2f6] sm:$0xff]
      %v7512 = vld [vmem:[#allocation2 + $0x2fe] sm:$0xff]
      %v7513 = vld [vmem:[#allocation2 + $0x306] sm:$0xff]
      %v7514 = vld [vmem:[#allocation2 + $0x30e] sm:$0xff]
      %v7515 = vld [vmem:[#allocation2 + $0x316] sm:$0xff]
      %v7516 = vld [vmem:[#allocation2 + $0x31e] sm:$0xff]
      %v7517 = vld [vmem:[#allocation2 + $0x326] sm:$0xff]
      %v7518 = vld [vmem:[#allocation2 + $0x32e] sm:$0xff]
      %v7519 = vld [vmem:[#allocation2 + $0x336] sm:$0xff]
      %v7520 = vld [vmem:[#allocation2 + $0x33e] sm:$0xff]
      %v7521 = vld [vmem:[#allocation2 + $0x346] sm:$0xff]
      %v7522 = vld [vmem:[#allocation2 + $0x34e] sm:$0xff]
      %v7523 = vld [vmem:[#allocation2 + $0x356] sm:$0xff]
      %v7524 = vld [vmem:[#allocation2 + $0x35e] sm:$0xff]
      %v7525 = vld [vmem:[#allocation2 + $0x366] sm:$0xff]
      %v7526 = vld [vmem:[#allocation2 + $0x36e] sm:$0xff]
      %v7527 = vld [vmem:[#allocation2 + $0x376] sm:$0xff]
      %v7528 = vld [vmem:[#allocation2 + $0x37e] sm:$0x3f]
      %v7529 = vpack.c.bf16 %v7425, %v7424
      %v7530 = vpack.c.bf16 %v7427, %v7426
      %v7531 = vpack.c.bf16 %v7429, %v7428
      %v7532 = vpack.c.bf16 %v7431, %v7430
      %v7533 = vpack.c.bf16 %v7433, %v7432
      %v7534 = vpack.c.bf16 %v7435, %v7434
      %v7535 = vpack.c.bf16 %v7437, %v7436
      %v7536 = vpack.c.bf16 %v7439, %v7438
      %v7537 = vpack.c.bf16 %v7441, %v7440
      %v7538 = vpack.c.bf16 %v7443, %v7442
      %v7539 = vpack.c.bf16 %v7445, %v7444
      %v7540 = vpack.c.bf16 %v7447, %v7446
      %v7541 = vpack.c.bf16 %v7449, %v7448
      %v7542 = vpack.c.bf16 %v7451, %v7450
      %v7543 = vpack.c.bf16 %v7453, %v7452
      %v7544 = vpack.c.bf16 %v7455, %v7454
      %v7545 = vpack.c.bf16 %v7457, %v7456
      %v7546 = vpack.c.bf16 %v7459, %v7458
      %v7547 = vpack.c.bf16 %v7461, %v7460
      %v7548 = vpack.c.bf16 %v7463, %v7462
      %v7549 = vpack.c.bf16 %v7465, %v7464
      %v7550 = vpack.c.bf16 %v7467, %v7466
      %v7551 = vpack.c.bf16 %v7469, %v7468
      %v7552 = vpack.c.bf16 %v7471, %v7470
      %v7553 = vpack.c.bf16 %v7473, %v7472
      %v7554 = vpack.c.bf16 %v7475, %v7474
      %v7555 = vpack.c.bf16 %v7477, %v7476
      %v7556 = vpack.c.bf16 %v7479, %v7478
      %v7557 = vpack.c.bf16 %v7481, %v7480
      %v7558 = vpack.c.bf16 %v7483, %v7482
      %v7559 = vpack.c.bf16 %v7485, %v7484
      %v7560 = vpack.c.bf16 %v7487, %v7486
      %v7561 = vpack.c.bf16 %v7489, %v7488
      %v7562 = vpack.c.bf16 %v7491, %v7490
      %v7563 = vpack.c.bf16 %v7493, %v7492
      %v7564 = vpack.c.bf16 %v7495, %v7494
      %v7565 = vpack.c.bf16 %v7497, %v7496
      %v7566 = vpack.c.bf16 %v7499, %v7498
      %v7567 = vpack.c.bf16 %v7501, %v7500
      %v7568 = vpack.c.bf16 %v7503, %v7502
      %v7569 = vpack.c.bf16 %v7505, %v7504
      %v7570 = vpack.c.bf16 %v7507, %v7506
      %v7571 = vpack.c.bf16 %v7509, %v7508
      %v7572 = vpack.c.bf16 %v7511, %v7510
      %v7573 = vpack.c.bf16 %v7513, %v7512
      %v7574 = vpack.c.bf16 %v7515, %v7514
      %v7575 = vpack.c.bf16 %v7517, %v7516
      %v7576 = vpack.c.bf16 %v7519, %v7518
      %v7577 = vpack.c.bf16 %v7521, %v7520
      %v7578 = vpack.c.bf16 %v7523, %v7522
      %v7579 = vpack.c.bf16 %v7525, %v7524
      %v7580 = vpack.c.bf16 %v7527, %v7526
      %v7581 = vpack.c.bf16 %v7528, %v7528
      %s7582 = scalar_lea.vmem %s1, 16
      %v7583 = vld [vmem:[%s7582] sm:$0x3]
      %v7585 = vsel %vm452, %v7529, 0
      %v7588 = vsel %vm452, %v7530, 0
      %v7591 = vsel %vm452, %v7531, 0
      %v7594 = vsel %vm452, %v7532, 0
      %v7597 = vsel %vm452, %v7533, 0
      %v7600 = vsel %vm452, %v7534, 0
      %v7603 = vsel %vm452, %v7535, 0
      %v7606 = vsel %vm452, %v7536, 0
      %v7609 = vsel %vm452, %v7537, 0
      %v7612 = vsel %vm452, %v7538, 0
      %v7615 = vsel %vm452, %v7539, 0
      %v7618 = vsel %vm452, %v7540, 0
      %v7621 = vsel %vm452, %v7541, 0
      %v7624 = vsel %vm452, %v7542, 0
      %v7627 = vsel %vm452, %v7543, 0
      %v7630 = vsel %vm452, %v7544, 0
      %v7633 = vsel %vm452, %v7545, 0
      %v7636 = vsel %vm452, %v7546, 0
      %v7639 = vsel %vm452, %v7547, 0
      %v7642 = vsel %vm452, %v7548, 0
      %v7645 = vsel %vm452, %v7549, 0
      %v7648 = vsel %vm452, %v7550, 0
      %v7651 = vsel %vm452, %v7551, 0
      %v7654 = vsel %vm452, %v7552, 0
      %v7657 = vsel %vm452, %v7553, 0
      %v7660 = vsel %vm452, %v7554, 0
      %v7663 = vsel %vm452, %v7555, 0
      %v7666 = vsel %vm452, %v7556, 0
      %v7669 = vsel %vm452, %v7557, 0
      %v7672 = vsel %vm452, %v7558, 0
      %v7675 = vsel %vm452, %v7559, 0
      %v7678 = vsel %vm452, %v7560, 0
      %v7681 = vsel %vm452, %v7561, 0
      %v7684 = vsel %vm452, %v7562, 0
      %v7687 = vsel %vm452, %v7563, 0
      %v7690 = vsel %vm452, %v7564, 0
      %v7693 = vsel %vm452, %v7565, 0
      %v7696 = vsel %vm452, %v7566, 0
      %v7699 = vsel %vm452, %v7567, 0
      %v7702 = vsel %vm452, %v7568, 0
      %v7705 = vsel %vm452, %v7569, 0
      %v7708 = vsel %vm452, %v7570, 0
      %v7711 = vsel %vm452, %v7571, 0
      %v7714 = vsel %vm452, %v7572, 0
      %v7717 = vsel %vm452, %v7573, 0
      %v7720 = vsel %vm452, %v7574, 0
      %v7723 = vsel %vm452, %v7575, 0
      %v7726 = vsel %vm452, %v7576, 0
      %v7729 = vsel %vm452, %v7577, 0
      %v7732 = vsel %vm452, %v7578, 0
      %v7735 = vsel %vm452, %v7579, 0
      %v7738 = vsel %vm452, %v7580, 0
      %v7741 = vsel %vm452, %v7581, 0
      %v7744 = vand.u32 %v7583, %v1048
      %7746 = vmatprep.subr.bf16.mxu0 0
      %7747 = vmatpush1.bf16.msra.mxu0 0
      %7748 = vmatprep.subr.bf16.mxu0 0
      %7749 = vmatpush1.bf16.msra.mxu0 0
      %7750 = vmatprep.subr.bf16.mxu0 0
      %7751 = vmatpush1.bf16.msra.mxu0 0
      %7752 = vmatprep.subr.bf16.mxu0 0
      %7753 = vmatpush1.bf16.msra.mxu0 0
      %7754 = vmatprep.subr.bf16.mxu0 0
      %7755 = vmatpush1.bf16.msra.mxu0 0
      %7756 = vmatprep.subr.bf16.mxu0 0
      %7757 = vmatpush1.bf16.msra.mxu0 0
      %7758 = vmatprep.subr.bf16.mxu0 0
      %7759 = vmatpush1.bf16.msra.mxu0 0
      %7760 = vmatprep.subr.bf16.mxu0 0
      %7761 = vmatpush1.bf16.msra.mxu0 %v7744
      %7762 = vmatprep.subr.bf16.mxu0 0
      %7763 = vmatpush2.bf16.msra.mxu0 0
      %7764 = vmatprep.subr.bf16.mxu0 0
      %7765 = vmatpush2.bf16.msra.mxu0 0
      %7766 = vmatprep.subr.bf16.mxu0 0
      %7767 = vmatpush2.bf16.msra.mxu0 0
      %7768 = vmatprep.subr.bf16.mxu0 0
      %7769 = vmatpush2.bf16.msra.mxu0 0
      %7770 = vmatprep.subr.bf16.mxu0 0
      %7771 = vmatpush2.bf16.msra.mxu0 0
      %7772 = vmatprep.subr.bf16.mxu0 0
      %7773 = vmatpush2.bf16.msra.mxu0 0
      %7774 = vmatprep.subr.bf16.mxu0 0
      %7775 = vmatpush2.bf16.msra.mxu0 0
      %7776 = vmatprep.subr.bf16.mxu0 0
      %7777 = vmatpush2.bf16.msra.mxu0 0
      %7778 = vmatprep.mubr.bf16.mxu0 0
      %7779 = vmatmul.mubr.bf16.gmra.mxu0 %v7585
      %v7780 = vpop.f32.mrf.mxu0
      %v7781 = vadd.f32 0.0, %v7780
      %v7782 = vpop.f32.mrf.mxu0
      %v7783 = vpop.f32.mrf.mxu0
      %v7784 = vadd.f32 0.0, %v7783
      %v7785 = vpop.f32.mrf.mxu0
      %7786 = vmatprep.mubr.bf16.mxu0 0
      %7787 = vmatmul.mubr.bf16.gmra.mxu0 %v7588
      %v7788 = vpop.f32.mrf.mxu0
      %v7789 = vadd.f32 0.0, %v7788
      %v7790 = vpop.f32.mrf.mxu0
      %v7791 = vpop.f32.mrf.mxu0
      %v7792 = vadd.f32 0.0, %v7791
      %v7793 = vpop.f32.mrf.mxu0
      %7794 = vmatprep.mubr.bf16.mxu0 0
      %7795 = vmatmul.mubr.bf16.gmra.mxu0 %v7591
      %v7796 = vpop.f32.mrf.mxu0
      %v7797 = vadd.f32 0.0, %v7796
      %v7798 = vpop.f32.mrf.mxu0
      %v7799 = vpop.f32.mrf.mxu0
      %v7800 = vadd.f32 0.0, %v7799
      %v7801 = vpop.f32.mrf.mxu0
      %7802 = vmatprep.mubr.bf16.mxu0 0
      %7803 = vmatmul.mubr.bf16.gmra.mxu0 %v7594
      %v7804 = vpop.f32.mrf.mxu0
      %v7805 = vadd.f32 0.0, %v7804
      %v7806 = vpop.f32.mrf.mxu0
      %v7807 = vpop.f32.mrf.mxu0
      %v7808 = vadd.f32 0.0, %v7807
      %v7809 = vpop.f32.mrf.mxu0
      %7810 = vmatprep.mubr.bf16.mxu0 0
      %7811 = vmatmul.mubr.bf16.gmra.mxu0 %v7597
      %v7812 = vpop.f32.mrf.mxu0
      %v7813 = vadd.f32 0.0, %v7812
      %v7814 = vpop.f32.mrf.mxu0
      %v7815 = vpop.f32.mrf.mxu0
      %v7816 = vadd.f32 0.0, %v7815
      %v7817 = vpop.f32.mrf.mxu0
      %7818 = vmatprep.mubr.bf16.mxu0 0
      %7819 = vmatmul.mubr.bf16.gmra.mxu0 %v7600
      %v7820 = vpop.f32.mrf.mxu0
      %v7821 = vadd.f32 0.0, %v7820
      %v7822 = vpop.f32.mrf.mxu0
      %v7823 = vpop.f32.mrf.mxu0
      %v7824 = vadd.f32 0.0, %v7823
      %v7825 = vpop.f32.mrf.mxu0
      %7826 = vmatprep.mubr.bf16.mxu0 0
      %7827 = vmatmul.mubr.bf16.gmra.mxu0 %v7603
      %v7828 = vpop.f32.mrf.mxu0
      %v7829 = vadd.f32 0.0, %v7828
      %v7830 = vpop.f32.mrf.mxu0
      %v7831 = vpop.f32.mrf.mxu0
      %v7832 = vadd.f32 0.0, %v7831
      %v7833 = vpop.f32.mrf.mxu0
      %7834 = vmatprep.mubr.bf16.mxu0 0
      %7835 = vmatmul.mubr.bf16.gmra.mxu0 %v7606
      %v7836 = vpop.f32.mrf.mxu0
      %v7837 = vadd.f32 0.0, %v7836
      %v7838 = vpop.f32.mrf.mxu0
      %v7839 = vpop.f32.mrf.mxu0
      %v7840 = vadd.f32 0.0, %v7839
      %v7841 = vpop.f32.mrf.mxu0
      %7842 = vmatprep.mubr.bf16.mxu0 0
      %7843 = vmatmul.mubr.bf16.gmra.mxu0 %v7609
      %v7844 = vpop.f32.mrf.mxu0
      %v7845 = vadd.f32 0.0, %v7844
      %v7846 = vpop.f32.mrf.mxu0
      %v7847 = vpop.f32.mrf.mxu0
      %v7848 = vadd.f32 0.0, %v7847
      %v7849 = vpop.f32.mrf.mxu0
      %7850 = vmatprep.mubr.bf16.mxu0 0
      %7851 = vmatmul.mubr.bf16.gmra.mxu0 %v7612
      %v7852 = vpop.f32.mrf.mxu0
      %v7853 = vadd.f32 0.0, %v7852
      %v7854 = vpop.f32.mrf.mxu0
      %v7855 = vpop.f32.mrf.mxu0
      %v7856 = vadd.f32 0.0, %v7855
      %v7857 = vpop.f32.mrf.mxu0
      %7858 = vmatprep.mubr.bf16.mxu0 0
      %7859 = vmatmul.mubr.bf16.gmra.mxu0 %v7615
      %v7860 = vpop.f32.mrf.mxu0
      %v7861 = vadd.f32 0.0, %v7860
      %v7862 = vpop.f32.mrf.mxu0
      %v7863 = vpop.f32.mrf.mxu0
      %v7864 = vadd.f32 0.0, %v7863
      %v7865 = vpop.f32.mrf.mxu0
      %7866 = vmatprep.mubr.bf16.mxu0 0
      %7867 = vmatmul.mubr.bf16.gmra.mxu0 %v7618
      %v7868 = vpop.f32.mrf.mxu0
      %v7869 = vadd.f32 0.0, %v7868
      %v7870 = vpop.f32.mrf.mxu0
      %v7871 = vpop.f32.mrf.mxu0
      %v7872 = vadd.f32 0.0, %v7871
      %v7873 = vpop.f32.mrf.mxu0
      %7874 = vmatprep.mubr.bf16.mxu0 0
      %7875 = vmatmul.mubr.bf16.gmra.mxu0 %v7621
      %v7876 = vpop.f32.mrf.mxu0
      %v7877 = vadd.f32 0.0, %v7876
      %v7878 = vpop.f32.mrf.mxu0
      %v7879 = vpop.f32.mrf.mxu0
      %v7880 = vadd.f32 0.0, %v7879
      %v7881 = vpop.f32.mrf.mxu0
      %7882 = vmatprep.mubr.bf16.mxu0 0
      %7883 = vmatmul.mubr.bf16.gmra.mxu0 %v7624
      %v7884 = vpop.f32.mrf.mxu0
      %v7885 = vadd.f32 0.0, %v7884
      %v7886 = vpop.f32.mrf.mxu0
      %v7887 = vpop.f32.mrf.mxu0
      %v7888 = vadd.f32 0.0, %v7887
      %v7889 = vpop.f32.mrf.mxu0
      %7890 = vmatprep.mubr.bf16.mxu0 0
      %7891 = vmatmul.mubr.bf16.gmra.mxu0 %v7627
      %v7892 = vpop.f32.mrf.mxu0
      %v7893 = vadd.f32 0.0, %v7892
      %v7894 = vpop.f32.mrf.mxu0
      %v7895 = vpop.f32.mrf.mxu0
      %v7896 = vadd.f32 0.0, %v7895
      %v7897 = vpop.f32.mrf.mxu0
      %7898 = vmatprep.mubr.bf16.mxu0 0
      %7899 = vmatmul.mubr.bf16.gmra.mxu0 %v7630
      %v7900 = vpop.f32.mrf.mxu0
      %v7901 = vadd.f32 0.0, %v7900
      %v7902 = vpop.f32.mrf.mxu0
      %v7903 = vpop.f32.mrf.mxu0
      %v7904 = vadd.f32 0.0, %v7903
      %v7905 = vpop.f32.mrf.mxu0
      %7906 = vmatprep.mubr.bf16.mxu0 0
      %7907 = vmatmul.mubr.bf16.gmra.mxu0 %v7633
      %v7908 = vpop.f32.mrf.mxu0
      %v7909 = vadd.f32 0.0, %v7908
      %v7910 = vpop.f32.mrf.mxu0
      %v7911 = vpop.f32.mrf.mxu0
      %v7912 = vadd.f32 0.0, %v7911
      %v7913 = vpop.f32.mrf.mxu0
      %7914 = vmatprep.mubr.bf16.mxu0 0
      %7915 = vmatmul.mubr.bf16.gmra.mxu0 %v7636
      %v7916 = vpop.f32.mrf.mxu0
      %v7917 = vadd.f32 0.0, %v7916
      %v7918 = vpop.f32.mrf.mxu0
      %v7919 = vpop.f32.mrf.mxu0
      %v7920 = vadd.f32 0.0, %v7919
      %v7921 = vpop.f32.mrf.mxu0
      %7922 = vmatprep.mubr.bf16.mxu0 0
      %7923 = vmatmul.mubr.bf16.gmra.mxu0 %v7639
      %v7924 = vpop.f32.mrf.mxu0
      %v7925 = vadd.f32 0.0, %v7924
      %v7926 = vpop.f32.mrf.mxu0
      %v7927 = vpop.f32.mrf.mxu0
      %v7928 = vadd.f32 0.0, %v7927
      %v7929 = vpop.f32.mrf.mxu0
      %7930 = vmatprep.mubr.bf16.mxu0 0
      %7931 = vmatmul.mubr.bf16.gmra.mxu0 %v7642
      %v7932 = vpop.f32.mrf.mxu0
      %v7933 = vadd.f32 0.0, %v7932
      %v7934 = vpop.f32.mrf.mxu0
      %v7935 = vpop.f32.mrf.mxu0
      %v7936 = vadd.f32 0.0, %v7935
      %v7937 = vpop.f32.mrf.mxu0
      %7938 = vmatprep.mubr.bf16.mxu0 0
      %7939 = vmatmul.mubr.bf16.gmra.mxu0 %v7645
      %v7940 = vpop.f32.mrf.mxu0
      %v7941 = vadd.f32 0.0, %v7940
      %v7942 = vpop.f32.mrf.mxu0
      %v7943 = vpop.f32.mrf.mxu0
      %v7944 = vadd.f32 0.0, %v7943
      %v7945 = vpop.f32.mrf.mxu0
      %7946 = vmatprep.mubr.bf16.mxu0 0
      %7947 = vmatmul.mubr.bf16.gmra.mxu0 %v7648
      %v7948 = vpop.f32.mrf.mxu0
      %v7949 = vadd.f32 0.0, %v7948
      %v7950 = vpop.f32.mrf.mxu0
      %v7951 = vpop.f32.mrf.mxu0
      %v7952 = vadd.f32 0.0, %v7951
      %v7953 = vpop.f32.mrf.mxu0
      %7954 = vmatprep.mubr.bf16.mxu0 0
      %7955 = vmatmul.mubr.bf16.gmra.mxu0 %v7651
      %v7956 = vpop.f32.mrf.mxu0
      %v7957 = vadd.f32 0.0, %v7956
      %v7958 = vpop.f32.mrf.mxu0
      %v7959 = vpop.f32.mrf.mxu0
      %v7960 = vadd.f32 0.0, %v7959
      %v7961 = vpop.f32.mrf.mxu0
      %7962 = vmatprep.mubr.bf16.mxu0 0
      %7963 = vmatmul.mubr.bf16.gmra.mxu0 %v7654
      %v7964 = vpop.f32.mrf.mxu0
      %v7965 = vadd.f32 0.0, %v7964
      %v7966 = vpop.f32.mrf.mxu0
      %v7967 = vpop.f32.mrf.mxu0
      %v7968 = vadd.f32 0.0, %v7967
      %v7969 = vpop.f32.mrf.mxu0
      %7970 = vmatprep.mubr.bf16.mxu0 0
      %7971 = vmatmul.mubr.bf16.gmra.mxu0 %v7657
      %v7972 = vpop.f32.mrf.mxu0
      %v7973 = vadd.f32 0.0, %v7972
      %v7974 = vpop.f32.mrf.mxu0
      %v7975 = vpop.f32.mrf.mxu0
      %v7976 = vadd.f32 0.0, %v7975
      %v7977 = vpop.f32.mrf.mxu0
      %7978 = vmatprep.mubr.bf16.mxu0 0
      %7979 = vmatmul.mubr.bf16.gmra.mxu0 %v7660
      %v7980 = vpop.f32.mrf.mxu0
      %v7981 = vadd.f32 0.0, %v7980
      %v7982 = vpop.f32.mrf.mxu0
      %v7983 = vpop.f32.mrf.mxu0
      %v7984 = vadd.f32 0.0, %v7983
      %v7985 = vpop.f32.mrf.mxu0
      %7986 = vmatprep.mubr.bf16.mxu0 0
      %7987 = vmatmul.mubr.bf16.gmra.mxu0 %v7663
      %v7988 = vpop.f32.mrf.mxu0
      %v7989 = vadd.f32 0.0, %v7988
      %v7990 = vpop.f32.mrf.mxu0
      %v7991 = vpop.f32.mrf.mxu0
      %v7992 = vadd.f32 0.0, %v7991
      %v7993 = vpop.f32.mrf.mxu0
      %7994 = vmatprep.mubr.bf16.mxu0 0
      %7995 = vmatmul.mubr.bf16.gmra.mxu0 %v7666
      %v7996 = vpop.f32.mrf.mxu0
      %v7997 = vadd.f32 0.0, %v7996
      %v7998 = vpop.f32.mrf.mxu0
      %v7999 = vpop.f32.mrf.mxu0
      %v8000 = vadd.f32 0.0, %v7999
      %v8001 = vpop.f32.mrf.mxu0
      %8002 = vmatprep.mubr.bf16.mxu0 0
      %8003 = vmatmul.mubr.bf16.gmra.mxu0 %v7669
      %v8004 = vpop.f32.mrf.mxu0
      %v8005 = vadd.f32 0.0, %v8004
      %v8006 = vpop.f32.mrf.mxu0
      %v8007 = vpop.f32.mrf.mxu0
      %v8008 = vadd.f32 0.0, %v8007
      %v8009 = vpop.f32.mrf.mxu0
      %8010 = vmatprep.mubr.bf16.mxu0 0
      %8011 = vmatmul.mubr.bf16.gmra.mxu0 %v7672
      %v8012 = vpop.f32.mrf.mxu0
      %v8013 = vadd.f32 0.0, %v8012
      %v8014 = vpop.f32.mrf.mxu0
      %v8015 = vpop.f32.mrf.mxu0
      %v8016 = vadd.f32 0.0, %v8015
      %v8017 = vpop.f32.mrf.mxu0
      %8018 = vmatprep.mubr.bf16.mxu0 0
      %8019 = vmatmul.mubr.bf16.gmra.mxu0 %v7675
      %v8020 = vpop.f32.mrf.mxu0
      %v8021 = vadd.f32 0.0, %v8020
      %v8022 = vpop.f32.mrf.mxu0
      %v8023 = vpop.f32.mrf.mxu0
      %v8024 = vadd.f32 0.0, %v8023
      %v8025 = vpop.f32.mrf.mxu0
      %8026 = vmatprep.mubr.bf16.mxu0 0
      %8027 = vmatmul.mubr.bf16.gmra.mxu0 %v7678
      %v8028 = vpop.f32.mrf.mxu0
      %v8029 = vadd.f32 0.0, %v8028
      %v8030 = vpop.f32.mrf.mxu0
      %v8031 = vpop.f32.mrf.mxu0
      %v8032 = vadd.f32 0.0, %v8031
      %v8033 = vpop.f32.mrf.mxu0
      %8034 = vmatprep.mubr.bf16.mxu0 0
      %8035 = vmatmul.mubr.bf16.gmra.mxu0 %v7681
      %v8036 = vpop.f32.mrf.mxu0
      %v8037 = vadd.f32 0.0, %v8036
      %v8038 = vpop.f32.mrf.mxu0
      %v8039 = vpop.f32.mrf.mxu0
      %v8040 = vadd.f32 0.0, %v8039
      %v8041 = vpop.f32.mrf.mxu0
      %8042 = vmatprep.mubr.bf16.mxu0 0
      %8043 = vmatmul.mubr.bf16.gmra.mxu0 %v7684
      %v8044 = vpop.f32.mrf.mxu0
      %v8045 = vadd.f32 0.0, %v8044
      %v8046 = vpop.f32.mrf.mxu0
      %v8047 = vpop.f32.mrf.mxu0
      %v8048 = vadd.f32 0.0, %v8047
      %v8049 = vpop.f32.mrf.mxu0
      %8050 = vmatprep.mubr.bf16.mxu0 0
      %8051 = vmatmul.mubr.bf16.gmra.mxu0 %v7687
      %v8052 = vpop.f32.mrf.mxu0
      %v8053 = vadd.f32 0.0, %v8052
      %v8054 = vpop.f32.mrf.mxu0
      %v8055 = vpop.f32.mrf.mxu0
      %v8056 = vadd.f32 0.0, %v8055
      %v8057 = vpop.f32.mrf.mxu0
      %8058 = vmatprep.mubr.bf16.mxu0 0
      %8059 = vmatmul.mubr.bf16.gmra.mxu0 %v7690
      %v8060 = vpop.f32.mrf.mxu0
      %v8061 = vadd.f32 0.0, %v8060
      %v8062 = vpop.f32.mrf.mxu0
      %v8063 = vpop.f32.mrf.mxu0
      %v8064 = vadd.f32 0.0, %v8063
      %v8065 = vpop.f32.mrf.mxu0
      %8066 = vmatprep.mubr.bf16.mxu0 0
      %8067 = vmatmul.mubr.bf16.gmra.mxu0 %v7693
      %v8068 = vpop.f32.mrf.mxu0
      %v8069 = vadd.f32 0.0, %v8068
      %v8070 = vpop.f32.mrf.mxu0
      %v8071 = vpop.f32.mrf.mxu0
      %v8072 = vadd.f32 0.0, %v8071
      %v8073 = vpop.f32.mrf.mxu0
      %8074 = vmatprep.mubr.bf16.mxu0 0
      %8075 = vmatmul.mubr.bf16.gmra.mxu0 %v7696
      %v8076 = vpop.f32.mrf.mxu0
      %v8077 = vadd.f32 0.0, %v8076
      %v8078 = vpop.f32.mrf.mxu0
      %v8079 = vpop.f32.mrf.mxu0
      %v8080 = vadd.f32 0.0, %v8079
      %v8081 = vpop.f32.mrf.mxu0
      %8082 = vmatprep.mubr.bf16.mxu0 0
      %8083 = vmatmul.mubr.bf16.gmra.mxu0 %v7699
      %v8084 = vpop.f32.mrf.mxu0
      %v8085 = vadd.f32 0.0, %v8084
      %v8086 = vpop.f32.mrf.mxu0
      %v8087 = vpop.f32.mrf.mxu0
      %v8088 = vadd.f32 0.0, %v8087
      %v8089 = vpop.f32.mrf.mxu0
      %8090 = vmatprep.mubr.bf16.mxu0 0
      %8091 = vmatmul.mubr.bf16.gmra.mxu0 %v7702
      %v8092 = vpop.f32.mrf.mxu0
      %v8093 = vadd.f32 0.0, %v8092
      %v8094 = vpop.f32.mrf.mxu0
      %v8095 = vpop.f32.mrf.mxu0
      %v8096 = vadd.f32 0.0, %v8095
      %v8097 = vpop.f32.mrf.mxu0
      %8098 = vmatprep.mubr.bf16.mxu0 0
      %8099 = vmatmul.mubr.bf16.gmra.mxu0 %v7705
      %v8100 = vpop.f32.mrf.mxu0
      %v8101 = vadd.f32 0.0, %v8100
      %v8102 = vpop.f32.mrf.mxu0
      %v8103 = vpop.f32.mrf.mxu0
      %v8104 = vadd.f32 0.0, %v8103
      %v8105 = vpop.f32.mrf.mxu0
      %8106 = vmatprep.mubr.bf16.mxu0 0
      %8107 = vmatmul.mubr.bf16.gmra.mxu0 %v7708
      %v8108 = vpop.f32.mrf.mxu0
      %v8109 = vadd.f32 0.0, %v8108
      %v8110 = vpop.f32.mrf.mxu0
      %v8111 = vpop.f32.mrf.mxu0
      %v8112 = vadd.f32 0.0, %v8111
      %v8113 = vpop.f32.mrf.mxu0
      %8114 = vmatprep.mubr.bf16.mxu0 0
      %8115 = vmatmul.mubr.bf16.gmra.mxu0 %v7711
      %v8116 = vpop.f32.mrf.mxu0
      %v8117 = vadd.f32 0.0, %v8116
      %v8118 = vpop.f32.mrf.mxu0
      %v8119 = vpop.f32.mrf.mxu0
      %v8120 = vadd.f32 0.0, %v8119
      %v8121 = vpop.f32.mrf.mxu0
      %8122 = vmatprep.mubr.bf16.mxu0 0
      %8123 = vmatmul.mubr.bf16.gmra.mxu0 %v7714
      %v8124 = vpop.f32.mrf.mxu0
      %v8125 = vadd.f32 0.0, %v8124
      %v8126 = vpop.f32.mrf.mxu0
      %v8127 = vpop.f32.mrf.mxu0
      %v8128 = vadd.f32 0.0, %v8127
      %v8129 = vpop.f32.mrf.mxu0
      %8130 = vmatprep.mubr.bf16.mxu0 0
      %8131 = vmatmul.mubr.bf16.gmra.mxu0 %v7717
      %v8132 = vpop.f32.mrf.mxu0
      %v8133 = vadd.f32 0.0, %v8132
      %v8134 = vpop.f32.mrf.mxu0
      %v8135 = vpop.f32.mrf.mxu0
      %v8136 = vadd.f32 0.0, %v8135
      %v8137 = vpop.f32.mrf.mxu0
      %8138 = vmatprep.mubr.bf16.mxu0 0
      %8139 = vmatmul.mubr.bf16.gmra.mxu0 %v7720
      %v8140 = vpop.f32.mrf.mxu0
      %v8141 = vadd.f32 0.0, %v8140
      %v8142 = vpop.f32.mrf.mxu0
      %v8143 = vpop.f32.mrf.mxu0
      %v8144 = vadd.f32 0.0, %v8143
      %v8145 = vpop.f32.mrf.mxu0
      %8146 = vmatprep.mubr.bf16.mxu0 0
      %8147 = vmatmul.mubr.bf16.gmra.mxu0 %v7723
      %v8148 = vpop.f32.mrf.mxu0
      %v8149 = vadd.f32 0.0, %v8148
      %v8150 = vpop.f32.mrf.mxu0
      %v8151 = vpop.f32.mrf.mxu0
      %v8152 = vadd.f32 0.0, %v8151
      %v8153 = vpop.f32.mrf.mxu0
      %8154 = vmatprep.mubr.bf16.mxu0 0
      %8155 = vmatmul.mubr.bf16.gmra.mxu0 %v7726
      %v8156 = vpop.f32.mrf.mxu0
      %v8157 = vadd.f32 0.0, %v8156
      %v8158 = vpop.f32.mrf.mxu0
      %v8159 = vpop.f32.mrf.mxu0
      %v8160 = vadd.f32 0.0, %v8159
      %v8161 = vpop.f32.mrf.mxu0
      %8162 = vmatprep.mubr.bf16.mxu0 0
      %8163 = vmatmul.mubr.bf16.gmra.mxu0 %v7729
      %v8164 = vpop.f32.mrf.mxu0
      %v8165 = vadd.f32 0.0, %v8164
      %v8166 = vpop.f32.mrf.mxu0
      %v8167 = vpop.f32.mrf.mxu0
      %v8168 = vadd.f32 0.0, %v8167
      %v8169 = vpop.f32.mrf.mxu0
      %8170 = vmatprep.mubr.bf16.mxu0 0
      %8171 = vmatmul.mubr.bf16.gmra.mxu0 %v7732
      %v8172 = vpop.f32.mrf.mxu0
      %v8173 = vadd.f32 0.0, %v8172
      %v8174 = vpop.f32.mrf.mxu0
      %v8175 = vpop.f32.mrf.mxu0
      %v8176 = vadd.f32 0.0, %v8175
      %v8177 = vpop.f32.mrf.mxu0
      %8178 = vmatprep.mubr.bf16.mxu0 0
      %8179 = vmatmul.mubr.bf16.gmra.mxu0 %v7735
      %v8180 = vpop.f32.mrf.mxu0
      %v8181 = vadd.f32 0.0, %v8180
      %v8182 = vpop.f32.mrf.mxu0
      %v8183 = vpop.f32.mrf.mxu0
      %v8184 = vadd.f32 0.0, %v8183
      %v8185 = vpop.f32.mrf.mxu0
      %8186 = vmatprep.mubr.bf16.mxu0 0
      %8187 = vmatmul.mubr.bf16.gmra.mxu0 %v7738
      %v8188 = vpop.f32.mrf.mxu0
      %v8189 = vadd.f32 0.0, %v8188
      %v8190 = vpop.f32.mrf.mxu0
      %v8191 = vpop.f32.mrf.mxu0
      %v8192 = vadd.f32 0.0, %v8191
      %v8193 = vpop.f32.mrf.mxu0
      %8194 = vmatprep.mubr.bf16.mxu0 0
      %8195 = vmatmul.mubr.bf16.gmra.mxu0 %v7741
      %v8196 = vpop.f32.mrf.mxu0
      %v8197 = vadd.f32 0.0, %v8196
      %v8198 = vpop.f32.mrf.mxu0
      %v8199 = vpop.f32.mrf.mxu0
      %v8200 = vpop.f32.mrf.mxu0
      %8201 = vdwg.mxu0
      %v8202 = vadd.f32 %v7319, %v7781
      %v8203 = vadd.f32 %v7320, %v7784
      %v8204 = vadd.f32 %v7321, %v7789
      %v8205 = vadd.f32 %v7322, %v7792
      %v8206 = vadd.f32 %v7323, %v7797
      %v8207 = vadd.f32 %v7324, %v7800
      %v8208 = vadd.f32 %v7325, %v7805
      %v8209 = vadd.f32 %v7326, %v7808
      %v8210 = vadd.f32 %v7327, %v7813
      %v8211 = vadd.f32 %v7328, %v7816
      %v8212 = vadd.f32 %v7329, %v7821
      %v8213 = vadd.f32 %v7330, %v7824
      %v8214 = vadd.f32 %v7331, %v7829
      %v8215 = vadd.f32 %v7332, %v7832
      %v8216 = vadd.f32 %v7333, %v7837
      %v8217 = vadd.f32 %v7334, %v7840
      %v8218 = vadd.f32 %v7335, %v7845
      %v8219 = vadd.f32 %v7336, %v7848
      %v8220 = vadd.f32 %v7337, %v7853
      %v8221 = vadd.f32 %v7338, %v7856
      %v8222 = vadd.f32 %v7339, %v7861
      %v8223 = vadd.f32 %v7340, %v7864
      %v8224 = vadd.f32 %v7341, %v7869
      %v8225 = vadd.f32 %v7342, %v7872
      %v8226 = vadd.f32 %v7343, %v7877
      %v8227 = vadd.f32 %v7344, %v7880
      %v8228 = vadd.f32 %v7345, %v7885
      %v8229 = vadd.f32 %v7346, %v7888
      %v8230 = vadd.f32 %v7347, %v7893
      %v8231 = vadd.f32 %v7348, %v7896
      %v8232 = vadd.f32 %v7349, %v7901
      %v8233 = vadd.f32 %v7350, %v7904
      %v8234 = vadd.f32 %v7351, %v7909
      %v8235 = vadd.f32 %v7352, %v7912
      %v8236 = vadd.f32 %v7353, %v7917
      %v8237 = vadd.f32 %v7354, %v7920
      %v8238 = vadd.f32 %v7355, %v7925
      %v8239 = vadd.f32 %v7356, %v7928
      %v8240 = vadd.f32 %v7357, %v7933
      %v8241 = vadd.f32 %v7358, %v7936
      %v8242 = vadd.f32 %v7359, %v7941
      %v8243 = vadd.f32 %v7360, %v7944
      %v8244 = vadd.f32 %v7361, %v7949
      %v8245 = vadd.f32 %v7362, %v7952
      %v8246 = vadd.f32 %v7363, %v7957
      %v8247 = vadd.f32 %v7364, %v7960
      %v8248 = vadd.f32 %v7365, %v7965
      %v8249 = vadd.f32 %v7366, %v7968
      %v8250 = vadd.f32 %v7367, %v7973
      %v8251 = vadd.f32 %v7368, %v7976
      %v8252 = vadd.f32 %v7369, %v7981
      %v8253 = vadd.f32 %v7370, %v7984
      %v8254 = vadd.f32 %v7371, %v7989
      %v8255 = vadd.f32 %v7372, %v7992
      %v8256 = vadd.f32 %v7373, %v7997
      %v8257 = vadd.f32 %v7374, %v8000
      %v8258 = vadd.f32 %v7375, %v8005
      %v8259 = vadd.f32 %v7376, %v8008
      %v8260 = vadd.f32 %v7377, %v8013
      %v8261 = vadd.f32 %v7378, %v8016
      %v8262 = vadd.f32 %v7379, %v8021
      %v8263 = vadd.f32 %v7380, %v8024
      %v8264 = vadd.f32 %v7381, %v8029
      %v8265 = vadd.f32 %v7382, %v8032
      %v8266 = vadd.f32 %v7383, %v8037
      %v8267 = vadd.f32 %v7384, %v8040
      %v8268 = vadd.f32 %v7385, %v8045
      %v8269 = vadd.f32 %v7386, %v8048
      %v8270 = vadd.f32 %v7387, %v8053
      %v8271 = vadd.f32 %v7388, %v8056
      %v8272 = vadd.f32 %v7389, %v8061
      %v8273 = vadd.f32 %v7390, %v8064
      %v8274 = vadd.f32 %v7391, %v8069
      %v8275 = vadd.f32 %v7392, %v8072
      %v8276 = vadd.f32 %v7393, %v8077
      %v8277 = vadd.f32 %v7394, %v8080
      %v8278 = vadd.f32 %v7395, %v8085
      %v8279 = vadd.f32 %v7396, %v8088
      %v8280 = vadd.f32 %v7397, %v8093
      %v8281 = vadd.f32 %v7398, %v8096
      %v8282 = vadd.f32 %v7399, %v8101
      %v8283 = vadd.f32 %v7400, %v8104
      %v8284 = vadd.f32 %v7401, %v8109
      %v8285 = vadd.f32 %v7402, %v8112
      %v8286 = vadd.f32 %v7403, %v8117
      %v8287 = vadd.f32 %v7404, %v8120
      %v8288 = vadd.f32 %v7405, %v8125
      %v8289 = vadd.f32 %v7406, %v8128
      %v8290 = vadd.f32 %v7407, %v8133
      %v8291 = vadd.f32 %v7408, %v8136
      %v8292 = vadd.f32 %v7409, %v8141
      %v8293 = vadd.f32 %v7410, %v8144
      %v8294 = vadd.f32 %v7411, %v8149
      %v8295 = vadd.f32 %v7412, %v8152
      %v8296 = vadd.f32 %v7413, %v8157
      %v8297 = vadd.f32 %v7414, %v8160
      %v8298 = vadd.f32 %v7415, %v8165
      %v8299 = vadd.f32 %v7416, %v8168
      %v8300 = vadd.f32 %v7417, %v8173
      %v8301 = vadd.f32 %v7418, %v8176
      %v8302 = vadd.f32 %v7419, %v8181
      %v8303 = vadd.f32 %v7420, %v8184
      %v8304 = vadd.f32 %v7421, %v8189
      %v8305 = vadd.f32 %v7422, %v8192
      %v8306 = vadd.f32 %v7423, %v8197
      %v8307 = vld [vmem:[%s2] sm:$0x1]
      %v8309 = vlaneseq
      %v8310 = vshrl.u32 %v8309, 7
      %v8311 = vsub.s32 0, %v8310
      %v8312 = vrot.slane %v8307, %v8311
      %v8314 = vmul.f32 %v8202, %v8312
      %v8315 = vmul.f32 %v8203, %v8312
      %v8316 = vmul.f32 %v8204, %v8312
      %v8317 = vmul.f32 %v8205, %v8312
      %v8318 = vmul.f32 %v8206, %v8312
      %v8319 = vmul.f32 %v8207, %v8312
      %v8320 = vmul.f32 %v8208, %v8312
      %v8321 = vmul.f32 %v8209, %v8312
      %v8322 = vmul.f32 %v8210, %v8312
      %v8323 = vmul.f32 %v8211, %v8312
      %v8324 = vmul.f32 %v8212, %v8312
      %v8325 = vmul.f32 %v8213, %v8312
      %v8326 = vmul.f32 %v8214, %v8312
      %v8327 = vmul.f32 %v8215, %v8312
      %v8328 = vmul.f32 %v8216, %v8312
      %v8329 = vmul.f32 %v8217, %v8312
      %v8330 = vmul.f32 %v8218, %v8312
      %v8331 = vmul.f32 %v8219, %v8312
      %v8332 = vmul.f32 %v8220, %v8312
      %v8333 = vmul.f32 %v8221, %v8312
      %v8334 = vmul.f32 %v8222, %v8312
      %v8335 = vmul.f32 %v8223, %v8312
      %v8336 = vmul.f32 %v8224, %v8312
      %v8337 = vmul.f32 %v8225, %v8312
      %v8338 = vmul.f32 %v8226, %v8312
      %v8339 = vmul.f32 %v8227, %v8312
      %v8340 = vmul.f32 %v8228, %v8312
      %v8341 = vmul.f32 %v8229, %v8312
      %v8342 = vmul.f32 %v8230, %v8312
      %v8343 = vmul.f32 %v8231, %v8312
      %v8344 = vmul.f32 %v8232, %v8312
      %v8345 = vmul.f32 %v8233, %v8312
      %v8346 = vmul.f32 %v8234, %v8312
      %v8347 = vmul.f32 %v8235, %v8312
      %v8348 = vmul.f32 %v8236, %v8312
      %v8349 = vmul.f32 %v8237, %v8312
      %v8350 = vmul.f32 %v8238, %v8312
      %v8351 = vmul.f32 %v8239, %v8312
      %v8352 = vmul.f32 %v8240, %v8312
      %v8353 = vmul.f32 %v8241, %v8312
      %v8354 = vmul.f32 %v8242, %v8312
      %v8355 = vmul.f32 %v8243, %v8312
      %v8356 = vmul.f32 %v8244, %v8312
      %v8357 = vmul.f32 %v8245, %v8312
      %v8358 = vmul.f32 %v8246, %v8312
      %v8359 = vmul.f32 %v8247, %v8312
      %v8360 = vmul.f32 %v8248, %v8312
      %v8361 = vmul.f32 %v8249, %v8312
      %v8362 = vmul.f32 %v8250, %v8312
      %v8363 = vmul.f32 %v8251, %v8312
      %v8364 = vmul.f32 %v8252, %v8312
      %v8365 = vmul.f32 %v8253, %v8312
      %v8366 = vmul.f32 %v8254, %v8312
      %v8367 = vmul.f32 %v8255, %v8312
      %v8368 = vmul.f32 %v8256, %v8312
      %v8369 = vmul.f32 %v8257, %v8312
      %v8370 = vmul.f32 %v8258, %v8312
      %v8371 = vmul.f32 %v8259, %v8312
      %v8372 = vmul.f32 %v8260, %v8312
      %v8373 = vmul.f32 %v8261, %v8312
      %v8374 = vmul.f32 %v8262, %v8312
      %v8375 = vmul.f32 %v8263, %v8312
      %v8376 = vmul.f32 %v8264, %v8312
      %v8377 = vmul.f32 %v8265, %v8312
      %v8378 = vmul.f32 %v8266, %v8312
      %v8379 = vmul.f32 %v8267, %v8312
      %v8380 = vmul.f32 %v8268, %v8312
      %v8381 = vmul.f32 %v8269, %v8312
      %v8382 = vmul.f32 %v8270, %v8312
      %v8383 = vmul.f32 %v8271, %v8312
      %v8384 = vmul.f32 %v8272, %v8312
      %v8385 = vmul.f32 %v8273, %v8312
      %v8386 = vmul.f32 %v8274, %v8312
      %v8387 = vmul.f32 %v8275, %v8312
      %v8388 = vmul.f32 %v8276, %v8312
      %v8389 = vmul.f32 %v8277, %v8312
      %v8390 = vmul.f32 %v8278, %v8312
      %v8391 = vmul.f32 %v8279, %v8312
      %v8392 = vmul.f32 %v8280, %v8312
      %v8393 = vmul.f32 %v8281, %v8312
      %v8394 = vmul.f32 %v8282, %v8312
      %v8395 = vmul.f32 %v8283, %v8312
      %v8396 = vmul.f32 %v8284, %v8312
      %v8397 = vmul.f32 %v8285, %v8312
      %v8398 = vmul.f32 %v8286, %v8312
      %v8399 = vmul.f32 %v8287, %v8312
      %v8400 = vmul.f32 %v8288, %v8312
      %v8401 = vmul.f32 %v8289, %v8312
      %v8402 = vmul.f32 %v8290, %v8312
      %v8403 = vmul.f32 %v8291, %v8312
      %v8404 = vmul.f32 %v8292, %v8312
      %v8405 = vmul.f32 %v8293, %v8312
      %v8406 = vmul.f32 %v8294, %v8312
      %v8407 = vmul.f32 %v8295, %v8312
      %v8408 = vmul.f32 %v8296, %v8312
      %v8409 = vmul.f32 %v8297, %v8312
      %v8410 = vmul.f32 %v8298, %v8312
      %v8411 = vmul.f32 %v8299, %v8312
      %v8412 = vmul.f32 %v8300, %v8312
      %v8413 = vmul.f32 %v8301, %v8312
      %v8414 = vmul.f32 %v8302, %v8312
      %v8415 = vmul.f32 %v8303, %v8312
      %v8416 = vmul.f32 %v8304, %v8312
      %v8417 = vmul.f32 %v8305, %v8312
      %v8418 = vmul.f32 %v8306, %v8312
      %v8419 = vld [vmem:[%s3] sm:$0x1]
      %v8421 = vlaneseq
      %v8422 = vshrl.u32 %v8421, 7
      %v8423 = vsub.s32 0, %v8422
      %v8424 = vrot.slane %v8419, %v8423
      %v8426 = vadd.f32 %v8314, %v8424
      %v8427 = vadd.f32 %v8315, %v8424
      %v8428 = vadd.f32 %v8316, %v8424
      %v8429 = vadd.f32 %v8317, %v8424
      %v8430 = vadd.f32 %v8318, %v8424
      %v8431 = vadd.f32 %v8319, %v8424
      %v8432 = vadd.f32 %v8320, %v8424
      %v8433 = vadd.f32 %v8321, %v8424
      %v8434 = vadd.f32 %v8322, %v8424
      %v8435 = vadd.f32 %v8323, %v8424
      %v8436 = vadd.f32 %v8324, %v8424
      %v8437 = vadd.f32 %v8325, %v8424
      %v8438 = vadd.f32 %v8326, %v8424
      %v8439 = vadd.f32 %v8327, %v8424
      %v8440 = vadd.f32 %v8328, %v8424
      %v8441 = vadd.f32 %v8329, %v8424
      %v8442 = vadd.f32 %v8330, %v8424
      %v8443 = vadd.f32 %v8331, %v8424
      %v8444 = vadd.f32 %v8332, %v8424
      %v8445 = vadd.f32 %v8333, %v8424
      %v8446 = vadd.f32 %v8334, %v8424
      %v8447 = vadd.f32 %v8335, %v8424
      %v8448 = vadd.f32 %v8336, %v8424
      %v8449 = vadd.f32 %v8337, %v8424
      %v8450 = vadd.f32 %v8338, %v8424
      %v8451 = vadd.f32 %v8339, %v8424
      %v8452 = vadd.f32 %v8340, %v8424
      %v8453 = vadd.f32 %v8341, %v8424
      %v8454 = vadd.f32 %v8342, %v8424
      %v8455 = vadd.f32 %v8343, %v8424
      %v8456 = vadd.f32 %v8344, %v8424
      %v8457 = vadd.f32 %v8345, %v8424
      %v8458 = vadd.f32 %v8346, %v8424
      %v8459 = vadd.f32 %v8347, %v8424
      %v8460 = vadd.f32 %v8348, %v8424
      %v8461 = vadd.f32 %v8349, %v8424
      %v8462 = vadd.f32 %v8350, %v8424
      %v8463 = vadd.f32 %v8351, %v8424
      %v8464 = vadd.f32 %v8352, %v8424
      %v8465 = vadd.f32 %v8353, %v8424
      %v8466 = vadd.f32 %v8354, %v8424
      %v8467 = vadd.f32 %v8355, %v8424
      %v8468 = vadd.f32 %v8356, %v8424
      %v8469 = vadd.f32 %v8357, %v8424
      %v8470 = vadd.f32 %v8358, %v8424
      %v8471 = vadd.f32 %v8359, %v8424
      %v8472 = vadd.f32 %v8360, %v8424
      %v8473 = vadd.f32 %v8361, %v8424
      %v8474 = vadd.f32 %v8362, %v8424
      %v8475 = vadd.f32 %v8363, %v8424
      %v8476 = vadd.f32 %v8364, %v8424
      %v8477 = vadd.f32 %v8365, %v8424
      %v8478 = vadd.f32 %v8366, %v8424
      %v8479 = vadd.f32 %v8367, %v8424
      %v8480 = vadd.f32 %v8368, %v8424
      %v8481 = vadd.f32 %v8369, %v8424
      %v8482 = vadd.f32 %v8370, %v8424
      %v8483 = vadd.f32 %v8371, %v8424
      %v8484 = vadd.f32 %v8372, %v8424
      %v8485 = vadd.f32 %v8373, %v8424
      %v8486 = vadd.f32 %v8374, %v8424
      %v8487 = vadd.f32 %v8375, %v8424
      %v8488 = vadd.f32 %v8376, %v8424
      %v8489 = vadd.f32 %v8377, %v8424
      %v8490 = vadd.f32 %v8378, %v8424
      %v8491 = vadd.f32 %v8379, %v8424
      %v8492 = vadd.f32 %v8380, %v8424
      %v8493 = vadd.f32 %v8381, %v8424
      %v8494 = vadd.f32 %v8382, %v8424
      %v8495 = vadd.f32 %v8383, %v8424
      %v8496 = vadd.f32 %v8384, %v8424
      %v8497 = vadd.f32 %v8385, %v8424
      %v8498 = vadd.f32 %v8386, %v8424
      %v8499 = vadd.f32 %v8387, %v8424
      %v8500 = vadd.f32 %v8388, %v8424
      %v8501 = vadd.f32 %v8389, %v8424
      %v8502 = vadd.f32 %v8390, %v8424
      %v8503 = vadd.f32 %v8391, %v8424
      %v8504 = vadd.f32 %v8392, %v8424
      %v8505 = vadd.f32 %v8393, %v8424
      %v8506 = vadd.f32 %v8394, %v8424
      %v8507 = vadd.f32 %v8395, %v8424
      %v8508 = vadd.f32 %v8396, %v8424
      %v8509 = vadd.f32 %v8397, %v8424
      %v8510 = vadd.f32 %v8398, %v8424
      %v8511 = vadd.f32 %v8399, %v8424
      %v8512 = vadd.f32 %v8400, %v8424
      %v8513 = vadd.f32 %v8401, %v8424
      %v8514 = vadd.f32 %v8402, %v8424
      %v8515 = vadd.f32 %v8403, %v8424
      %v8516 = vadd.f32 %v8404, %v8424
      %v8517 = vadd.f32 %v8405, %v8424
      %v8518 = vadd.f32 %v8406, %v8424
      %v8519 = vadd.f32 %v8407, %v8424
      %v8520 = vadd.f32 %v8408, %v8424
      %v8521 = vadd.f32 %v8409, %v8424
      %v8522 = vadd.f32 %v8410, %v8424
      %v8523 = vadd.f32 %v8411, %v8424
      %v8524 = vadd.f32 %v8412, %v8424
      %v8525 = vadd.f32 %v8413, %v8424
      %v8526 = vadd.f32 %v8414, %v8424
      %v8527 = vadd.f32 %v8415, %v8424
      %v8528 = vadd.f32 %v8416, %v8424
      %v8529 = vadd.f32 %v8417, %v8424
      %v8530 = vadd.f32 %v8418, %v8424
      %v8531 = vmax.f32 %v8426, 0.0
      %v8532 = vmax.f32 %v8427, 0.0
      %v8533 = vmax.f32 %v8428, 0.0
      %v8534 = vmax.f32 %v8429, 0.0
      %v8535 = vmax.f32 %v8430, 0.0
      %v8536 = vmax.f32 %v8431, 0.0
      %v8537 = vmax.f32 %v8432, 0.0
      %v8538 = vmax.f32 %v8433, 0.0
      %v8539 = vmax.f32 %v8434, 0.0
      %v8540 = vmax.f32 %v8435, 0.0
      %v8541 = vmax.f32 %v8436, 0.0
      %v8542 = vmax.f32 %v8437, 0.0
      %v8543 = vmax.f32 %v8438, 0.0
      %v8544 = vmax.f32 %v8439, 0.0
      %v8545 = vmax.f32 %v8440, 0.0
      %v8546 = vmax.f32 %v8441, 0.0
      %v8547 = vmax.f32 %v8442, 0.0
      %v8548 = vmax.f32 %v8443, 0.0
      %v8549 = vmax.f32 %v8444, 0.0
      %v8550 = vmax.f32 %v8445, 0.0
      %v8551 = vmax.f32 %v8446, 0.0
      %v8552 = vmax.f32 %v8447, 0.0
      %v8553 = vmax.f32 %v8448, 0.0
      %v8554 = vmax.f32 %v8449, 0.0
      %v8555 = vmax.f32 %v8450, 0.0
      %v8556 = vmax.f32 %v8451, 0.0
      %v8557 = vmax.f32 %v8452, 0.0
      %v8558 = vmax.f32 %v8453, 0.0
      %v8559 = vmax.f32 %v8454, 0.0
      %v8560 = vmax.f32 %v8455, 0.0
      %v8561 = vmax.f32 %v8456, 0.0
      %v8562 = vmax.f32 %v8457, 0.0
      %v8563 = vmax.f32 %v8458, 0.0
      %v8564 = vmax.f32 %v8459, 0.0
      %v8565 = vmax.f32 %v8460, 0.0
      %v8566 = vmax.f32 %v8461, 0.0
      %v8567 = vmax.f32 %v8462, 0.0
      %v8568 = vmax.f32 %v8463, 0.0
      %v8569 = vmax.f32 %v8464, 0.0
      %v8570 = vmax.f32 %v8465, 0.0
      %v8571 = vmax.f32 %v8466, 0.0
      %v8572 = vmax.f32 %v8467, 0.0
      %v8573 = vmax.f32 %v8468, 0.0
      %v8574 = vmax.f32 %v8469, 0.0
      %v8575 = vmax.f32 %v8470, 0.0
      %v8576 = vmax.f32 %v8471, 0.0
      %v8577 = vmax.f32 %v8472, 0.0
      %v8578 = vmax.f32 %v8473, 0.0
      %v8579 = vmax.f32 %v8474, 0.0
      %v8580 = vmax.f32 %v8475, 0.0
      %v8581 = vmax.f32 %v8476, 0.0
      %v8582 = vmax.f32 %v8477, 0.0
      %v8583 = vmax.f32 %v8478, 0.0
      %v8584 = vmax.f32 %v8479, 0.0
      %v8585 = vmax.f32 %v8480, 0.0
      %v8586 = vmax.f32 %v8481, 0.0
      %v8587 = vmax.f32 %v8482, 0.0
      %v8588 = vmax.f32 %v8483, 0.0
      %v8589 = vmax.f32 %v8484, 0.0
      %v8590 = vmax.f32 %v8485, 0.0
      %v8591 = vmax.f32 %v8486, 0.0
      %v8592 = vmax.f32 %v8487, 0.0
      %v8593 = vmax.f32 %v8488, 0.0
      %v8594 = vmax.f32 %v8489, 0.0
      %v8595 = vmax.f32 %v8490, 0.0
      %v8596 = vmax.f32 %v8491, 0.0
      %v8597 = vmax.f32 %v8492, 0.0
      %v8598 = vmax.f32 %v8493, 0.0
      %v8599 = vmax.f32 %v8494, 0.0
      %v8600 = vmax.f32 %v8495, 0.0
      %v8601 = vmax.f32 %v8496, 0.0
      %v8602 = vmax.f32 %v8497, 0.0
      %v8603 = vmax.f32 %v8498, 0.0
      %v8604 = vmax.f32 %v8499, 0.0
      %v8605 = vmax.f32 %v8500, 0.0
      %v8606 = vmax.f32 %v8501, 0.0
      %v8607 = vmax.f32 %v8502, 0.0
      %v8608 = vmax.f32 %v8503, 0.0
      %v8609 = vmax.f32 %v8504, 0.0
      %v8610 = vmax.f32 %v8505, 0.0
      %v8611 = vmax.f32 %v8506, 0.0
      %v8612 = vmax.f32 %v8507, 0.0
      %v8613 = vmax.f32 %v8508, 0.0
      %v8614 = vmax.f32 %v8509, 0.0
      %v8615 = vmax.f32 %v8510, 0.0
      %v8616 = vmax.f32 %v8511, 0.0
      %v8617 = vmax.f32 %v8512, 0.0
      %v8618 = vmax.f32 %v8513, 0.0
      %v8619 = vmax.f32 %v8514, 0.0
      %v8620 = vmax.f32 %v8515, 0.0
      %v8621 = vmax.f32 %v8516, 0.0
      %v8622 = vmax.f32 %v8517, 0.0
      %v8623 = vmax.f32 %v8518, 0.0
      %v8624 = vmax.f32 %v8519, 0.0
      %v8625 = vmax.f32 %v8520, 0.0
      %v8626 = vmax.f32 %v8521, 0.0
      %v8627 = vmax.f32 %v8522, 0.0
      %v8628 = vmax.f32 %v8523, 0.0
      %v8629 = vmax.f32 %v8524, 0.0
      %v8630 = vmax.f32 %v8525, 0.0
      %v8631 = vmax.f32 %v8526, 0.0
      %v8632 = vmax.f32 %v8527, 0.0
      %v8633 = vmax.f32 %v8528, 0.0
      %v8634 = vmax.f32 %v8529, 0.0
      %v8635 = vmax.f32 %v8530, 0.0
      %v8636 = vld [vmem:[%s4] sm:$0xff]
      %v8637 = vld [vmem:[%s4 + $0x8] sm:$0xff]
      %v8638 = vld [vmem:[%s4 + $0x10] sm:$0xff]
      %v8639 = vld [vmem:[%s4 + $0x18] sm:$0xff]
      %v8640 = vld [vmem:[%s4 + $0x20] sm:$0xff]
      %v8641 = vld [vmem:[%s4 + $0x28] sm:$0xff]
      %v8642 = vld [vmem:[%s4 + $0x30] sm:$0xff]
      %v8643 = vld [vmem:[%s4 + $0x38] sm:$0xff]
      %v8644 = vld [vmem:[%s4 + $0x40] sm:$0xff]
      %v8645 = vld [vmem:[%s4 + $0x48] sm:$0xff]
      %v8646 = vld [vmem:[%s4 + $0x50] sm:$0xff]
      %v8647 = vld [vmem:[%s4 + $0x58] sm:$0xff]
      %v8648 = vld [vmem:[%s4 + $0x60] sm:$0xff]
      %v8649 = vld [vmem:[%s4 + $0x68] sm:$0xff]
      %v8650 = vld [vmem:[%s4 + $0x70] sm:$0xff]
      %v8651 = vld [vmem:[%s4 + $0x78] sm:$0xff]
      %v8652 = vld [vmem:[%s4 + $0x80] sm:$0xff]
      %v8653 = vld [vmem:[%s4 + $0x88] sm:$0xff]
      %v8654 = vld [vmem:[%s4 + $0x90] sm:$0xff]
      %v8655 = vld [vmem:[%s4 + $0x98] sm:$0xff]
      %v8656 = vld [vmem:[%s4 + $0xa0] sm:$0xff]
      %v8657 = vld [vmem:[%s4 + $0xa8] sm:$0xff]
      %v8658 = vld [vmem:[%s4 + $0xb0] sm:$0xff]
      %v8659 = vld [vmem:[%s4 + $0xb8] sm:$0xff]
      %v8660 = vld [vmem:[%s4 + $0xc0] sm:$0xff]
      %v8661 = vld [vmem:[%s4 + $0xc8] sm:$0xff]
      %v8662 = vld [vmem:[%s4 + $0xd0] sm:$0xff]
      %v8663 = vld [vmem:[%s4 + $0xd8] sm:$0xff]
      %v8664 = vld [vmem:[%s4 + $0xe0] sm:$0xff]
      %v8665 = vld [vmem:[%s4 + $0xe8] sm:$0xff]
      %v8666 = vld [vmem:[%s4 + $0xf0] sm:$0xff]
      %v8667 = vld [vmem:[%s4 + $0xf8] sm:$0xff]
      %v8668 = vld [vmem:[%s4 + $0x100] sm:$0xff]
      %v8669 = vld [vmem:[%s4 + $0x108] sm:$0xff]
      %v8670 = vld [vmem:[%s4 + $0x110] sm:$0xff]
      %v8671 = vld [vmem:[%s4 + $0x118] sm:$0xff]
      %v8672 = vld [vmem:[%s4 + $0x120] sm:$0xff]
      %v8673 = vld [vmem:[%s4 + $0x128] sm:$0xff]
      %v8674 = vld [vmem:[%s4 + $0x130] sm:$0xff]
      %v8675 = vld [vmem:[%s4 + $0x138] sm:$0xff]
      %v8676 = vld [vmem:[%s4 + $0x140] sm:$0xff]
      %v8677 = vld [vmem:[%s4 + $0x148] sm:$0xff]
      %v8678 = vld [vmem:[%s4 + $0x150] sm:$0xff]
      %v8679 = vld [vmem:[%s4 + $0x158] sm:$0xff]
      %v8680 = vld [vmem:[%s4 + $0x160] sm:$0xff]
      %v8681 = vld [vmem:[%s4 + $0x168] sm:$0xff]
      %v8682 = vld [vmem:[%s4 + $0x170] sm:$0xff]
      %v8683 = vld [vmem:[%s4 + $0x178] sm:$0xff]
      %v8684 = vld [vmem:[%s4 + $0x180] sm:$0xff]
      %v8685 = vld [vmem:[%s4 + $0x188] sm:$0xff]
      %v8686 = vld [vmem:[%s4 + $0x190] sm:$0xff]
      %v8687 = vld [vmem:[%s4 + $0x198] sm:$0xff]
      %v8688 = vld [vmem:[%s4 + $0x1a0] sm:$0xff]
      %v8689 = vld [vmem:[%s4 + $0x1a8] sm:$0xff]
      %v8690 = vld [vmem:[%s4 + $0x1b0] sm:$0xff]
      %v8691 = vld [vmem:[%s4 + $0x1b8] sm:$0xff]
      %v8692 = vld [vmem:[%s4 + $0x1c0] sm:$0xff]
      %v8693 = vld [vmem:[%s4 + $0x1c8] sm:$0xff]
      %v8694 = vld [vmem:[%s4 + $0x1d0] sm:$0xff]
      %v8695 = vld [vmem:[%s4 + $0x1d8] sm:$0xff]
      %v8696 = vld [vmem:[%s4 + $0x1e0] sm:$0xff]
      %v8697 = vld [vmem:[%s4 + $0x1e8] sm:$0xff]
      %v8698 = vld [vmem:[%s4 + $0x1f0] sm:$0xff]
      %v8699 = vld [vmem:[%s4 + $0x1f8] sm:$0xff]
      %v8700 = vld [vmem:[%s4 + $0x200] sm:$0xff]
      %v8701 = vld [vmem:[%s4 + $0x208] sm:$0xff]
      %v8702 = vld [vmem:[%s4 + $0x210] sm:$0xff]
      %v8703 = vld [vmem:[%s4 + $0x218] sm:$0xff]
      %v8704 = vld [vmem:[%s4 + $0x220] sm:$0xff]
      %v8705 = vld [vmem:[%s4 + $0x228] sm:$0xff]
      %v8706 = vld [vmem:[%s4 + $0x230] sm:$0xff]
      %v8707 = vld [vmem:[%s4 + $0x238] sm:$0xff]
      %v8708 = vld [vmem:[%s4 + $0x240] sm:$0xff]
      %v8709 = vld [vmem:[%s4 + $0x248] sm:$0xff]
      %v8710 = vld [vmem:[%s4 + $0x250] sm:$0xff]
      %v8711 = vld [vmem:[%s4 + $0x258] sm:$0xff]
      %v8712 = vld [vmem:[%s4 + $0x260] sm:$0xff]
      %v8713 = vld [vmem:[%s4 + $0x268] sm:$0xff]
      %v8714 = vld [vmem:[%s4 + $0x270] sm:$0xff]
      %v8715 = vld [vmem:[%s4 + $0x278] sm:$0xff]
      %v8716 = vld [vmem:[%s4 + $0x280] sm:$0xff]
      %v8717 = vld [vmem:[%s4 + $0x288] sm:$0xff]
      %v8718 = vld [vmem:[%s4 + $0x290] sm:$0xff]
      %v8719 = vld [vmem:[%s4 + $0x298] sm:$0xff]
      %v8720 = vld [vmem:[%s4 + $0x2a0] sm:$0xff]
      %v8721 = vld [vmem:[%s4 + $0x2a8] sm:$0xff]
      %v8722 = vld [vmem:[%s4 + $0x2b0] sm:$0xff]
      %v8723 = vld [vmem:[%s4 + $0x2b8] sm:$0xff]
      %v8724 = vld [vmem:[%s4 + $0x2c0] sm:$0xff]
      %v8725 = vld [vmem:[%s4 + $0x2c8] sm:$0xff]
      %v8726 = vld [vmem:[%s4 + $0x2d0] sm:$0xff]
      %v8727 = vld [vmem:[%s4 + $0x2d8] sm:$0xff]
      %v8728 = vld [vmem:[%s4 + $0x2e0] sm:$0xff]
      %v8729 = vld [vmem:[%s4 + $0x2e8] sm:$0xff]
      %v8730 = vld [vmem:[%s4 + $0x2f0] sm:$0xff]
      %v8731 = vld [vmem:[%s4 + $0x2f8] sm:$0xff]
      %v8732 = vld [vmem:[%s4 + $0x300] sm:$0xff]
      %v8733 = vld [vmem:[%s4 + $0x308] sm:$0xff]
      %v8734 = vld [vmem:[%s4 + $0x310] sm:$0xff]
      %v8735 = vld [vmem:[%s4 + $0x318] sm:$0xff]
      %v8736 = vld [vmem:[%s4 + $0x320] sm:$0xff]
      %v8737 = vld [vmem:[%s4 + $0x328] sm:$0xff]
      %v8738 = vld [vmem:[%s4 + $0x330] sm:$0xff]
      %v8739 = vld [vmem:[%s4 + $0x338] sm:$0xff]
      %v8740 = vld [vmem:[%s4 + $0x340] sm:$0x3f]
      %8742 = vset.pattern.permute.xlu0 0
      %8743 = vperm.xlu0 %8742, %v8636
      %v8744 = vpop.permute.xlu0 %8743
      %8747 = vset.pattern.permute.xlu0 0
      %8748 = vperm.xlu0 %8747, %v8637
      %v8749 = vpop.permute.xlu0 %8748
      %8752 = vset.pattern.permute.xlu0 0
      %8753 = vperm.xlu0 %8752, %v8638
      %v8754 = vpop.permute.xlu0 %8753
      %8757 = vset.pattern.permute.xlu0 0
      %8758 = vperm.xlu0 %8757, %v8639
      %v8759 = vpop.permute.xlu0 %8758
      %8762 = vset.pattern.permute.xlu0 0
      %8763 = vperm.xlu0 %8762, %v8640
      %v8764 = vpop.permute.xlu0 %8763
      %8767 = vset.pattern.permute.xlu0 0
      %8768 = vperm.xlu0 %8767, %v8641
      %v8769 = vpop.permute.xlu0 %8768
      %8772 = vset.pattern.permute.xlu0 0
      %8773 = vperm.xlu0 %8772, %v8642
      %v8774 = vpop.permute.xlu0 %8773
      %8777 = vset.pattern.permute.xlu0 0
      %8778 = vperm.xlu0 %8777, %v8643
      %v8779 = vpop.permute.xlu0 %8778
      %8782 = vset.pattern.permute.xlu0 0
      %8783 = vperm.xlu0 %8782, %v8644
      %v8784 = vpop.permute.xlu0 %8783
      %8787 = vset.pattern.permute.xlu0 0
      %8788 = vperm.xlu0 %8787, %v8645
      %v8789 = vpop.permute.xlu0 %8788
      %8792 = vset.pattern.permute.xlu0 0
      %8793 = vperm.xlu0 %8792, %v8646
      %v8794 = vpop.permute.xlu0 %8793
      %8797 = vset.pattern.permute.xlu0 0
      %8798 = vperm.xlu0 %8797, %v8647
      %v8799 = vpop.permute.xlu0 %8798
      %8802 = vset.pattern.permute.xlu0 0
      %8803 = vperm.xlu0 %8802, %v8648
      %v8804 = vpop.permute.xlu0 %8803
      %8807 = vset.pattern.permute.xlu0 0
      %8808 = vperm.xlu0 %8807, %v8649
      %v8809 = vpop.permute.xlu0 %8808
      %8812 = vset.pattern.permute.xlu0 0
      %8813 = vperm.xlu0 %8812, %v8650
      %v8814 = vpop.permute.xlu0 %8813
      %8817 = vset.pattern.permute.xlu0 0
      %8818 = vperm.xlu0 %8817, %v8651
      %v8819 = vpop.permute.xlu0 %8818
      %8822 = vset.pattern.permute.xlu0 0
      %8823 = vperm.xlu0 %8822, %v8652
      %v8824 = vpop.permute.xlu0 %8823
      %8827 = vset.pattern.permute.xlu0 0
      %8828 = vperm.xlu0 %8827, %v8653
      %v8829 = vpop.permute.xlu0 %8828
      %8832 = vset.pattern.permute.xlu0 0
      %8833 = vperm.xlu0 %8832, %v8654
      %v8834 = vpop.permute.xlu0 %8833
      %8837 = vset.pattern.permute.xlu0 0
      %8838 = vperm.xlu0 %8837, %v8655
      %v8839 = vpop.permute.xlu0 %8838
      %8842 = vset.pattern.permute.xlu0 0
      %8843 = vperm.xlu0 %8842, %v8656
      %v8844 = vpop.permute.xlu0 %8843
      %8847 = vset.pattern.permute.xlu0 0
      %8848 = vperm.xlu0 %8847, %v8657
      %v8849 = vpop.permute.xlu0 %8848
      %8852 = vset.pattern.permute.xlu0 0
      %8853 = vperm.xlu0 %8852, %v8658
      %v8854 = vpop.permute.xlu0 %8853
      %8857 = vset.pattern.permute.xlu0 0
      %8858 = vperm.xlu0 %8857, %v8659
      %v8859 = vpop.permute.xlu0 %8858
      %8862 = vset.pattern.permute.xlu0 0
      %8863 = vperm.xlu0 %8862, %v8660
      %v8864 = vpop.permute.xlu0 %8863
      %8867 = vset.pattern.permute.xlu0 0
      %8868 = vperm.xlu0 %8867, %v8661
      %v8869 = vpop.permute.xlu0 %8868
      %8872 = vset.pattern.permute.xlu0 0
      %8873 = vperm.xlu0 %8872, %v8662
      %v8874 = vpop.permute.xlu0 %8873
      %8877 = vset.pattern.permute.xlu0 0
      %8878 = vperm.xlu0 %8877, %v8663
      %v8879 = vpop.permute.xlu0 %8878
      %8882 = vset.pattern.permute.xlu0 0
      %8883 = vperm.xlu0 %8882, %v8664
      %v8884 = vpop.permute.xlu0 %8883
      %8887 = vset.pattern.permute.xlu0 0
      %8888 = vperm.xlu0 %8887, %v8665
      %v8889 = vpop.permute.xlu0 %8888
      %8892 = vset.pattern.permute.xlu0 0
      %8893 = vperm.xlu0 %8892, %v8666
      %v8894 = vpop.permute.xlu0 %8893
      %8897 = vset.pattern.permute.xlu0 0
      %8898 = vperm.xlu0 %8897, %v8667
      %v8899 = vpop.permute.xlu0 %8898
      %8902 = vset.pattern.permute.xlu0 0
      %8903 = vperm.xlu0 %8902, %v8668
      %v8904 = vpop.permute.xlu0 %8903
      %8907 = vset.pattern.permute.xlu0 0
      %8908 = vperm.xlu0 %8907, %v8669
      %v8909 = vpop.permute.xlu0 %8908
      %8912 = vset.pattern.permute.xlu0 0
      %8913 = vperm.xlu0 %8912, %v8670
      %v8914 = vpop.permute.xlu0 %8913
      %8917 = vset.pattern.permute.xlu0 0
      %8918 = vperm.xlu0 %8917, %v8671
      %v8919 = vpop.permute.xlu0 %8918
      %8922 = vset.pattern.permute.xlu0 0
      %8923 = vperm.xlu0 %8922, %v8672
      %v8924 = vpop.permute.xlu0 %8923
      %8927 = vset.pattern.permute.xlu0 0
      %8928 = vperm.xlu0 %8927, %v8673
      %v8929 = vpop.permute.xlu0 %8928
      %8932 = vset.pattern.permute.xlu0 0
      %8933 = vperm.xlu0 %8932, %v8674
      %v8934 = vpop.permute.xlu0 %8933
      %8937 = vset.pattern.permute.xlu0 0
      %8938 = vperm.xlu0 %8937, %v8675
      %v8939 = vpop.permute.xlu0 %8938
      %8942 = vset.pattern.permute.xlu0 0
      %8943 = vperm.xlu0 %8942, %v8676
      %v8944 = vpop.permute.xlu0 %8943
      %8947 = vset.pattern.permute.xlu0 0
      %8948 = vperm.xlu0 %8947, %v8677
      %v8949 = vpop.permute.xlu0 %8948
      %8952 = vset.pattern.permute.xlu0 0
      %8953 = vperm.xlu0 %8952, %v8678
      %v8954 = vpop.permute.xlu0 %8953
      %8957 = vset.pattern.permute.xlu0 0
      %8958 = vperm.xlu0 %8957, %v8679
      %v8959 = vpop.permute.xlu0 %8958
      %8962 = vset.pattern.permute.xlu0 0
      %8963 = vperm.xlu0 %8962, %v8680
      %v8964 = vpop.permute.xlu0 %8963
      %8967 = vset.pattern.permute.xlu0 0
      %8968 = vperm.xlu0 %8967, %v8681
      %v8969 = vpop.permute.xlu0 %8968
      %8972 = vset.pattern.permute.xlu0 0
      %8973 = vperm.xlu0 %8972, %v8682
      %v8974 = vpop.permute.xlu0 %8973
      %8977 = vset.pattern.permute.xlu0 0
      %8978 = vperm.xlu0 %8977, %v8683
      %v8979 = vpop.permute.xlu0 %8978
      %8982 = vset.pattern.permute.xlu0 0
      %8983 = vperm.xlu0 %8982, %v8684
      %v8984 = vpop.permute.xlu0 %8983
      %8987 = vset.pattern.permute.xlu0 0
      %8988 = vperm.xlu0 %8987, %v8685
      %v8989 = vpop.permute.xlu0 %8988
      %8992 = vset.pattern.permute.xlu0 0
      %8993 = vperm.xlu0 %8992, %v8686
      %v8994 = vpop.permute.xlu0 %8993
      %8997 = vset.pattern.permute.xlu0 0
      %8998 = vperm.xlu0 %8997, %v8687
      %v8999 = vpop.permute.xlu0 %8998
      %9002 = vset.pattern.permute.xlu0 0
      %9003 = vperm.xlu0 %9002, %v8688
      %v9004 = vpop.permute.xlu0 %9003
      %9007 = vset.pattern.permute.xlu0 0
      %9008 = vperm.xlu0 %9007, %v8689
      %v9009 = vpop.permute.xlu0 %9008
      %9012 = vset.pattern.permute.xlu0 0
      %9013 = vperm.xlu0 %9012, %v8690
      %v9014 = vpop.permute.xlu0 %9013
      %9017 = vset.pattern.permute.xlu0 0
      %9018 = vperm.xlu0 %9017, %v8691
      %v9019 = vpop.permute.xlu0 %9018
      %9022 = vset.pattern.permute.xlu0 0
      %9023 = vperm.xlu0 %9022, %v8692
      %v9024 = vpop.permute.xlu0 %9023
      %9027 = vset.pattern.permute.xlu0 0
      %9028 = vperm.xlu0 %9027, %v8693
      %v9029 = vpop.permute.xlu0 %9028
      %9032 = vset.pattern.permute.xlu0 0
      %9033 = vperm.xlu0 %9032, %v8694
      %v9034 = vpop.permute.xlu0 %9033
      %9037 = vset.pattern.permute.xlu0 0
      %9038 = vperm.xlu0 %9037, %v8695
      %v9039 = vpop.permute.xlu0 %9038
      %9042 = vset.pattern.permute.xlu0 0
      %9043 = vperm.xlu0 %9042, %v8696
      %v9044 = vpop.permute.xlu0 %9043
      %9047 = vset.pattern.permute.xlu0 0
      %9048 = vperm.xlu0 %9047, %v8697
      %v9049 = vpop.permute.xlu0 %9048
      %9052 = vset.pattern.permute.xlu0 0
      %9053 = vperm.xlu0 %9052, %v8698
      %v9054 = vpop.permute.xlu0 %9053
      %9057 = vset.pattern.permute.xlu0 0
      %9058 = vperm.xlu0 %9057, %v8699
      %v9059 = vpop.permute.xlu0 %9058
      %9062 = vset.pattern.permute.xlu0 0
      %9063 = vperm.xlu0 %9062, %v8700
      %v9064 = vpop.permute.xlu0 %9063
      %9067 = vset.pattern.permute.xlu0 0
      %9068 = vperm.xlu0 %9067, %v8701
      %v9069 = vpop.permute.xlu0 %9068
      %9072 = vset.pattern.permute.xlu0 0
      %9073 = vperm.xlu0 %9072, %v8702
      %v9074 = vpop.permute.xlu0 %9073
      %9077 = vset.pattern.permute.xlu0 0
      %9078 = vperm.xlu0 %9077, %v8703
      %v9079 = vpop.permute.xlu0 %9078
      %9082 = vset.pattern.permute.xlu0 0
      %9083 = vperm.xlu0 %9082, %v8704
      %v9084 = vpop.permute.xlu0 %9083
      %9087 = vset.pattern.permute.xlu0 0
      %9088 = vperm.xlu0 %9087, %v8705
      %v9089 = vpop.permute.xlu0 %9088
      %9092 = vset.pattern.permute.xlu0 0
      %9093 = vperm.xlu0 %9092, %v8706
      %v9094 = vpop.permute.xlu0 %9093
      %9097 = vset.pattern.permute.xlu0 0
      %9098 = vperm.xlu0 %9097, %v8707
      %v9099 = vpop.permute.xlu0 %9098
      %9102 = vset.pattern.permute.xlu0 0
      %9103 = vperm.xlu0 %9102, %v8708
      %v9104 = vpop.permute.xlu0 %9103
      %9107 = vset.pattern.permute.xlu0 0
      %9108 = vperm.xlu0 %9107, %v8709
      %v9109 = vpop.permute.xlu0 %9108
      %9112 = vset.pattern.permute.xlu0 0
      %9113 = vperm.xlu0 %9112, %v8710
      %v9114 = vpop.permute.xlu0 %9113
      %9117 = vset.pattern.permute.xlu0 0
      %9118 = vperm.xlu0 %9117, %v8711
      %v9119 = vpop.permute.xlu0 %9118
      %9122 = vset.pattern.permute.xlu0 0
      %9123 = vperm.xlu0 %9122, %v8712
      %v9124 = vpop.permute.xlu0 %9123
      %9127 = vset.pattern.permute.xlu0 0
      %9128 = vperm.xlu0 %9127, %v8713
      %v9129 = vpop.permute.xlu0 %9128
      %9132 = vset.pattern.permute.xlu0 0
      %9133 = vperm.xlu0 %9132, %v8714
      %v9134 = vpop.permute.xlu0 %9133
      %9137 = vset.pattern.permute.xlu0 0
      %9138 = vperm.xlu0 %9137, %v8715
      %v9139 = vpop.permute.xlu0 %9138
      %9142 = vset.pattern.permute.xlu0 0
      %9143 = vperm.xlu0 %9142, %v8716
      %v9144 = vpop.permute.xlu0 %9143
      %9147 = vset.pattern.permute.xlu0 0
      %9148 = vperm.xlu0 %9147, %v8717
      %v9149 = vpop.permute.xlu0 %9148
      %9152 = vset.pattern.permute.xlu0 0
      %9153 = vperm.xlu0 %9152, %v8718
      %v9154 = vpop.permute.xlu0 %9153
      %9157 = vset.pattern.permute.xlu0 0
      %9158 = vperm.xlu0 %9157, %v8719
      %v9159 = vpop.permute.xlu0 %9158
      %9162 = vset.pattern.permute.xlu0 0
      %9163 = vperm.xlu0 %9162, %v8720
      %v9164 = vpop.permute.xlu0 %9163
      %9167 = vset.pattern.permute.xlu0 0
      %9168 = vperm.xlu0 %9167, %v8721
      %v9169 = vpop.permute.xlu0 %9168
      %9172 = vset.pattern.permute.xlu0 0
      %9173 = vperm.xlu0 %9172, %v8722
      %v9174 = vpop.permute.xlu0 %9173
      %9177 = vset.pattern.permute.xlu0 0
      %9178 = vperm.xlu0 %9177, %v8723
      %v9179 = vpop.permute.xlu0 %9178
      %9182 = vset.pattern.permute.xlu0 0
      %9183 = vperm.xlu0 %9182, %v8724
      %v9184 = vpop.permute.xlu0 %9183
      %9187 = vset.pattern.permute.xlu0 0
      %9188 = vperm.xlu0 %9187, %v8725
      %v9189 = vpop.permute.xlu0 %9188
      %9192 = vset.pattern.permute.xlu0 0
      %9193 = vperm.xlu0 %9192, %v8726
      %v9194 = vpop.permute.xlu0 %9193
      %9197 = vset.pattern.permute.xlu0 0
      %9198 = vperm.xlu0 %9197, %v8727
      %v9199 = vpop.permute.xlu0 %9198
      %9202 = vset.pattern.permute.xlu0 0
      %9203 = vperm.xlu0 %9202, %v8728
      %v9204 = vpop.permute.xlu0 %9203
      %9207 = vset.pattern.permute.xlu0 0
      %9208 = vperm.xlu0 %9207, %v8729
      %v9209 = vpop.permute.xlu0 %9208
      %9212 = vset.pattern.permute.xlu0 0
      %9213 = vperm.xlu0 %9212, %v8730
      %v9214 = vpop.permute.xlu0 %9213
      %9217 = vset.pattern.permute.xlu0 0
      %9218 = vperm.xlu0 %9217, %v8731
      %v9219 = vpop.permute.xlu0 %9218
      %9222 = vset.pattern.permute.xlu0 0
      %9223 = vperm.xlu0 %9222, %v8732
      %v9224 = vpop.permute.xlu0 %9223
      %9227 = vset.pattern.permute.xlu0 0
      %9228 = vperm.xlu0 %9227, %v8733
      %v9229 = vpop.permute.xlu0 %9228
      %9232 = vset.pattern.permute.xlu0 0
      %9233 = vperm.xlu0 %9232, %v8734
      %v9234 = vpop.permute.xlu0 %9233
      %9237 = vset.pattern.permute.xlu0 0
      %9238 = vperm.xlu0 %9237, %v8735
      %v9239 = vpop.permute.xlu0 %9238
      %9242 = vset.pattern.permute.xlu0 0
      %9243 = vperm.xlu0 %9242, %v8736
      %v9244 = vpop.permute.xlu0 %9243
      %9247 = vset.pattern.permute.xlu0 0
      %9248 = vperm.xlu0 %9247, %v8737
      %v9249 = vpop.permute.xlu0 %9248
      %9252 = vset.pattern.permute.xlu0 0
      %9253 = vperm.xlu0 %9252, %v8738
      %v9254 = vpop.permute.xlu0 %9253
      %9257 = vset.pattern.permute.xlu0 0
      %9258 = vperm.xlu0 %9257, %v8739
      %v9259 = vpop.permute.xlu0 %9258
      %9262 = vset.pattern.permute.xlu0 0
      %9263 = vperm.xlu0 %9262, %v8740
      %v9264 = vpop.permute.xlu0 %9263
      %v9266 = vmul.f32 %v8531, %v8744
      %v9267 = vmul.f32 %v8532, %v8749
      %v9268 = vmul.f32 %v8533, %v8754
      %v9269 = vmul.f32 %v8534, %v8759
      %v9270 = vmul.f32 %v8535, %v8764
      %v9271 = vmul.f32 %v8536, %v8769
      %v9272 = vmul.f32 %v8537, %v8774
      %v9273 = vmul.f32 %v8538, %v8779
      %v9274 = vmul.f32 %v8539, %v8784
      %v9275 = vmul.f32 %v8540, %v8789
      %v9276 = vmul.f32 %v8541, %v8794
      %v9277 = vmul.f32 %v8542, %v8799
      %v9278 = vmul.f32 %v8543, %v8804
      %v9279 = vmul.f32 %v8544, %v8809
      %v9280 = vmul.f32 %v8545, %v8814
      %v9281 = vmul.f32 %v8546, %v8819
      %v9282 = vmul.f32 %v8547, %v8824
      %v9283 = vmul.f32 %v8548, %v8829
      %v9284 = vmul.f32 %v8549, %v8834
      %v9285 = vmul.f32 %v8550, %v8839
      %v9286 = vmul.f32 %v8551, %v8844
      %v9287 = vmul.f32 %v8552, %v8849
      %v9288 = vmul.f32 %v8553, %v8854
      %v9289 = vmul.f32 %v8554, %v8859
      %v9290 = vmul.f32 %v8555, %v8864
      %v9291 = vmul.f32 %v8556, %v8869
      %v9292 = vmul.f32 %v8557, %v8874
      %v9293 = vmul.f32 %v8558, %v8879
      %v9294 = vmul.f32 %v8559, %v8884
      %v9295 = vmul.f32 %v8560, %v8889
      %v9296 = vmul.f32 %v8561, %v8894
      %v9297 = vmul.f32 %v8562, %v8899
      %v9298 = vmul.f32 %v8563, %v8904
      %v9299 = vmul.f32 %v8564, %v8909
      %v9300 = vmul.f32 %v8565, %v8914
      %v9301 = vmul.f32 %v8566, %v8919
      %v9302 = vmul.f32 %v8567, %v8924
      %v9303 = vmul.f32 %v8568, %v8929
      %v9304 = vmul.f32 %v8569, %v8934
      %v9305 = vmul.f32 %v8570, %v8939
      %v9306 = vmul.f32 %v8571, %v8944
      %v9307 = vmul.f32 %v8572, %v8949
      %v9308 = vmul.f32 %v8573, %v8954
      %v9309 = vmul.f32 %v8574, %v8959
      %v9310 = vmul.f32 %v8575, %v8964
      %v9311 = vmul.f32 %v8576, %v8969
      %v9312 = vmul.f32 %v8577, %v8974
      %v9313 = vmul.f32 %v8578, %v8979
      %v9314 = vmul.f32 %v8579, %v8984
      %v9315 = vmul.f32 %v8580, %v8989
      %v9316 = vmul.f32 %v8581, %v8994
      %v9317 = vmul.f32 %v8582, %v8999
      %v9318 = vmul.f32 %v8583, %v9004
      %v9319 = vmul.f32 %v8584, %v9009
      %v9320 = vmul.f32 %v8585, %v9014
      %v9321 = vmul.f32 %v8586, %v9019
      %v9322 = vmul.f32 %v8587, %v9024
      %v9323 = vmul.f32 %v8588, %v9029
      %v9324 = vmul.f32 %v8589, %v9034
      %v9325 = vmul.f32 %v8590, %v9039
      %v9326 = vmul.f32 %v8591, %v9044
      %v9327 = vmul.f32 %v8592, %v9049
      %v9328 = vmul.f32 %v8593, %v9054
      %v9329 = vmul.f32 %v8594, %v9059
      %v9330 = vmul.f32 %v8595, %v9064
      %v9331 = vmul.f32 %v8596, %v9069
      %v9332 = vmul.f32 %v8597, %v9074
      %v9333 = vmul.f32 %v8598, %v9079
      %v9334 = vmul.f32 %v8599, %v9084
      %v9335 = vmul.f32 %v8600, %v9089
      %v9336 = vmul.f32 %v8601, %v9094
      %v9337 = vmul.f32 %v8602, %v9099
      %v9338 = vmul.f32 %v8603, %v9104
      %v9339 = vmul.f32 %v8604, %v9109
      %v9340 = vmul.f32 %v8605, %v9114
      %v9341 = vmul.f32 %v8606, %v9119
      %v9342 = vmul.f32 %v8607, %v9124
      %v9343 = vmul.f32 %v8608, %v9129
      %v9344 = vmul.f32 %v8609, %v9134
      %v9345 = vmul.f32 %v8610, %v9139
      %v9346 = vmul.f32 %v8611, %v9144
      %v9347 = vmul.f32 %v8612, %v9149
      %v9348 = vmul.f32 %v8613, %v9154
      %v9349 = vmul.f32 %v8614, %v9159
      %v9350 = vmul.f32 %v8615, %v9164
      %v9351 = vmul.f32 %v8616, %v9169
      %v9352 = vmul.f32 %v8617, %v9174
      %v9353 = vmul.f32 %v8618, %v9179
      %v9354 = vmul.f32 %v8619, %v9184
      %v9355 = vmul.f32 %v8620, %v9189
      %v9356 = vmul.f32 %v8621, %v9194
      %v9357 = vmul.f32 %v8622, %v9199
      %v9358 = vmul.f32 %v8623, %v9204
      %v9359 = vmul.f32 %v8624, %v9209
      %v9360 = vmul.f32 %v8625, %v9214
      %v9361 = vmul.f32 %v8626, %v9219
      %v9362 = vmul.f32 %v8627, %v9224
      %v9363 = vmul.f32 %v8628, %v9229
      %v9364 = vmul.f32 %v8629, %v9234
      %v9365 = vmul.f32 %v8630, %v9239
      %v9366 = vmul.f32 %v8631, %v9244
      %v9367 = vmul.f32 %v8632, %v9249
      %v9368 = vmul.f32 %v8633, %v9254
      %v9369 = vmul.f32 %v8634, %v9259
      %v9370 = vmul.f32 %v8635, %v9264
      %vm9371 = vcmask 130048
      %9372 = vst.msk [vmem:[#allocation3] sm:$0xff] %vm9371, %v9266
      %9373 = vst.msk [vmem:[#allocation3 + $0x8] sm:$0xff] %vm9371, %v9267
      %9374 = vst.msk [vmem:[#allocation3 + $0x10] sm:$0xff] %vm9371, %v9268
      %9375 = vst.msk [vmem:[#allocation3 + $0x18] sm:$0xff] %vm9371, %v9269
      %9376 = vst.msk [vmem:[#allocation3 + $0x20] sm:$0xff] %vm9371, %v9270
      %9377 = vst.msk [vmem:[#allocation3 + $0x28] sm:$0xff] %vm9371, %v9271
      %9378 = vst.msk [vmem:[#allocation3 + $0x30] sm:$0xff] %vm9371, %v9272
      %9379 = vst.msk [vmem:[#allocation3 + $0x38] sm:$0xff] %vm9371, %v9273
      %9380 = vst.msk [vmem:[#allocation3 + $0x40] sm:$0xff] %vm9371, %v9274
      %9381 = vst.msk [vmem:[#allocation3 + $0x48] sm:$0xff] %vm9371, %v9275
      %9382 = vst.msk [vmem:[#allocation3 + $0x50] sm:$0xff] %vm9371, %v9276
      %9383 = vst.msk [vmem:[#allocation3 + $0x58] sm:$0xff] %vm9371, %v9277
      %9384 = vst.msk [vmem:[#allocation3 + $0x60] sm:$0xff] %vm9371, %v9278
      %9385 = vst.msk [vmem:[#allocation3 + $0x68] sm:$0xff] %vm9371, %v9279
      %9386 = vst.msk [vmem:[#allocation3 + $0x70] sm:$0xff] %vm9371, %v9280
      %9387 = vst.msk [vmem:[#allocation3 + $0x78] sm:$0xff] %vm9371, %v9281
      %9388 = vst.msk [vmem:[#allocation3 + $0x80] sm:$0xff] %vm9371, %v9282
      %9389 = vst.msk [vmem:[#allocation3 + $0x88] sm:$0xff] %vm9371, %v9283
      %9390 = vst.msk [vmem:[#allocation3 + $0x90] sm:$0xff] %vm9371, %v9284
      %9391 = vst.msk [vmem:[#allocation3 + $0x98] sm:$0xff] %vm9371, %v9285
      %9392 = vst.msk [vmem:[#allocation3 + $0xa0] sm:$0xff] %vm9371, %v9286
      %9393 = vst.msk [vmem:[#allocation3 + $0xa8] sm:$0xff] %vm9371, %v9287
      %9394 = vst.msk [vmem:[#allocation3 + $0xb0] sm:$0xff] %vm9371, %v9288
      %9395 = vst.msk [vmem:[#allocation3 + $0xb8] sm:$0xff] %vm9371, %v9289
      %9396 = vst.msk [vmem:[#allocation3 + $0xc0] sm:$0xff] %vm9371, %v9290
      %9397 = vst.msk [vmem:[#allocation3 + $0xc8] sm:$0xff] %vm9371, %v9291
      %9398 = vst.msk [vmem:[#allocation3 + $0xd0] sm:$0xff] %vm9371, %v9292
      %9399 = vst.msk [vmem:[#allocation3 + $0xd8] sm:$0xff] %vm9371, %v9293
      %9400 = vst.msk [vmem:[#allocation3 + $0xe0] sm:$0xff] %vm9371, %v9294
      %9401 = vst.msk [vmem:[#allocation3 + $0xe8] sm:$0xff] %vm9371, %v9295
      %9402 = vst.msk [vmem:[#allocation3 + $0xf0] sm:$0xff] %vm9371, %v9296
      %9403 = vst.msk [vmem:[#allocation3 + $0xf8] sm:$0xff] %vm9371, %v9297
      %9404 = vst.msk [vmem:[#allocation3 + $0x100] sm:$0xff] %vm9371, %v9298
      %9405 = vst.msk [vmem:[#allocation3 + $0x108] sm:$0xff] %vm9371, %v9299
      %9406 = vst.msk [vmem:[#allocation3 + $0x110] sm:$0xff] %vm9371, %v9300
      %9407 = vst.msk [vmem:[#allocation3 + $0x118] sm:$0xff] %vm9371, %v9301
      %9408 = vst.msk [vmem:[#allocation3 + $0x120] sm:$0xff] %vm9371, %v9302
      %9409 = vst.msk [vmem:[#allocation3 + $0x128] sm:$0xff] %vm9371, %v9303
      %9410 = vst.msk [vmem:[#allocation3 + $0x130] sm:$0xff] %vm9371, %v9304
      %9411 = vst.msk [vmem:[#allocation3 + $0x138] sm:$0xff] %vm9371, %v9305
      %9412 = vst.msk [vmem:[#allocation3 + $0x140] sm:$0xff] %vm9371, %v9306
      %9413 = vst.msk [vmem:[#allocation3 + $0x148] sm:$0xff] %vm9371, %v9307
      %9414 = vst.msk [vmem:[#allocation3 + $0x150] sm:$0xff] %vm9371, %v9308
      %9415 = vst.msk [vmem:[#allocation3 + $0x158] sm:$0xff] %vm9371, %v9309
      %9416 = vst.msk [vmem:[#allocation3 + $0x160] sm:$0xff] %vm9371, %v9310
      %9417 = vst.msk [vmem:[#allocation3 + $0x168] sm:$0xff] %vm9371, %v9311
      %9418 = vst.msk [vmem:[#allocation3 + $0x170] sm:$0xff] %vm9371, %v9312
      %9419 = vst.msk [vmem:[#allocation3 + $0x178] sm:$0xff] %vm9371, %v9313
      %9420 = vst.msk [vmem:[#allocation3 + $0x180] sm:$0xff] %vm9371, %v9314
      %9421 = vst.msk [vmem:[#allocation3 + $0x188] sm:$0xff] %vm9371, %v9315
      %9422 = vst.msk [vmem:[#allocation3 + $0x190] sm:$0xff] %vm9371, %v9316
      %9423 = vst.msk [vmem:[#allocation3 + $0x198] sm:$0xff] %vm9371, %v9317
      %9424 = vst.msk [vmem:[#allocation3 + $0x1a0] sm:$0xff] %vm9371, %v9318
      %9425 = vst.msk [vmem:[#allocation3 + $0x1a8] sm:$0xff] %vm9371, %v9319
      %9426 = vst.msk [vmem:[#allocation3 + $0x1b0] sm:$0xff] %vm9371, %v9320
      %9427 = vst.msk [vmem:[#allocation3 + $0x1b8] sm:$0xff] %vm9371, %v9321
      %9428 = vst.msk [vmem:[#allocation3 + $0x1c0] sm:$0xff] %vm9371, %v9322
      %9429 = vst.msk [vmem:[#allocation3 + $0x1c8] sm:$0xff] %vm9371, %v9323
      %9430 = vst.msk [vmem:[#allocation3 + $0x1d0] sm:$0xff] %vm9371, %v9324
      %9431 = vst.msk [vmem:[#allocation3 + $0x1d8] sm:$0xff] %vm9371, %v9325
      %9432 = vst.msk [vmem:[#allocation3 + $0x1e0] sm:$0xff] %vm9371, %v9326
      %9433 = vst.msk [vmem:[#allocation3 + $0x1e8] sm:$0xff] %vm9371, %v9327
      %9434 = vst.msk [vmem:[#allocation3 + $0x1f0] sm:$0xff] %vm9371, %v9328
      %9435 = vst.msk [vmem:[#allocation3 + $0x1f8] sm:$0xff] %vm9371, %v9329
      %9436 = vst.msk [vmem:[#allocation3 + $0x200] sm:$0xff] %vm9371, %v9330
      %9437 = vst.msk [vmem:[#allocation3 + $0x208] sm:$0xff] %vm9371, %v9331
      %9438 = vst.msk [vmem:[#allocation3 + $0x210] sm:$0xff] %vm9371, %v9332
      %9439 = vst.msk [vmem:[#allocation3 + $0x218] sm:$0xff] %vm9371, %v9333
      %9440 = vst.msk [vmem:[#allocation3 + $0x220] sm:$0xff] %vm9371, %v9334
      %9441 = vst.msk [vmem:[#allocation3 + $0x228] sm:$0xff] %vm9371, %v9335
      %9442 = vst.msk [vmem:[#allocation3 + $0x230] sm:$0xff] %vm9371, %v9336
      %9443 = vst.msk [vmem:[#allocation3 + $0x238] sm:$0xff] %vm9371, %v9337
      %9444 = vst.msk [vmem:[#allocation3 + $0x240] sm:$0xff] %vm9371, %v9338
      %9445 = vst.msk [vmem:[#allocation3 + $0x248] sm:$0xff] %vm9371, %v9339
      %9446 = vst.msk [vmem:[#allocation3 + $0x250] sm:$0xff] %vm9371, %v9340
      %9447 = vst.msk [vmem:[#allocation3 + $0x258] sm:$0xff] %vm9371, %v9341
      %9448 = vst.msk [vmem:[#allocation3 + $0x260] sm:$0xff] %vm9371, %v9342
      %9449 = vst.msk [vmem:[#allocation3 + $0x268] sm:$0xff] %vm9371, %v9343
      %9450 = vst.msk [vmem:[#allocation3 + $0x270] sm:$0xff] %vm9371, %v9344
      %9451 = vst.msk [vmem:[#allocation3 + $0x278] sm:$0xff] %vm9371, %v9345
      %9452 = vst.msk [vmem:[#allocation3 + $0x280] sm:$0xff] %vm9371, %v9346
      %9453 = vst.msk [vmem:[#allocation3 + $0x288] sm:$0xff] %vm9371, %v9347
      %9454 = vst.msk [vmem:[#allocation3 + $0x290] sm:$0xff] %vm9371, %v9348
      %9455 = vst.msk [vmem:[#allocation3 + $0x298] sm:$0xff] %vm9371, %v9349
      %9456 = vst.msk [vmem:[#allocation3 + $0x2a0] sm:$0xff] %vm9371, %v9350
      %9457 = vst.msk [vmem:[#allocation3 + $0x2a8] sm:$0xff] %vm9371, %v9351
      %9458 = vst.msk [vmem:[#allocation3 + $0x2b0] sm:$0xff] %vm9371, %v9352
      %9459 = vst.msk [vmem:[#allocation3 + $0x2b8] sm:$0xff] %vm9371, %v9353
      %9460 = vst.msk [vmem:[#allocation3 + $0x2c0] sm:$0xff] %vm9371, %v9354
      %9461 = vst.msk [vmem:[#allocation3 + $0x2c8] sm:$0xff] %vm9371, %v9355
      %9462 = vst.msk [vmem:[#allocation3 + $0x2d0] sm:$0xff] %vm9371, %v9356
      %9463 = vst.msk [vmem:[#allocation3 + $0x2d8] sm:$0xff] %vm9371, %v9357
      %9464 = vst.msk [vmem:[#allocation3 + $0x2e0] sm:$0xff] %vm9371, %v9358
      %9465 = vst.msk [vmem:[#allocation3 + $0x2e8] sm:$0xff] %vm9371, %v9359
      %9466 = vst.msk [vmem:[#allocation3 + $0x2f0] sm:$0xff] %vm9371, %v9360
      %9467 = vst.msk [vmem:[#allocation3 + $0x2f8] sm:$0xff] %vm9371, %v9361
      %9468 = vst.msk [vmem:[#allocation3 + $0x300] sm:$0xff] %vm9371, %v9362
      %9469 = vst.msk [vmem:[#allocation3 + $0x308] sm:$0xff] %vm9371, %v9363
      %9470 = vst.msk [vmem:[#allocation3 + $0x310] sm:$0xff] %vm9371, %v9364
      %9471 = vst.msk [vmem:[#allocation3 + $0x318] sm:$0xff] %vm9371, %v9365
      %9472 = vst.msk [vmem:[#allocation3 + $0x320] sm:$0xff] %vm9371, %v9366
      %9473 = vst.msk [vmem:[#allocation3 + $0x328] sm:$0xff] %vm9371, %v9367
      %9474 = vst.msk [vmem:[#allocation3 + $0x330] sm:$0xff] %vm9371, %v9368
      %9475 = vst.msk [vmem:[#allocation3 + $0x338] sm:$0xff] %vm9371, %v9369
      %vm9476 = vcmask 128000
      %9477 = vst.msk [vmem:[#allocation3 + $0x340] sm:$0x3f] %vm9476, %v9370
      %9478 = vst.msk [vmem:[#allocation4] sm:$0xff] %vm9371, 0.0
      %9479 = vst.msk [vmem:[#allocation4 + $0x8] sm:$0xff] %vm9371, 0.0
      %9480 = vst.msk [vmem:[#allocation4 + $0x10] sm:$0xff] %vm9371, 0.0
      %9481 = vst.msk [vmem:[#allocation4 + $0x18] sm:$0xff] %vm9371, 0.0
      %9482 = vst.msk [vmem:[#allocation4 + $0x20] sm:$0xff] %vm9371, 0.0
      %9483 = vst.msk [vmem:[#allocation4 + $0x28] sm:$0xff] %vm9371, 0.0
      %9484 = vst.msk [vmem:[#allocation4 + $0x30] sm:$0xff] %vm9371, 0.0
      %9485 = vst.msk [vmem:[#allocation4 + $0x38] sm:$0xff] %vm9371, 0.0
      %9486 = vst.msk [vmem:[#allocation4 + $0x40] sm:$0xff] %vm9371, 0.0
      %9487 = vst.msk [vmem:[#allocation4 + $0x48] sm:$0xff] %vm9371, 0.0
      %9488 = vst.msk [vmem:[#allocation4 + $0x50] sm:$0xff] %vm9371, 0.0
      %9489 = vst.msk [vmem:[#allocation4 + $0x58] sm:$0xff] %vm9371, 0.0
      %9490 = vst.msk [vmem:[#allocation4 + $0x60] sm:$0xff] %vm9371, 0.0
      %9491 = vst.msk [vmem:[#allocation4 + $0x68] sm:$0xff] %vm9371, 0.0
      %9492 = vst.msk [vmem:[#allocation4 + $0x70] sm:$0xff] %vm9371, 0.0
      %9493 = vst.msk [vmem:[#allocation4 + $0x78] sm:$0xff] %vm9371, 0.0
      %9494 = vst.msk [vmem:[#allocation4 + $0x80] sm:$0xff] %vm9371, 0.0
      %9495 = vst.msk [vmem:[#allocation4 + $0x88] sm:$0xff] %vm9371, 0.0
      %9496 = vst.msk [vmem:[#allocation4 + $0x90] sm:$0xff] %vm9371, 0.0
      %9497 = vst.msk [vmem:[#allocation4 + $0x98] sm:$0xff] %vm9371, 0.0
      %9498 = vst.msk [vmem:[#allocation4 + $0xa0] sm:$0xff] %vm9371, 0.0
      %9499 = vst.msk [vmem:[#allocation4 + $0xa8] sm:$0xff] %vm9371, 0.0
      %9500 = vst.msk [vmem:[#allocation4 + $0xb0] sm:$0xff] %vm9371, 0.0
      %9501 = vst.msk [vmem:[#allocation4 + $0xb8] sm:$0xff] %vm9371, 0.0
      %9502 = vst.msk [vmem:[#allocation4 + $0xc0] sm:$0xff] %vm9371, 0.0
      %9503 = vst.msk [vmem:[#allocation4 + $0xc8] sm:$0xff] %vm9371, 0.0
      %9504 = vst.msk [vmem:[#allocation4 + $0xd0] sm:$0xff] %vm9371, 0.0
      %9505 = vst.msk [vmem:[#allocation4 + $0xd8] sm:$0xff] %vm9371, 0.0
      %9506 = vst.msk [vmem:[#allocation4 + $0xe0] sm:$0xff] %vm9371, 0.0
      %9507 = vst.msk [vmem:[#allocation4 + $0xe8] sm:$0xff] %vm9371, 0.0
      %9508 = vst.msk [vmem:[#allocation4 + $0xf0] sm:$0xff] %vm9371, 0.0
      %9509 = vst.msk [vmem:[#allocation4 + $0xf8] sm:$0xff] %vm9371, 0.0
      %v9510 = vld [vmem:[#allocation3] ss:$2 sm:$0xff]
      %s9511 = scalar_lea.vmem [#allocation3], 16
      %v9512 = vld [vmem:[%s9511] ss:$2 sm:$0x3f]
      %s9513 = scalar_lea.vmem [#allocation3], 1
      %v9514 = vld [vmem:[%s9513] ss:$2 sm:$0xff]
      %s9515 = scalar_lea.vmem [#allocation3], 17
      %v9516 = vld [vmem:[%s9515] ss:$2 sm:$0x3f]
      %s9517 = scalar_lea.vmem [#allocation3], 30
      %v9518 = vld [vmem:[%s9517] ss:$2 sm:$0xff]
      %s9519 = scalar_lea.vmem [#allocation3], 46
      %v9520 = vld [vmem:[%s9519] ss:$2 sm:$0x3f]
      %s9521 = scalar_lea.vmem [#allocation3], 31
      %v9522 = vld [vmem:[%s9521] ss:$2 sm:$0xff]
      %s9523 = scalar_lea.vmem [#allocation3], 47
      %v9524 = vld [vmem:[%s9523] ss:$2 sm:$0x3f]
      %v9525 = vmax.f32 %v9510, %v9514
      %v9526 = vmax.f32 %v9512, %v9516
      %v9527 = vmax.f32 %v9518, %v9522
      %v9528 = vmax.f32 %v9520, %v9524
      %v9529 = vmax.f32 %v9525, %v9527
      %v9530 = vmax.f32 %v9526, %v9528
      %9531 = vst.msk [vmem:[#allocation4 + $0x11] sm:$0xff] %vm9371, %v9529
      %9532 = vst.msk [vmem:[#allocation4 + $0x19] sm:$0x3f] %vm9476, %v9530
      %s9533 = scalar_lea.vmem [#allocation3], 60
      %v9534 = vld [vmem:[%s9533] ss:$2 sm:$0xff]
      %s9535 = scalar_lea.vmem [#allocation3], 76
      %v9536 = vld [vmem:[%s9535] ss:$2 sm:$0x3f]
      %s9537 = scalar_lea.vmem [#allocation3], 61
      %v9538 = vld [vmem:[%s9537] ss:$2 sm:$0xff]
      %s9539 = scalar_lea.vmem [#allocation3], 77
      %v9540 = vld [vmem:[%s9539] ss:$2 sm:$0x3f]
      %s9541 = scalar_lea.vmem [#allocation3], 90
      %v9542 = vld [vmem:[%s9541] ss:$2 sm:$0xff]
      %s9543 = scalar_lea.vmem [#allocation3], 106
      %v9544 = vld [vmem:[%s9543] ss:$2 sm:$0x3f]
      %s9545 = scalar_lea.vmem [#allocation3], 91
      %v9546 = vld [vmem:[%s9545] ss:$2 sm:$0xff]
      %s9547 = scalar_lea.vmem [#allocation3], 107
      %v9548 = vld [vmem:[%s9547] ss:$2 sm:$0x3f]
      %v9549 = vmax.f32 %v9534, %v9538
      %v9550 = vmax.f32 %v9536, %v9540
      %v9551 = vmax.f32 %v9542, %v9546
      %v9552 = vmax.f32 %v9544, %v9548
      %v9553 = vmax.f32 %v9549, %v9551
      %v9554 = vmax.f32 %v9550, %v9552
      %9555 = vst.msk [vmem:[#allocation4 + $0x21] sm:$0xff] %vm9371, %v9553
      %9556 = vst.msk [vmem:[#allocation4 + $0x29] sm:$0x3f] %vm9476, %v9554
      %s9557 = scalar_lea.vmem [#allocation3], 120
      %v9558 = vld [vmem:[%s9557] ss:$2 sm:$0xff]
      %s9559 = scalar_lea.vmem [#allocation3], 136
      %v9560 = vld [vmem:[%s9559] ss:$2 sm:$0x3f]
      %s9561 = scalar_lea.vmem [#allocation3], 121
      %v9562 = vld [vmem:[%s9561] ss:$2 sm:$0xff]
      %s9563 = scalar_lea.vmem [#allocation3], 137
      %v9564 = vld [vmem:[%s9563] ss:$2 sm:$0x3f]
      %s9565 = scalar_lea.vmem [#allocation3], 150
      %v9566 = vld [vmem:[%s9565] ss:$2 sm:$0xff]
      %s9567 = scalar_lea.vmem [#allocation3], 166
      %v9568 = vld [vmem:[%s9567] ss:$2 sm:$0x3f]
      %s9569 = scalar_lea.vmem [#allocation3], 151
      %v9570 = vld [vmem:[%s9569] ss:$2 sm:$0xff]
      %s9571 = scalar_lea.vmem [#allocation3], 167
      %v9572 = vld [vmem:[%s9571] ss:$2 sm:$0x3f]
      %v9573 = vmax.f32 %v9558, %v9562
      %v9574 = vmax.f32 %v9560, %v9564
      %v9575 = vmax.f32 %v9566, %v9570
      %v9576 = vmax.f32 %v9568, %v9572
      %v9577 = vmax.f32 %v9573, %v9575
      %v9578 = vmax.f32 %v9574, %v9576
      %9579 = vst.msk [vmem:[#allocation4 + $0x31] sm:$0xff] %vm9371, %v9577
      %9580 = vst.msk [vmem:[#allocation4 + $0x39] sm:$0x3f] %vm9476, %v9578
      %s9581 = scalar_lea.vmem [#allocation3], 180
      %v9582 = vld [vmem:[%s9581] ss:$2 sm:$0xff]
      %s9583 = scalar_lea.vmem [#allocation3], 196
      %v9584 = vld [vmem:[%s9583] ss:$2 sm:$0x3f]
      %s9585 = scalar_lea.vmem [#allocation3], 181
      %v9586 = vld [vmem:[%s9585] ss:$2 sm:$0xff]
      %s9587 = scalar_lea.vmem [#allocation3], 197
      %v9588 = vld [vmem:[%s9587] ss:$2 sm:$0x3f]
      %s9589 = scalar_lea.vmem [#allocation3], 210
      %v9590 = vld [vmem:[%s9589] ss:$2 sm:$0xff]
      %s9591 = scalar_lea.vmem [#allocation3], 226
      %v9592 = vld [vmem:[%s9591] ss:$2 sm:$0x3f]
      %s9593 = scalar_lea.vmem [#allocation3], 211
      %v9594 = vld [vmem:[%s9593] ss:$2 sm:$0xff]
      %s9595 = scalar_lea.vmem [#allocation3], 227
      %v9596 = vld [vmem:[%s9595] ss:$2 sm:$0x3f]
      %v9597 = vmax.f32 %v9582, %v9586
      %v9598 = vmax.f32 %v9584, %v9588
      %v9599 = vmax.f32 %v9590, %v9594
      %v9600 = vmax.f32 %v9592, %v9596
      %v9601 = vmax.f32 %v9597, %v9599
      %v9602 = vmax.f32 %v9598, %v9600
      %9603 = vst.msk [vmem:[#allocation4 + $0x41] sm:$0xff] %vm9371, %v9601
      %9604 = vst.msk [vmem:[#allocation4 + $0x49] sm:$0x3f] %vm9476, %v9602
      %s9605 = scalar_lea.vmem [#allocation3], 240
      %v9606 = vld [vmem:[%s9605] ss:$2 sm:$0xff]
      %s9607 = scalar_lea.vmem [#allocation3], 256
      %v9608 = vld [vmem:[%s9607] ss:$2 sm:$0x3f]
      %s9609 = scalar_lea.vmem [#allocation3], 241
      %v9610 = vld [vmem:[%s9609] ss:$2 sm:$0xff]
      %s9611 = scalar_lea.vmem [#allocation3], 257
      %v9612 = vld [vmem:[%s9611] ss:$2 sm:$0x3f]
      %s9613 = scalar_lea.vmem [#allocation3], 270
      %v9614 = vld [vmem:[%s9613] ss:$2 sm:$0xff]
      %s9615 = scalar_lea.vmem [#allocation3], 286
      %v9616 = vld [vmem:[%s9615] ss:$2 sm:$0x3f]
      %s9617 = scalar_lea.vmem [#allocation3], 271
      %v9618 = vld [vmem:[%s9617] ss:$2 sm:$0xff]
      %s9619 = scalar_lea.vmem [#allocation3], 287
      %v9620 = vld [vmem:[%s9619] ss:$2 sm:$0x3f]
      %v9621 = vmax.f32 %v9606, %v9610
      %v9622 = vmax.f32 %v9608, %v9612
      %v9623 = vmax.f32 %v9614, %v9618
      %v9624 = vmax.f32 %v9616, %v9620
      %v9625 = vmax.f32 %v9621, %v9623
      %v9626 = vmax.f32 %v9622, %v9624
      %9627 = vst.msk [vmem:[#allocation4 + $0x51] sm:$0xff] %vm9371, %v9625
      %9628 = vst.msk [vmem:[#allocation4 + $0x59] sm:$0x3f] %vm9476, %v9626
      %s9629 = scalar_lea.vmem [#allocation3], 300
      %v9630 = vld [vmem:[%s9629] ss:$2 sm:$0xff]
      %s9631 = scalar_lea.vmem [#allocation3], 316
      %v9632 = vld [vmem:[%s9631] ss:$2 sm:$0x3f]
      %s9633 = scalar_lea.vmem [#allocation3], 301
      %v9634 = vld [vmem:[%s9633] ss:$2 sm:$0xff]
      %s9635 = scalar_lea.vmem [#allocation3], 317
      %v9636 = vld [vmem:[%s9635] ss:$2 sm:$0x3f]
      %s9637 = scalar_lea.vmem [#allocation3], 330
      %v9638 = vld [vmem:[%s9637] ss:$2 sm:$0xff]
      %s9639 = scalar_lea.vmem [#allocation3], 346
      %v9640 = vld [vmem:[%s9639] ss:$2 sm:$0x3f]
      %s9641 = scalar_lea.vmem [#allocation3], 331
      %v9642 = vld [vmem:[%s9641] ss:$2 sm:$0xff]
      %s9643 = scalar_lea.vmem [#allocation3], 347
      %v9644 = vld [vmem:[%s9643] ss:$2 sm:$0x3f]
      %v9645 = vmax.f32 %v9630, %v9634
      %v9646 = vmax.f32 %v9632, %v9636
      %v9647 = vmax.f32 %v9638, %v9642
      %v9648 = vmax.f32 %v9640, %v9644
      %v9649 = vmax.f32 %v9645, %v9647
      %v9650 = vmax.f32 %v9646, %v9648
      %9651 = vst.msk [vmem:[#allocation4 + $0x61] sm:$0xff] %vm9371, %v9649
      %9652 = vst.msk [vmem:[#allocation4 + $0x69] sm:$0x3f] %vm9476, %v9650
      %s9653 = scalar_lea.vmem [#allocation3], 360
      %v9654 = vld [vmem:[%s9653] ss:$2 sm:$0xff]
      %s9655 = scalar_lea.vmem [#allocation3], 376
      %v9656 = vld [vmem:[%s9655] ss:$2 sm:$0x3f]
      %s9657 = scalar_lea.vmem [#allocation3], 361
      %v9658 = vld [vmem:[%s9657] ss:$2 sm:$0xff]
      %s9659 = scalar_lea.vmem [#allocation3], 377
      %v9660 = vld [vmem:[%s9659] ss:$2 sm:$0x3f]
      %s9661 = scalar_lea.vmem [#allocation3], 390
      %v9662 = vld [vmem:[%s9661] ss:$2 sm:$0xff]
      %s9663 = scalar_lea.vmem [#allocation3], 406
      %v9664 = vld [vmem:[%s9663] ss:$2 sm:$0x3f]
      %s9665 = scalar_lea.vmem [#allocation3], 391
      %v9666 = vld [vmem:[%s9665] ss:$2 sm:$0xff]
      %s9667 = scalar_lea.vmem [#allocation3], 407
      %v9668 = vld [vmem:[%s9667] ss:$2 sm:$0x3f]
      %v9669 = vmax.f32 %v9654, %v9658
      %v9670 = vmax.f32 %v9656, %v9660
      %v9671 = vmax.f32 %v9662, %v9666
      %v9672 = vmax.f32 %v9664, %v9668
      %v9673 = vmax.f32 %v9669, %v9671
      %v9674 = vmax.f32 %v9670, %v9672
      %9675 = vst.msk [vmem:[#allocation4 + $0x71] sm:$0xff] %vm9371, %v9673
      %9676 = vst.msk [vmem:[#allocation4 + $0x79] sm:$0x3f] %vm9476, %v9674
      %s9677 = scalar_lea.vmem [#allocation3], 420
      %v9678 = vld [vmem:[%s9677] ss:$2 sm:$0xff]
      %s9679 = scalar_lea.vmem [#allocation3], 436
      %v9680 = vld [vmem:[%s9679] ss:$2 sm:$0x3f]
      %s9681 = scalar_lea.vmem [#allocation3], 421
      %v9682 = vld [vmem:[%s9681] ss:$2 sm:$0xff]
      %s9683 = scalar_lea.vmem [#allocation3], 437
      %v9684 = vld [vmem:[%s9683] ss:$2 sm:$0x3f]
      %s9685 = scalar_lea.vmem [#allocation3], 450
      %v9686 = vld [vmem:[%s9685] ss:$2 sm:$0xff]
      %s9687 = scalar_lea.vmem [#allocation3], 466
      %v9688 = vld [vmem:[%s9687] ss:$2 sm:$0x3f]
      %s9689 = scalar_lea.vmem [#allocation3], 451
      %v9690 = vld [vmem:[%s9689] ss:$2 sm:$0xff]
      %s9691 = scalar_lea.vmem [#allocation3], 467
      %v9692 = vld [vmem:[%s9691] ss:$2 sm:$0x3f]
      %v9693 = vmax.f32 %v9678, %v9682
      %v9694 = vmax.f32 %v9680, %v9684
      %v9695 = vmax.f32 %v9686, %v9690
      %v9696 = vmax.f32 %v9688, %v9692
      %v9697 = vmax.f32 %v9693, %v9695
      %v9698 = vmax.f32 %v9694, %v9696
      %9699 = vst.msk [vmem:[#allocation4 + $0x81] sm:$0xff] %vm9371, %v9697
      %9700 = vst.msk [vmem:[#allocation4 + $0x89] sm:$0x3f] %vm9476, %v9698
      %s9701 = scalar_lea.vmem [#allocation3], 480
      %v9702 = vld [vmem:[%s9701] ss:$2 sm:$0xff]
      %s9703 = scalar_lea.vmem [#allocation3], 496
      %v9704 = vld [vmem:[%s9703] ss:$2 sm:$0x3f]
      %s9705 = scalar_lea.vmem [#allocation3], 481
      %v9706 = vld [vmem:[%s9705] ss:$2 sm:$0xff]
      %s9707 = scalar_lea.vmem [#allocation3], 497
      %v9708 = vld [vmem:[%s9707] ss:$2 sm:$0x3f]
      %s9709 = scalar_lea.vmem [#allocation3], 510
      %v9710 = vld [vmem:[%s9709] ss:$2 sm:$0xff]
      %s9711 = scalar_lea.vmem [#allocation3], 526
      %v9712 = vld [vmem:[%s9711] ss:$2 sm:$0x3f]
      %s9713 = scalar_lea.vmem [#allocation3], 511
      %v9714 = vld [vmem:[%s9713] ss:$2 sm:$0xff]
      %s9715 = scalar_lea.vmem [#allocation3], 527
      %v9716 = vld [vmem:[%s9715] ss:$2 sm:$0x3f]
      %v9717 = vmax.f32 %v9702, %v9706
      %v9718 = vmax.f32 %v9704, %v9708
      %v9719 = vmax.f32 %v9710, %v9714
      %v9720 = vmax.f32 %v9712, %v9716
      %v9721 = vmax.f32 %v9717, %v9719
      %v9722 = vmax.f32 %v9718, %v9720
      %9723 = vst.msk [vmem:[#allocation4 + $0x91] sm:$0xff] %vm9371, %v9721
      %9724 = vst.msk [vmem:[#allocation4 + $0x99] sm:$0x3f] %vm9476, %v9722
      %s9725 = scalar_lea.vmem [#allocation3], 540
      %v9726 = vld [vmem:[%s9725] ss:$2 sm:$0xff]
      %s9727 = scalar_lea.vmem [#allocation3], 556
      %v9728 = vld [vmem:[%s9727] ss:$2 sm:$0x3f]
      %s9729 = scalar_lea.vmem [#allocation3], 541
      %v9730 = vld [vmem:[%s9729] ss:$2 sm:$0xff]
      %s9731 = scalar_lea.vmem [#allocation3], 557
      %v9732 = vld [vmem:[%s9731] ss:$2 sm:$0x3f]
      %s9733 = scalar_lea.vmem [#allocation3], 570
      %v9734 = vld [vmem:[%s9733] ss:$2 sm:$0xff]
      %s9735 = scalar_lea.vmem [#allocation3], 586
      %v9736 = vld [vmem:[%s9735] ss:$2 sm:$0x3f]
      %s9737 = scalar_lea.vmem [#allocation3], 571
      %v9738 = vld [vmem:[%s9737] ss:$2 sm:$0xff]
      %s9739 = scalar_lea.vmem [#allocation3], 587
      %v9740 = vld [vmem:[%s9739] ss:$2 sm:$0x3f]
      %v9741 = vmax.f32 %v9726, %v9730
      %v9742 = vmax.f32 %v9728, %v9732
      %v9743 = vmax.f32 %v9734, %v9738
      %v9744 = vmax.f32 %v9736, %v9740
      %v9745 = vmax.f32 %v9741, %v9743
      %v9746 = vmax.f32 %v9742, %v9744
      %9747 = vst.msk [vmem:[#allocation4 + $0xa1] sm:$0xff] %vm9371, %v9745
      %9748 = vst.msk [vmem:[#allocation4 + $0xa9] sm:$0x3f] %vm9476, %v9746
      %s9749 = scalar_lea.vmem [#allocation3], 600
      %v9750 = vld [vmem:[%s9749] ss:$2 sm:$0xff]
      %s9751 = scalar_lea.vmem [#allocation3], 616
      %v9752 = vld [vmem:[%s9751] ss:$2 sm:$0x3f]
      %s9753 = scalar_lea.vmem [#allocation3], 601
      %v9754 = vld [vmem:[%s9753] ss:$2 sm:$0xff]
      %s9755 = scalar_lea.vmem [#allocation3], 617
      %v9756 = vld [vmem:[%s9755] ss:$2 sm:$0x3f]
      %s9757 = scalar_lea.vmem [#allocation3], 630
      %v9758 = vld [vmem:[%s9757] ss:$2 sm:$0xff]
      %s9759 = scalar_lea.vmem [#allocation3], 646
      %v9760 = vld [vmem:[%s9759] ss:$2 sm:$0x3f]
      %s9761 = scalar_lea.vmem [#allocation3], 631
      %v9762 = vld [vmem:[%s9761] ss:$2 sm:$0xff]
      %s9763 = scalar_lea.vmem [#allocation3], 647
      %v9764 = vld [vmem:[%s9763] ss:$2 sm:$0x3f]
      %v9765 = vmax.f32 %v9750, %v9754
      %v9766 = vmax.f32 %v9752, %v9756
      %v9767 = vmax.f32 %v9758, %v9762
      %v9768 = vmax.f32 %v9760, %v9764
      %v9769 = vmax.f32 %v9765, %v9767
      %v9770 = vmax.f32 %v9766, %v9768
      %9771 = vst.msk [vmem:[#allocation4 + $0xb1] sm:$0xff] %vm9371, %v9769
      %9772 = vst.msk [vmem:[#allocation4 + $0xb9] sm:$0x3f] %vm9476, %v9770
      %s9773 = scalar_lea.vmem [#allocation3], 660
      %v9774 = vld [vmem:[%s9773] ss:$2 sm:$0xff]
      %s9775 = scalar_lea.vmem [#allocation3], 676
      %v9776 = vld [vmem:[%s9775] ss:$2 sm:$0x3f]
      %s9777 = scalar_lea.vmem [#allocation3], 661
      %v9778 = vld [vmem:[%s9777] ss:$2 sm:$0xff]
      %s9779 = scalar_lea.vmem [#allocation3], 677
      %v9780 = vld [vmem:[%s9779] ss:$2 sm:$0x3f]
      %s9781 = scalar_lea.vmem [#allocation3], 690
      %v9782 = vld [vmem:[%s9781] ss:$2 sm:$0xff]
      %s9783 = scalar_lea.vmem [#allocation3], 706
      %v9784 = vld [vmem:[%s9783] ss:$2 sm:$0x3f]
      %s9785 = scalar_lea.vmem [#allocation3], 691
      %v9786 = vld [vmem:[%s9785] ss:$2 sm:$0xff]
      %s9787 = scalar_lea.vmem [#allocation3], 707
      %v9788 = vld [vmem:[%s9787] ss:$2 sm:$0x3f]
      %v9789 = vmax.f32 %v9774, %v9778
      %v9790 = vmax.f32 %v9776, %v9780
      %v9791 = vmax.f32 %v9782, %v9786
      %v9792 = vmax.f32 %v9784, %v9788
      %v9793 = vmax.f32 %v9789, %v9791
      %v9794 = vmax.f32 %v9790, %v9792
      %9795 = vst.msk [vmem:[#allocation4 + $0xc1] sm:$0xff] %vm9371, %v9793
      %9796 = vst.msk [vmem:[#allocation4 + $0xc9] sm:$0x3f] %vm9476, %v9794
      %s9797 = scalar_lea.vmem [#allocation3], 720
      %v9798 = vld [vmem:[%s9797] ss:$2 sm:$0xff]
      %s9799 = scalar_lea.vmem [#allocation3], 736
      %v9800 = vld [vmem:[%s9799] ss:$2 sm:$0x3f]
      %s9801 = scalar_lea.vmem [#allocation3], 721
      %v9802 = vld [vmem:[%s9801] ss:$2 sm:$0xff]
      %s9803 = scalar_lea.vmem [#allocation3], 737
      %v9804 = vld [vmem:[%s9803] ss:$2 sm:$0x3f]
      %s9805 = scalar_lea.vmem [#allocation3], 750
      %v9806 = vld [vmem:[%s9805] ss:$2 sm:$0xff]
      %s9807 = scalar_lea.vmem [#allocation3], 766
      %v9808 = vld [vmem:[%s9807] ss:$2 sm:$0x3f]
      %s9809 = scalar_lea.vmem [#allocation3], 751
      %v9810 = vld [vmem:[%s9809] ss:$2 sm:$0xff]
      %s9811 = scalar_lea.vmem [#allocation3], 767
      %v9812 = vld [vmem:[%s9811] ss:$2 sm:$0x3f]
      %v9813 = vmax.f32 %v9798, %v9802
      %v9814 = vmax.f32 %v9800, %v9804
      %v9815 = vmax.f32 %v9806, %v9810
      %v9816 = vmax.f32 %v9808, %v9812
      %v9817 = vmax.f32 %v9813, %v9815
      %v9818 = vmax.f32 %v9814, %v9816
      %9819 = vst.msk [vmem:[#allocation4 + $0xd1] sm:$0xff] %vm9371, %v9817
      %9820 = vst.msk [vmem:[#allocation4 + $0xd9] sm:$0x3f] %vm9476, %v9818
      %s9821 = scalar_lea.vmem [#allocation3], 780
      %v9822 = vld [vmem:[%s9821] ss:$2 sm:$0xff]
      %s9823 = scalar_lea.vmem [#allocation3], 796
      %v9824 = vld [vmem:[%s9823] ss:$2 sm:$0x3f]
      %s9825 = scalar_lea.vmem [#allocation3], 781
      %v9826 = vld [vmem:[%s9825] ss:$2 sm:$0xff]
      %s9827 = scalar_lea.vmem [#allocation3], 797
      %v9828 = vld [vmem:[%s9827] ss:$2 sm:$0x3f]
      %s9829 = scalar_lea.vmem [#allocation3], 810
      %v9830 = vld [vmem:[%s9829] ss:$2 sm:$0xff]
      %s9831 = scalar_lea.vmem [#allocation3], 826
      %v9832 = vld [vmem:[%s9831] ss:$2 sm:$0x3f]
      %s9833 = scalar_lea.vmem [#allocation3], 811
      %v9834 = vld [vmem:[%s9833] ss:$2 sm:$0xff]
      %s9835 = scalar_lea.vmem [#allocation3], 827
      %v9836 = vld [vmem:[%s9835] ss:$2 sm:$0x3f]
      %v9837 = vmax.f32 %v9822, %v9826
      %v9838 = vmax.f32 %v9824, %v9828
      %v9839 = vmax.f32 %v9830, %v9834
      %v9840 = vmax.f32 %v9832, %v9836
      %v9841 = vmax.f32 %v9837, %v9839
      %v9842 = vmax.f32 %v9838, %v9840
      %9843 = vst.msk [vmem:[#allocation4 + $0xe1] sm:$0xff] %vm9371, %v9841
      %9844 = vst.msk [vmem:[#allocation4 + $0xe9] sm:$0x3f] %vm9476, %v9842
      %v9845 = vld [vmem:[#allocation4] sm:$0xff]
      %v9846 = vld [vmem:[#allocation4 + $0x8] sm:$0xff]
      %v9847 = vld [vmem:[#allocation4 + $0x10] sm:$0xff]
      %v9848 = vld [vmem:[#allocation4 + $0x18] sm:$0xff]
      %v9849 = vld [vmem:[#allocation4 + $0x20] sm:$0xff]
      %v9850 = vld [vmem:[#allocation4 + $0x28] sm:$0xff]
      %v9851 = vld [vmem:[#allocation4 + $0x30] sm:$0xff]
      %v9852 = vld [vmem:[#allocation4 + $0x38] sm:$0xff]
      %v9853 = vld [vmem:[#allocation4 + $0x40] sm:$0xff]
      %v9854 = vld [vmem:[#allocation4 + $0x48] sm:$0xff]
      %v9855 = vld [vmem:[#allocation4 + $0x50] sm:$0xff]
      %v9856 = vld [vmem:[#allocation4 + $0x58] sm:$0xff]
      %v9857 = vld [vmem:[#allocation4 + $0x60] sm:$0xff]
      %v9858 = vld [vmem:[#allocation4 + $0x68] sm:$0xff]
      %v9859 = vld [vmem:[#allocation4 + $0x70] sm:$0xff]
      %v9860 = vld [vmem:[#allocation4 + $0x78] sm:$0xff]
      %v9861 = vld [vmem:[#allocation4 + $0x80] sm:$0xff]
      %v9862 = vld [vmem:[#allocation4 + $0x88] sm:$0xff]
      %v9863 = vld [vmem:[#allocation4 + $0x90] sm:$0xff]
      %v9864 = vld [vmem:[#allocation4 + $0x98] sm:$0xff]
      %v9865 = vld [vmem:[#allocation4 + $0xa0] sm:$0xff]
      %v9866 = vld [vmem:[#allocation4 + $0xa8] sm:$0xff]
      %v9867 = vld [vmem:[#allocation4 + $0xb0] sm:$0xff]
      %v9868 = vld [vmem:[#allocation4 + $0xb8] sm:$0xff]
      %v9869 = vld [vmem:[#allocation4 + $0xc0] sm:$0xff]
      %v9870 = vld [vmem:[#allocation4 + $0xc8] sm:$0xff]
      %v9871 = vld [vmem:[#allocation4 + $0xd0] sm:$0xff]
      %v9872 = vld [vmem:[#allocation4 + $0xd8] sm:$0xff]
      %v9873 = vld [vmem:[#allocation4 + $0xe0] sm:$0xff]
      %v9874 = vld [vmem:[#allocation4 + $0xe8] sm:$0xff]
      %v9875 = vld [vmem:[#allocation4 + $0xf0] sm:$0xff]
      %v9876 = vld [vmem:[#allocation4 + $0xf8] sm:$0xff]
      %v9877 = vpack.c.bf16 %v9846, %v9845
      %v9878 = vpack.c.bf16 %v9848, %v9847
      %v9879 = vpack.c.bf16 %v9850, %v9849
      %v9880 = vpack.c.bf16 %v9852, %v9851
      %v9881 = vpack.c.bf16 %v9854, %v9853
      %v9882 = vpack.c.bf16 %v9856, %v9855
      %v9883 = vpack.c.bf16 %v9858, %v9857
      %v9884 = vpack.c.bf16 %v9860, %v9859
      %v9885 = vpack.c.bf16 %v9862, %v9861
      %v9886 = vpack.c.bf16 %v9864, %v9863
      %v9887 = vpack.c.bf16 %v9866, %v9865
      %v9888 = vpack.c.bf16 %v9868, %v9867
      %v9889 = vpack.c.bf16 %v9870, %v9869
      %v9890 = vpack.c.bf16 %v9872, %v9871
      %v9891 = vpack.c.bf16 %v9874, %v9873
      %v9892 = vpack.c.bf16 %v9876, %v9875
      %v9909 = vunpack.c.l.b16 %v9877
      %v9910 = vunpack.c.h.b16 %v9877
      %v9911 = vunpack.c.l.b16 %v9878
      %v9912 = vunpack.c.h.b16 %v9878
      %v9913 = vunpack.c.l.b16 %v9879
      %v9914 = vunpack.c.h.b16 %v9879
      %v9915 = vunpack.c.l.b16 %v9880
      %v9916 = vunpack.c.h.b16 %v9880
      %v9917 = vunpack.c.l.b16 %v9881
      %v9918 = vunpack.c.h.b16 %v9881
      %v9919 = vunpack.c.l.b16 %v9882
      %v9920 = vunpack.c.h.b16 %v9882
      %v9921 = vunpack.c.l.b16 %v9883
      %v9922 = vunpack.c.h.b16 %v9883
      %v9923 = vunpack.c.l.b16 %v9884
      %v9924 = vunpack.c.h.b16 %v9884
      %v9925 = vunpack.c.l.b16 %v9885
      %v9926 = vunpack.c.h.b16 %v9885
      %v9927 = vunpack.c.l.b16 %v9886
      %v9928 = vunpack.c.h.b16 %v9886
      %v9929 = vunpack.c.l.b16 %v9887
      %v9930 = vunpack.c.h.b16 %v9887
      %v9931 = vunpack.c.l.b16 %v9888
      %v9932 = vunpack.c.h.b16 %v9888
      %v9933 = vunpack.c.l.b16 %v9889
      %v9934 = vunpack.c.h.b16 %v9889
      %v9935 = vunpack.c.l.b16 %v9890
      %v9936 = vunpack.c.h.b16 %v9890
      %v9937 = vunpack.c.l.b16 %v9891
      %v9938 = vunpack.c.h.b16 %v9891
      %v9939 = vunpack.c.l.b16 %v9892
      %v9940 = vunpack.c.h.b16 %v9892
      %v9941 = vpack.c.b16 %v9909, %v9909
      %v9942 = vpack.c.b16 %v9910, %v9910
      %v9943 = vpack.c.b16 %v9911, %v9911
      %v9944 = vpack.c.b16 %v9912, %v9912
      %v9945 = vpack.c.b16 %v9913, %v9913
      %v9946 = vpack.c.b16 %v9914, %v9914
      %v9947 = vpack.c.b16 %v9915, %v9915
      %v9948 = vpack.c.b16 %v9916, %v9916
      %v9949 = vpack.c.b16 %v9917, %v9917
      %v9950 = vpack.c.b16 %v9918, %v9918
      %v9951 = vpack.c.b16 %v9919, %v9919
      %v9952 = vpack.c.b16 %v9920, %v9920
      %v9953 = vpack.c.b16 %v9921, %v9921
      %v9954 = vpack.c.b16 %v9922, %v9922
      %v9955 = vpack.c.b16 %v9923, %v9923
      %v9956 = vpack.c.b16 %v9924, %v9924
      %v9957 = vpack.c.b16 %v9925, %v9925
      %v9958 = vpack.c.b16 %v9926, %v9926
      %v9959 = vpack.c.b16 %v9927, %v9927
      %v9960 = vpack.c.b16 %v9928, %v9928
      %v9961 = vpack.c.b16 %v9929, %v9929
      %v9962 = vpack.c.b16 %v9930, %v9930
      %v9963 = vpack.c.b16 %v9931, %v9931
      %v9964 = vpack.c.b16 %v9932, %v9932
      %v9965 = vpack.c.b16 %v9933, %v9933
      %v9966 = vpack.c.b16 %v9934, %v9934
      %v9967 = vpack.c.b16 %v9935, %v9935
      %v9968 = vpack.c.b16 %v9936, %v9936
      %v9969 = vpack.c.b16 %v9937, %v9937
      %v9970 = vpack.c.b16 %v9938, %v9938
      %v9971 = vpack.c.b16 %v9939, %v9939
      %v9972 = vpack.c.b16 %v9940, %v9940
      %vm10005 = vcmask 125952
      %10006 = vst.msk [vmem:[%s224] sm:$0xf] %vm10005, %v9941
      %10007 = vst.msk [vmem:[%s224 + $0x4] sm:$0xf] %vm10005, %v9942
      %10008 = vst.msk [vmem:[%s224 + $0x8] sm:$0xf] %vm10005, %v9943
      %10009 = vst.msk [vmem:[%s224 + $0xc] sm:$0xf] %vm10005, %v9944
      %10010 = vst.msk [vmem:[%s224 + $0x10] sm:$0xf] %vm10005, %v9945
      %10011 = vst.msk [vmem:[%s224 + $0x14] sm:$0xf] %vm10005, %v9946
      %10012 = vst.msk [vmem:[%s224 + $0x18] sm:$0xf] %vm10005, %v9947
      %10013 = vst.msk [vmem:[%s224 + $0x1c] sm:$0xf] %vm10005, %v9948
      %10014 = vst.msk [vmem:[%s224 + $0x20] sm:$0xf] %vm10005, %v9949
      %10015 = vst.msk [vmem:[%s224 + $0x24] sm:$0xf] %vm10005, %v9950
      %10016 = vst.msk [vmem:[%s224 + $0x28] sm:$0xf] %vm10005, %v9951
      %10017 = vst.msk [vmem:[%s224 + $0x2c] sm:$0xf] %vm10005, %v9952
      %10018 = vst.msk [vmem:[%s224 + $0x30] sm:$0xf] %vm10005, %v9953
      %10019 = vst.msk [vmem:[%s224 + $0x34] sm:$0xf] %vm10005, %v9954
      %10020 = vst.msk [vmem:[%s224 + $0x38] sm:$0xf] %vm10005, %v9955
      %10021 = vst.msk [vmem:[%s224 + $0x3c] sm:$0xf] %vm10005, %v9956
      %10022 = vst.msk [vmem:[%s224 + $0x40] sm:$0xf] %vm10005, %v9957
      %10023 = vst.msk [vmem:[%s224 + $0x44] sm:$0xf] %vm10005, %v9958
      %10024 = vst.msk [vmem:[%s224 + $0x48] sm:$0xf] %vm10005, %v9959
      %10025 = vst.msk [vmem:[%s224 + $0x4c] sm:$0xf] %vm10005, %v9960
      %10026 = vst.msk [vmem:[%s224 + $0x50] sm:$0xf] %vm10005, %v9961
      %10027 = vst.msk [vmem:[%s224 + $0x54] sm:$0xf] %vm10005, %v9962
      %10028 = vst.msk [vmem:[%s224 + $0x58] sm:$0xf] %vm10005, %v9963
      %10029 = vst.msk [vmem:[%s224 + $0x5c] sm:$0xf] %vm10005, %v9964
      %10030 = vst.msk [vmem:[%s224 + $0x60] sm:$0xf] %vm10005, %v9965
      %10031 = vst.msk [vmem:[%s224 + $0x64] sm:$0xf] %vm10005, %v9966
      %10032 = vst.msk [vmem:[%s224 + $0x68] sm:$0xf] %vm10005, %v9967
      %10033 = vst.msk [vmem:[%s224 + $0x6c] sm:$0xf] %vm10005, %v9968
      %10034 = vst.msk [vmem:[%s224 + $0x70] sm:$0xf] %vm10005, %v9969
      %10035 = vst.msk [vmem:[%s224 + $0x74] sm:$0xf] %vm10005, %v9970
      %10036 = vst.msk [vmem:[%s224 + $0x78] sm:$0xf] %vm10005, %v9971
      %10037 = vst.msk [vmem:[%s224 + $0x7c] sm:$0xf] %vm10005, %v9972
      %p10038 = scmp.lt.s32.totalorder %s16, 1
      %s10039 = scalar_select %p10038, %s16, 1
      %s10040 = smul.addr %s10039, 32
      %s10041 = smul.addr %s10040, 4
      %s10042 = scalar_lea.vmem %s5, %s10041
      // Predicated region
      $region41: #{tpu_custom_call.1} parent=39 // pred_check
        %p10043 = pneg %p144
      $region42: #{tpu_custom_call.1} parent=39 // pred_check_branch
        %10045 = sbr.rel (%p10043) target = $region44
      $region43: #{tpu_custom_call.1} parent=39 // pred_region
        _
      $region44: #{tpu_custom_call.1} parent=39 // pred_fallthru
        _
    $region40: #{tpu_custom_call.1} parent=5 // pred_fallthru
      _
    %p10046 = scmp.le.s32.totalorder 2, %s11
    // Predicated region
    $region45: #{tpu_custom_call.1} parent=5 // pred_check
      %p10047 = pneg %p10046
    $region46: #{tpu_custom_call.1} parent=5 // pred_check_branch
      %10049 = sbr.rel (%p10047) target = $region48
    $region47: #{tpu_custom_call.1} parent=5 // pred_region
      %s10050 = ssub.s32 %s11, 2
      // Predicated region
      $region49: #{tpu_custom_call.1} parent=47 // pred_check
        %p10051 = pneg %p150
      $region50: #{tpu_custom_call.1} parent=47 // pred_check_branch
        %10053 = sbr.rel (%p10051) target = $region52
      $region51: #{tpu_custom_call.1} parent=47 // pred_region
        %p10054 = scmp.lt.s32.totalorder %s17, 1
        %s10055 = scalar_select %p10054, %s17, 1
        %s10056 = smul.addr %s10055, 32
        %s10057 = smul.addr %s10056, 4
        %s10058 = scalar_lea.vmem %s5, %s10057
      $region52: #{tpu_custom_call.1} parent=47 // pred_fallthru
        _
    $region48: #{tpu_custom_call.1} parent=5 // pred_fallthru
      _
  $region6: #{tpu_custom_call.1} parent=0 // loop_footer
    %s15 = sadd.s32 1, %s11
  $region7: #{tpu_custom_call.1} parent=0 // loop_footer_branch
    %10 = sbr.rel target = $region3
  $region8: #{tpu_custom_call.1} parent=0 // loop_exit
    _

</llo_original>
